<compile_context>
chip_gen: v7x
topology: tpu7x:2x2x1
jax: 0.10.0
libtpu: 0.0.40
codegen_flags: <defaults>
</compile_context>

<pallas_src>
import functools

import jax
import jax.numpy as jnp
from jax.experimental import pallas as pl
from jax.experimental.pallas import tpu as pltpu


IMG = 32            # input spatial size (32x32) implied by 16*5*5 = 400 fc1 features
SEG = IMG * IMG     # lanes per image on the flattened spatial grid
KK = 5              # conv kernel size
TAPS = KK * KK
# Shifted in-kernel reads reach at most 2*((KK-1)*IMG + (KK-1)) = 264 lanes past
# the written extent (conv2 on the stride-2 grid); TAIL is that rounded up to a
# 128-lane tile.  Garbage read from a tail only ever lands in grid positions
# that are never consumed: the receptive field of every consumed output stays
# inside its own image.  Keep this assert in sync if IMG/KK/strides change.
TAIL = 384
assert TAIL >= 2 * ((KK - 1) * IMG + (KK - 1)) and TAIL % 128 == 0


# ------------------------------ fused kernel -------------------------------

def _lenet_kernel(x_ref, wconv_ref, f1w_ref, wfc23_ref, bias_ref, o_ref,
                  x_s, y1_s, p1_s, y2_s, p2_s, col_s, xt_s, *, nimg):
    BL = nimg * SEG

    # Stage the input block into scratch that carries a zero lane tail so every
    # shifted conv/pool read below stays in bounds.  Zero ONLY the tails: the
    # [0, BL) body of every scratch buffer is fully overwritten each block
    # (tails are re-zeroed per block so megacore grid sharding stays safe).
    x_s[:, 0:BL] = x_ref[...]
    for buf in (x_s, y1_s, p1_s, y2_s):
        buf[:, BL:] = jnp.zeros((buf.shape[0], TAIL), jnp.float32)

    def conv5x5_relu(src, dst, w, b, step):
        # im2col slab: sublane rows [8k, 8k+8) hold the 8 (padded) source
        # channels shifted by tap k, so one K=200 MXU matmul does the conv and
        # accumulation stays inside the MXU (no per-tap pops / VPU adds).
        for k in range(TAPS):
            d = step * ((k // KK) * IMG + (k % KK))
            col_s[8 * k:8 * (k + 1), 0:BL] = src[:, pl.ds(d, BL)]
        dst[:, 0:BL] = jnp.maximum(
            jnp.dot(w, col_s[:, 0:BL], preferred_element_type=jnp.float32) + b,
            0.0)

    def maxpool2x2(src, dst, step):
        # max over the 2x2 window whose top-left sits at each grid position
        m = src[:, pl.ds(0, BL)]
        for off in (step, IMG * step, (IMG + 1) * step):
            m = jnp.maximum(m, src[:, pl.ds(off, BL)])
        dst[:, 0:BL] = m

    conv5x5_relu(x_s, y1_s, wconv_ref[0:8, :], bias_ref[0:8, :], 1)     # 28x28 valid, stride-1 grid
    maxpool2x2(y1_s, p1_s, 1)                                           # 14x14 valid, stride-2 grid
    conv5x5_relu(p1_s, y2_s, wconv_ref[8:24, :], bias_ref[8:24, :], 2)  # 10x10 valid, stride-2 grid
    maxpool2x2(y2_s, p2_s, 2)                                           #  5x5 valid, stride-4 grid

    # Flatten the 16x5x5 valid values of every image in the block into
    # xT [400, nimg] with 25 batch-wide slab copies (lane stride SEG picks the
    # same grid position out of every image), ordered (spatial, channel) to
    # match the fc1 column permutation done once in prepare_params.
    for s in range(TAPS):
        off = 4 * IMG * (s // KK) + 4 * (s % KK)      # stride-4 grid position of (qi, qj)
        if nimg == 1:
            xt_s[16 * s:16 * (s + 1), 0:1] = p2_s[:, pl.ds(off, 1)]
        else:
            xt_s[16 * s:16 * (s + 1), 0:nimg] = p2_s[:, pl.ds(off, nimg, stride=SEG)]

    # Fused MLP head, computed transposed: [features, nimg].
    h = jnp.dot(f1w_ref[...], xt_s[...], preferred_element_type=jnp.float32)
    h = jnp.maximum(h + bias_ref[24:144, :], 0.0)                       # [120, nimg]
    h = jnp.dot(wfc23_ref[0:84, :], h, preferred_element_type=jnp.float32)
    h = jnp.maximum(h + bias_ref[144:228, :], 0.0)                      # [84, nimg]
    logits = (jnp.dot(wfc23_ref[88:98, 0:84], h, preferred_element_type=jnp.float32)
              + bias_ref[232:242, :])                                   # [10, nimg]
    o_ref[0] = logits.astype(o_ref.dtype)


# ------------------------------ forward wrapper -----------------------------

def net_forward(x, kp, imgs_per_block=1):
    """Forward pass of `Net` for NCHW float32 x of shape [B, 3, 32, 32]."""
    # TODO(synk): PyTorch forward begins with `print(x)` (debug side effect only); omitted.
    B = x.shape[0]
    nimg = min(imgs_per_block, B)
    assert B % nimg == 0, "batch must divide evenly into image blocks"
    nblk = B // nimg
    BL = nimg * SEG

    # Per-forward glue: flatten NCHW to the kernel layout [channels(pad 8), B*H*W].
    x2d = jnp.pad(x.transpose(1, 0, 2, 3).reshape(3, B * SEG), ((0, 5), (0, 0)))

    const = lambda i: (0, 0)
    out3 = pl.pallas_call(
        functools.partial(_lenet_kernel, nimg=nimg),
        out_shape=jax.ShapeDtypeStruct((nblk, 10, nimg), jnp.float32),
        grid=(nblk,),
        in_specs=[
            pl.BlockSpec((8, BL), lambda i: (0, i)),    # image block [8, nimg*1024]
            pl.BlockSpec((24, 200), const),             # conv1 (rows 0:8) + conv2 (rows 8:24) taps
            pl.BlockSpec((120, 400), const),            # fc1 weight (columns pre-permuted)
            pl.BlockSpec((104, 120), const),            # fc2 (rows 0:84) + fc3 (rows 88:98)
            pl.BlockSpec((248, 1), const),              # all biases packed in one column
        ],
        out_specs=pl.BlockSpec((1, 10, nimg), lambda i: (i, 0, 0)),
        scratch_shapes=[
            pltpu.VMEM((8, BL + TAIL), jnp.float32),    # staged input (zero tail)
            pltpu.VMEM((8, BL + TAIL), jnp.float32),    # conv1 output (relu'd)
            pltpu.VMEM((8, BL + TAIL), jnp.float32),    # pool1 output
            pltpu.VMEM((16, BL + TAIL), jnp.float32),   # conv2 output (relu'd)
            pltpu.VMEM((16, BL), jnp.float32),          # pool2 output
            pltpu.VMEM((200, BL), jnp.float32),         # im2col slab (shared by both convs)
            pltpu.VMEM((400, nimg), jnp.float32),       # flattened features, transposed
        ],
        compiler_params=pltpu.CompilerParams(
            dimension_semantics=("parallel",),          # v7x: blocks split across both TCs
            vmem_limit_bytes=32 * 1024 * 1024),         # ~1.1 MB scratch per image in a block
    )(x2d, kp["wconv"], kp["f1w"], kp["wfc23"], kp["bias"])

    # Kernel keeps batch on the lane axis; tiny layout fixup back to [B, 10].
    return out3.transpose(0, 2, 1).reshape(B, 10)


# ------------------------------ params --------------------------------------

def _uniform(key, shape, bound):
    return jax.random.uniform(key, shape, jnp.float32, -bound, bound)


def init_params(key):
    """PyTorch-layout parameters with PyTorch-default init U(-1/sqrt(fan_in), +)."""
    ks = jax.random.split(key, 10)
    p = {}
    p["conv1_w"] = _uniform(ks[0], (6, 3, 5, 5), 1.0 / (3 * 25) ** 0.5)
    p["conv1_b"] = _uniform(ks[1], (6,), 1.0 / (3 * 25) ** 0.5)
    p["conv2_w"] = _uniform(ks[2], (16, 6, 5, 5), 1.0 / (6 * 25) ** 0.5)
    p["conv2_b"] = _uniform(ks[3], (16,), 1.0 / (6 * 25) ** 0.5)
    p["fc1_w"] = _uniform(ks[4], (120, 400), 1.0 / 400 ** 0.5)   # PyTorch [out, in]
    p["fc1_b"] = _uniform(ks[5], (120,), 1.0 / 400 ** 0.5)
    p["fc2_w"] = _uniform(ks[6], (84, 120), 1.0 / 120 ** 0.5)
    p["fc2_b"] = _uniform(ks[7], (84,), 1.0 / 120 ** 0.5)
    p["fc3_w"] = _uniform(ks[8], (10, 84), 1.0 / 84 ** 0.5)
    p["fc3_b"] = _uniform(ks[9], (10,), 1.0 / 84 ** 0.5)
    return p


def prepare_params(p):
    """One-time re-layout of PyTorch-layout params into kernel-friendly slabs."""
    # Conv weights -> [out, 200] with column = 8*(kh*5 + kw) + in_channel,
    # matching the im2col slab row layout; out/in channels zero-padded to 8.
    w1 = jnp.transpose(p["conv1_w"], (0, 2, 3, 1))                     # [6,5,5,3]
    w1 = jnp.pad(w1, ((0, 2), (0, 0), (0, 0), (0, 5))).reshape(8, 200)
    w2 = jnp.transpose(p["conv2_w"], (0, 2, 3, 1))                     # [16,5,5,6]
    w2 = jnp.pad(w2, ((0, 0), (0, 0), (0, 0), (0, 2))).reshape(16, 200)
    # fc1: PyTorch flattens (c, qi, qj); the kernel flattens (qi, qj, c) ->
    # permute the fc1 weight columns once to match.
    f1 = p["fc1_w"].reshape(120, 16, 25).transpose(0, 2, 1).reshape(120, 400)
    # fc2 + fc3 packed into one slab (fc3 at an 8-aligned sublane offset 88).
    f3 = jnp.pad(p["fc3_w"], ((0, 0), (0, 36)))                        # [10, 120]
    wfc23 = jnp.concatenate(
        [p["fc2_w"], jnp.zeros((4, 120), jnp.float32), f3,
         jnp.zeros((6, 120), jnp.float32)], axis=0)                    # [104, 120]
    # All biases in one column: conv1 @0, conv2 @8, fc1 @24, fc2 @144, fc3 @232.
    bias = jnp.concatenate(
        [jnp.pad(p["conv1_b"], (0, 2)), p["conv2_b"], p["fc1_b"], p["fc2_b"],
         jnp.zeros((4,), jnp.float32), p["fc3_b"],
         jnp.zeros((6,), jnp.float32)]).reshape(-1, 1)                 # [248, 1]
    return {"wconv": jnp.concatenate([w1, w2], axis=0),                # [24, 200]
            "f1w": f1, "wfc23": wfc23, "bias": bias}


if __name__ == "__main__":
    key = jax.random.PRNGKey(0)
    kx, kp_key = jax.random.split(key)
    # forward implies 3x32x32 inputs (conv/pool chain -> 16*5*5 = 400 features)
    x = jax.random.normal(kx, (2, 3, 32, 32), dtype=jnp.float32)
    params = init_params(kp_key)
    kparams = prepare_params(params)      # one-time weight re-layout, not per forward
    fwd = jax.jit(net_forward)
    out = fwd(x, kparams)
    jax.block_until_ready(out)
    assert out.shape == (2, 10) and out.dtype == jnp.float32
    print("KERNEL_OK")
</pallas_src>

<mosaic_0001>
module attributes {stable_mosaic.version = 11 : i64} {
  func.func @_lenet_kernel(%arg0: i32, %arg1: memref<8x1024xf32, #tpu.memory_space<vmem>>, %arg2: memref<24x200xf32, #tpu.memory_space<vmem>>, %arg3: memref<120x400xf32, #tpu.memory_space<vmem>>, %arg4: memref<104x120xf32, #tpu.memory_space<vmem>>, %arg5: memref<248x1xf32, #tpu.memory_space<vmem>>, %arg6: memref<1x10x1xf32, #tpu.memory_space<vmem>>, %arg7: memref<8x1408xf32, #tpu.memory_space<vmem>>, %arg8: memref<8x1408xf32, #tpu.memory_space<vmem>>, %arg9: memref<8x1408xf32, #tpu.memory_space<vmem>>, %arg10: memref<16x1408xf32, #tpu.memory_space<vmem>>, %arg11: memref<16x1024xf32, #tpu.memory_space<vmem>>, %arg12: memref<200x1024xf32, #tpu.memory_space<vmem>>, %arg13: memref<400x1xf32, #tpu.memory_space<vmem>>) attributes {dimension_semantics = [#tpu.dimension_semantics<parallel>], iteration_bounds = array<i64: 2>, scalar_prefetch = 0 : i64, scratch_operands = 7 : i64, tpu.core_type = #tpu.core_type<tc>, window_params = [{transform_indices = @transform_0, window_bounds = array<i64: 8, 1024>}, {pipeline_mode = #tpu.pipeline_mode<synchronous>, transform_indices = @transform_1, window_bounds = array<i64: 24, 200>}, {pipeline_mode = #tpu.pipeline_mode<synchronous>, transform_indices = @transform_2, window_bounds = array<i64: 120, 400>}, {pipeline_mode = #tpu.pipeline_mode<synchronous>, transform_indices = @transform_3, window_bounds = array<i64: 104, 120>}, {pipeline_mode = #tpu.pipeline_mode<synchronous>, transform_indices = @transform_4, window_bounds = array<i64: 248, 1>}, {transform_indices = @transform_5, window_bounds = array<i64: 1, 10, 1>}]} {
    %c0 = arith.constant 0 : index
    %c0_0 = arith.constant 0 : index
    %0 = vector.load %arg1[%c0, %c0_0] : memref<8x1024xf32, #tpu.memory_space<vmem>>, vector<8x1024xf32>
    %c0_1 = arith.constant 0 : index
    %c0_2 = arith.constant 0 : index
    %1 = vector.load %arg7[%c0_1, %c0_2] : memref<8x1408xf32, #tpu.memory_space<vmem>>, vector<8x1024xf32>
    tpu.vector_store %arg7[%c0_1, %c0_2], %0 {strides = array<i32>} : memref<8x1408xf32, #tpu.memory_space<vmem>>, vector<8x1024xf32>,
    %cst = arith.constant 0.000000e+00 : f32
    %2 = vector.broadcast %cst : f32 to vector<8x384xf32>
    %c0_3 = arith.constant 0 : index
    %c1024 = arith.constant 1024 : index
    %3 = vector.load %arg7[%c0_3, %c1024] : memref<8x1408xf32, #tpu.memory_space<vmem>>, vector<8x384xf32>
    tpu.vector_store %arg7[%c0_3, %c1024], %2 {strides = array<i32>} : memref<8x1408xf32, #tpu.memory_space<vmem>>, vector<8x384xf32>,
    %cst_4 = arith.constant 0.000000e+00 : f32
    %4 = vector.broadcast %cst_4 : f32 to vector<8x384xf32>
    %c0_5 = arith.constant 0 : index
    %c1024_6 = arith.constant 1024 : index
    %5 = vector.load %arg8[%c0_5, %c1024_6] : memref<8x1408xf32, #tpu.memory_space<vmem>>, vector<8x384xf32>
    tpu.vector_store %arg8[%c0_5, %c1024_6], %4 {strides = array<i32>} : memref<8x1408xf32, #tpu.memory_space<vmem>>, vector<8x384xf32>,
    %cst_7 = arith.constant 0.000000e+00 : f32
    %6 = vector.broadcast %cst_7 : f32 to vector<8x384xf32>
    %c0_8 = arith.constant 0 : index
    %c1024_9 = arith.constant 1024 : index
    %7 = vector.load %arg9[%c0_8, %c1024_9] : memref<8x1408xf32, #tpu.memory_space<vmem>>, vector<8x384xf32>
    tpu.vector_store %arg9[%c0_8, %c1024_9], %6 {strides = array<i32>} : memref<8x1408xf32, #tpu.memory_space<vmem>>, vector<8x384xf32>,
    %cst_10 = arith.constant 0.000000e+00 : f32
    %8 = vector.broadcast %cst_10 : f32 to vector<16x384xf32>
    %c0_11 = arith.constant 0 : index
    %c1024_12 = arith.constant 1024 : index
    %9 = vector.load %arg10[%c0_11, %c1024_12] : memref<16x1408xf32, #tpu.memory_space<vmem>>, vector<16x384xf32>
    tpu.vector_store %arg10[%c0_11, %c1024_12], %8 {strides = array<i32>} : memref<16x1408xf32, #tpu.memory_space<vmem>>, vector<16x384xf32>,
    %c0_13 = arith.constant 0 : index
    %c0_14 = arith.constant 0 : index
    %10 = vector.load %arg2[%c0_13, %c0_14] : memref<24x200xf32, #tpu.memory_space<vmem>>, vector<8x200xf32>
    %c0_15 = arith.constant 0 : index
    %c0_16 = arith.constant 0 : index
    %11 = vector.load %arg5[%c0_15, %c0_16] : memref<248x1xf32, #tpu.memory_space<vmem>>, vector<8x1xf32>
    %c0_17 = arith.constant 0 : index
    %c0_18 = arith.constant 0 : index
    %12 = vector.load %arg7[%c0_17, %c0_18] : memref<8x1408xf32, #tpu.memory_space<vmem>>, vector<8x1024xf32>
    %c0_19 = arith.constant 0 : index
    %c0_20 = arith.constant 0 : index
    %13 = vector.load %arg12[%c0_19, %c0_20] : memref<200x1024xf32, #tpu.memory_space<vmem>>, vector<8x1024xf32>
    tpu.vector_store %arg12[%c0_19, %c0_20], %12 {strides = array<i32>} : memref<200x1024xf32, #tpu.memory_space<vmem>>, vector<8x1024xf32>,
    %c0_21 = arith.constant 0 : index
    %c1 = arith.constant 1 : index
    %14 = vector.load %arg7[%c0_21, %c1] : memref<8x1408xf32, #tpu.memory_space<vmem>>, vector<8x1024xf32>
    %c8 = arith.constant 8 : index
    %c0_22 = arith.constant 0 : index
    %15 = vector.load %arg12[%c8, %c0_22] : memref<200x1024xf32, #tpu.memory_space<vmem>>, vector<8x1024xf32>
    tpu.vector_store %arg12[%c8, %c0_22], %14 {strides = array<i32>} : memref<200x1024xf32, #tpu.memory_space<vmem>>, vector<8x1024xf32>,
    %c0_23 = arith.constant 0 : index
    %c2 = arith.constant 2 : index
    %16 = vector.load %arg7[%c0_23, %c2] : memref<8x1408xf32, #tpu.memory_space<vmem>>, vector<8x1024xf32>
    %c16 = arith.constant 16 : index
    %c0_24 = arith.constant 0 : index
    %17 = vector.load %arg12[%c16, %c0_24] : memref<200x1024xf32, #tpu.memory_space<vmem>>, vector<8x1024xf32>
    tpu.vector_store %arg12[%c16, %c0_24], %16 {strides = array<i32>} : memref<200x1024xf32, #tpu.memory_space<vmem>>, vector<8x1024xf32>,
    %c0_25 = arith.constant 0 : index
    %c3 = arith.constant 3 : index
    %18 = vector.load %arg7[%c0_25, %c3] : memref<8x1408xf32, #tpu.memory_space<vmem>>, vector<8x1024xf32>
    %c24 = arith.constant 24 : index
    %c0_26 = arith.constant 0 : index
    %19 = vector.load %arg12[%c24, %c0_26] : memref<200x1024xf32, #tpu.memory_space<vmem>>, vector<8x1024xf32>
    tpu.vector_store %arg12[%c24, %c0_26], %18 {strides = array<i32>} : memref<200x1024xf32, #tpu.memory_space<vmem>>, vector<8x1024xf32>,
    %c0_27 = arith.constant 0 : index
    %c4 = arith.constant 4 : index
    %20 = vector.load %arg7[%c0_27, %c4] : memref<8x1408xf32, #tpu.memory_space<vmem>>, vector<8x1024xf32>
    %c32 = arith.constant 32 : index
    %c0_28 = arith.constant 0 : index
    %21 = vector.load %arg12[%c32, %c0_28] : memref<200x1024xf32, #tpu.memory_space<vmem>>, vector<8x1024xf32>
    tpu.vector_store %arg12[%c32, %c0_28], %20 {strides = array<i32>} : memref<200x1024xf32, #tpu.memory_space<vmem>>, vector<8x1024xf32>,
    %c0_29 = arith.constant 0 : index
    %c32_30 = arith.constant 32 : index
    %22 = vector.load %arg7[%c0_29, %c32_30] : memref<8x1408xf32, #tpu.memory_space<vmem>>, vector<8x1024xf32>
    %c40 = arith.constant 40 : index
    %c0_31 = arith.constant 0 : index
    %23 = vector.load %arg12[%c40, %c0_31] : memref<200x1024xf32, #tpu.memory_space<vmem>>, vector<8x1024xf32>
    tpu.vector_store %arg12[%c40, %c0_31], %22 {strides = array<i32>} : memref<200x1024xf32, #tpu.memory_space<vmem>>, vector<8x1024xf32>,
    %c0_32 = arith.constant 0 : index
    %c33 = arith.constant 33 : index
    %24 = vector.load %arg7[%c0_32, %c33] : memref<8x1408xf32, #tpu.memory_space<vmem>>, vector<8x1024xf32>
    %c48 = arith.constant 48 : index
    %c0_33 = arith.constant 0 : index
    %25 = vector.load %arg12[%c48, %c0_33] : memref<200x1024xf32, #tpu.memory_space<vmem>>, vector<8x1024xf32>
    tpu.vector_store %arg12[%c48, %c0_33], %24 {strides = array<i32>} : memref<200x1024xf32, #tpu.memory_space<vmem>>, vector<8x1024xf32>,
    %c0_34 = arith.constant 0 : index
    %c34 = arith.constant 34 : index
    %26 = vector.load %arg7[%c0_34, %c34] : memref<8x1408xf32, #tpu.memory_space<vmem>>, vector<8x1024xf32>
    %c56 = arith.constant 56 : index
    %c0_35 = arith.constant 0 : index
    %27 = vector.load %arg12[%c56, %c0_35] : memref<200x1024xf32, #tpu.memory_space<vmem>>, vector<8x1024xf32>
    tpu.vector_store %arg12[%c56, %c0_35], %26 {strides = array<i32>} : memref<200x1024xf32, #tpu.memory_space<vmem>>, vector<8x1024xf32>,
    %c0_36 = arith.constant 0 : index
    %c35 = arith.constant 35 : index
    %28 = vector.load %arg7[%c0_36, %c35] : memref<8x1408xf32, #tpu.memory_space<vmem>>, vector<8x1024xf32>
    %c64 = arith.constant 64 : index
    %c0_37 = arith.constant 0 : index
    %29 = vector.load %arg12[%c64, %c0_37] : memref<200x1024xf32, #tpu.memory_space<vmem>>, vector<8x1024xf32>
    tpu.vector_store %arg12[%c64, %c0_37], %28 {strides = array<i32>} : memref<200x1024xf32, #tpu.memory_space<vmem>>, vector<8x1024xf32>,
    %c0_38 = arith.constant 0 : index
    %c36 = arith.constant 36 : index
    %30 = vector.load %arg7[%c0_38, %c36] : memref<8x1408xf32, #tpu.memory_space<vmem>>, vector<8x1024xf32>
    %c72 = arith.constant 72 : index
    %c0_39 = arith.constant 0 : index
    %31 = vector.load %arg12[%c72, %c0_39] : memref<200x1024xf32, #tpu.memory_space<vmem>>, vector<8x1024xf32>
    tpu.vector_store %arg12[%c72, %c0_39], %30 {strides = array<i32>} : memref<200x1024xf32, #tpu.memory_space<vmem>>, vector<8x1024xf32>,
    %c0_40 = arith.constant 0 : index
    %c64_41 = arith.constant 64 : index
    %32 = vector.load %arg7[%c0_40, %c64_41] : memref<8x1408xf32, #tpu.memory_space<vmem>>, vector<8x1024xf32>
    %c80 = arith.constant 80 : index
    %c0_42 = arith.constant 0 : index
    %33 = vector.load %arg12[%c80, %c0_42] : memref<200x1024xf32, #tpu.memory_space<vmem>>, vector<8x1024xf32>
    tpu.vector_store %arg12[%c80, %c0_42], %32 {strides = array<i32>} : memref<200x1024xf32, #tpu.memory_space<vmem>>, vector<8x1024xf32>,
    %c0_43 = arith.constant 0 : index
    %c65 = arith.constant 65 : index
    %34 = vector.load %arg7[%c0_43, %c65] : memref<8x1408xf32, #tpu.memory_space<vmem>>, vector<8x1024xf32>
    %c88 = arith.constant 88 : index
    %c0_44 = arith.constant 0 : index
    %35 = vector.load %arg12[%c88, %c0_44] : memref<200x1024xf32, #tpu.memory_space<vmem>>, vector<8x1024xf32>
    tpu.vector_store %arg12[%c88, %c0_44], %34 {strides = array<i32>} : memref<200x1024xf32, #tpu.memory_space<vmem>>, vector<8x1024xf32>,
    %c0_45 = arith.constant 0 : index
    %c66 = arith.constant 66 : index
    %36 = vector.load %arg7[%c0_45, %c66] : memref<8x1408xf32, #tpu.memory_space<vmem>>, vector<8x1024xf32>
    %c96 = arith.constant 96 : index
    %c0_46 = arith.constant 0 : index
    %37 = vector.load %arg12[%c96, %c0_46] : memref<200x1024xf32, #tpu.memory_space<vmem>>, vector<8x1024xf32>
    tpu.vector_store %arg12[%c96, %c0_46], %36 {strides = array<i32>} : memref<200x1024xf32, #tpu.memory_space<vmem>>, vector<8x1024xf32>,
    %c0_47 = arith.constant 0 : index
    %c67 = arith.constant 67 : index
    %38 = vector.load %arg7[%c0_47, %c67] : memref<8x1408xf32, #tpu.memory_space<vmem>>, vector<8x1024xf32>
    %c104 = arith.constant 104 : index
    %c0_48 = arith.constant 0 : index
    %39 = vector.load %arg12[%c104, %c0_48] : memref<200x1024xf32, #tpu.memory_space<vmem>>, vector<8x1024xf32>
    tpu.vector_store %arg12[%c104, %c0_48], %38 {strides = array<i32>} : memref<200x1024xf32, #tpu.memory_space<vmem>>, vector<8x1024xf32>,
    %c0_49 = arith.constant 0 : index
    %c68 = arith.constant 68 : index
    %40 = vector.load %arg7[%c0_49, %c68] : memref<8x1408xf32, #tpu.memory_space<vmem>>, vector<8x1024xf32>
    %c112 = arith.constant 112 : index
    %c0_50 = arith.constant 0 : index
    %41 = vector.load %arg12[%c112, %c0_50] : memref<200x1024xf32, #tpu.memory_space<vmem>>, vector<8x1024xf32>
    tpu.vector_store %arg12[%c112, %c0_50], %40 {strides = array<i32>} : memref<200x1024xf32, #tpu.memory_space<vmem>>, vector<8x1024xf32>,
    %c0_51 = arith.constant 0 : index
    %c96_52 = arith.constant 96 : index
    %42 = vector.load %arg7[%c0_51, %c96_52] : memref<8x1408xf32, #tpu.memory_space<vmem>>, vector<8x1024xf32>
    %c120 = arith.constant 120 : index
    %c0_53 = arith.constant 0 : index
    %43 = vector.load %arg12[%c120, %c0_53] : memref<200x1024xf32, #tpu.memory_space<vmem>>, vector<8x1024xf32>
    tpu.vector_store %arg12[%c120, %c0_53], %42 {strides = array<i32>} : memref<200x1024xf32, #tpu.memory_space<vmem>>, vector<8x1024xf32>,
    %c0_54 = arith.constant 0 : index
    %c97 = arith.constant 97 : index
    %44 = vector.load %arg7[%c0_54, %c97] : memref<8x1408xf32, #tpu.memory_space<vmem>>, vector<8x1024xf32>
    %c128 = arith.constant 128 : index
    %c0_55 = arith.constant 0 : index
    %45 = vector.load %arg12[%c128, %c0_55] : memref<200x1024xf32, #tpu.memory_space<vmem>>, vector<8x1024xf32>
    tpu.vector_store %arg12[%c128, %c0_55], %44 {strides = array<i32>} : memref<200x1024xf32, #tpu.memory_space<vmem>>, vector<8x1024xf32>,
    %c0_56 = arith.constant 0 : index
    %c98 = arith.constant 98 : index
    %46 = vector.load %arg7[%c0_56, %c98] : memref<8x1408xf32, #tpu.memory_space<vmem>>, vector<8x1024xf32>
    %c136 = arith.constant 136 : index
    %c0_57 = arith.constant 0 : index
    %47 = vector.load %arg12[%c136, %c0_57] : memref<200x1024xf32, #tpu.memory_space<vmem>>, vector<8x1024xf32>
    tpu.vector_store %arg12[%c136, %c0_57], %46 {strides = array<i32>} : memref<200x1024xf32, #tpu.memory_space<vmem>>, vector<8x1024xf32>,
    %c0_58 = arith.constant 0 : index
    %c99 = arith.constant 99 : index
    %48 = vector.load %arg7[%c0_58, %c99] : memref<8x1408xf32, #tpu.memory_space<vmem>>, vector<8x1024xf32>
    %c144 = arith.constant 144 : index
    %c0_59 = arith.constant 0 : index
    %49 = vector.load %arg12[%c144, %c0_59] : memref<200x1024xf32, #tpu.memory_space<vmem>>, vector<8x1024xf32>
    tpu.vector_store %arg12[%c144, %c0_59], %48 {strides = array<i32>} : memref<200x1024xf32, #tpu.memory_space<vmem>>, vector<8x1024xf32>,
    %c0_60 = arith.constant 0 : index
    %c100 = arith.constant 100 : index
    %50 = vector.load %arg7[%c0_60, %c100] : memref<8x1408xf32, #tpu.memory_space<vmem>>, vector<8x1024xf32>
    %c152 = arith.constant 152 : index
    %c0_61 = arith.constant 0 : index
    %51 = vector.load %arg12[%c152, %c0_61] : memref<200x1024xf32, #tpu.memory_space<vmem>>, vector<8x1024xf32>
    tpu.vector_store %arg12[%c152, %c0_61], %50 {strides = array<i32>} : memref<200x1024xf32, #tpu.memory_space<vmem>>, vector<8x1024xf32>,
    %c0_62 = arith.constant 0 : index
    %c128_63 = arith.constant 128 : index
    %52 = vector.load %arg7[%c0_62, %c128_63] : memref<8x1408xf32, #tpu.memory_space<vmem>>, vector<8x1024xf32>
    %c160 = arith.constant 160 : index
    %c0_64 = arith.constant 0 : index
    %53 = vector.load %arg12[%c160, %c0_64] : memref<200x1024xf32, #tpu.memory_space<vmem>>, vector<8x1024xf32>
    tpu.vector_store %arg12[%c160, %c0_64], %52 {strides = array<i32>} : memref<200x1024xf32, #tpu.memory_space<vmem>>, vector<8x1024xf32>,
    %c0_65 = arith.constant 0 : index
    %c129 = arith.constant 129 : index
    %54 = vector.load %arg7[%c0_65, %c129] : memref<8x1408xf32, #tpu.memory_space<vmem>>, vector<8x1024xf32>
    %c168 = arith.constant 168 : index
    %c0_66 = arith.constant 0 : index
    %55 = vector.load %arg12[%c168, %c0_66] : memref<200x1024xf32, #tpu.memory_space<vmem>>, vector<8x1024xf32>
    tpu.vector_store %arg12[%c168, %c0_66], %54 {strides = array<i32>} : memref<200x1024xf32, #tpu.memory_space<vmem>>, vector<8x1024xf32>,
    %c0_67 = arith.constant 0 : index
    %c130 = arith.constant 130 : index
    %56 = vector.load %arg7[%c0_67, %c130] : memref<8x1408xf32, #tpu.memory_space<vmem>>, vector<8x1024xf32>
    %c176 = arith.constant 176 : index
    %c0_68 = arith.constant 0 : index
    %57 = vector.load %arg12[%c176, %c0_68] : memref<200x1024xf32, #tpu.memory_space<vmem>>, vector<8x1024xf32>
    tpu.vector_store %arg12[%c176, %c0_68], %56 {strides = array<i32>} : memref<200x1024xf32, #tpu.memory_space<vmem>>, vector<8x1024xf32>,
    %c0_69 = arith.constant 0 : index
    %c131 = arith.constant 131 : index
    %58 = vector.load %arg7[%c0_69, %c131] : memref<8x1408xf32, #tpu.memory_space<vmem>>, vector<8x1024xf32>
    %c184 = arith.constant 184 : index
    %c0_70 = arith.constant 0 : index
    %59 = vector.load %arg12[%c184, %c0_70] : memref<200x1024xf32, #tpu.memory_space<vmem>>, vector<8x1024xf32>
    tpu.vector_store %arg12[%c184, %c0_70], %58 {strides = array<i32>} : memref<200x1024xf32, #tpu.memory_space<vmem>>, vector<8x1024xf32>,
    %c0_71 = arith.constant 0 : index
    %c132 = arith.constant 132 : index
    %60 = vector.load %arg7[%c0_71, %c132] : memref<8x1408xf32, #tpu.memory_space<vmem>>, vector<8x1024xf32>
    %c192 = arith.constant 192 : index
    %c0_72 = arith.constant 0 : index
    %61 = vector.load %arg12[%c192, %c0_72] : memref<200x1024xf32, #tpu.memory_space<vmem>>, vector<8x1024xf32>
    tpu.vector_store %arg12[%c192, %c0_72], %60 {strides = array<i32>} : memref<200x1024xf32, #tpu.memory_space<vmem>>, vector<8x1024xf32>,
    %c0_73 = arith.constant 0 : index
    %c0_74 = arith.constant 0 : index
    %62 = vector.load %arg12[%c0_73, %c0_74] : memref<200x1024xf32, #tpu.memory_space<vmem>>, vector<200x1024xf32>
    %cst_75 = arith.constant dense<0.000000e+00> : vector<8x1024xf32>
    %63 = tpu.matmul %10, %62, %cst_75 {dimension_numbers = #tpu.dot_dimension_numbers<[1], [0], [0], [1], [0, 0, 1, 1], [], []>} : vector<8x200xf32>, vector<200x1024xf32>, vector<8x1024xf32> -> vector<8x1024xf32>
    %64 = vector.broadcast %11 : vector<8x1xf32> to vector<8x1024xf32>
    %65 = arith.addf %63, %64 : vector<8x1024xf32>
    %cst_76 = arith.constant 0.000000e+00 : f32
    %66 = vector.broadcast %cst_76 : f32 to vector<8x1024xf32>
    %67 = arith.maximumf %65, %66 : vector<8x1024xf32>
    %c0_77 = arith.constant 0 : index
    %c0_78 = arith.constant 0 : index
    %68 = vector.load %arg8[%c0_77, %c0_78] : memref<8x1408xf32, #tpu.memory_space<vmem>>, vector<8x1024xf32>
    tpu.vector_store %arg8[%c0_77, %c0_78], %67 {strides = array<i32>} : memref<8x1408xf32, #tpu.memory_space<vmem>>, vector<8x1024xf32>,
    %c0_79 = arith.constant 0 : index
    %c0_80 = arith.constant 0 : index
    %69 = vector.load %arg8[%c0_79, %c0_80] : memref<8x1408xf32, #tpu.memory_space<vmem>>, vector<8x1024xf32>
    %c0_81 = arith.constant 0 : index
    %c1_82 = arith.constant 1 : index
    %70 = vector.load %arg8[%c0_81, %c1_82] : memref<8x1408xf32, #tpu.memory_space<vmem>>, vector<8x1024xf32>
    %71 = arith.maximumf %69, %70 : vector<8x1024xf32>
    %c0_83 = arith.constant 0 : index
    %c32_84 = arith.constant 32 : index
    %72 = vector.load %arg8[%c0_83, %c32_84] : memref<8x1408xf32, #tpu.memory_space<vmem>>, vector<8x1024xf32>
    %73 = arith.maximumf %71, %72 : vector<8x1024xf32>
    %c0_85 = arith.constant 0 : index
    %c33_86 = arith.constant 33 : index
    %74 = vector.load %arg8[%c0_85, %c33_86] : memref<8x1408xf32, #tpu.memory_space<vmem>>, vector<8x1024xf32>
    %75 = arith.maximumf %73, %74 : vector<8x1024xf32>
    %c0_87 = arith.constant 0 : index
    %c0_88 = arith.constant 0 : index
    %76 = vector.load %arg9[%c0_87, %c0_88] : memref<8x1408xf32, #tpu.memory_space<vmem>>, vector<8x1024xf32>
    tpu.vector_store %arg9[%c0_87, %c0_88], %75 {strides = array<i32>} : memref<8x1408xf32, #tpu.memory_space<vmem>>, vector<8x1024xf32>,
    %c8_89 = arith.constant 8 : index
    %c0_90 = arith.constant 0 : index
    %77 = vector.load %arg2[%c8_89, %c0_90] : memref<24x200xf32, #tpu.memory_space<vmem>>, vector<16x200xf32>
    %c8_91 = arith.constant 8 : index
    %c0_92 = arith.constant 0 : index
    %78 = vector.load %arg5[%c8_91, %c0_92] : memref<248x1xf32, #tpu.memory_space<vmem>>, vector<16x1xf32>
    %c0_93 = arith.constant 0 : index
    %c0_94 = arith.constant 0 : index
    %79 = vector.load %arg9[%c0_93, %c0_94] : memref<8x1408xf32, #tpu.memory_space<vmem>>, vector<8x1024xf32>
    %c0_95 = arith.constant 0 : index
    %c0_96 = arith.constant 0 : index
    %80 = vector.load %arg12[%c0_95, %c0_96] : memref<200x1024xf32, #tpu.memory_space<vmem>>, vector<8x1024xf32>
    tpu.vector_store %arg12[%c0_95, %c0_96], %79 {strides = array<i32>} : memref<200x1024xf32, #tpu.memory_space<vmem>>, vector<8x1024xf32>,
    %c0_97 = arith.constant 0 : index
    %c2_98 = arith.constant 2 : index
    %81 = vector.load %arg9[%c0_97, %c2_98] : memref<8x1408xf32, #tpu.memory_space<vmem>>, vector<8x1024xf32>
    %c8_99 = arith.constant 8 : index
    %c0_100 = arith.constant 0 : index
    %82 = vector.load %arg12[%c8_99, %c0_100] : memref<200x1024xf32, #tpu.memory_space<vmem>>, vector<8x1024xf32>
    tpu.vector_store %arg12[%c8_99, %c0_100], %81 {strides = array<i32>} : memref<200x1024xf32, #tpu.memory_space<vmem>>, vector<8x1024xf32>,
    %c0_101 = arith.constant 0 : index
    %c4_102 = arith.constant 4 : index
    %83 = vector.load %arg9[%c0_101, %c4_102] : memref<8x1408xf32, #tpu.memory_space<vmem>>, vector<8x1024xf32>
    %c16_103 = arith.constant 16 : index
    %c0_104 = arith.constant 0 : index
    %84 = vector.load %arg12[%c16_103, %c0_104] : memref<200x1024xf32, #tpu.memory_space<vmem>>, vector<8x1024xf32>
    tpu.vector_store %arg12[%c16_103, %c0_104], %83 {strides = array<i32>} : memref<200x1024xf32, #tpu.memory_space<vmem>>, vector<8x1024xf32>,
    %c0_105 = arith.constant 0 : index
    %c6 = arith.constant 6 : index
    %85 = vector.load %arg9[%c0_105, %c6] : memref<8x1408xf32, #tpu.memory_space<vmem>>, vector<8x1024xf32>
    %c24_106 = arith.constant 24 : index
    %c0_107 = arith.constant 0 : index
    %86 = vector.load %arg12[%c24_106, %c0_107] : memref<200x1024xf32, #tpu.memory_space<vmem>>, vector<8x1024xf32>
    tpu.vector_store %arg12[%c24_106, %c0_107], %85 {strides = array<i32>} : memref<200x1024xf32, #tpu.memory_space<vmem>>, vector<8x1024xf32>,
    %c0_108 = arith.constant 0 : index
    %c8_109 = arith.constant 8 : index
    %87 = vector.load %arg9[%c0_108, %c8_109] : memref<8x1408xf32, #tpu.memory_space<vmem>>, vector<8x1024xf32>
    %c32_110 = arith.constant 32 : index
    %c0_111 = arith.constant 0 : index
    %88 = vector.load %arg12[%c32_110, %c0_111] : memref<200x1024xf32, #tpu.memory_space<vmem>>, vector<8x1024xf32>
    tpu.vector_store %arg12[%c32_110, %c0_111], %87 {strides = array<i32>} : memref<200x1024xf32, #tpu.memory_space<vmem>>, vector<8x1024xf32>,
    %c0_112 = arith.constant 0 : index
    %c64_113 = arith.constant 64 : index
    %89 = vector.load %arg9[%c0_112, %c64_113] : memref<8x1408xf32, #tpu.memory_space<vmem>>, vector<8x1024xf32>
    %c40_114 = arith.constant 40 : index
    %c0_115 = arith.constant 0 : index
    %90 = vector.load %arg12[%c40_114, %c0_115] : memref<200x1024xf32, #tpu.memory_space<vmem>>, vector<8x1024xf32>
    tpu.vector_store %arg12[%c40_114, %c0_115], %89 {strides = array<i32>} : memref<200x1024xf32, #tpu.memory_space<vmem>>, vector<8x1024xf32>,
    %c0_116 = arith.constant 0 : index
    %c66_117 = arith.constant 66 : index
    %91 = vector.load %arg9[%c0_116, %c66_117] : memref<8x1408xf32, #tpu.memory_space<vmem>>, vector<8x1024xf32>
    %c48_118 = arith.constant 48 : index
    %c0_119 = arith.constant 0 : index
    %92 = vector.load %arg12[%c48_118, %c0_119] : memref<200x1024xf32, #tpu.memory_space<vmem>>, vector<8x1024xf32>
    tpu.vector_store %arg12[%c48_118, %c0_119], %91 {strides = array<i32>} : memref<200x1024xf32, #tpu.memory_space<vmem>>, vector<8x1024xf32>,
    %c0_120 = arith.constant 0 : index
    %c68_121 = arith.constant 68 : index
    %93 = vector.load %arg9[%c0_120, %c68_121] : memref<8x1408xf32, #tpu.memory_space<vmem>>, vector<8x1024xf32>
    %c56_122 = arith.constant 56 : index
    %c0_123 = arith.constant 0 : index
    %94 = vector.load %arg12[%c56_122, %c0_123] : memref<200x1024xf32, #tpu.memory_space<vmem>>, vector<8x1024xf32>
    tpu.vector_store %arg12[%c56_122, %c0_123], %93 {strides = array<i32>} : memref<200x1024xf32, #tpu.memory_space<vmem>>, vector<8x1024xf32>,
    %c0_124 = arith.constant 0 : index
    %c70 = arith.constant 70 : index
    %95 = vector.load %arg9[%c0_124, %c70] : memref<8x1408xf32, #tpu.memory_space<vmem>>, vector<8x1024xf32>
    %c64_125 = arith.constant 64 : index
    %c0_126 = arith.constant 0 : index
    %96 = vector.load %arg12[%c64_125, %c0_126] : memref<200x1024xf32, #tpu.memory_space<vmem>>, vector<8x1024xf32>
    tpu.vector_store %arg12[%c64_125, %c0_126], %95 {strides = array<i32>} : memref<200x1024xf32, #tpu.memory_space<vmem>>, vector<8x1024xf32>,
    %c0_127 = arith.constant 0 : index
    %c72_128 = arith.constant 72 : index
    %97 = vector.load %arg9[%c0_127, %c72_128] : memref<8x1408xf32, #tpu.memory_space<vmem>>, vector<8x1024xf32>
    %c72_129 = arith.constant 72 : index
    %c0_130 = arith.constant 0 : index
    %98 = vector.load %arg12[%c72_129, %c0_130] : memref<200x1024xf32, #tpu.memory_space<vmem>>, vector<8x1024xf32>
    tpu.vector_store %arg12[%c72_129, %c0_130], %97 {strides = array<i32>} : memref<200x1024xf32, #tpu.memory_space<vmem>>, vector<8x1024xf32>,
    %c0_131 = arith.constant 0 : index
    %c128_132 = arith.constant 128 : index
    %99 = vector.load %arg9[%c0_131, %c128_132] : memref<8x1408xf32, #tpu.memory_space<vmem>>, vector<8x1024xf32>
    %c80_133 = arith.constant 80 : index
    %c0_134 = arith.constant 0 : index
    %100 = vector.load %arg12[%c80_133, %c0_134] : memref<200x1024xf32, #tpu.memory_space<vmem>>, vector<8x1024xf32>
    tpu.vector_store %arg12[%c80_133, %c0_134], %99 {strides = array<i32>} : memref<200x1024xf32, #tpu.memory_space<vmem>>, vector<8x1024xf32>,
    %c0_135 = arith.constant 0 : index
    %c130_136 = arith.constant 130 : index
    %101 = vector.load %arg9[%c0_135, %c130_136] : memref<8x1408xf32, #tpu.memory_space<vmem>>, vector<8x1024xf32>
    %c88_137 = arith.constant 88 : index
    %c0_138 = arith.constant 0 : index
    %102 = vector.load %arg12[%c88_137, %c0_138] : memref<200x1024xf32, #tpu.memory_space<vmem>>, vector<8x1024xf32>
    tpu.vector_store %arg12[%c88_137, %c0_138], %101 {strides = array<i32>} : memref<200x1024xf32, #tpu.memory_space<vmem>>, vector<8x1024xf32>,
    %c0_139 = arith.constant 0 : index
    %c132_140 = arith.constant 132 : index
    %103 = vector.load %arg9[%c0_139, %c132_140] : memref<8x1408xf32, #tpu.memory_space<vmem>>, vector<8x1024xf32>
    %c96_141 = arith.constant 96 : index
    %c0_142 = arith.constant 0 : index
    %104 = vector.load %arg12[%c96_141, %c0_142] : memref<200x1024xf32, #tpu.memory_space<vmem>>, vector<8x1024xf32>
    tpu.vector_store %arg12[%c96_141, %c0_142], %103 {strides = array<i32>} : memref<200x1024xf32, #tpu.memory_space<vmem>>, vector<8x1024xf32>,
    %c0_143 = arith.constant 0 : index
    %c134 = arith.constant 134 : index
    %105 = vector.load %arg9[%c0_143, %c134] : memref<8x1408xf32, #tpu.memory_space<vmem>>, vector<8x1024xf32>
    %c104_144 = arith.constant 104 : index
    %c0_145 = arith.constant 0 : index
    %106 = vector.load %arg12[%c104_144, %c0_145] : memref<200x1024xf32, #tpu.memory_space<vmem>>, vector<8x1024xf32>
    tpu.vector_store %arg12[%c104_144, %c0_145], %105 {strides = array<i32>} : memref<200x1024xf32, #tpu.memory_space<vmem>>, vector<8x1024xf32>,
    %c0_146 = arith.constant 0 : index
    %c136_147 = arith.constant 136 : index
    %107 = vector.load %arg9[%c0_146, %c136_147] : memref<8x1408xf32, #tpu.memory_space<vmem>>, vector<8x1024xf32>
    %c112_148 = arith.constant 112 : index
    %c0_149 = arith.constant 0 : index
    %108 = vector.load %arg12[%c112_148, %c0_149] : memref<200x1024xf32, #tpu.memory_space<vmem>>, vector<8x1024xf32>
    tpu.vector_store %arg12[%c112_148, %c0_149], %107 {strides = array<i32>} : memref<200x1024xf32, #tpu.memory_space<vmem>>, vector<8x1024xf32>,
    %c0_150 = arith.constant 0 : index
    %c192_151 = arith.constant 192 : index
    %109 = vector.load %arg9[%c0_150, %c192_151] : memref<8x1408xf32, #tpu.memory_space<vmem>>, vector<8x1024xf32>
    %c120_152 = arith.constant 120 : index
    %c0_153 = arith.constant 0 : index
    %110 = vector.load %arg12[%c120_152, %c0_153] : memref<200x1024xf32, #tpu.memory_space<vmem>>, vector<8x1024xf32>
    tpu.vector_store %arg12[%c120_152, %c0_153], %109 {strides = array<i32>} : memref<200x1024xf32, #tpu.memory_space<vmem>>, vector<8x1024xf32>,
    %c0_154 = arith.constant 0 : index
    %c194 = arith.constant 194 : index
    %111 = vector.load %arg9[%c0_154, %c194] : memref<8x1408xf32, #tpu.memory_space<vmem>>, vector<8x1024xf32>
    %c128_155 = arith.constant 128 : index
    %c0_156 = arith.constant 0 : index
    %112 = vector.load %arg12[%c128_155, %c0_156] : memref<200x1024xf32, #tpu.memory_space<vmem>>, vector<8x1024xf32>
    tpu.vector_store %arg12[%c128_155, %c0_156], %111 {strides = array<i32>} : memref<200x1024xf32, #tpu.memory_space<vmem>>, vector<8x1024xf32>,
    %c0_157 = arith.constant 0 : index
    %c196 = arith.constant 196 : index
    %113 = vector.load %arg9[%c0_157, %c196] : memref<8x1408xf32, #tpu.memory_space<vmem>>, vector<8x1024xf32>
    %c136_158 = arith.constant 136 : index
    %c0_159 = arith.constant 0 : index
    %114 = vector.load %arg12[%c136_158, %c0_159] : memref<200x1024xf32, #tpu.memory_space<vmem>>, vector<8x1024xf32>
    tpu.vector_store %arg12[%c136_158, %c0_159], %113 {strides = array<i32>} : memref<200x1024xf32, #tpu.memory_space<vmem>>, vector<8x1024xf32>,
    %c0_160 = arith.constant 0 : index
    %c198 = arith.constant 198 : index
    %115 = vector.load %arg9[%c0_160, %c198] : memref<8x1408xf32, #tpu.memory_space<vmem>>, vector<8x1024xf32>
    %c144_161 = arith.constant 144 : index
    %c0_162 = arith.constant 0 : index
    %116 = vector.load %arg12[%c144_161, %c0_162] : memref<200x1024xf32, #tpu.memory_space<vmem>>, vector<8x1024xf32>
    tpu.vector_store %arg12[%c144_161, %c0_162], %115 {strides = array<i32>} : memref<200x1024xf32, #tpu.memory_space<vmem>>, vector<8x1024xf32>,
    %c0_163 = arith.constant 0 : index
    %c200 = arith.constant 200 : index
    %117 = vector.load %arg9[%c0_163, %c200] : memref<8x1408xf32, #tpu.memory_space<vmem>>, vector<8x1024xf32>
    %c152_164 = arith.constant 152 : index
    %c0_165 = arith.constant 0 : index
    %118 = vector.load %arg12[%c152_164, %c0_165] : memref<200x1024xf32, #tpu.memory_space<vmem>>, vector<8x1024xf32>
    tpu.vector_store %arg12[%c152_164, %c0_165], %117 {strides = array<i32>} : memref<200x1024xf32, #tpu.memory_space<vmem>>, vector<8x1024xf32>,
    %c0_166 = arith.constant 0 : index
    %c256 = arith.constant 256 : index
    %119 = vector.load %arg9[%c0_166, %c256] : memref<8x1408xf32, #tpu.memory_space<vmem>>, vector<8x1024xf32>
    %c160_167 = arith.constant 160 : index
    %c0_168 = arith.constant 0 : index
    %120 = vector.load %arg12[%c160_167, %c0_168] : memref<200x1024xf32, #tpu.memory_space<vmem>>, vector<8x1024xf32>
    tpu.vector_store %arg12[%c160_167, %c0_168], %119 {strides = array<i32>} : memref<200x1024xf32, #tpu.memory_space<vmem>>, vector<8x1024xf32>,
    %c0_169 = arith.constant 0 : index
    %c258 = arith.constant 258 : index
    %121 = vector.load %arg9[%c0_169, %c258] : memref<8x1408xf32, #tpu.memory_space<vmem>>, vector<8x1024xf32>
    %c168_170 = arith.constant 168 : index
    %c0_171 = arith.constant 0 : index
    %122 = vector.load %arg12[%c168_170, %c0_171] : memref<200x1024xf32, #tpu.memory_space<vmem>>, vector<8x1024xf32>
    tpu.vector_store %arg12[%c168_170, %c0_171], %121 {strides = array<i32>} : memref<200x1024xf32, #tpu.memory_space<vmem>>, vector<8x1024xf32>,
    %c0_172 = arith.constant 0 : index
    %c260 = arith.constant 260 : index
    %123 = vector.load %arg9[%c0_172, %c260] : memref<8x1408xf32, #tpu.memory_space<vmem>>, vector<8x1024xf32>
    %c176_173 = arith.constant 176 : index
    %c0_174 = arith.constant 0 : index
    %124 = vector.load %arg12[%c176_173, %c0_174] : memref<200x1024xf32, #tpu.memory_space<vmem>>, vector<8x1024xf32>
    tpu.vector_store %arg12[%c176_173, %c0_174], %123 {strides = array<i32>} : memref<200x1024xf32, #tpu.memory_space<vmem>>, vector<8x1024xf32>,
    %c0_175 = arith.constant 0 : index
    %c262 = arith.constant 262 : index
    %125 = vector.load %arg9[%c0_175, %c262] : memref<8x1408xf32, #tpu.memory_space<vmem>>, vector<8x1024xf32>
    %c184_176 = arith.constant 184 : index
    %c0_177 = arith.constant 0 : index
    %126 = vector.load %arg12[%c184_176, %c0_177] : memref<200x1024xf32, #tpu.memory_space<vmem>>, vector<8x1024xf32>
    tpu.vector_store %arg12[%c184_176, %c0_177], %125 {strides = array<i32>} : memref<200x1024xf32, #tpu.memory_space<vmem>>, vector<8x1024xf32>,
    %c0_178 = arith.constant 0 : index
    %c264 = arith.constant 264 : index
    %127 = vector.load %arg9[%c0_178, %c264] : memref<8x1408xf32, #tpu.memory_space<vmem>>, vector<8x1024xf32>
    %c192_179 = arith.constant 192 : index
    %c0_180 = arith.constant 0 : index
    %128 = vector.load %arg12[%c192_179, %c0_180] : memref<200x1024xf32, #tpu.memory_space<vmem>>, vector<8x1024xf32>
    tpu.vector_store %arg12[%c192_179, %c0_180], %127 {strides = array<i32>} : memref<200x1024xf32, #tpu.memory_space<vmem>>, vector<8x1024xf32>,
    %c0_181 = arith.constant 0 : index
    %c0_182 = arith.constant 0 : index
    %129 = vector.load %arg12[%c0_181, %c0_182] : memref<200x1024xf32, #tpu.memory_space<vmem>>, vector<200x1024xf32>
    %cst_183 = arith.constant dense<0.000000e+00> : vector<16x1024xf32>
    %130 = tpu.matmul %77, %129, %cst_183 {dimension_numbers = #tpu.dot_dimension_numbers<[1], [0], [0], [1], [0, 0, 1, 1], [], []>} : vector<16x200xf32>, vector<200x1024xf32>, vector<16x1024xf32> -> vector<16x1024xf32>
    %131 = vector.broadcast %78 : vector<16x1xf32> to vector<16x1024xf32>
    %132 = arith.addf %130, %131 : vector<16x1024xf32>
    %cst_184 = arith.constant 0.000000e+00 : f32
    %133 = vector.broadcast %cst_184 : f32 to vector<16x1024xf32>
    %134 = arith.maximumf %132, %133 : vector<16x1024xf32>
    %c0_185 = arith.constant 0 : index
    %c0_186 = arith.constant 0 : index
    %135 = vector.load %arg10[%c0_185, %c0_186] : memref<16x1408xf32, #tpu.memory_space<vmem>>, vector<16x1024xf32>
    tpu.vector_store %arg10[%c0_185, %c0_186], %134 {strides = array<i32>} : memref<16x1408xf32, #tpu.memory_space<vmem>>, vector<16x1024xf32>,
    %c0_187 = arith.constant 0 : index
    %c0_188 = arith.constant 0 : index
    %136 = vector.load %arg10[%c0_187, %c0_188] : memref<16x1408xf32, #tpu.memory_space<vmem>>, vector<16x1024xf32>
    %c0_189 = arith.constant 0 : index
    %c2_190 = arith.constant 2 : index
    %137 = vector.load %arg10[%c0_189, %c2_190] : memref<16x1408xf32, #tpu.memory_space<vmem>>, vector<16x1024xf32>
    %138 = arith.maximumf %136, %137 : vector<16x1024xf32>
    %c0_191 = arith.constant 0 : index
    %c64_192 = arith.constant 64 : index
    %139 = vector.load %arg10[%c0_191, %c64_192] : memref<16x1408xf32, #tpu.memory_space<vmem>>, vector<16x1024xf32>
    %140 = arith.maximumf %138, %139 : vector<16x1024xf32>
    %c0_193 = arith.constant 0 : index
    %c66_194 = arith.constant 66 : index
    %141 = vector.load %arg10[%c0_193, %c66_194] : memref<16x1408xf32, #tpu.memory_space<vmem>>, vector<16x1024xf32>
    %142 = arith.maximumf %140, %141 : vector<16x1024xf32>
    %c0_195 = arith.constant 0 : index
    %c0_196 = arith.constant 0 : index
    %143 = vector.load %arg11[%c0_195, %c0_196] : memref<16x1024xf32, #tpu.memory_space<vmem>>, vector<16x1024xf32>
    tpu.vector_store %arg11[%c0_195, %c0_196], %142 {strides = array<i32>} : memref<16x1024xf32, #tpu.memory_space<vmem>>, vector<16x1024xf32>,
    %c0_197 = arith.constant 0 : index
    %c0_198 = arith.constant 0 : index
    %144 = vector.load %arg11[%c0_197, %c0_198] : memref<16x1024xf32, #tpu.memory_space<vmem>>, vector<16x1xf32>
    %c0_199 = arith.constant 0 : index
    %c0_200 = arith.constant 0 : index
    %145 = vector.load %arg13[%c0_199, %c0_200] : memref<400x1xf32, #tpu.memory_space<vmem>>, vector<16x1xf32>
    tpu.vector_store %arg13[%c0_199, %c0_200], %144 {strides = array<i32>} : memref<400x1xf32, #tpu.memory_space<vmem>>, vector<16x1xf32>,
    %c0_201 = arith.constant 0 : index
    %c4_202 = arith.constant 4 : index
    %146 = vector.load %arg11[%c0_201, %c4_202] : memref<16x1024xf32, #tpu.memory_space<vmem>>, vector<16x1xf32>
    %c16_203 = arith.constant 16 : index
    %c0_204 = arith.constant 0 : index
    %147 = vector.load %arg13[%c16_203, %c0_204] : memref<400x1xf32, #tpu.memory_space<vmem>>, vector<16x1xf32>
    tpu.vector_store %arg13[%c16_203, %c0_204], %146 {strides = array<i32>} : memref<400x1xf32, #tpu.memory_space<vmem>>, vector<16x1xf32>,
    %c0_205 = arith.constant 0 : index
    %c8_206 = arith.constant 8 : index
    %148 = vector.load %arg11[%c0_205, %c8_206] : memref<16x1024xf32, #tpu.memory_space<vmem>>, vector<16x1xf32>
    %c32_207 = arith.constant 32 : index
    %c0_208 = arith.constant 0 : index
    %149 = vector.load %arg13[%c32_207, %c0_208] : memref<400x1xf32, #tpu.memory_space<vmem>>, vector<16x1xf32>
    tpu.vector_store %arg13[%c32_207, %c0_208], %148 {strides = array<i32>} : memref<400x1xf32, #tpu.memory_space<vmem>>, vector<16x1xf32>,
    %c0_209 = arith.constant 0 : index
    %c12 = arith.constant 12 : index
    %150 = vector.load %arg11[%c0_209, %c12] : memref<16x1024xf32, #tpu.memory_space<vmem>>, vector<16x1xf32>
    %c48_210 = arith.constant 48 : index
    %c0_211 = arith.constant 0 : index
    %151 = vector.load %arg13[%c48_210, %c0_211] : memref<400x1xf32, #tpu.memory_space<vmem>>, vector<16x1xf32>
    tpu.vector_store %arg13[%c48_210, %c0_211], %150 {strides = array<i32>} : memref<400x1xf32, #tpu.memory_space<vmem>>, vector<16x1xf32>,
    %c0_212 = arith.constant 0 : index
    %c16_213 = arith.constant 16 : index
    %152 = vector.load %arg11[%c0_212, %c16_213] : memref<16x1024xf32, #tpu.memory_space<vmem>>, vector<16x1xf32>
    %c64_214 = arith.constant 64 : index
    %c0_215 = arith.constant 0 : index
    %153 = vector.load %arg13[%c64_214, %c0_215] : memref<400x1xf32, #tpu.memory_space<vmem>>, vector<16x1xf32>
    tpu.vector_store %arg13[%c64_214, %c0_215], %152 {strides = array<i32>} : memref<400x1xf32, #tpu.memory_space<vmem>>, vector<16x1xf32>,
    %c0_216 = arith.constant 0 : index
    %c128_217 = arith.constant 128 : index
    %154 = vector.load %arg11[%c0_216, %c128_217] : memref<16x1024xf32, #tpu.memory_space<vmem>>, vector<16x1xf32>
    %c80_218 = arith.constant 80 : index
    %c0_219 = arith.constant 0 : index
    %155 = vector.load %arg13[%c80_218, %c0_219] : memref<400x1xf32, #tpu.memory_space<vmem>>, vector<16x1xf32>
    tpu.vector_store %arg13[%c80_218, %c0_219], %154 {strides = array<i32>} : memref<400x1xf32, #tpu.memory_space<vmem>>, vector<16x1xf32>,
    %c0_220 = arith.constant 0 : index
    %c132_221 = arith.constant 132 : index
    %156 = vector.load %arg11[%c0_220, %c132_221] : memref<16x1024xf32, #tpu.memory_space<vmem>>, vector<16x1xf32>
    %c96_222 = arith.constant 96 : index
    %c0_223 = arith.constant 0 : index
    %157 = vector.load %arg13[%c96_222, %c0_223] : memref<400x1xf32, #tpu.memory_space<vmem>>, vector<16x1xf32>
    tpu.vector_store %arg13[%c96_222, %c0_223], %156 {strides = array<i32>} : memref<400x1xf32, #tpu.memory_space<vmem>>, vector<16x1xf32>,
    %c0_224 = arith.constant 0 : index
    %c136_225 = arith.constant 136 : index
    %158 = vector.load %arg11[%c0_224, %c136_225] : memref<16x1024xf32, #tpu.memory_space<vmem>>, vector<16x1xf32>
    %c112_226 = arith.constant 112 : index
    %c0_227 = arith.constant 0 : index
    %159 = vector.load %arg13[%c112_226, %c0_227] : memref<400x1xf32, #tpu.memory_space<vmem>>, vector<16x1xf32>
    tpu.vector_store %arg13[%c112_226, %c0_227], %158 {strides = array<i32>} : memref<400x1xf32, #tpu.memory_space<vmem>>, vector<16x1xf32>,
    %c0_228 = arith.constant 0 : index
    %c140 = arith.constant 140 : index
    %160 = vector.load %arg11[%c0_228, %c140] : memref<16x1024xf32, #tpu.memory_space<vmem>>, vector<16x1xf32>
    %c128_229 = arith.constant 128 : index
    %c0_230 = arith.constant 0 : index
    %161 = vector.load %arg13[%c128_229, %c0_230] : memref<400x1xf32, #tpu.memory_space<vmem>>, vector<16x1xf32>
    tpu.vector_store %arg13[%c128_229, %c0_230], %160 {strides = array<i32>} : memref<400x1xf32, #tpu.memory_space<vmem>>, vector<16x1xf32>,
    %c0_231 = arith.constant 0 : index
    %c144_232 = arith.constant 144 : index
    %162 = vector.load %arg11[%c0_231, %c144_232] : memref<16x1024xf32, #tpu.memory_space<vmem>>, vector<16x1xf32>
    %c144_233 = arith.constant 144 : index
    %c0_234 = arith.constant 0 : index
    %163 = vector.load %arg13[%c144_233, %c0_234] : memref<400x1xf32, #tpu.memory_space<vmem>>, vector<16x1xf32>
    tpu.vector_store %arg13[%c144_233, %c0_234], %162 {strides = array<i32>} : memref<400x1xf32, #tpu.memory_space<vmem>>, vector<16x1xf32>,
    %c0_235 = arith.constant 0 : index
    %c256_236 = arith.constant 256 : index
    %164 = vector.load %arg11[%c0_235, %c256_236] : memref<16x1024xf32, #tpu.memory_space<vmem>>, vector<16x1xf32>
    %c160_237 = arith.constant 160 : index
    %c0_238 = arith.constant 0 : index
    %165 = vector.load %arg13[%c160_237, %c0_238] : memref<400x1xf32, #tpu.memory_space<vmem>>, vector<16x1xf32>
    tpu.vector_store %arg13[%c160_237, %c0_238], %164 {strides = array<i32>} : memref<400x1xf32, #tpu.memory_space<vmem>>, vector<16x1xf32>,
    %c0_239 = arith.constant 0 : index
    %c260_240 = arith.constant 260 : index
    %166 = vector.load %arg11[%c0_239, %c260_240] : memref<16x1024xf32, #tpu.memory_space<vmem>>, vector<16x1xf32>
    %c176_241 = arith.constant 176 : index
    %c0_242 = arith.constant 0 : index
    %167 = vector.load %arg13[%c176_241, %c0_242] : memref<400x1xf32, #tpu.memory_space<vmem>>, vector<16x1xf32>
    tpu.vector_store %arg13[%c176_241, %c0_242], %166 {strides = array<i32>} : memref<400x1xf32, #tpu.memory_space<vmem>>, vector<16x1xf32>,
    %c0_243 = arith.constant 0 : index
    %c264_244 = arith.constant 264 : index
    %168 = vector.load %arg11[%c0_243, %c264_244] : memref<16x1024xf32, #tpu.memory_space<vmem>>, vector<16x1xf32>
    %c192_245 = arith.constant 192 : index
    %c0_246 = arith.constant 0 : index
    %169 = vector.load %arg13[%c192_245, %c0_246] : memref<400x1xf32, #tpu.memory_space<vmem>>, vector<16x1xf32>
    tpu.vector_store %arg13[%c192_245, %c0_246], %168 {strides = array<i32>} : memref<400x1xf32, #tpu.memory_space<vmem>>, vector<16x1xf32>,
    %c0_247 = arith.constant 0 : index
    %c268 = arith.constant 268 : index
    %170 = vector.load %arg11[%c0_247, %c268] : memref<16x1024xf32, #tpu.memory_space<vmem>>, vector<16x1xf32>
    %c208 = arith.constant 208 : index
    %c0_248 = arith.constant 0 : index
    %171 = vector.load %arg13[%c208, %c0_248] : memref<400x1xf32, #tpu.memory_space<vmem>>, vector<16x1xf32>
    tpu.vector_store %arg13[%c208, %c0_248], %170 {strides = array<i32>} : memref<400x1xf32, #tpu.memory_space<vmem>>, vector<16x1xf32>,
    %c0_249 = arith.constant 0 : index
    %c272 = arith.constant 272 : index
    %172 = vector.load %arg11[%c0_249, %c272] : memref<16x1024xf32, #tpu.memory_space<vmem>>, vector<16x1xf32>
    %c224 = arith.constant 224 : index
    %c0_250 = arith.constant 0 : index
    %173 = vector.load %arg13[%c224, %c0_250] : memref<400x1xf32, #tpu.memory_space<vmem>>, vector<16x1xf32>
    tpu.vector_store %arg13[%c224, %c0_250], %172 {strides = array<i32>} : memref<400x1xf32, #tpu.memory_space<vmem>>, vector<16x1xf32>,
    %c0_251 = arith.constant 0 : index
    %c384 = arith.constant 384 : index
    %174 = vector.load %arg11[%c0_251, %c384] : memref<16x1024xf32, #tpu.memory_space<vmem>>, vector<16x1xf32>
    %c240 = arith.constant 240 : index
    %c0_252 = arith.constant 0 : index
    %175 = vector.load %arg13[%c240, %c0_252] : memref<400x1xf32, #tpu.memory_space<vmem>>, vector<16x1xf32>
    tpu.vector_store %arg13[%c240, %c0_252], %174 {strides = array<i32>} : memref<400x1xf32, #tpu.memory_space<vmem>>, vector<16x1xf32>,
    %c0_253 = arith.constant 0 : index
    %c388 = arith.constant 388 : index
    %176 = vector.load %arg11[%c0_253, %c388] : memref<16x1024xf32, #tpu.memory_space<vmem>>, vector<16x1xf32>
    %c256_254 = arith.constant 256 : index
    %c0_255 = arith.constant 0 : index
    %177 = vector.load %arg13[%c256_254, %c0_255] : memref<400x1xf32, #tpu.memory_space<vmem>>, vector<16x1xf32>
    tpu.vector_store %arg13[%c256_254, %c0_255], %176 {strides = array<i32>} : memref<400x1xf32, #tpu.memory_space<vmem>>, vector<16x1xf32>,
    %c0_256 = arith.constant 0 : index
    %c392 = arith.constant 392 : index
    %178 = vector.load %arg11[%c0_256, %c392] : memref<16x1024xf32, #tpu.memory_space<vmem>>, vector<16x1xf32>
    %c272_257 = arith.constant 272 : index
    %c0_258 = arith.constant 0 : index
    %179 = vector.load %arg13[%c272_257, %c0_258] : memref<400x1xf32, #tpu.memory_space<vmem>>, vector<16x1xf32>
    tpu.vector_store %arg13[%c272_257, %c0_258], %178 {strides = array<i32>} : memref<400x1xf32, #tpu.memory_space<vmem>>, vector<16x1xf32>,
    %c0_259 = arith.constant 0 : index
    %c396 = arith.constant 396 : index
    %180 = vector.load %arg11[%c0_259, %c396] : memref<16x1024xf32, #tpu.memory_space<vmem>>, vector<16x1xf32>
    %c288 = arith.constant 288 : index
    %c0_260 = arith.constant 0 : index
    %181 = vector.load %arg13[%c288, %c0_260] : memref<400x1xf32, #tpu.memory_space<vmem>>, vector<16x1xf32>
    tpu.vector_store %arg13[%c288, %c0_260], %180 {strides = array<i32>} : memref<400x1xf32, #tpu.memory_space<vmem>>, vector<16x1xf32>,
    %c0_261 = arith.constant 0 : index
    %c400 = arith.constant 400 : index
    %182 = vector.load %arg11[%c0_261, %c400] : memref<16x1024xf32, #tpu.memory_space<vmem>>, vector<16x1xf32>
    %c304 = arith.constant 304 : index
    %c0_262 = arith.constant 0 : index
    %183 = vector.load %arg13[%c304, %c0_262] : memref<400x1xf32, #tpu.memory_space<vmem>>, vector<16x1xf32>
    tpu.vector_store %arg13[%c304, %c0_262], %182 {strides = array<i32>} : memref<400x1xf32, #tpu.memory_space<vmem>>, vector<16x1xf32>,
    %c0_263 = arith.constant 0 : index
    %c512 = arith.constant 512 : index
    %184 = vector.load %arg11[%c0_263, %c512] : memref<16x1024xf32, #tpu.memory_space<vmem>>, vector<16x1xf32>
    %c320 = arith.constant 320 : index
    %c0_264 = arith.constant 0 : index
    %185 = vector.load %arg13[%c320, %c0_264] : memref<400x1xf32, #tpu.memory_space<vmem>>, vector<16x1xf32>
    tpu.vector_store %arg13[%c320, %c0_264], %184 {strides = array<i32>} : memref<400x1xf32, #tpu.memory_space<vmem>>, vector<16x1xf32>,
    %c0_265 = arith.constant 0 : index
    %c516 = arith.constant 516 : index
    %186 = vector.load %arg11[%c0_265, %c516] : memref<16x1024xf32, #tpu.memory_space<vmem>>, vector<16x1xf32>
    %c336 = arith.constant 336 : index
    %c0_266 = arith.constant 0 : index
    %187 = vector.load %arg13[%c336, %c0_266] : memref<400x1xf32, #tpu.memory_space<vmem>>, vector<16x1xf32>
    tpu.vector_store %arg13[%c336, %c0_266], %186 {strides = array<i32>} : memref<400x1xf32, #tpu.memory_space<vmem>>, vector<16x1xf32>,
    %c0_267 = arith.constant 0 : index
    %c520 = arith.constant 520 : index
    %188 = vector.load %arg11[%c0_267, %c520] : memref<16x1024xf32, #tpu.memory_space<vmem>>, vector<16x1xf32>
    %c352 = arith.constant 352 : index
    %c0_268 = arith.constant 0 : index
    %189 = vector.load %arg13[%c352, %c0_268] : memref<400x1xf32, #tpu.memory_space<vmem>>, vector<16x1xf32>
    tpu.vector_store %arg13[%c352, %c0_268], %188 {strides = array<i32>} : memref<400x1xf32, #tpu.memory_space<vmem>>, vector<16x1xf32>,
    %c0_269 = arith.constant 0 : index
    %c524 = arith.constant 524 : index
    %190 = vector.load %arg11[%c0_269, %c524] : memref<16x1024xf32, #tpu.memory_space<vmem>>, vector<16x1xf32>
    %c368 = arith.constant 368 : index
    %c0_270 = arith.constant 0 : index
    %191 = vector.load %arg13[%c368, %c0_270] : memref<400x1xf32, #tpu.memory_space<vmem>>, vector<16x1xf32>
    tpu.vector_store %arg13[%c368, %c0_270], %190 {strides = array<i32>} : memref<400x1xf32, #tpu.memory_space<vmem>>, vector<16x1xf32>,
    %c0_271 = arith.constant 0 : index
    %c528 = arith.constant 528 : index
    %192 = vector.load %arg11[%c0_271, %c528] : memref<16x1024xf32, #tpu.memory_space<vmem>>, vector<16x1xf32>
    %c384_272 = arith.constant 384 : index
    %c0_273 = arith.constant 0 : index
    %193 = vector.load %arg13[%c384_272, %c0_273] : memref<400x1xf32, #tpu.memory_space<vmem>>, vector<16x1xf32>
    tpu.vector_store %arg13[%c384_272, %c0_273], %192 {strides = array<i32>} : memref<400x1xf32, #tpu.memory_space<vmem>>, vector<16x1xf32>,
    %c0_274 = arith.constant 0 : index
    %c0_275 = arith.constant 0 : index
    %194 = vector.load %arg3[%c0_274, %c0_275] : memref<120x400xf32, #tpu.memory_space<vmem>>, vector<120x400xf32>
    %c0_276 = arith.constant 0 : index
    %c0_277 = arith.constant 0 : index
    %195 = vector.load %arg13[%c0_276, %c0_277] : memref<400x1xf32, #tpu.memory_space<vmem>>, vector<400x1xf32>
    %cst_278 = arith.constant dense<0.000000e+00> : vector<120x1xf32>
    %196 = tpu.matmul %194, %195, %cst_278 {dimension_numbers = #tpu.dot_dimension_numbers<[1], [0], [0], [1], [0, 0, 1, 1], [], []>} : vector<120x400xf32>, vector<400x1xf32>, vector<120x1xf32> -> vector<120x1xf32>
    %c24_279 = arith.constant 24 : index
    %c0_280 = arith.constant 0 : index
    %197 = vector.load %arg5[%c24_279, %c0_280] : memref<248x1xf32, #tpu.memory_space<vmem>>, vector<120x1xf32>
    %198 = arith.addf %196, %197 : vector<120x1xf32>
    %cst_281 = arith.constant 0.000000e+00 : f32
    %199 = vector.broadcast %cst_281 : f32 to vector<120x1xf32>
    %200 = arith.maximumf %198, %199 : vector<120x1xf32>
    %c0_282 = arith.constant 0 : index
    %c0_283 = arith.constant 0 : index
    %201 = vector.load %arg4[%c0_282, %c0_283] : memref<104x120xf32, #tpu.memory_space<vmem>>, vector<84x120xf32>
    %cst_284 = arith.constant dense<0.000000e+00> : vector<84x1xf32>
    %202 = tpu.matmul %201, %200, %cst_284 {dimension_numbers = #tpu.dot_dimension_numbers<[1], [0], [0], [1], [0, 0, 1, 1], [], []>} : vector<84x120xf32>, vector<120x1xf32>, vector<84x1xf32> -> vector<84x1xf32>
    %c144_285 = arith.constant 144 : index
    %c0_286 = arith.constant 0 : index
    %203 = vector.load %arg5[%c144_285, %c0_286] : memref<248x1xf32, #tpu.memory_space<vmem>>, vector<84x1xf32>
    %204 = arith.addf %202, %203 : vector<84x1xf32>
    %cst_287 = arith.constant 0.000000e+00 : f32
    %205 = vector.broadcast %cst_287 : f32 to vector<84x1xf32>
    %206 = arith.maximumf %204, %205 : vector<84x1xf32>
    %c88_288 = arith.constant 88 : index
    %c0_289 = arith.constant 0 : index
    %207 = vector.load %arg4[%c88_288, %c0_289] : memref<104x120xf32, #tpu.memory_space<vmem>>, vector<10x84xf32>
    %cst_290 = arith.constant dense<0.000000e+00> : vector<10x1xf32>
    %208 = tpu.matmul %207, %206, %cst_290 {dimension_numbers = #tpu.dot_dimension_numbers<[1], [0], [0], [1], [0, 0, 1, 1], [], []>} : vector<10x84xf32>, vector<84x1xf32>, vector<10x1xf32> -> vector<10x1xf32>
    %c232 = arith.constant 232 : index
    %c0_291 = arith.constant 0 : index
    %209 = vector.load %arg5[%c232, %c0_291] : memref<248x1xf32, #tpu.memory_space<vmem>>, vector<10x1xf32>
    %210 = arith.addf %208, %209 : vector<10x1xf32>
    %c0_292 = arith.constant 0 : index
    %c0_293 = arith.constant 0 : index
    %c0_294 = arith.constant 0 : index
    %211 = vector.load %arg6[%c0_292, %c0_293, %c0_294] : memref<1x10x1xf32, #tpu.memory_space<vmem>>, vector<1x10x1xf32>
    %212 = vector.shape_cast %211 : vector<1x10x1xf32> to vector<10x1xf32>
    %213 = vector.shape_cast %210 : vector<10x1xf32> to vector<1x10x1xf32>
    tpu.vector_store %arg6[%c0_292, %c0_293, %c0_294], %213 {strides = array<i32>} : memref<1x10x1xf32, #tpu.memory_space<vmem>>, vector<1x10x1xf32>,
    return
  }
  func.func @transform_0(%arg0: i32) -> (i32, i32) {
    %c0_i32 = arith.constant 0 : i32
    %c0_i32_0 = arith.constant 0 : i32
    return %c0_i32, %arg0 : i32, i32
  }
  func.func @transform_1(%arg0: i32) -> (i32, i32) {
    %c0_i32 = arith.constant 0 : i32
    %c0_i32_0 = arith.constant 0 : i32
    %c0_i32_1 = arith.constant 0 : i32
    return %c0_i32, %c0_i32_0 : i32, i32
  }
  func.func @transform_2(%arg0: i32) -> (i32, i32) {
    %c0_i32 = arith.constant 0 : i32
    %c0_i32_0 = arith.constant 0 : i32
    %c0_i32_1 = arith.constant 0 : i32
    return %c0_i32, %c0_i32_0 : i32, i32
  }
  func.func @transform_3(%arg0: i32) -> (i32, i32) {
    %c0_i32 = arith.constant 0 : i32
    %c0_i32_0 = arith.constant 0 : i32
    %c0_i32_1 = arith.constant 0 : i32
    return %c0_i32, %c0_i32_0 : i32, i32
  }
  func.func @transform_4(%arg0: i32) -> (i32, i32) {
    %c0_i32 = arith.constant 0 : i32
    %c0_i32_0 = arith.constant 0 : i32
    %c0_i32_1 = arith.constant 0 : i32
    return %c0_i32, %c0_i32_0 : i32, i32
  }
  func.func @transform_5(%arg0: i32) -> (i32, i32, i32) {
    %c0_i32 = arith.constant 0 : i32
    %c0_i32_0 = arith.constant 0 : i32
    %c0_i32_1 = arith.constant 0 : i32
    return %arg0, %c0_i32, %c0_i32_0 : i32, i32, i32
  }
}

</mosaic_0001>

<llo_original>
// kernel: net_forward.1
$region0: #{net_forward.1}
  #allocation0 [shape = 'u32[]', space=smem, size = 0x4, offset = 0x4, fixed_abs, tag = 'smem constant byte address 0x4 - core index']
  #allocation1 [shape = 'u32[144,128]{1,0:T(1,128)}', space=vmem, size = 0x12000, scoped, tag = 'internal scratch']
  #allocation2 [shape = 'f32[8,1408]{1,0:T(8,128)}', space=vmem, size = 0xb000, scoped, tag = 'scratch operand']
  #allocation3 [shape = 'f32[8,1408]{1,0:T(8,128)}', space=vmem, size = 0xb000, scoped, tag = 'scratch operand']
  #allocation4 [shape = 'f32[8,1408]{1,0:T(8,128)}', space=vmem, size = 0xb000, scoped, tag = 'scratch operand']
  #allocation5 [shape = 'f32[16,1408]{1,0:T(8,128)}', space=vmem, size = 0x16000, scoped, tag = 'scratch operand']
  #allocation6 [shape = 'f32[16,1024]{1,0:T(8,128)}', space=vmem, size = 0x10000, scoped, tag = 'scratch operand']
  #allocation7 [shape = 'f32[200,1024]{1,0:T(8,128)}', space=vmem, size = 0xc8000, scoped, tag = 'scratch operand']
  #allocation8 [shape = 'f32[400,1]{1,0:T(8,128)}', space=vmem, size = 0x32000, scoped, tag = 'scratch operand']
  %s0 = inlined_call_operand.vmem [shape: f32[8,2048], index: 0, kind: input, shape index: {}]
  %s1 = inlined_call_operand.vmem [shape: f32[24,200], index: 1, kind: input, shape index: {}]
  %s2 = inlined_call_operand.vmem [shape: f32[120,400], index: 2, kind: input, shape index: {}]
  %s3 = inlined_call_operand.vmem [shape: f32[104,120], index: 3, kind: input, shape index: {}]
  %s4 = inlined_call_operand.vmem [shape: f32[248,1], index: 4, kind: input, shape index: {}]
  %s5 = inlined_call_operand.vmem [shape: f32[2,10,1], index: 5, kind: output, shape index: {}]
  %s6 = sld [smem:[#allocation0]]
  $region53: #{net_forward.1} parent=0
    _
  %s8 = ssub.s32 1, %s6
  %s9 = scalar_select 0, %s8, %s6
  loop: start=0, step=1, limit=4
  $region2: #{net_forward.1} parent=0 // loop_pre_header
    _
  $region3: #{net_forward.1} parent=0 // loop_header
    %s11 = sphi 0, %s15
    %p12 = scmp.ge.s32.totalorder %s11, 4
    %s21 = sphi 0, %s23
    %s24 = sphi 0, %s21
    %s25 = sphi 0, %s24
    %s41 = sphi 0, %s25
    %s45 = sphi 0, %s45
    %s47 = sphi 0, %s45
    %s48 = sphi 0, %s47
    %s62 = sphi 0, %s48
    %s66 = sphi 0, %s66
    %s68 = sphi 0, %s66
    %s69 = sphi 0, %s68
    %s83 = sphi 0, %s69
    %s87 = sphi 0, %s87
    %s89 = sphi 0, %s87
    %s90 = sphi 0, %s89
    %s104 = sphi 0, %s90
    %s108 = sphi 0, %s108
    %s110 = sphi 0, %s108
    %s111 = sphi 0, %s110
    %s125 = sphi 0, %s111
    %s131 = sphi 0, %s133
    %s134 = sphi 0, %s131
    %s135 = sphi 0, %s134
    %s151 = sphi 0, %s135
  $region4: #{net_forward.1} parent=0 // loop_header_branch
    %14 = sbr.rel (%p12) target = $region8
  $region5: #{net_forward.1} parent=0 // loop_body
    %s16 = ssub.s32 %s11, 1
    %s17 = ssub.s32 %s11, 2
    %s18 = sadd.s32 %s11, 1
    %s19 = ssub.s32 %s11, %s18
    %p20 = scmp.eq.s32.totalorder %s19, 0
    %s22 = sadd.s32 %s21, 1
    %s23 = scalar_select %p20, %s21, %s22
    %p26 = pneg %p20
    %p27 = scmp.eq.s32.totalorder %s11, 1
    %p28 = por %p26, %p27
    %p29 = scmp.ne.s32.totalorder %s21, %s24
    %p30 = scmp.eq.s32.totalorder %s11, 0
    %p31 = por %p29, %p30
    %p32 = scmp.ne.s32.totalorder %s21, %s24
    %p33 = scmp.eq.s32.totalorder %s16, 1
    %p34 = por %p32, %p33
    %p35 = scmp.ne.s32.totalorder %s24, %s25
    %p36 = scmp.eq.s32.totalorder %s16, 0
    %p37 = por %p35, %p36
    %p38 = scmp.ne.s32.totalorder %s24, %s25
    %p39 = scmp.eq.s32.totalorder %s17, 1
    %p40 = por %p38, %p39
    %p42 = scmp.ne.s32.totalorder %s25, %s41
    %p43 = scmp.eq.s32.totalorder %s17, 0
    %p44 = por %p42, %p43
    %s46 = sadd.s32 %s45, 1
    %p49 = scmp.eq.s32.totalorder %s11, 1
    %p50 = scmp.ne.s32.totalorder %s45, %s47
    %p51 = scmp.eq.s32.totalorder %s11, 0
    %p52 = por %p50, %p51
    %p53 = scmp.ne.s32.totalorder %s45, %s47
    %p54 = scmp.eq.s32.totalorder %s16, 1
    %p55 = por %p53, %p54
    %p56 = scmp.ne.s32.totalorder %s47, %s48
    %p57 = scmp.eq.s32.totalorder %s16, 0
    %p58 = por %p56, %p57
    %p59 = scmp.ne.s32.totalorder %s47, %s48
    %p60 = scmp.eq.s32.totalorder %s17, 1
    %p61 = por %p59, %p60
    %p63 = scmp.ne.s32.totalorder %s48, %s62
    %p64 = scmp.eq.s32.totalorder %s17, 0
    %p65 = por %p63, %p64
    %s67 = sadd.s32 %s66, 1
    %p70 = scmp.eq.s32.totalorder %s11, 1
    %p71 = scmp.ne.s32.totalorder %s66, %s68
    %p72 = scmp.eq.s32.totalorder %s11, 0
    %p73 = por %p71, %p72
    %p74 = scmp.ne.s32.totalorder %s66, %s68
    %p75 = scmp.eq.s32.totalorder %s16, 1
    %p76 = por %p74, %p75
    %p77 = scmp.ne.s32.totalorder %s68, %s69
    %p78 = scmp.eq.s32.totalorder %s16, 0
    %p79 = por %p77, %p78
    %p80 = scmp.ne.s32.totalorder %s68, %s69
    %p81 = scmp.eq.s32.totalorder %s17, 1
    %p82 = por %p80, %p81
    %p84 = scmp.ne.s32.totalorder %s69, %s83
    %p85 = scmp.eq.s32.totalorder %s17, 0
    %p86 = por %p84, %p85
    %s88 = sadd.s32 %s87, 1
    %p91 = scmp.eq.s32.totalorder %s11, 1
    %p92 = scmp.ne.s32.totalorder %s87, %s89
    %p93 = scmp.eq.s32.totalorder %s11, 0
    %p94 = por %p92, %p93
    %p95 = scmp.ne.s32.totalorder %s87, %s89
    %p96 = scmp.eq.s32.totalorder %s16, 1
    %p97 = por %p95, %p96
    %p98 = scmp.ne.s32.totalorder %s89, %s90
    %p99 = scmp.eq.s32.totalorder %s16, 0
    %p100 = por %p98, %p99
    %p101 = scmp.ne.s32.totalorder %s89, %s90
    %p102 = scmp.eq.s32.totalorder %s17, 1
    %p103 = por %p101, %p102
    %p105 = scmp.ne.s32.totalorder %s90, %s104
    %p106 = scmp.eq.s32.totalorder %s17, 0
    %p107 = por %p105, %p106
    %s109 = sadd.s32 %s108, 1
    %p112 = scmp.eq.s32.totalorder %s11, 1
    %p113 = scmp.ne.s32.totalorder %s108, %s110
    %p114 = scmp.eq.s32.totalorder %s11, 0
    %p115 = por %p113, %p114
    %p116 = scmp.ne.s32.totalorder %s108, %s110
    %p117 = scmp.eq.s32.totalorder %s16, 1
    %p118 = por %p116, %p117
    %p119 = scmp.ne.s32.totalorder %s110, %s111
    %p120 = scmp.eq.s32.totalorder %s16, 0
    %p121 = por %p119, %p120
    %p122 = scmp.ne.s32.totalorder %s110, %s111
    %p123 = scmp.eq.s32.totalorder %s17, 1
    %p124 = por %p122, %p123
    %p126 = scmp.ne.s32.totalorder %s111, %s125
    %p127 = scmp.eq.s32.totalorder %s17, 0
    %p128 = por %p126, %p127
    %s129 = ssub.s32 %s11, %s18
    %p130 = scmp.eq.s32.totalorder %s129, 0
    %s132 = sadd.s32 %s131, 1
    %s133 = scalar_select %p130, %s131, %s132
    %p136 = pneg %p130
    %p137 = scmp.eq.s32.totalorder %s11, 1
    %p138 = por %p136, %p137
    %p139 = scmp.ne.s32.totalorder %s131, %s134
    %p140 = scmp.eq.s32.totalorder %s11, 0
    %p141 = por %p139, %p140
    %p142 = scmp.ne.s32.totalorder %s131, %s134
    %p143 = scmp.eq.s32.totalorder %s16, 1
    %p144 = por %p142, %p143
    %p145 = scmp.ne.s32.totalorder %s134, %s135
    %p146 = scmp.eq.s32.totalorder %s16, 0
    %p147 = por %p145, %p146
    %p148 = scmp.ne.s32.totalorder %s134, %s135
    %p149 = scmp.eq.s32.totalorder %s17, 1
    %p150 = por %p148, %p149
    %p152 = scmp.ne.s32.totalorder %s135, %s151
    %p153 = scmp.eq.s32.totalorder %s17, 0
    %p154 = por %p152, %p153
    %p155 = scmp.le.s32.totalorder 1, %s11
    %p156 = scmp.lt.s32.totalorder %s11, 3
    %p157 = pnand %p155, %p156
    %p158 = pneg %p157
    // Predicated region
    $region9: #{net_forward.1} parent=5 // pred_check
      _
    $region10: #{net_forward.1} parent=5 // pred_check_branch
      %160 = sbr.rel (%p157) target = $region12
    $region11: #{net_forward.1} parent=5 // pred_region
      %s161 = ssub.s32 %s11, 1
      // Predicated region
      $region13: #{net_forward.1} parent=11 // pred_check
        %p162 = pneg %p58
      $region14: #{net_forward.1} parent=11 // pred_check_branch
        %164 = sbr.rel (%p162) target = $region16
      $region15: #{net_forward.1} parent=11 // pred_region
        _
      $region16: #{net_forward.1} parent=11 // pred_fallthru
        _
      // Predicated region
      $region17: #{net_forward.1} parent=11 // pred_check
        %p165 = pneg %p79
      $region18: #{net_forward.1} parent=11 // pred_check_branch
        %167 = sbr.rel (%p165) target = $region20
      $region19: #{net_forward.1} parent=11 // pred_region
        _
      $region20: #{net_forward.1} parent=11 // pred_fallthru
        _
      // Predicated region
      $region21: #{net_forward.1} parent=11 // pred_check
        %p168 = pneg %p100
      $region22: #{net_forward.1} parent=11 // pred_check_branch
        %170 = sbr.rel (%p168) target = $region24
      $region23: #{net_forward.1} parent=11 // pred_region
        _
      $region24: #{net_forward.1} parent=11 // pred_fallthru
        _
      // Predicated region
      $region25: #{net_forward.1} parent=11 // pred_check
        %p171 = pneg %p121
      $region26: #{net_forward.1} parent=11 // pred_check_branch
        %173 = sbr.rel (%p171) target = $region28
      $region27: #{net_forward.1} parent=11 // pred_region
        _
      $region28: #{net_forward.1} parent=11 // pred_fallthru
        _
    $region12: #{net_forward.1} parent=5 // pred_fallthru
      _
    %p174 = scmp.lt.s32.totalorder %s11, 2
    // Predicated region
    $region29: #{net_forward.1} parent=5 // pred_check
      %p175 = pneg %p174
    $region30: #{net_forward.1} parent=5 // pred_check_branch
      %177 = sbr.rel (%p175) target = $region32
    $region31: #{net_forward.1} parent=5 // pred_region
      // Predicated region
      $region33: #{net_forward.1} parent=31 // pred_check
        %p178 = pneg %p31
      $region34: #{net_forward.1} parent=31 // pred_check_branch
        %180 = sbr.rel (%p178) target = $region36
      $region35: #{net_forward.1} parent=31 // pred_region
        %s181 = smul.u32 8, %s11
        %p182 = scmp.lt.s32.totalorder %s181, 15
        %s183 = scalar_select %p182, %s181, 15
        %s184 = smul.addr %s183, 8
        %s185 = scalar_lea.vmem %s0, %s184
        %s186 = smul.u32 8, %s11
      $region36: #{net_forward.1} parent=31 // pred_fallthru
        _
    $region32: #{net_forward.1} parent=5 // pred_fallthru
      _
    %p187 = scmp.le.s32.totalorder 1, %s11
    %p188 = scmp.lt.s32.totalorder %s11, 3
    %p189 = pnand %p187, %p188
    %p190 = pneg %p189
    // Predicated region
    $region37: #{net_forward.1} parent=5 // pred_check
      _
    $region38: #{net_forward.1} parent=5 // pred_check_branch
      %192 = sbr.rel (%p189) target = $region40
    $region39: #{net_forward.1} parent=5 // pred_region
      %s193 = ssub.s32 %s11, 1
      %s194 = smul.u32 8, %s16
      %p195 = scmp.lt.s32.totalorder %s194, 15
      %s196 = scalar_select %p195, %s194, 15
      %s197 = smul.addr %s196, 8
      %s198 = scalar_lea.vmem %s0, %s197
      %p199 = pneg %p37
      %p200 = pneg %p34
      %p201 = pneg %p58
      %p202 = pneg %p55
      %p203 = pneg %p79
      %p204 = pneg %p76
      %p205 = pneg %p100
      %p206 = pneg %p97
      %p207 = pneg %p121
      %p208 = pneg %p118
      %p209 = pneg %p147
      %p210 = pneg %p144
      %p211 = scmp.lt.s32.totalorder %s16, 1
      %s212 = scalar_select %p211, %s16, 1
      %s213 = smul.addr %s212, 2
      %s214 = smul.addr %s213, 8
      %s215 = scalar_lea.vmem %s5, %s214
      %s216 = smul.u32 8, %s16
      %p217 = scmp.lt.s32.totalorder %s216, 15
      %s218 = scalar_select %p217, %s216, 15
      %s219 = smul.addr %s218, 8
      %s220 = scalar_lea.vmem %s0, %s219
      %s221 = smul.u32 8, %s16
      %p222 = scmp.lt.s32.totalorder %s16, 1
      %s223 = scalar_select %p222, %s16, 1
      %s224 = smul.addr %s223, 2
      %s225 = smul.addr %s224, 8
      %s226 = scalar_lea.vmem %s5, %s225
      %v227 = vld [vmem:[%s220] sm:$0xff]
      %v228 = vld [vmem:[%s220 + $0x8] sm:$0xff]
      %v229 = vld [vmem:[%s220 + $0x10] sm:$0xff]
      %v230 = vld [vmem:[%s220 + $0x18] sm:$0xff]
      %v231 = vld [vmem:[%s220 + $0x20] sm:$0xff]
      %v232 = vld [vmem:[%s220 + $0x28] sm:$0xff]
      %v233 = vld [vmem:[%s220 + $0x30] sm:$0xff]
      %v234 = vld [vmem:[%s220 + $0x38] sm:$0xff]
      %235 = vst [vmem:[#allocation2] sm:$0xff] %v227
      %236 = vst [vmem:[#allocation2 + $0x8] sm:$0xff] %v228
      %237 = vst [vmem:[#allocation2 + $0x10] sm:$0xff] %v229
      %238 = vst [vmem:[#allocation2 + $0x18] sm:$0xff] %v230
      %239 = vst [vmem:[#allocation2 + $0x20] sm:$0xff] %v231
      %240 = vst [vmem:[#allocation2 + $0x28] sm:$0xff] %v232
      %241 = vst [vmem:[#allocation2 + $0x30] sm:$0xff] %v233
      %242 = vst [vmem:[#allocation2 + $0x38] sm:$0xff] %v234
      %243 = vst [vmem:[#allocation2 + $0x40] sm:$0xff] 0.0
      %244 = vst [vmem:[#allocation2 + $0x48] sm:$0xff] 0.0
      %245 = vst [vmem:[#allocation2 + $0x50] sm:$0xff] 0.0
      %246 = vst [vmem:[#allocation3 + $0x40] sm:$0xff] 0.0
      %247 = vst [vmem:[#allocation3 + $0x48] sm:$0xff] 0.0
      %248 = vst [vmem:[#allocation3 + $0x50] sm:$0xff] 0.0
      %249 = vst [vmem:[#allocation4 + $0x40] sm:$0xff] 0.0
      %250 = vst [vmem:[#allocation4 + $0x48] sm:$0xff] 0.0
      %251 = vst [vmem:[#allocation4 + $0x50] sm:$0xff] 0.0
      %252 = vst [vmem:[#allocation5 + $0x40] sm:$0xff] 0.0
      %253 = vst [vmem:[#allocation5 + $0x48] sm:$0xff] 0.0
      %254 = vst [vmem:[#allocation5 + $0x50] sm:$0xff] 0.0
      %255 = vst [vmem:[#allocation5 + $0x98] sm:$0xff] 0.0
      %256 = vst [vmem:[#allocation5 + $0xa0] sm:$0xff] 0.0
      %257 = vst [vmem:[#allocation5 + $0xa8] sm:$0xff] 0.0
      %v258 = vld [vmem:[%s1] sm:$0xff]
      %v259 = vld [vmem:[%s1 + $0x8] sm:$0xff]
      %v260 = vld [vmem:[%s4] sm:$0xff]
      %v261 = vld [vmem:[#allocation2] sm:$0xff]
      %v262 = vld [vmem:[#allocation2 + $0x8] sm:$0xff]
      %v263 = vld [vmem:[#allocation2 + $0x10] sm:$0xff]
      %v264 = vld [vmem:[#allocation2 + $0x18] sm:$0xff]
      %v265 = vld [vmem:[#allocation2 + $0x20] sm:$0xff]
      %v266 = vld [vmem:[#allocation2 + $0x28] sm:$0xff]
      %v267 = vld [vmem:[#allocation2 + $0x30] sm:$0xff]
      %v268 = vld [vmem:[#allocation2 + $0x38] sm:$0xff]
      %269 = vst [vmem:[#allocation7] sm:$0xff] %v261
      %270 = vst [vmem:[#allocation7 + $0x8] sm:$0xff] %v262
      %271 = vst [vmem:[#allocation7 + $0x10] sm:$0xff] %v263
      %272 = vst [vmem:[#allocation7 + $0x18] sm:$0xff] %v264
      %273 = vst [vmem:[#allocation7 + $0x20] sm:$0xff] %v265
      %274 = vst [vmem:[#allocation7 + $0x28] sm:$0xff] %v266
      %275 = vst [vmem:[#allocation7 + $0x30] sm:$0xff] %v267
      %276 = vst [vmem:[#allocation7 + $0x38] sm:$0xff] %v268
      %v277 = vld [vmem:[#allocation2] sm:$0xff]
      %v278 = vld [vmem:[#allocation2 + $0x8] sm:$0xff]
      %v279 = vld [vmem:[#allocation2 + $0x10] sm:$0xff]
      %v280 = vld [vmem:[#allocation2 + $0x18] sm:$0xff]
      %v281 = vld [vmem:[#allocation2 + $0x20] sm:$0xff]
      %v282 = vld [vmem:[#allocation2 + $0x28] sm:$0xff]
      %v283 = vld [vmem:[#allocation2 + $0x30] sm:$0xff]
      %v284 = vld [vmem:[#allocation2 + $0x38] sm:$0xff]
      %v285 = vld [vmem:[#allocation2 + $0x40] sm:$0xff]
      %295 = vrot.lane.b32.xlu0 %v277, 127
      %v296 = vpop.permute.xlu0 %295
      %297 = vrot.lane.b32.xlu0 %v278, 127
      %v298 = vpop.permute.xlu0 %297
      %299 = vrot.lane.b32.xlu0 %v279, 127
      %v300 = vpop.permute.xlu0 %299
      %301 = vrot.lane.b32.xlu0 %v280, 127
      %v302 = vpop.permute.xlu0 %301
      %303 = vrot.lane.b32.xlu0 %v281, 127
      %v304 = vpop.permute.xlu0 %303
      %305 = vrot.lane.b32.xlu0 %v282, 127
      %v306 = vpop.permute.xlu0 %305
      %307 = vrot.lane.b32.xlu0 %v283, 127
      %v308 = vpop.permute.xlu0 %307
      %309 = vrot.lane.b32.xlu0 %v284, 127
      %v310 = vpop.permute.xlu0 %309
      %311 = vrot.lane.b32.xlu0 %v285, 127
      %v312 = vpop.permute.xlu0 %311
      %vm313 = vcmask 1039360
      %v314 = vsel %vm313, %v296, %v298
      %v315 = vsel %vm313, %v298, %v300
      %v316 = vsel %vm313, %v300, %v302
      %v317 = vsel %vm313, %v302, %v304
      %v318 = vsel %vm313, %v304, %v306
      %v319 = vsel %vm313, %v306, %v308
      %v320 = vsel %vm313, %v308, %v310
      %v321 = vsel %vm313, %v310, %v312
      %330 = vst [vmem:[#allocation7 + $0x40] sm:$0xff] %v314
      %331 = vst [vmem:[#allocation7 + $0x48] sm:$0xff] %v315
      %332 = vst [vmem:[#allocation7 + $0x50] sm:$0xff] %v316
      %333 = vst [vmem:[#allocation7 + $0x58] sm:$0xff] %v317
      %334 = vst [vmem:[#allocation7 + $0x60] sm:$0xff] %v318
      %335 = vst [vmem:[#allocation7 + $0x68] sm:$0xff] %v319
      %336 = vst [vmem:[#allocation7 + $0x70] sm:$0xff] %v320
      %337 = vst [vmem:[#allocation7 + $0x78] sm:$0xff] %v321
      %v338 = vld [vmem:[#allocation2] sm:$0xff]
      %v339 = vld [vmem:[#allocation2 + $0x8] sm:$0xff]
      %v340 = vld [vmem:[#allocation2 + $0x10] sm:$0xff]
      %v341 = vld [vmem:[#allocation2 + $0x18] sm:$0xff]
      %v342 = vld [vmem:[#allocation2 + $0x20] sm:$0xff]
      %v343 = vld [vmem:[#allocation2 + $0x28] sm:$0xff]
      %v344 = vld [vmem:[#allocation2 + $0x30] sm:$0xff]
      %v345 = vld [vmem:[#allocation2 + $0x38] sm:$0xff]
      %v346 = vld [vmem:[#allocation2 + $0x40] sm:$0xff]
      %356 = vrot.lane.b32.xlu0 %v338, 126
      %v357 = vpop.permute.xlu0 %356
      %358 = vrot.lane.b32.xlu0 %v339, 126
      %v359 = vpop.permute.xlu0 %358
      %360 = vrot.lane.b32.xlu0 %v340, 126
      %v361 = vpop.permute.xlu0 %360
      %362 = vrot.lane.b32.xlu0 %v341, 126
      %v363 = vpop.permute.xlu0 %362
      %364 = vrot.lane.b32.xlu0 %v342, 126
      %v365 = vpop.permute.xlu0 %364
      %366 = vrot.lane.b32.xlu0 %v343, 126
      %v367 = vpop.permute.xlu0 %366
      %368 = vrot.lane.b32.xlu0 %v344, 126
      %v369 = vpop.permute.xlu0 %368
      %370 = vrot.lane.b32.xlu0 %v345, 126
      %v371 = vpop.permute.xlu0 %370
      %372 = vrot.lane.b32.xlu0 %v346, 126
      %v373 = vpop.permute.xlu0 %372
      %vm374 = vcmask 1031168
      %v375 = vsel %vm374, %v357, %v359
      %v376 = vsel %vm374, %v359, %v361
      %v377 = vsel %vm374, %v361, %v363
      %v378 = vsel %vm374, %v363, %v365
      %v379 = vsel %vm374, %v365, %v367
      %v380 = vsel %vm374, %v367, %v369
      %v381 = vsel %vm374, %v369, %v371
      %v382 = vsel %vm374, %v371, %v373
      %391 = vst [vmem:[#allocation7 + $0x80] sm:$0xff] %v375
      %392 = vst [vmem:[#allocation7 + $0x88] sm:$0xff] %v376
      %393 = vst [vmem:[#allocation7 + $0x90] sm:$0xff] %v377
      %394 = vst [vmem:[#allocation7 + $0x98] sm:$0xff] %v378
      %395 = vst [vmem:[#allocation7 + $0xa0] sm:$0xff] %v379
      %396 = vst [vmem:[#allocation7 + $0xa8] sm:$0xff] %v380
      %397 = vst [vmem:[#allocation7 + $0xb0] sm:$0xff] %v381
      %398 = vst [vmem:[#allocation7 + $0xb8] sm:$0xff] %v382
      %v399 = vld [vmem:[#allocation2] sm:$0xff]
      %v400 = vld [vmem:[#allocation2 + $0x8] sm:$0xff]
      %v401 = vld [vmem:[#allocation2 + $0x10] sm:$0xff]
      %v402 = vld [vmem:[#allocation2 + $0x18] sm:$0xff]
      %v403 = vld [vmem:[#allocation2 + $0x20] sm:$0xff]
      %v404 = vld [vmem:[#allocation2 + $0x28] sm:$0xff]
      %v405 = vld [vmem:[#allocation2 + $0x30] sm:$0xff]
      %v406 = vld [vmem:[#allocation2 + $0x38] sm:$0xff]
      %v407 = vld [vmem:[#allocation2 + $0x40] sm:$0xff]
      %417 = vrot.lane.b32.xlu0 %v399, 125
      %v418 = vpop.permute.xlu0 %417
      %419 = vrot.lane.b32.xlu0 %v400, 125
      %v420 = vpop.permute.xlu0 %419
      %421 = vrot.lane.b32.xlu0 %v401, 125
      %v422 = vpop.permute.xlu0 %421
      %423 = vrot.lane.b32.xlu0 %v402, 125
      %v424 = vpop.permute.xlu0 %423
      %425 = vrot.lane.b32.xlu0 %v403, 125
      %v426 = vpop.permute.xlu0 %425
      %427 = vrot.lane.b32.xlu0 %v404, 125
      %v428 = vpop.permute.xlu0 %427
      %429 = vrot.lane.b32.xlu0 %v405, 125
      %v430 = vpop.permute.xlu0 %429
      %431 = vrot.lane.b32.xlu0 %v406, 125
      %v432 = vpop.permute.xlu0 %431
      %433 = vrot.lane.b32.xlu0 %v407, 125
      %v434 = vpop.permute.xlu0 %433
      %vm435 = vcmask 1022976
      %v436 = vsel %vm435, %v418, %v420
      %v437 = vsel %vm435, %v420, %v422
      %v438 = vsel %vm435, %v422, %v424
      %v439 = vsel %vm435, %v424, %v426
      %v440 = vsel %vm435, %v426, %v428
      %v441 = vsel %vm435, %v428, %v430
      %v442 = vsel %vm435, %v430, %v432
      %v443 = vsel %vm435, %v432, %v434
      %452 = vst [vmem:[#allocation7 + $0xc0] sm:$0xff] %v436
      %453 = vst [vmem:[#allocation7 + $0xc8] sm:$0xff] %v437
      %454 = vst [vmem:[#allocation7 + $0xd0] sm:$0xff] %v438
      %455 = vst [vmem:[#allocation7 + $0xd8] sm:$0xff] %v439
      %456 = vst [vmem:[#allocation7 + $0xe0] sm:$0xff] %v440
      %457 = vst [vmem:[#allocation7 + $0xe8] sm:$0xff] %v441
      %458 = vst [vmem:[#allocation7 + $0xf0] sm:$0xff] %v442
      %459 = vst [vmem:[#allocation7 + $0xf8] sm:$0xff] %v443
      %v460 = vld [vmem:[#allocation2] sm:$0xff]
      %v461 = vld [vmem:[#allocation2 + $0x8] sm:$0xff]
      %v462 = vld [vmem:[#allocation2 + $0x10] sm:$0xff]
      %v463 = vld [vmem:[#allocation2 + $0x18] sm:$0xff]
      %v464 = vld [vmem:[#allocation2 + $0x20] sm:$0xff]
      %v465 = vld [vmem:[#allocation2 + $0x28] sm:$0xff]
      %v466 = vld [vmem:[#allocation2 + $0x30] sm:$0xff]
      %v467 = vld [vmem:[#allocation2 + $0x38] sm:$0xff]
      %v468 = vld [vmem:[#allocation2 + $0x40] sm:$0xff]
      %478 = vrot.lane.b32.xlu0 %v460, 124
      %v479 = vpop.permute.xlu0 %478
      %480 = vrot.lane.b32.xlu0 %v461, 124
      %v481 = vpop.permute.xlu0 %480
      %482 = vrot.lane.b32.xlu0 %v462, 124
      %v483 = vpop.permute.xlu0 %482
      %484 = vrot.lane.b32.xlu0 %v463, 124
      %v485 = vpop.permute.xlu0 %484
      %486 = vrot.lane.b32.xlu0 %v464, 124
      %v487 = vpop.permute.xlu0 %486
      %488 = vrot.lane.b32.xlu0 %v465, 124
      %v489 = vpop.permute.xlu0 %488
      %490 = vrot.lane.b32.xlu0 %v466, 124
      %v491 = vpop.permute.xlu0 %490
      %492 = vrot.lane.b32.xlu0 %v467, 124
      %v493 = vpop.permute.xlu0 %492
      %494 = vrot.lane.b32.xlu0 %v468, 124
      %v495 = vpop.permute.xlu0 %494
      %vm496 = vcmask 1014784
      %v497 = vsel %vm496, %v479, %v481
      %v498 = vsel %vm496, %v481, %v483
      %v499 = vsel %vm496, %v483, %v485
      %v500 = vsel %vm496, %v485, %v487
      %v501 = vsel %vm496, %v487, %v489
      %v502 = vsel %vm496, %v489, %v491
      %v503 = vsel %vm496, %v491, %v493
      %v504 = vsel %vm496, %v493, %v495
      %513 = vst [vmem:[#allocation7 + $0x100] sm:$0xff] %v497
      %514 = vst [vmem:[#allocation7 + $0x108] sm:$0xff] %v498
      %515 = vst [vmem:[#allocation7 + $0x110] sm:$0xff] %v499
      %516 = vst [vmem:[#allocation7 + $0x118] sm:$0xff] %v500
      %517 = vst [vmem:[#allocation7 + $0x120] sm:$0xff] %v501
      %518 = vst [vmem:[#allocation7 + $0x128] sm:$0xff] %v502
      %519 = vst [vmem:[#allocation7 + $0x130] sm:$0xff] %v503
      %520 = vst [vmem:[#allocation7 + $0x138] sm:$0xff] %v504
      %v521 = vld [vmem:[#allocation2] sm:$0xff]
      %v522 = vld [vmem:[#allocation2 + $0x8] sm:$0xff]
      %v523 = vld [vmem:[#allocation2 + $0x10] sm:$0xff]
      %v524 = vld [vmem:[#allocation2 + $0x18] sm:$0xff]
      %v525 = vld [vmem:[#allocation2 + $0x20] sm:$0xff]
      %v526 = vld [vmem:[#allocation2 + $0x28] sm:$0xff]
      %v527 = vld [vmem:[#allocation2 + $0x30] sm:$0xff]
      %v528 = vld [vmem:[#allocation2 + $0x38] sm:$0xff]
      %v529 = vld [vmem:[#allocation2 + $0x40] sm:$0xff]
      %539 = vrot.lane.b32.xlu0 %v521, 96
      %v540 = vpop.permute.xlu0 %539
      %541 = vrot.lane.b32.xlu0 %v522, 96
      %v542 = vpop.permute.xlu0 %541
      %543 = vrot.lane.b32.xlu0 %v523, 96
      %v544 = vpop.permute.xlu0 %543
      %545 = vrot.lane.b32.xlu0 %v524, 96
      %v546 = vpop.permute.xlu0 %545
      %547 = vrot.lane.b32.xlu0 %v525, 96
      %v548 = vpop.permute.xlu0 %547
      %549 = vrot.lane.b32.xlu0 %v526, 96
      %v550 = vpop.permute.xlu0 %549
      %551 = vrot.lane.b32.xlu0 %v527, 96
      %v552 = vpop.permute.xlu0 %551
      %553 = vrot.lane.b32.xlu0 %v528, 96
      %v554 = vpop.permute.xlu0 %553
      %555 = vrot.lane.b32.xlu0 %v529, 96
      %v556 = vpop.permute.xlu0 %555
      %vm557 = vcmask 785408
      %v558 = vsel %vm557, %v540, %v542
      %v559 = vsel %vm557, %v542, %v544
      %v560 = vsel %vm557, %v544, %v546
      %v561 = vsel %vm557, %v546, %v548
      %v562 = vsel %vm557, %v548, %v550
      %v563 = vsel %vm557, %v550, %v552
      %v564 = vsel %vm557, %v552, %v554
      %v565 = vsel %vm557, %v554, %v556
      %574 = vst [vmem:[#allocation7 + $0x140] sm:$0xff] %v558
      %575 = vst [vmem:[#allocation7 + $0x148] sm:$0xff] %v559
      %576 = vst [vmem:[#allocation7 + $0x150] sm:$0xff] %v560
      %577 = vst [vmem:[#allocation7 + $0x158] sm:$0xff] %v561
      %578 = vst [vmem:[#allocation7 + $0x160] sm:$0xff] %v562
      %579 = vst [vmem:[#allocation7 + $0x168] sm:$0xff] %v563
      %580 = vst [vmem:[#allocation7 + $0x170] sm:$0xff] %v564
      %581 = vst [vmem:[#allocation7 + $0x178] sm:$0xff] %v565
      %v582 = vld [vmem:[#allocation2] sm:$0xff]
      %v583 = vld [vmem:[#allocation2 + $0x8] sm:$0xff]
      %v584 = vld [vmem:[#allocation2 + $0x10] sm:$0xff]
      %v585 = vld [vmem:[#allocation2 + $0x18] sm:$0xff]
      %v586 = vld [vmem:[#allocation2 + $0x20] sm:$0xff]
      %v587 = vld [vmem:[#allocation2 + $0x28] sm:$0xff]
      %v588 = vld [vmem:[#allocation2 + $0x30] sm:$0xff]
      %v589 = vld [vmem:[#allocation2 + $0x38] sm:$0xff]
      %v590 = vld [vmem:[#allocation2 + $0x40] sm:$0xff]
      %600 = vrot.lane.b32.xlu0 %v582, 95
      %v601 = vpop.permute.xlu0 %600
      %602 = vrot.lane.b32.xlu0 %v583, 95
      %v603 = vpop.permute.xlu0 %602
      %604 = vrot.lane.b32.xlu0 %v584, 95
      %v605 = vpop.permute.xlu0 %604
      %606 = vrot.lane.b32.xlu0 %v585, 95
      %v607 = vpop.permute.xlu0 %606
      %608 = vrot.lane.b32.xlu0 %v586, 95
      %v609 = vpop.permute.xlu0 %608
      %610 = vrot.lane.b32.xlu0 %v587, 95
      %v611 = vpop.permute.xlu0 %610
      %612 = vrot.lane.b32.xlu0 %v588, 95
      %v613 = vpop.permute.xlu0 %612
      %614 = vrot.lane.b32.xlu0 %v589, 95
      %v615 = vpop.permute.xlu0 %614
      %616 = vrot.lane.b32.xlu0 %v590, 95
      %v617 = vpop.permute.xlu0 %616
      %vm618 = vcmask 777216
      %v619 = vsel %vm618, %v601, %v603
      %v620 = vsel %vm618, %v603, %v605
      %v621 = vsel %vm618, %v605, %v607
      %v622 = vsel %vm618, %v607, %v609
      %v623 = vsel %vm618, %v609, %v611
      %v624 = vsel %vm618, %v611, %v613
      %v625 = vsel %vm618, %v613, %v615
      %v626 = vsel %vm618, %v615, %v617
      %635 = vst [vmem:[#allocation7 + $0x180] sm:$0xff] %v619
      %636 = vst [vmem:[#allocation7 + $0x188] sm:$0xff] %v620
      %637 = vst [vmem:[#allocation7 + $0x190] sm:$0xff] %v621
      %638 = vst [vmem:[#allocation7 + $0x198] sm:$0xff] %v622
      %639 = vst [vmem:[#allocation7 + $0x1a0] sm:$0xff] %v623
      %640 = vst [vmem:[#allocation7 + $0x1a8] sm:$0xff] %v624
      %641 = vst [vmem:[#allocation7 + $0x1b0] sm:$0xff] %v625
      %642 = vst [vmem:[#allocation7 + $0x1b8] sm:$0xff] %v626
      %v643 = vld [vmem:[#allocation2] sm:$0xff]
      %v644 = vld [vmem:[#allocation2 + $0x8] sm:$0xff]
      %v645 = vld [vmem:[#allocation2 + $0x10] sm:$0xff]
      %v646 = vld [vmem:[#allocation2 + $0x18] sm:$0xff]
      %v647 = vld [vmem:[#allocation2 + $0x20] sm:$0xff]
      %v648 = vld [vmem:[#allocation2 + $0x28] sm:$0xff]
      %v649 = vld [vmem:[#allocation2 + $0x30] sm:$0xff]
      %v650 = vld [vmem:[#allocation2 + $0x38] sm:$0xff]
      %v651 = vld [vmem:[#allocation2 + $0x40] sm:$0xff]
      %661 = vrot.lane.b32.xlu0 %v643, 94
      %v662 = vpop.permute.xlu0 %661
      %663 = vrot.lane.b32.xlu0 %v644, 94
      %v664 = vpop.permute.xlu0 %663
      %665 = vrot.lane.b32.xlu0 %v645, 94
      %v666 = vpop.permute.xlu0 %665
      %667 = vrot.lane.b32.xlu0 %v646, 94
      %v668 = vpop.permute.xlu0 %667
      %669 = vrot.lane.b32.xlu0 %v647, 94
      %v670 = vpop.permute.xlu0 %669
      %671 = vrot.lane.b32.xlu0 %v648, 94
      %v672 = vpop.permute.xlu0 %671
      %673 = vrot.lane.b32.xlu0 %v649, 94
      %v674 = vpop.permute.xlu0 %673
      %675 = vrot.lane.b32.xlu0 %v650, 94
      %v676 = vpop.permute.xlu0 %675
      %677 = vrot.lane.b32.xlu0 %v651, 94
      %v678 = vpop.permute.xlu0 %677
      %vm679 = vcmask 769024
      %v680 = vsel %vm679, %v662, %v664
      %v681 = vsel %vm679, %v664, %v666
      %v682 = vsel %vm679, %v666, %v668
      %v683 = vsel %vm679, %v668, %v670
      %v684 = vsel %vm679, %v670, %v672
      %v685 = vsel %vm679, %v672, %v674
      %v686 = vsel %vm679, %v674, %v676
      %v687 = vsel %vm679, %v676, %v678
      %696 = vst [vmem:[#allocation7 + $0x1c0] sm:$0xff] %v680
      %697 = vst [vmem:[#allocation7 + $0x1c8] sm:$0xff] %v681
      %698 = vst [vmem:[#allocation7 + $0x1d0] sm:$0xff] %v682
      %699 = vst [vmem:[#allocation7 + $0x1d8] sm:$0xff] %v683
      %700 = vst [vmem:[#allocation7 + $0x1e0] sm:$0xff] %v684
      %701 = vst [vmem:[#allocation7 + $0x1e8] sm:$0xff] %v685
      %702 = vst [vmem:[#allocation7 + $0x1f0] sm:$0xff] %v686
      %703 = vst [vmem:[#allocation7 + $0x1f8] sm:$0xff] %v687
      %v704 = vld [vmem:[#allocation2] sm:$0xff]
      %v705 = vld [vmem:[#allocation2 + $0x8] sm:$0xff]
      %v706 = vld [vmem:[#allocation2 + $0x10] sm:$0xff]
      %v707 = vld [vmem:[#allocation2 + $0x18] sm:$0xff]
      %v708 = vld [vmem:[#allocation2 + $0x20] sm:$0xff]
      %v709 = vld [vmem:[#allocation2 + $0x28] sm:$0xff]
      %v710 = vld [vmem:[#allocation2 + $0x30] sm:$0xff]
      %v711 = vld [vmem:[#allocation2 + $0x38] sm:$0xff]
      %v712 = vld [vmem:[#allocation2 + $0x40] sm:$0xff]
      %722 = vrot.lane.b32.xlu0 %v704, 93
      %v723 = vpop.permute.xlu0 %722
      %724 = vrot.lane.b32.xlu0 %v705, 93
      %v725 = vpop.permute.xlu0 %724
      %726 = vrot.lane.b32.xlu0 %v706, 93
      %v727 = vpop.permute.xlu0 %726
      %728 = vrot.lane.b32.xlu0 %v707, 93
      %v729 = vpop.permute.xlu0 %728
      %730 = vrot.lane.b32.xlu0 %v708, 93
      %v731 = vpop.permute.xlu0 %730
      %732 = vrot.lane.b32.xlu0 %v709, 93
      %v733 = vpop.permute.xlu0 %732
      %734 = vrot.lane.b32.xlu0 %v710, 93
      %v735 = vpop.permute.xlu0 %734
      %736 = vrot.lane.b32.xlu0 %v711, 93
      %v737 = vpop.permute.xlu0 %736
      %738 = vrot.lane.b32.xlu0 %v712, 93
      %v739 = vpop.permute.xlu0 %738
      %vm740 = vcmask 760832
      %v741 = vsel %vm740, %v723, %v725
      %v742 = vsel %vm740, %v725, %v727
      %v743 = vsel %vm740, %v727, %v729
      %v744 = vsel %vm740, %v729, %v731
      %v745 = vsel %vm740, %v731, %v733
      %v746 = vsel %vm740, %v733, %v735
      %v747 = vsel %vm740, %v735, %v737
      %v748 = vsel %vm740, %v737, %v739
      %757 = vst [vmem:[#allocation7 + $0x200] sm:$0xff] %v741
      %758 = vst [vmem:[#allocation7 + $0x208] sm:$0xff] %v742
      %759 = vst [vmem:[#allocation7 + $0x210] sm:$0xff] %v743
      %760 = vst [vmem:[#allocation7 + $0x218] sm:$0xff] %v744
      %761 = vst [vmem:[#allocation7 + $0x220] sm:$0xff] %v745
      %762 = vst [vmem:[#allocation7 + $0x228] sm:$0xff] %v746
      %763 = vst [vmem:[#allocation7 + $0x230] sm:$0xff] %v747
      %764 = vst [vmem:[#allocation7 + $0x238] sm:$0xff] %v748
      %v765 = vld [vmem:[#allocation2] sm:$0xff]
      %v766 = vld [vmem:[#allocation2 + $0x8] sm:$0xff]
      %v767 = vld [vmem:[#allocation2 + $0x10] sm:$0xff]
      %v768 = vld [vmem:[#allocation2 + $0x18] sm:$0xff]
      %v769 = vld [vmem:[#allocation2 + $0x20] sm:$0xff]
      %v770 = vld [vmem:[#allocation2 + $0x28] sm:$0xff]
      %v771 = vld [vmem:[#allocation2 + $0x30] sm:$0xff]
      %v772 = vld [vmem:[#allocation2 + $0x38] sm:$0xff]
      %v773 = vld [vmem:[#allocation2 + $0x40] sm:$0xff]
      %783 = vrot.lane.b32.xlu0 %v765, 92
      %v784 = vpop.permute.xlu0 %783
      %785 = vrot.lane.b32.xlu0 %v766, 92
      %v786 = vpop.permute.xlu0 %785
      %787 = vrot.lane.b32.xlu0 %v767, 92
      %v788 = vpop.permute.xlu0 %787
      %789 = vrot.lane.b32.xlu0 %v768, 92
      %v790 = vpop.permute.xlu0 %789
      %791 = vrot.lane.b32.xlu0 %v769, 92
      %v792 = vpop.permute.xlu0 %791
      %793 = vrot.lane.b32.xlu0 %v770, 92
      %v794 = vpop.permute.xlu0 %793
      %795 = vrot.lane.b32.xlu0 %v771, 92
      %v796 = vpop.permute.xlu0 %795
      %797 = vrot.lane.b32.xlu0 %v772, 92
      %v798 = vpop.permute.xlu0 %797
      %799 = vrot.lane.b32.xlu0 %v773, 92
      %v800 = vpop.permute.xlu0 %799
      %vm801 = vcmask 752640
      %v802 = vsel %vm801, %v784, %v786
      %v803 = vsel %vm801, %v786, %v788
      %v804 = vsel %vm801, %v788, %v790
      %v805 = vsel %vm801, %v790, %v792
      %v806 = vsel %vm801, %v792, %v794
      %v807 = vsel %vm801, %v794, %v796
      %v808 = vsel %vm801, %v796, %v798
      %v809 = vsel %vm801, %v798, %v800
      %818 = vst [vmem:[#allocation7 + $0x240] sm:$0xff] %v802
      %819 = vst [vmem:[#allocation7 + $0x248] sm:$0xff] %v803
      %820 = vst [vmem:[#allocation7 + $0x250] sm:$0xff] %v804
      %821 = vst [vmem:[#allocation7 + $0x258] sm:$0xff] %v805
      %822 = vst [vmem:[#allocation7 + $0x260] sm:$0xff] %v806
      %823 = vst [vmem:[#allocation7 + $0x268] sm:$0xff] %v807
      %824 = vst [vmem:[#allocation7 + $0x270] sm:$0xff] %v808
      %825 = vst [vmem:[#allocation7 + $0x278] sm:$0xff] %v809
      %v826 = vld [vmem:[#allocation2] sm:$0xff]
      %v827 = vld [vmem:[#allocation2 + $0x8] sm:$0xff]
      %v828 = vld [vmem:[#allocation2 + $0x10] sm:$0xff]
      %v829 = vld [vmem:[#allocation2 + $0x18] sm:$0xff]
      %v830 = vld [vmem:[#allocation2 + $0x20] sm:$0xff]
      %v831 = vld [vmem:[#allocation2 + $0x28] sm:$0xff]
      %v832 = vld [vmem:[#allocation2 + $0x30] sm:$0xff]
      %v833 = vld [vmem:[#allocation2 + $0x38] sm:$0xff]
      %v834 = vld [vmem:[#allocation2 + $0x40] sm:$0xff]
      %844 = vrot.lane.b32.xlu0 %v826, 64
      %v845 = vpop.permute.xlu0 %844
      %846 = vrot.lane.b32.xlu0 %v827, 64
      %v847 = vpop.permute.xlu0 %846
      %848 = vrot.lane.b32.xlu0 %v828, 64
      %v849 = vpop.permute.xlu0 %848
      %850 = vrot.lane.b32.xlu0 %v829, 64
      %v851 = vpop.permute.xlu0 %850
      %852 = vrot.lane.b32.xlu0 %v830, 64
      %v853 = vpop.permute.xlu0 %852
      %854 = vrot.lane.b32.xlu0 %v831, 64
      %v855 = vpop.permute.xlu0 %854
      %856 = vrot.lane.b32.xlu0 %v832, 64
      %v857 = vpop.permute.xlu0 %856
      %858 = vrot.lane.b32.xlu0 %v833, 64
      %v859 = vpop.permute.xlu0 %858
      %860 = vrot.lane.b32.xlu0 %v834, 64
      %v861 = vpop.permute.xlu0 %860
      %vm862 = vcmask 523264
      %v863 = vsel %vm862, %v845, %v847
      %v864 = vsel %vm862, %v847, %v849
      %v865 = vsel %vm862, %v849, %v851
      %v866 = vsel %vm862, %v851, %v853
      %v867 = vsel %vm862, %v853, %v855
      %v868 = vsel %vm862, %v855, %v857
      %v869 = vsel %vm862, %v857, %v859
      %v870 = vsel %vm862, %v859, %v861
      %879 = vst [vmem:[#allocation7 + $0x280] sm:$0xff] %v863
      %880 = vst [vmem:[#allocation7 + $0x288] sm:$0xff] %v864
      %881 = vst [vmem:[#allocation7 + $0x290] sm:$0xff] %v865
      %882 = vst [vmem:[#allocation7 + $0x298] sm:$0xff] %v866
      %883 = vst [vmem:[#allocation7 + $0x2a0] sm:$0xff] %v867
      %884 = vst [vmem:[#allocation7 + $0x2a8] sm:$0xff] %v868
      %885 = vst [vmem:[#allocation7 + $0x2b0] sm:$0xff] %v869
      %886 = vst [vmem:[#allocation7 + $0x2b8] sm:$0xff] %v870
      %v887 = vld [vmem:[#allocation2] sm:$0xff]
      %v888 = vld [vmem:[#allocation2 + $0x8] sm:$0xff]
      %v889 = vld [vmem:[#allocation2 + $0x10] sm:$0xff]
      %v890 = vld [vmem:[#allocation2 + $0x18] sm:$0xff]
      %v891 = vld [vmem:[#allocation2 + $0x20] sm:$0xff]
      %v892 = vld [vmem:[#allocation2 + $0x28] sm:$0xff]
      %v893 = vld [vmem:[#allocation2 + $0x30] sm:$0xff]
      %v894 = vld [vmem:[#allocation2 + $0x38] sm:$0xff]
      %v895 = vld [vmem:[#allocation2 + $0x40] sm:$0xff]
      %905 = vrot.lane.b32.xlu0 %v887, 63
      %v906 = vpop.permute.xlu0 %905
      %907 = vrot.lane.b32.xlu0 %v888, 63
      %v908 = vpop.permute.xlu0 %907
      %909 = vrot.lane.b32.xlu0 %v889, 63
      %v910 = vpop.permute.xlu0 %909
      %911 = vrot.lane.b32.xlu0 %v890, 63
      %v912 = vpop.permute.xlu0 %911
      %913 = vrot.lane.b32.xlu0 %v891, 63
      %v914 = vpop.permute.xlu0 %913
      %915 = vrot.lane.b32.xlu0 %v892, 63
      %v916 = vpop.permute.xlu0 %915
      %917 = vrot.lane.b32.xlu0 %v893, 63
      %v918 = vpop.permute.xlu0 %917
      %919 = vrot.lane.b32.xlu0 %v894, 63
      %v920 = vpop.permute.xlu0 %919
      %921 = vrot.lane.b32.xlu0 %v895, 63
      %v922 = vpop.permute.xlu0 %921
      %vm923 = vcmask 515072
      %v924 = vsel %vm923, %v906, %v908
      %v925 = vsel %vm923, %v908, %v910
      %v926 = vsel %vm923, %v910, %v912
      %v927 = vsel %vm923, %v912, %v914
      %v928 = vsel %vm923, %v914, %v916
      %v929 = vsel %vm923, %v916, %v918
      %v930 = vsel %vm923, %v918, %v920
      %v931 = vsel %vm923, %v920, %v922
      %940 = vst [vmem:[#allocation7 + $0x2c0] sm:$0xff] %v924
      %941 = vst [vmem:[#allocation7 + $0x2c8] sm:$0xff] %v925
      %942 = vst [vmem:[#allocation7 + $0x2d0] sm:$0xff] %v926
      %943 = vst [vmem:[#allocation7 + $0x2d8] sm:$0xff] %v927
      %944 = vst [vmem:[#allocation7 + $0x2e0] sm:$0xff] %v928
      %945 = vst [vmem:[#allocation7 + $0x2e8] sm:$0xff] %v929
      %946 = vst [vmem:[#allocation7 + $0x2f0] sm:$0xff] %v930
      %947 = vst [vmem:[#allocation7 + $0x2f8] sm:$0xff] %v931
      %v948 = vld [vmem:[#allocation2] sm:$0xff]
      %v949 = vld [vmem:[#allocation2 + $0x8] sm:$0xff]
      %v950 = vld [vmem:[#allocation2 + $0x10] sm:$0xff]
      %v951 = vld [vmem:[#allocation2 + $0x18] sm:$0xff]
      %v952 = vld [vmem:[#allocation2 + $0x20] sm:$0xff]
      %v953 = vld [vmem:[#allocation2 + $0x28] sm:$0xff]
      %v954 = vld [vmem:[#allocation2 + $0x30] sm:$0xff]
      %v955 = vld [vmem:[#allocation2 + $0x38] sm:$0xff]
      %v956 = vld [vmem:[#allocation2 + $0x40] sm:$0xff]
      %966 = vrot.lane.b32.xlu0 %v948, 62
      %v967 = vpop.permute.xlu0 %966
      %968 = vrot.lane.b32.xlu0 %v949, 62
      %v969 = vpop.permute.xlu0 %968
      %970 = vrot.lane.b32.xlu0 %v950, 62
      %v971 = vpop.permute.xlu0 %970
      %972 = vrot.lane.b32.xlu0 %v951, 62
      %v973 = vpop.permute.xlu0 %972
      %974 = vrot.lane.b32.xlu0 %v952, 62
      %v975 = vpop.permute.xlu0 %974
      %976 = vrot.lane.b32.xlu0 %v953, 62
      %v977 = vpop.permute.xlu0 %976
      %978 = vrot.lane.b32.xlu0 %v954, 62
      %v979 = vpop.permute.xlu0 %978
      %980 = vrot.lane.b32.xlu0 %v955, 62
      %v981 = vpop.permute.xlu0 %980
      %982 = vrot.lane.b32.xlu0 %v956, 62
      %v983 = vpop.permute.xlu0 %982
      %vm984 = vcmask 506880
      %v985 = vsel %vm984, %v967, %v969
      %v986 = vsel %vm984, %v969, %v971
      %v987 = vsel %vm984, %v971, %v973
      %v988 = vsel %vm984, %v973, %v975
      %v989 = vsel %vm984, %v975, %v977
      %v990 = vsel %vm984, %v977, %v979
      %v991 = vsel %vm984, %v979, %v981
      %v992 = vsel %vm984, %v981, %v983
      %1001 = vst [vmem:[#allocation7 + $0x300] sm:$0xff] %v985
      %1002 = vst [vmem:[#allocation7 + $0x308] sm:$0xff] %v986
      %1003 = vst [vmem:[#allocation7 + $0x310] sm:$0xff] %v987
      %1004 = vst [vmem:[#allocation7 + $0x318] sm:$0xff] %v988
      %1005 = vst [vmem:[#allocation7 + $0x320] sm:$0xff] %v989
      %1006 = vst [vmem:[#allocation7 + $0x328] sm:$0xff] %v990
      %1007 = vst [vmem:[#allocation7 + $0x330] sm:$0xff] %v991
      %1008 = vst [vmem:[#allocation7 + $0x338] sm:$0xff] %v992
      %v1009 = vld [vmem:[#allocation2] sm:$0xff]
      %v1010 = vld [vmem:[#allocation2 + $0x8] sm:$0xff]
      %v1011 = vld [vmem:[#allocation2 + $0x10] sm:$0xff]
      %v1012 = vld [vmem:[#allocation2 + $0x18] sm:$0xff]
      %v1013 = vld [vmem:[#allocation2 + $0x20] sm:$0xff]
      %v1014 = vld [vmem:[#allocation2 + $0x28] sm:$0xff]
      %v1015 = vld [vmem:[#allocation2 + $0x30] sm:$0xff]
      %v1016 = vld [vmem:[#allocation2 + $0x38] sm:$0xff]
      %v1017 = vld [vmem:[#allocation2 + $0x40] sm:$0xff]
      %1027 = vrot.lane.b32.xlu0 %v1009, 61
      %v1028 = vpop.permute.xlu0 %1027
      %1029 = vrot.lane.b32.xlu0 %v1010, 61
      %v1030 = vpop.permute.xlu0 %1029
      %1031 = vrot.lane.b32.xlu0 %v1011, 61
      %v1032 = vpop.permute.xlu0 %1031
      %1033 = vrot.lane.b32.xlu0 %v1012, 61
      %v1034 = vpop.permute.xlu0 %1033
      %1035 = vrot.lane.b32.xlu0 %v1013, 61
      %v1036 = vpop.permute.xlu0 %1035
      %1037 = vrot.lane.b32.xlu0 %v1014, 61
      %v1038 = vpop.permute.xlu0 %1037
      %1039 = vrot.lane.b32.xlu0 %v1015, 61
      %v1040 = vpop.permute.xlu0 %1039
      %1041 = vrot.lane.b32.xlu0 %v1016, 61
      %v1042 = vpop.permute.xlu0 %1041
      %1043 = vrot.lane.b32.xlu0 %v1017, 61
      %v1044 = vpop.permute.xlu0 %1043
      %vm1045 = vcmask 498688
      %v1046 = vsel %vm1045, %v1028, %v1030
      %v1047 = vsel %vm1045, %v1030, %v1032
      %v1048 = vsel %vm1045, %v1032, %v1034
      %v1049 = vsel %vm1045, %v1034, %v1036
      %v1050 = vsel %vm1045, %v1036, %v1038
      %v1051 = vsel %vm1045, %v1038, %v1040
      %v1052 = vsel %vm1045, %v1040, %v1042
      %v1053 = vsel %vm1045, %v1042, %v1044
      %1062 = vst [vmem:[#allocation7 + $0x340] sm:$0xff] %v1046
      %1063 = vst [vmem:[#allocation7 + $0x348] sm:$0xff] %v1047
      %1064 = vst [vmem:[#allocation7 + $0x350] sm:$0xff] %v1048
      %1065 = vst [vmem:[#allocation7 + $0x358] sm:$0xff] %v1049
      %1066 = vst [vmem:[#allocation7 + $0x360] sm:$0xff] %v1050
      %1067 = vst [vmem:[#allocation7 + $0x368] sm:$0xff] %v1051
      %1068 = vst [vmem:[#allocation7 + $0x370] sm:$0xff] %v1052
      %1069 = vst [vmem:[#allocation7 + $0x378] sm:$0xff] %v1053
      %v1070 = vld [vmem:[#allocation2] sm:$0xff]
      %v1071 = vld [vmem:[#allocation2 + $0x8] sm:$0xff]
      %v1072 = vld [vmem:[#allocation2 + $0x10] sm:$0xff]
      %v1073 = vld [vmem:[#allocation2 + $0x18] sm:$0xff]
      %v1074 = vld [vmem:[#allocation2 + $0x20] sm:$0xff]
      %v1075 = vld [vmem:[#allocation2 + $0x28] sm:$0xff]
      %v1076 = vld [vmem:[#allocation2 + $0x30] sm:$0xff]
      %v1077 = vld [vmem:[#allocation2 + $0x38] sm:$0xff]
      %v1078 = vld [vmem:[#allocation2 + $0x40] sm:$0xff]
      %1088 = vrot.lane.b32.xlu0 %v1070, 60
      %v1089 = vpop.permute.xlu0 %1088
      %1090 = vrot.lane.b32.xlu0 %v1071, 60
      %v1091 = vpop.permute.xlu0 %1090
      %1092 = vrot.lane.b32.xlu0 %v1072, 60
      %v1093 = vpop.permute.xlu0 %1092
      %1094 = vrot.lane.b32.xlu0 %v1073, 60
      %v1095 = vpop.permute.xlu0 %1094
      %1096 = vrot.lane.b32.xlu0 %v1074, 60
      %v1097 = vpop.permute.xlu0 %1096
      %1098 = vrot.lane.b32.xlu0 %v1075, 60
      %v1099 = vpop.permute.xlu0 %1098
      %1100 = vrot.lane.b32.xlu0 %v1076, 60
      %v1101 = vpop.permute.xlu0 %1100
      %1102 = vrot.lane.b32.xlu0 %v1077, 60
      %v1103 = vpop.permute.xlu0 %1102
      %1104 = vrot.lane.b32.xlu0 %v1078, 60
      %v1105 = vpop.permute.xlu0 %1104
      %vm1106 = vcmask 490496
      %v1107 = vsel %vm1106, %v1089, %v1091
      %v1108 = vsel %vm1106, %v1091, %v1093
      %v1109 = vsel %vm1106, %v1093, %v1095
      %v1110 = vsel %vm1106, %v1095, %v1097
      %v1111 = vsel %vm1106, %v1097, %v1099
      %v1112 = vsel %vm1106, %v1099, %v1101
      %v1113 = vsel %vm1106, %v1101, %v1103
      %v1114 = vsel %vm1106, %v1103, %v1105
      %1123 = vst [vmem:[#allocation7 + $0x380] sm:$0xff] %v1107
      %1124 = vst [vmem:[#allocation7 + $0x388] sm:$0xff] %v1108
      %1125 = vst [vmem:[#allocation7 + $0x390] sm:$0xff] %v1109
      %1126 = vst [vmem:[#allocation7 + $0x398] sm:$0xff] %v1110
      %1127 = vst [vmem:[#allocation7 + $0x3a0] sm:$0xff] %v1111
      %1128 = vst [vmem:[#allocation7 + $0x3a8] sm:$0xff] %v1112
      %1129 = vst [vmem:[#allocation7 + $0x3b0] sm:$0xff] %v1113
      %1130 = vst [vmem:[#allocation7 + $0x3b8] sm:$0xff] %v1114
      %v1131 = vld [vmem:[#allocation2] sm:$0xff]
      %v1132 = vld [vmem:[#allocation2 + $0x8] sm:$0xff]
      %v1133 = vld [vmem:[#allocation2 + $0x10] sm:$0xff]
      %v1134 = vld [vmem:[#allocation2 + $0x18] sm:$0xff]
      %v1135 = vld [vmem:[#allocation2 + $0x20] sm:$0xff]
      %v1136 = vld [vmem:[#allocation2 + $0x28] sm:$0xff]
      %v1137 = vld [vmem:[#allocation2 + $0x30] sm:$0xff]
      %v1138 = vld [vmem:[#allocation2 + $0x38] sm:$0xff]
      %v1139 = vld [vmem:[#allocation2 + $0x40] sm:$0xff]
      %1149 = vrot.lane.b32.xlu0 %v1131, 32
      %v1150 = vpop.permute.xlu0 %1149
      %1151 = vrot.lane.b32.xlu0 %v1132, 32
      %v1152 = vpop.permute.xlu0 %1151
      %1153 = vrot.lane.b32.xlu0 %v1133, 32
      %v1154 = vpop.permute.xlu0 %1153
      %1155 = vrot.lane.b32.xlu0 %v1134, 32
      %v1156 = vpop.permute.xlu0 %1155
      %1157 = vrot.lane.b32.xlu0 %v1135, 32
      %v1158 = vpop.permute.xlu0 %1157
      %1159 = vrot.lane.b32.xlu0 %v1136, 32
      %v1160 = vpop.permute.xlu0 %1159
      %1161 = vrot.lane.b32.xlu0 %v1137, 32
      %v1162 = vpop.permute.xlu0 %1161
      %1163 = vrot.lane.b32.xlu0 %v1138, 32
      %v1164 = vpop.permute.xlu0 %1163
      %1165 = vrot.lane.b32.xlu0 %v1139, 32
      %v1166 = vpop.permute.xlu0 %1165
      %vm1167 = vcmask 261120
      %v1168 = vsel %vm1167, %v1150, %v1152
      %v1169 = vsel %vm1167, %v1152, %v1154
      %v1170 = vsel %vm1167, %v1154, %v1156
      %v1171 = vsel %vm1167, %v1156, %v1158
      %v1172 = vsel %vm1167, %v1158, %v1160
      %v1173 = vsel %vm1167, %v1160, %v1162
      %v1174 = vsel %vm1167, %v1162, %v1164
      %v1175 = vsel %vm1167, %v1164, %v1166
      %1184 = vst [vmem:[#allocation7 + $0x3c0] sm:$0xff] %v1168
      %1185 = vst [vmem:[#allocation7 + $0x3c8] sm:$0xff] %v1169
      %1186 = vst [vmem:[#allocation7 + $0x3d0] sm:$0xff] %v1170
      %1187 = vst [vmem:[#allocation7 + $0x3d8] sm:$0xff] %v1171
      %1188 = vst [vmem:[#allocation7 + $0x3e0] sm:$0xff] %v1172
      %1189 = vst [vmem:[#allocation7 + $0x3e8] sm:$0xff] %v1173
      %1190 = vst [vmem:[#allocation7 + $0x3f0] sm:$0xff] %v1174
      %1191 = vst [vmem:[#allocation7 + $0x3f8] sm:$0xff] %v1175
      %v1192 = vld [vmem:[#allocation2] sm:$0xff]
      %v1193 = vld [vmem:[#allocation2 + $0x8] sm:$0xff]
      %v1194 = vld [vmem:[#allocation2 + $0x10] sm:$0xff]
      %v1195 = vld [vmem:[#allocation2 + $0x18] sm:$0xff]
      %v1196 = vld [vmem:[#allocation2 + $0x20] sm:$0xff]
      %v1197 = vld [vmem:[#allocation2 + $0x28] sm:$0xff]
      %v1198 = vld [vmem:[#allocation2 + $0x30] sm:$0xff]
      %v1199 = vld [vmem:[#allocation2 + $0x38] sm:$0xff]
      %v1200 = vld [vmem:[#allocation2 + $0x40] sm:$0xff]
      %1210 = vrot.lane.b32.xlu0 %v1192, 31
      %v1211 = vpop.permute.xlu0 %1210
      %1212 = vrot.lane.b32.xlu0 %v1193, 31
      %v1213 = vpop.permute.xlu0 %1212
      %1214 = vrot.lane.b32.xlu0 %v1194, 31
      %v1215 = vpop.permute.xlu0 %1214
      %1216 = vrot.lane.b32.xlu0 %v1195, 31
      %v1217 = vpop.permute.xlu0 %1216
      %1218 = vrot.lane.b32.xlu0 %v1196, 31
      %v1219 = vpop.permute.xlu0 %1218
      %1220 = vrot.lane.b32.xlu0 %v1197, 31
      %v1221 = vpop.permute.xlu0 %1220
      %1222 = vrot.lane.b32.xlu0 %v1198, 31
      %v1223 = vpop.permute.xlu0 %1222
      %1224 = vrot.lane.b32.xlu0 %v1199, 31
      %v1225 = vpop.permute.xlu0 %1224
      %1226 = vrot.lane.b32.xlu0 %v1200, 31
      %v1227 = vpop.permute.xlu0 %1226
      %vm1228 = vcmask 252928
      %v1229 = vsel %vm1228, %v1211, %v1213
      %v1230 = vsel %vm1228, %v1213, %v1215
      %v1231 = vsel %vm1228, %v1215, %v1217
      %v1232 = vsel %vm1228, %v1217, %v1219
      %v1233 = vsel %vm1228, %v1219, %v1221
      %v1234 = vsel %vm1228, %v1221, %v1223
      %v1235 = vsel %vm1228, %v1223, %v1225
      %v1236 = vsel %vm1228, %v1225, %v1227
      %1245 = vst [vmem:[#allocation7 + $0x400] sm:$0xff] %v1229
      %1246 = vst [vmem:[#allocation7 + $0x408] sm:$0xff] %v1230
      %1247 = vst [vmem:[#allocation7 + $0x410] sm:$0xff] %v1231
      %1248 = vst [vmem:[#allocation7 + $0x418] sm:$0xff] %v1232
      %1249 = vst [vmem:[#allocation7 + $0x420] sm:$0xff] %v1233
      %1250 = vst [vmem:[#allocation7 + $0x428] sm:$0xff] %v1234
      %1251 = vst [vmem:[#allocation7 + $0x430] sm:$0xff] %v1235
      %1252 = vst [vmem:[#allocation7 + $0x438] sm:$0xff] %v1236
      %v1253 = vld [vmem:[#allocation2] sm:$0xff]
      %v1254 = vld [vmem:[#allocation2 + $0x8] sm:$0xff]
      %v1255 = vld [vmem:[#allocation2 + $0x10] sm:$0xff]
      %v1256 = vld [vmem:[#allocation2 + $0x18] sm:$0xff]
      %v1257 = vld [vmem:[#allocation2 + $0x20] sm:$0xff]
      %v1258 = vld [vmem:[#allocation2 + $0x28] sm:$0xff]
      %v1259 = vld [vmem:[#allocation2 + $0x30] sm:$0xff]
      %v1260 = vld [vmem:[#allocation2 + $0x38] sm:$0xff]
      %v1261 = vld [vmem:[#allocation2 + $0x40] sm:$0xff]
      %1271 = vrot.lane.b32.xlu0 %v1253, 30
      %v1272 = vpop.permute.xlu0 %1271
      %1273 = vrot.lane.b32.xlu0 %v1254, 30
      %v1274 = vpop.permute.xlu0 %1273
      %1275 = vrot.lane.b32.xlu0 %v1255, 30
      %v1276 = vpop.permute.xlu0 %1275
      %1277 = vrot.lane.b32.xlu0 %v1256, 30
      %v1278 = vpop.permute.xlu0 %1277
      %1279 = vrot.lane.b32.xlu0 %v1257, 30
      %v1280 = vpop.permute.xlu0 %1279
      %1281 = vrot.lane.b32.xlu0 %v1258, 30
      %v1282 = vpop.permute.xlu0 %1281
      %1283 = vrot.lane.b32.xlu0 %v1259, 30
      %v1284 = vpop.permute.xlu0 %1283
      %1285 = vrot.lane.b32.xlu0 %v1260, 30
      %v1286 = vpop.permute.xlu0 %1285
      %1287 = vrot.lane.b32.xlu0 %v1261, 30
      %v1288 = vpop.permute.xlu0 %1287
      %vm1289 = vcmask 244736
      %v1290 = vsel %vm1289, %v1272, %v1274
      %v1291 = vsel %vm1289, %v1274, %v1276
      %v1292 = vsel %vm1289, %v1276, %v1278
      %v1293 = vsel %vm1289, %v1278, %v1280
      %v1294 = vsel %vm1289, %v1280, %v1282
      %v1295 = vsel %vm1289, %v1282, %v1284
      %v1296 = vsel %vm1289, %v1284, %v1286
      %v1297 = vsel %vm1289, %v1286, %v1288
      %1306 = vst [vmem:[#allocation7 + $0x440] sm:$0xff] %v1290
      %1307 = vst [vmem:[#allocation7 + $0x448] sm:$0xff] %v1291
      %1308 = vst [vmem:[#allocation7 + $0x450] sm:$0xff] %v1292
      %1309 = vst [vmem:[#allocation7 + $0x458] sm:$0xff] %v1293
      %1310 = vst [vmem:[#allocation7 + $0x460] sm:$0xff] %v1294
      %1311 = vst [vmem:[#allocation7 + $0x468] sm:$0xff] %v1295
      %1312 = vst [vmem:[#allocation7 + $0x470] sm:$0xff] %v1296
      %1313 = vst [vmem:[#allocation7 + $0x478] sm:$0xff] %v1297
      %v1314 = vld [vmem:[#allocation2] sm:$0xff]
      %v1315 = vld [vmem:[#allocation2 + $0x8] sm:$0xff]
      %v1316 = vld [vmem:[#allocation2 + $0x10] sm:$0xff]
      %v1317 = vld [vmem:[#allocation2 + $0x18] sm:$0xff]
      %v1318 = vld [vmem:[#allocation2 + $0x20] sm:$0xff]
      %v1319 = vld [vmem:[#allocation2 + $0x28] sm:$0xff]
      %v1320 = vld [vmem:[#allocation2 + $0x30] sm:$0xff]
      %v1321 = vld [vmem:[#allocation2 + $0x38] sm:$0xff]
      %v1322 = vld [vmem:[#allocation2 + $0x40] sm:$0xff]
      %1332 = vrot.lane.b32.xlu0 %v1314, 29
      %v1333 = vpop.permute.xlu0 %1332
      %1334 = vrot.lane.b32.xlu0 %v1315, 29
      %v1335 = vpop.permute.xlu0 %1334
      %1336 = vrot.lane.b32.xlu0 %v1316, 29
      %v1337 = vpop.permute.xlu0 %1336
      %1338 = vrot.lane.b32.xlu0 %v1317, 29
      %v1339 = vpop.permute.xlu0 %1338
      %1340 = vrot.lane.b32.xlu0 %v1318, 29
      %v1341 = vpop.permute.xlu0 %1340
      %1342 = vrot.lane.b32.xlu0 %v1319, 29
      %v1343 = vpop.permute.xlu0 %1342
      %1344 = vrot.lane.b32.xlu0 %v1320, 29
      %v1345 = vpop.permute.xlu0 %1344
      %1346 = vrot.lane.b32.xlu0 %v1321, 29
      %v1347 = vpop.permute.xlu0 %1346
      %1348 = vrot.lane.b32.xlu0 %v1322, 29
      %v1349 = vpop.permute.xlu0 %1348
      %vm1350 = vcmask 236544
      %v1351 = vsel %vm1350, %v1333, %v1335
      %v1352 = vsel %vm1350, %v1335, %v1337
      %v1353 = vsel %vm1350, %v1337, %v1339
      %v1354 = vsel %vm1350, %v1339, %v1341
      %v1355 = vsel %vm1350, %v1341, %v1343
      %v1356 = vsel %vm1350, %v1343, %v1345
      %v1357 = vsel %vm1350, %v1345, %v1347
      %v1358 = vsel %vm1350, %v1347, %v1349
      %1367 = vst [vmem:[#allocation7 + $0x480] sm:$0xff] %v1351
      %1368 = vst [vmem:[#allocation7 + $0x488] sm:$0xff] %v1352
      %1369 = vst [vmem:[#allocation7 + $0x490] sm:$0xff] %v1353
      %1370 = vst [vmem:[#allocation7 + $0x498] sm:$0xff] %v1354
      %1371 = vst [vmem:[#allocation7 + $0x4a0] sm:$0xff] %v1355
      %1372 = vst [vmem:[#allocation7 + $0x4a8] sm:$0xff] %v1356
      %1373 = vst [vmem:[#allocation7 + $0x4b0] sm:$0xff] %v1357
      %1374 = vst [vmem:[#allocation7 + $0x4b8] sm:$0xff] %v1358
      %v1375 = vld [vmem:[#allocation2] sm:$0xff]
      %v1376 = vld [vmem:[#allocation2 + $0x8] sm:$0xff]
      %v1377 = vld [vmem:[#allocation2 + $0x10] sm:$0xff]
      %v1378 = vld [vmem:[#allocation2 + $0x18] sm:$0xff]
      %v1379 = vld [vmem:[#allocation2 + $0x20] sm:$0xff]
      %v1380 = vld [vmem:[#allocation2 + $0x28] sm:$0xff]
      %v1381 = vld [vmem:[#allocation2 + $0x30] sm:$0xff]
      %v1382 = vld [vmem:[#allocation2 + $0x38] sm:$0xff]
      %v1383 = vld [vmem:[#allocation2 + $0x40] sm:$0xff]
      %1393 = vrot.lane.b32.xlu0 %v1375, 28
      %v1394 = vpop.permute.xlu0 %1393
      %1395 = vrot.lane.b32.xlu0 %v1376, 28
      %v1396 = vpop.permute.xlu0 %1395
      %1397 = vrot.lane.b32.xlu0 %v1377, 28
      %v1398 = vpop.permute.xlu0 %1397
      %1399 = vrot.lane.b32.xlu0 %v1378, 28
      %v1400 = vpop.permute.xlu0 %1399
      %1401 = vrot.lane.b32.xlu0 %v1379, 28
      %v1402 = vpop.permute.xlu0 %1401
      %1403 = vrot.lane.b32.xlu0 %v1380, 28
      %v1404 = vpop.permute.xlu0 %1403
      %1405 = vrot.lane.b32.xlu0 %v1381, 28
      %v1406 = vpop.permute.xlu0 %1405
      %1407 = vrot.lane.b32.xlu0 %v1382, 28
      %v1408 = vpop.permute.xlu0 %1407
      %1409 = vrot.lane.b32.xlu0 %v1383, 28
      %v1410 = vpop.permute.xlu0 %1409
      %vm1411 = vcmask 228352
      %v1412 = vsel %vm1411, %v1394, %v1396
      %v1413 = vsel %vm1411, %v1396, %v1398
      %v1414 = vsel %vm1411, %v1398, %v1400
      %v1415 = vsel %vm1411, %v1400, %v1402
      %v1416 = vsel %vm1411, %v1402, %v1404
      %v1417 = vsel %vm1411, %v1404, %v1406
      %v1418 = vsel %vm1411, %v1406, %v1408
      %v1419 = vsel %vm1411, %v1408, %v1410
      %1428 = vst [vmem:[#allocation7 + $0x4c0] sm:$0xff] %v1412
      %1429 = vst [vmem:[#allocation7 + $0x4c8] sm:$0xff] %v1413
      %1430 = vst [vmem:[#allocation7 + $0x4d0] sm:$0xff] %v1414
      %1431 = vst [vmem:[#allocation7 + $0x4d8] sm:$0xff] %v1415
      %1432 = vst [vmem:[#allocation7 + $0x4e0] sm:$0xff] %v1416
      %1433 = vst [vmem:[#allocation7 + $0x4e8] sm:$0xff] %v1417
      %1434 = vst [vmem:[#allocation7 + $0x4f0] sm:$0xff] %v1418
      %1435 = vst [vmem:[#allocation7 + $0x4f8] sm:$0xff] %v1419
      %v1436 = vld [vmem:[#allocation2 + $0x8] sm:$0xff]
      %v1437 = vld [vmem:[#allocation2 + $0x10] sm:$0xff]
      %v1438 = vld [vmem:[#allocation2 + $0x18] sm:$0xff]
      %v1439 = vld [vmem:[#allocation2 + $0x20] sm:$0xff]
      %v1440 = vld [vmem:[#allocation2 + $0x28] sm:$0xff]
      %v1441 = vld [vmem:[#allocation2 + $0x30] sm:$0xff]
      %v1442 = vld [vmem:[#allocation2 + $0x38] sm:$0xff]
      %v1443 = vld [vmem:[#allocation2 + $0x40] sm:$0xff]
      %1444 = vst [vmem:[#allocation7 + $0x500] sm:$0xff] %v1436
      %1445 = vst [vmem:[#allocation7 + $0x508] sm:$0xff] %v1437
      %1446 = vst [vmem:[#allocation7 + $0x510] sm:$0xff] %v1438
      %1447 = vst [vmem:[#allocation7 + $0x518] sm:$0xff] %v1439
      %1448 = vst [vmem:[#allocation7 + $0x520] sm:$0xff] %v1440
      %1449 = vst [vmem:[#allocation7 + $0x528] sm:$0xff] %v1441
      %1450 = vst [vmem:[#allocation7 + $0x530] sm:$0xff] %v1442
      %1451 = vst [vmem:[#allocation7 + $0x538] sm:$0xff] %v1443
      %v1452 = vld [vmem:[#allocation2 + $0x8] sm:$0xff]
      %v1453 = vld [vmem:[#allocation2 + $0x10] sm:$0xff]
      %v1454 = vld [vmem:[#allocation2 + $0x18] sm:$0xff]
      %v1455 = vld [vmem:[#allocation2 + $0x20] sm:$0xff]
      %v1456 = vld [vmem:[#allocation2 + $0x28] sm:$0xff]
      %v1457 = vld [vmem:[#allocation2 + $0x30] sm:$0xff]
      %v1458 = vld [vmem:[#allocation2 + $0x38] sm:$0xff]
      %v1459 = vld [vmem:[#allocation2 + $0x40] sm:$0xff]
      %v1460 = vld [vmem:[#allocation2 + $0x48] sm:$0xff]
      %1470 = vrot.lane.b32.xlu0 %v1452, 127
      %v1471 = vpop.permute.xlu0 %1470
      %1472 = vrot.lane.b32.xlu0 %v1453, 127
      %v1473 = vpop.permute.xlu0 %1472
      %1474 = vrot.lane.b32.xlu0 %v1454, 127
      %v1475 = vpop.permute.xlu0 %1474
      %1476 = vrot.lane.b32.xlu0 %v1455, 127
      %v1477 = vpop.permute.xlu0 %1476
      %1478 = vrot.lane.b32.xlu0 %v1456, 127
      %v1479 = vpop.permute.xlu0 %1478
      %1480 = vrot.lane.b32.xlu0 %v1457, 127
      %v1481 = vpop.permute.xlu0 %1480
      %1482 = vrot.lane.b32.xlu0 %v1458, 127
      %v1483 = vpop.permute.xlu0 %1482
      %1484 = vrot.lane.b32.xlu0 %v1459, 127
      %v1485 = vpop.permute.xlu0 %1484
      %1486 = vrot.lane.b32.xlu0 %v1460, 127
      %v1487 = vpop.permute.xlu0 %1486
      %v1488 = vsel %vm313, %v1471, %v1473
      %v1489 = vsel %vm313, %v1473, %v1475
      %v1490 = vsel %vm313, %v1475, %v1477
      %v1491 = vsel %vm313, %v1477, %v1479
      %v1492 = vsel %vm313, %v1479, %v1481
      %v1493 = vsel %vm313, %v1481, %v1483
      %v1494 = vsel %vm313, %v1483, %v1485
      %v1495 = vsel %vm313, %v1485, %v1487
      %1504 = vst [vmem:[#allocation7 + $0x540] sm:$0xff] %v1488
      %1505 = vst [vmem:[#allocation7 + $0x548] sm:$0xff] %v1489
      %1506 = vst [vmem:[#allocation7 + $0x550] sm:$0xff] %v1490
      %1507 = vst [vmem:[#allocation7 + $0x558] sm:$0xff] %v1491
      %1508 = vst [vmem:[#allocation7 + $0x560] sm:$0xff] %v1492
      %1509 = vst [vmem:[#allocation7 + $0x568] sm:$0xff] %v1493
      %1510 = vst [vmem:[#allocation7 + $0x570] sm:$0xff] %v1494
      %1511 = vst [vmem:[#allocation7 + $0x578] sm:$0xff] %v1495
      %v1512 = vld [vmem:[#allocation2 + $0x8] sm:$0xff]
      %v1513 = vld [vmem:[#allocation2 + $0x10] sm:$0xff]
      %v1514 = vld [vmem:[#allocation2 + $0x18] sm:$0xff]
      %v1515 = vld [vmem:[#allocation2 + $0x20] sm:$0xff]
      %v1516 = vld [vmem:[#allocation2 + $0x28] sm:$0xff]
      %v1517 = vld [vmem:[#allocation2 + $0x30] sm:$0xff]
      %v1518 = vld [vmem:[#allocation2 + $0x38] sm:$0xff]
      %v1519 = vld [vmem:[#allocation2 + $0x40] sm:$0xff]
      %v1520 = vld [vmem:[#allocation2 + $0x48] sm:$0xff]
      %1530 = vrot.lane.b32.xlu0 %v1512, 126
      %v1531 = vpop.permute.xlu0 %1530
      %1532 = vrot.lane.b32.xlu0 %v1513, 126
      %v1533 = vpop.permute.xlu0 %1532
      %1534 = vrot.lane.b32.xlu0 %v1514, 126
      %v1535 = vpop.permute.xlu0 %1534
      %1536 = vrot.lane.b32.xlu0 %v1515, 126
      %v1537 = vpop.permute.xlu0 %1536
      %1538 = vrot.lane.b32.xlu0 %v1516, 126
      %v1539 = vpop.permute.xlu0 %1538
      %1540 = vrot.lane.b32.xlu0 %v1517, 126
      %v1541 = vpop.permute.xlu0 %1540
      %1542 = vrot.lane.b32.xlu0 %v1518, 126
      %v1543 = vpop.permute.xlu0 %1542
      %1544 = vrot.lane.b32.xlu0 %v1519, 126
      %v1545 = vpop.permute.xlu0 %1544
      %1546 = vrot.lane.b32.xlu0 %v1520, 126
      %v1547 = vpop.permute.xlu0 %1546
      %v1548 = vsel %vm374, %v1531, %v1533
      %v1549 = vsel %vm374, %v1533, %v1535
      %v1550 = vsel %vm374, %v1535, %v1537
      %v1551 = vsel %vm374, %v1537, %v1539
      %v1552 = vsel %vm374, %v1539, %v1541
      %v1553 = vsel %vm374, %v1541, %v1543
      %v1554 = vsel %vm374, %v1543, %v1545
      %v1555 = vsel %vm374, %v1545, %v1547
      %1564 = vst [vmem:[#allocation7 + $0x580] sm:$0xff] %v1548
      %1565 = vst [vmem:[#allocation7 + $0x588] sm:$0xff] %v1549
      %1566 = vst [vmem:[#allocation7 + $0x590] sm:$0xff] %v1550
      %1567 = vst [vmem:[#allocation7 + $0x598] sm:$0xff] %v1551
      %1568 = vst [vmem:[#allocation7 + $0x5a0] sm:$0xff] %v1552
      %1569 = vst [vmem:[#allocation7 + $0x5a8] sm:$0xff] %v1553
      %1570 = vst [vmem:[#allocation7 + $0x5b0] sm:$0xff] %v1554
      %1571 = vst [vmem:[#allocation7 + $0x5b8] sm:$0xff] %v1555
      %v1572 = vld [vmem:[#allocation2 + $0x8] sm:$0xff]
      %v1573 = vld [vmem:[#allocation2 + $0x10] sm:$0xff]
      %v1574 = vld [vmem:[#allocation2 + $0x18] sm:$0xff]
      %v1575 = vld [vmem:[#allocation2 + $0x20] sm:$0xff]
      %v1576 = vld [vmem:[#allocation2 + $0x28] sm:$0xff]
      %v1577 = vld [vmem:[#allocation2 + $0x30] sm:$0xff]
      %v1578 = vld [vmem:[#allocation2 + $0x38] sm:$0xff]
      %v1579 = vld [vmem:[#allocation2 + $0x40] sm:$0xff]
      %v1580 = vld [vmem:[#allocation2 + $0x48] sm:$0xff]
      %1590 = vrot.lane.b32.xlu0 %v1572, 125
      %v1591 = vpop.permute.xlu0 %1590
      %1592 = vrot.lane.b32.xlu0 %v1573, 125
      %v1593 = vpop.permute.xlu0 %1592
      %1594 = vrot.lane.b32.xlu0 %v1574, 125
      %v1595 = vpop.permute.xlu0 %1594
      %1596 = vrot.lane.b32.xlu0 %v1575, 125
      %v1597 = vpop.permute.xlu0 %1596
      %1598 = vrot.lane.b32.xlu0 %v1576, 125
      %v1599 = vpop.permute.xlu0 %1598
      %1600 = vrot.lane.b32.xlu0 %v1577, 125
      %v1601 = vpop.permute.xlu0 %1600
      %1602 = vrot.lane.b32.xlu0 %v1578, 125
      %v1603 = vpop.permute.xlu0 %1602
      %1604 = vrot.lane.b32.xlu0 %v1579, 125
      %v1605 = vpop.permute.xlu0 %1604
      %1606 = vrot.lane.b32.xlu0 %v1580, 125
      %v1607 = vpop.permute.xlu0 %1606
      %v1608 = vsel %vm435, %v1591, %v1593
      %v1609 = vsel %vm435, %v1593, %v1595
      %v1610 = vsel %vm435, %v1595, %v1597
      %v1611 = vsel %vm435, %v1597, %v1599
      %v1612 = vsel %vm435, %v1599, %v1601
      %v1613 = vsel %vm435, %v1601, %v1603
      %v1614 = vsel %vm435, %v1603, %v1605
      %v1615 = vsel %vm435, %v1605, %v1607
      %1624 = vst [vmem:[#allocation7 + $0x5c0] sm:$0xff] %v1608
      %1625 = vst [vmem:[#allocation7 + $0x5c8] sm:$0xff] %v1609
      %1626 = vst [vmem:[#allocation7 + $0x5d0] sm:$0xff] %v1610
      %1627 = vst [vmem:[#allocation7 + $0x5d8] sm:$0xff] %v1611
      %1628 = vst [vmem:[#allocation7 + $0x5e0] sm:$0xff] %v1612
      %1629 = vst [vmem:[#allocation7 + $0x5e8] sm:$0xff] %v1613
      %1630 = vst [vmem:[#allocation7 + $0x5f0] sm:$0xff] %v1614
      %1631 = vst [vmem:[#allocation7 + $0x5f8] sm:$0xff] %v1615
      %v1632 = vld [vmem:[#allocation2 + $0x8] sm:$0xff]
      %v1633 = vld [vmem:[#allocation2 + $0x10] sm:$0xff]
      %v1634 = vld [vmem:[#allocation2 + $0x18] sm:$0xff]
      %v1635 = vld [vmem:[#allocation2 + $0x20] sm:$0xff]
      %v1636 = vld [vmem:[#allocation2 + $0x28] sm:$0xff]
      %v1637 = vld [vmem:[#allocation2 + $0x30] sm:$0xff]
      %v1638 = vld [vmem:[#allocation2 + $0x38] sm:$0xff]
      %v1639 = vld [vmem:[#allocation2 + $0x40] sm:$0xff]
      %v1640 = vld [vmem:[#allocation2 + $0x48] sm:$0xff]
      %1650 = vrot.lane.b32.xlu0 %v1632, 124
      %v1651 = vpop.permute.xlu0 %1650
      %1652 = vrot.lane.b32.xlu0 %v1633, 124
      %v1653 = vpop.permute.xlu0 %1652
      %1654 = vrot.lane.b32.xlu0 %v1634, 124
      %v1655 = vpop.permute.xlu0 %1654
      %1656 = vrot.lane.b32.xlu0 %v1635, 124
      %v1657 = vpop.permute.xlu0 %1656
      %1658 = vrot.lane.b32.xlu0 %v1636, 124
      %v1659 = vpop.permute.xlu0 %1658
      %1660 = vrot.lane.b32.xlu0 %v1637, 124
      %v1661 = vpop.permute.xlu0 %1660
      %1662 = vrot.lane.b32.xlu0 %v1638, 124
      %v1663 = vpop.permute.xlu0 %1662
      %1664 = vrot.lane.b32.xlu0 %v1639, 124
      %v1665 = vpop.permute.xlu0 %1664
      %1666 = vrot.lane.b32.xlu0 %v1640, 124
      %v1667 = vpop.permute.xlu0 %1666
      %v1668 = vsel %vm496, %v1651, %v1653
      %v1669 = vsel %vm496, %v1653, %v1655
      %v1670 = vsel %vm496, %v1655, %v1657
      %v1671 = vsel %vm496, %v1657, %v1659
      %v1672 = vsel %vm496, %v1659, %v1661
      %v1673 = vsel %vm496, %v1661, %v1663
      %v1674 = vsel %vm496, %v1663, %v1665
      %v1675 = vsel %vm496, %v1665, %v1667
      %1684 = vst [vmem:[#allocation7 + $0x600] sm:$0xff] %v1668
      %1685 = vst [vmem:[#allocation7 + $0x608] sm:$0xff] %v1669
      %1686 = vst [vmem:[#allocation7 + $0x610] sm:$0xff] %v1670
      %1687 = vst [vmem:[#allocation7 + $0x618] sm:$0xff] %v1671
      %1688 = vst [vmem:[#allocation7 + $0x620] sm:$0xff] %v1672
      %1689 = vst [vmem:[#allocation7 + $0x628] sm:$0xff] %v1673
      %1690 = vst [vmem:[#allocation7 + $0x630] sm:$0xff] %v1674
      %1691 = vst [vmem:[#allocation7 + $0x638] sm:$0xff] %v1675
      %v1692 = vld [vmem:[#allocation7] sm:$0xff]
      %v1693 = vld [vmem:[#allocation7 + $0x8] sm:$0xff]
      %v1694 = vld [vmem:[#allocation7 + $0x10] sm:$0xff]
      %v1695 = vld [vmem:[#allocation7 + $0x18] sm:$0xff]
      %v1696 = vld [vmem:[#allocation7 + $0x20] sm:$0xff]
      %v1697 = vld [vmem:[#allocation7 + $0x28] sm:$0xff]
      %v1698 = vld [vmem:[#allocation7 + $0x30] sm:$0xff]
      %v1699 = vld [vmem:[#allocation7 + $0x38] sm:$0xff]
      %v1700 = vld [vmem:[#allocation7 + $0x40] sm:$0xff]
      %v1701 = vld [vmem:[#allocation7 + $0x48] sm:$0xff]
      %v1702 = vld [vmem:[#allocation7 + $0x50] sm:$0xff]
      %v1703 = vld [vmem:[#allocation7 + $0x58] sm:$0xff]
      %v1704 = vld [vmem:[#allocation7 + $0x60] sm:$0xff]
      %v1705 = vld [vmem:[#allocation7 + $0x68] sm:$0xff]
      %v1706 = vld [vmem:[#allocation7 + $0x70] sm:$0xff]
      %v1707 = vld [vmem:[#allocation7 + $0x78] sm:$0xff]
      %v1708 = vld [vmem:[#allocation7 + $0x80] sm:$0xff]
      %v1709 = vld [vmem:[#allocation7 + $0x88] sm:$0xff]
      %v1710 = vld [vmem:[#allocation7 + $0x90] sm:$0xff]
      %v1711 = vld [vmem:[#allocation7 + $0x98] sm:$0xff]
      %v1712 = vld [vmem:[#allocation7 + $0xa0] sm:$0xff]
      %v1713 = vld [vmem:[#allocation7 + $0xa8] sm:$0xff]
      %v1714 = vld [vmem:[#allocation7 + $0xb0] sm:$0xff]
      %v1715 = vld [vmem:[#allocation7 + $0xb8] sm:$0xff]
      %v1716 = vld [vmem:[#allocation7 + $0xc0] sm:$0xff]
      %v1717 = vld [vmem:[#allocation7 + $0xc8] sm:$0xff]
      %v1718 = vld [vmem:[#allocation7 + $0xd0] sm:$0xff]
      %v1719 = vld [vmem:[#allocation7 + $0xd8] sm:$0xff]
      %v1720 = vld [vmem:[#allocation7 + $0xe0] sm:$0xff]
      %v1721 = vld [vmem:[#allocation7 + $0xe8] sm:$0xff]
      %v1722 = vld [vmem:[#allocation7 + $0xf0] sm:$0xff]
      %v1723 = vld [vmem:[#allocation7 + $0xf8] sm:$0xff]
      %v1724 = vld [vmem:[#allocation7 + $0x100] sm:$0xff]
      %v1725 = vld [vmem:[#allocation7 + $0x108] sm:$0xff]
      %v1726 = vld [vmem:[#allocation7 + $0x110] sm:$0xff]
      %v1727 = vld [vmem:[#allocation7 + $0x118] sm:$0xff]
      %v1728 = vld [vmem:[#allocation7 + $0x120] sm:$0xff]
      %v1729 = vld [vmem:[#allocation7 + $0x128] sm:$0xff]
      %v1730 = vld [vmem:[#allocation7 + $0x130] sm:$0xff]
      %v1731 = vld [vmem:[#allocation7 + $0x138] sm:$0xff]
      %v1732 = vld [vmem:[#allocation7 + $0x140] sm:$0xff]
      %v1733 = vld [vmem:[#allocation7 + $0x148] sm:$0xff]
      %v1734 = vld [vmem:[#allocation7 + $0x150] sm:$0xff]
      %v1735 = vld [vmem:[#allocation7 + $0x158] sm:$0xff]
      %v1736 = vld [vmem:[#allocation7 + $0x160] sm:$0xff]
      %v1737 = vld [vmem:[#allocation7 + $0x168] sm:$0xff]
      %v1738 = vld [vmem:[#allocation7 + $0x170] sm:$0xff]
      %v1739 = vld [vmem:[#allocation7 + $0x178] sm:$0xff]
      %v1740 = vld [vmem:[#allocation7 + $0x180] sm:$0xff]
      %v1741 = vld [vmem:[#allocation7 + $0x188] sm:$0xff]
      %v1742 = vld [vmem:[#allocation7 + $0x190] sm:$0xff]
      %v1743 = vld [vmem:[#allocation7 + $0x198] sm:$0xff]
      %v1744 = vld [vmem:[#allocation7 + $0x1a0] sm:$0xff]
      %v1745 = vld [vmem:[#allocation7 + $0x1a8] sm:$0xff]
      %v1746 = vld [vmem:[#allocation7 + $0x1b0] sm:$0xff]
      %v1747 = vld [vmem:[#allocation7 + $0x1b8] sm:$0xff]
      %v1748 = vld [vmem:[#allocation7 + $0x1c0] sm:$0xff]
      %v1749 = vld [vmem:[#allocation7 + $0x1c8] sm:$0xff]
      %v1750 = vld [vmem:[#allocation7 + $0x1d0] sm:$0xff]
      %v1751 = vld [vmem:[#allocation7 + $0x1d8] sm:$0xff]
      %v1752 = vld [vmem:[#allocation7 + $0x1e0] sm:$0xff]
      %v1753 = vld [vmem:[#allocation7 + $0x1e8] sm:$0xff]
      %v1754 = vld [vmem:[#allocation7 + $0x1f0] sm:$0xff]
      %v1755 = vld [vmem:[#allocation7 + $0x1f8] sm:$0xff]
      %v1756 = vld [vmem:[#allocation7 + $0x200] sm:$0xff]
      %v1757 = vld [vmem:[#allocation7 + $0x208] sm:$0xff]
      %v1758 = vld [vmem:[#allocation7 + $0x210] sm:$0xff]
      %v1759 = vld [vmem:[#allocation7 + $0x218] sm:$0xff]
      %v1760 = vld [vmem:[#allocation7 + $0x220] sm:$0xff]
      %v1761 = vld [vmem:[#allocation7 + $0x228] sm:$0xff]
      %v1762 = vld [vmem:[#allocation7 + $0x230] sm:$0xff]
      %v1763 = vld [vmem:[#allocation7 + $0x238] sm:$0xff]
      %v1764 = vld [vmem:[#allocation7 + $0x240] sm:$0xff]
      %v1765 = vld [vmem:[#allocation7 + $0x248] sm:$0xff]
      %v1766 = vld [vmem:[#allocation7 + $0x250] sm:$0xff]
      %v1767 = vld [vmem:[#allocation7 + $0x258] sm:$0xff]
      %v1768 = vld [vmem:[#allocation7 + $0x260] sm:$0xff]
      %v1769 = vld [vmem:[#allocation7 + $0x268] sm:$0xff]
      %v1770 = vld [vmem:[#allocation7 + $0x270] sm:$0xff]
      %v1771 = vld [vmem:[#allocation7 + $0x278] sm:$0xff]
      %v1772 = vld [vmem:[#allocation7 + $0x280] sm:$0xff]
      %v1773 = vld [vmem:[#allocation7 + $0x288] sm:$0xff]
      %v1774 = vld [vmem:[#allocation7 + $0x290] sm:$0xff]
      %v1775 = vld [vmem:[#allocation7 + $0x298] sm:$0xff]
      %v1776 = vld [vmem:[#allocation7 + $0x2a0] sm:$0xff]
      %v1777 = vld [vmem:[#allocation7 + $0x2a8] sm:$0xff]
      %v1778 = vld [vmem:[#allocation7 + $0x2b0] sm:$0xff]
      %v1779 = vld [vmem:[#allocation7 + $0x2b8] sm:$0xff]
      %v1780 = vld [vmem:[#allocation7 + $0x2c0] sm:$0xff]
      %v1781 = vld [vmem:[#allocation7 + $0x2c8] sm:$0xff]
      %v1782 = vld [vmem:[#allocation7 + $0x2d0] sm:$0xff]
      %v1783 = vld [vmem:[#allocation7 + $0x2d8] sm:$0xff]
      %v1784 = vld [vmem:[#allocation7 + $0x2e0] sm:$0xff]
      %v1785 = vld [vmem:[#allocation7 + $0x2e8] sm:$0xff]
      %v1786 = vld [vmem:[#allocation7 + $0x2f0] sm:$0xff]
      %v1787 = vld [vmem:[#allocation7 + $0x2f8] sm:$0xff]
      %v1788 = vld [vmem:[#allocation7 + $0x300] sm:$0xff]
      %v1789 = vld [vmem:[#allocation7 + $0x308] sm:$0xff]
      %v1790 = vld [vmem:[#allocation7 + $0x310] sm:$0xff]
      %v1791 = vld [vmem:[#allocation7 + $0x318] sm:$0xff]
      %v1792 = vld [vmem:[#allocation7 + $0x320] sm:$0xff]
      %v1793 = vld [vmem:[#allocation7 + $0x328] sm:$0xff]
      %v1794 = vld [vmem:[#allocation7 + $0x330] sm:$0xff]
      %v1795 = vld [vmem:[#allocation7 + $0x338] sm:$0xff]
      %v1796 = vld [vmem:[#allocation7 + $0x340] sm:$0xff]
      %v1797 = vld [vmem:[#allocation7 + $0x348] sm:$0xff]
      %v1798 = vld [vmem:[#allocation7 + $0x350] sm:$0xff]
      %v1799 = vld [vmem:[#allocation7 + $0x358] sm:$0xff]
      %v1800 = vld [vmem:[#allocation7 + $0x360] sm:$0xff]
      %v1801 = vld [vmem:[#allocation7 + $0x368] sm:$0xff]
      %v1802 = vld [vmem:[#allocation7 + $0x370] sm:$0xff]
      %v1803 = vld [vmem:[#allocation7 + $0x378] sm:$0xff]
      %v1804 = vld [vmem:[#allocation7 + $0x380] sm:$0xff]
      %v1805 = vld [vmem:[#allocation7 + $0x388] sm:$0xff]
      %v1806 = vld [vmem:[#allocation7 + $0x390] sm:$0xff]
      %v1807 = vld [vmem:[#allocation7 + $0x398] sm:$0xff]
      %v1808 = vld [vmem:[#allocation7 + $0x3a0] sm:$0xff]
      %v1809 = vld [vmem:[#allocation7 + $0x3a8] sm:$0xff]
      %v1810 = vld [vmem:[#allocation7 + $0x3b0] sm:$0xff]
      %v1811 = vld [vmem:[#allocation7 + $0x3b8] sm:$0xff]
      %v1812 = vld [vmem:[#allocation7 + $0x3c0] sm:$0xff]
      %v1813 = vld [vmem:[#allocation7 + $0x3c8] sm:$0xff]
      %v1814 = vld [vmem:[#allocation7 + $0x3d0] sm:$0xff]
      %v1815 = vld [vmem:[#allocation7 + $0x3d8] sm:$0xff]
      %v1816 = vld [vmem:[#allocation7 + $0x3e0] sm:$0xff]
      %v1817 = vld [vmem:[#allocation7 + $0x3e8] sm:$0xff]
      %v1818 = vld [vmem:[#allocation7 + $0x3f0] sm:$0xff]
      %v1819 = vld [vmem:[#allocation7 + $0x3f8] sm:$0xff]
      %v1820 = vld [vmem:[#allocation7 + $0x400] sm:$0xff]
      %v1821 = vld [vmem:[#allocation7 + $0x408] sm:$0xff]
      %v1822 = vld [vmem:[#allocation7 + $0x410] sm:$0xff]
      %v1823 = vld [vmem:[#allocation7 + $0x418] sm:$0xff]
      %v1824 = vld [vmem:[#allocation7 + $0x420] sm:$0xff]
      %v1825 = vld [vmem:[#allocation7 + $0x428] sm:$0xff]
      %v1826 = vld [vmem:[#allocation7 + $0x430] sm:$0xff]
      %v1827 = vld [vmem:[#allocation7 + $0x438] sm:$0xff]
      %v1828 = vld [vmem:[#allocation7 + $0x440] sm:$0xff]
      %v1829 = vld [vmem:[#allocation7 + $0x448] sm:$0xff]
      %v1830 = vld [vmem:[#allocation7 + $0x450] sm:$0xff]
      %v1831 = vld [vmem:[#allocation7 + $0x458] sm:$0xff]
      %v1832 = vld [vmem:[#allocation7 + $0x460] sm:$0xff]
      %v1833 = vld [vmem:[#allocation7 + $0x468] sm:$0xff]
      %v1834 = vld [vmem:[#allocation7 + $0x470] sm:$0xff]
      %v1835 = vld [vmem:[#allocation7 + $0x478] sm:$0xff]
      %v1836 = vld [vmem:[#allocation7 + $0x480] sm:$0xff]
      %v1837 = vld [vmem:[#allocation7 + $0x488] sm:$0xff]
      %v1838 = vld [vmem:[#allocation7 + $0x490] sm:$0xff]
      %v1839 = vld [vmem:[#allocation7 + $0x498] sm:$0xff]
      %v1840 = vld [vmem:[#allocation7 + $0x4a0] sm:$0xff]
      %v1841 = vld [vmem:[#allocation7 + $0x4a8] sm:$0xff]
      %v1842 = vld [vmem:[#allocation7 + $0x4b0] sm:$0xff]
      %v1843 = vld [vmem:[#allocation7 + $0x4b8] sm:$0xff]
      %v1844 = vld [vmem:[#allocation7 + $0x4c0] sm:$0xff]
      %v1845 = vld [vmem:[#allocation7 + $0x4c8] sm:$0xff]
      %v1846 = vld [vmem:[#allocation7 + $0x4d0] sm:$0xff]
      %v1847 = vld [vmem:[#allocation7 + $0x4d8] sm:$0xff]
      %v1848 = vld [vmem:[#allocation7 + $0x4e0] sm:$0xff]
      %v1849 = vld [vmem:[#allocation7 + $0x4e8] sm:$0xff]
      %v1850 = vld [vmem:[#allocation7 + $0x4f0] sm:$0xff]
      %v1851 = vld [vmem:[#allocation7 + $0x4f8] sm:$0xff]
      %v1852 = vld [vmem:[#allocation7 + $0x500] sm:$0xff]
      %v1853 = vld [vmem:[#allocation7 + $0x508] sm:$0xff]
      %v1854 = vld [vmem:[#allocation7 + $0x510] sm:$0xff]
      %v1855 = vld [vmem:[#allocation7 + $0x518] sm:$0xff]
      %v1856 = vld [vmem:[#allocation7 + $0x520] sm:$0xff]
      %v1857 = vld [vmem:[#allocation7 + $0x528] sm:$0xff]
      %v1858 = vld [vmem:[#allocation7 + $0x530] sm:$0xff]
      %v1859 = vld [vmem:[#allocation7 + $0x538] sm:$0xff]
      %v1860 = vld [vmem:[#allocation7 + $0x540] sm:$0xff]
      %v1861 = vld [vmem:[#allocation7 + $0x548] sm:$0xff]
      %v1862 = vld [vmem:[#allocation7 + $0x550] sm:$0xff]
      %v1863 = vld [vmem:[#allocation7 + $0x558] sm:$0xff]
      %v1864 = vld [vmem:[#allocation7 + $0x560] sm:$0xff]
      %v1865 = vld [vmem:[#allocation7 + $0x568] sm:$0xff]
      %v1866 = vld [vmem:[#allocation7 + $0x570] sm:$0xff]
      %v1867 = vld [vmem:[#allocation7 + $0x578] sm:$0xff]
      %v1868 = vld [vmem:[#allocation7 + $0x580] sm:$0xff]
      %v1869 = vld [vmem:[#allocation7 + $0x588] sm:$0xff]
      %v1870 = vld [vmem:[#allocation7 + $0x590] sm:$0xff]
      %v1871 = vld [vmem:[#allocation7 + $0x598] sm:$0xff]
      %v1872 = vld [vmem:[#allocation7 + $0x5a0] sm:$0xff]
      %v1873 = vld [vmem:[#allocation7 + $0x5a8] sm:$0xff]
      %v1874 = vld [vmem:[#allocation7 + $0x5b0] sm:$0xff]
      %v1875 = vld [vmem:[#allocation7 + $0x5b8] sm:$0xff]
      %v1876 = vld [vmem:[#allocation7 + $0x5c0] sm:$0xff]
      %v1877 = vld [vmem:[#allocation7 + $0x5c8] sm:$0xff]
      %v1878 = vld [vmem:[#allocation7 + $0x5d0] sm:$0xff]
      %v1879 = vld [vmem:[#allocation7 + $0x5d8] sm:$0xff]
      %v1880 = vld [vmem:[#allocation7 + $0x5e0] sm:$0xff]
      %v1881 = vld [vmem:[#allocation7 + $0x5e8] sm:$0xff]
      %v1882 = vld [vmem:[#allocation7 + $0x5f0] sm:$0xff]
      %v1883 = vld [vmem:[#allocation7 + $0x5f8] sm:$0xff]
      %v1884 = vld [vmem:[#allocation7 + $0x600] sm:$0xff]
      %v1885 = vld [vmem:[#allocation7 + $0x608] sm:$0xff]
      %v1886 = vld [vmem:[#allocation7 + $0x610] sm:$0xff]
      %v1887 = vld [vmem:[#allocation7 + $0x618] sm:$0xff]
      %v1888 = vld [vmem:[#allocation7 + $0x620] sm:$0xff]
      %v1889 = vld [vmem:[#allocation7 + $0x628] sm:$0xff]
      %v1890 = vld [vmem:[#allocation7 + $0x630] sm:$0xff]
      %v1891 = vld [vmem:[#allocation7 + $0x638] sm:$0xff]
      %1893 = vset.pattern.permute.xlu0 0
      %1894 = vperm.xlu0 %1893, %v260
      %v1895 = vpop.permute.xlu0 %1894
      %vm1897 = vcmask 588800
      %v1899 = vsel %vm1897, %v259, 0
      %1901 = vmatprep.subr.mxu0 %v1693
      %1902 = vmatpush1.msra.mxu0 %v1692
      %1903 = vmatprep.subr.mxu0 %v1701
      %1904 = vmatpush1.msra.mxu0 %v1700
      %1905 = vmatprep.subr.mxu0 %v1709
      %1906 = vmatpush1.msra.mxu0 %v1708
      %1907 = vmatprep.subr.mxu0 %v1717
      %1908 = vmatpush1.msra.mxu0 %v1716
      %1909 = vmatprep.subr.mxu0 %v1725
      %1910 = vmatpush1.msra.mxu0 %v1724
      %1911 = vmatprep.subr.mxu0 %v1733
      %1912 = vmatpush1.msra.mxu0 %v1732
      %1913 = vmatprep.subr.mxu0 %v1741
      %1914 = vmatpush1.msra.mxu0 %v1740
      %1915 = vmatprep.subr.mxu0 %v1749
      %1916 = vmatpush1.msra.mxu0 %v1748
      %1917 = vmatprep.subr.mxu0 %v1757
      %1918 = vmatpush1.msra.mxu0 %v1756
      %1919 = vmatprep.subr.mxu0 %v1765
      %1920 = vmatpush1.msra.mxu0 %v1764
      %1921 = vmatprep.subr.mxu0 %v1773
      %1922 = vmatpush1.msra.mxu0 %v1772
      %1923 = vmatprep.subr.mxu0 %v1781
      %1924 = vmatpush1.msra.mxu0 %v1780
      %1925 = vmatprep.subr.mxu0 %v1789
      %1926 = vmatpush1.msra.mxu0 %v1788
      %1927 = vmatprep.subr.mxu0 %v1797
      %1928 = vmatpush1.msra.mxu0 %v1796
      %1929 = vmatprep.subr.mxu0 %v1805
      %1930 = vmatpush1.msra.mxu0 %v1804
      %1931 = vmatprep.subr.mxu0 %v1813
      %1932 = vmatpush1.msra.mxu0 %v1812
      %1933 = vmatprep.subr.mxu0 %v1821
      %1934 = vmatpush1.msra.mxu0 %v1820
      %1935 = vmatprep.subr.mxu0 %v1829
      %1936 = vmatpush1.msra.mxu0 %v1828
      %1937 = vmatprep.subr.mxu0 %v1837
      %1938 = vmatpush1.msra.mxu0 %v1836
      %1939 = vmatprep.subr.mxu0 %v1845
      %1940 = vmatpush1.msra.mxu0 %v1844
      %1941 = vmatprep.subr.mxu0 %v1853
      %1942 = vmatpush1.msra.mxu0 %v1852
      %1943 = vmatprep.subr.mxu0 %v1861
      %1944 = vmatpush1.msra.mxu0 %v1860
      %1945 = vmatprep.subr.mxu0 %v1869
      %1946 = vmatpush1.msra.mxu0 %v1868
      %1947 = vmatprep.subr.mxu0 %v1877
      %1948 = vmatpush1.msra.mxu0 %v1876
      %1949 = vmatprep.subr.mxu0 %v1885
      %1950 = vmatpush1.msra.mxu0 %v1884
      %1951 = vmatprep.subr.mxu0 0.0
      %1952 = vmatpush1.msra.mxu0 0.0
      %1953 = vmatprep.subr.mxu0 0.0
      %1954 = vmatpush1.msra.mxu0 0.0
      %1955 = vmatprep.subr.mxu0 0.0
      %1956 = vmatpush1.msra.mxu0 0.0
      %1957 = vmatprep.subr.mxu0 0.0
      %1958 = vmatpush1.msra.mxu0 0.0
      %1959 = vmatprep.subr.mxu0 0.0
      %1960 = vmatpush1.msra.mxu0 0.0
      %1961 = vmatprep.subr.mxu0 0.0
      %1962 = vmatpush1.msra.mxu0 0.0
      %1963 = vmatprep.subr.mxu0 0.0
      %1964 = vmatpush1.msra.mxu0 0.0
      %1965 = vmatprep.mubr.f32.mxu0 %v1899
      %1966 = vmatmul.mubr.f32.gmra.mrb[0].mxu0 %v258
      %v1967 = vpop.f32.mrb[0].mxu0
      %v1968 = vadd.f32 %v1895, %v1967
      %v1969 = vpop.f32.mrb[0].mxu0
      %v1970 = vadd.f32 %v1895, %v1969
      %1971 = vdwg.mxu0
      %1972 = vmatprep.subr.mxu0 %v1695
      %1973 = vmatpush1.msra.mxu0 %v1694
      %1974 = vmatprep.subr.mxu0 %v1703
      %1975 = vmatpush1.msra.mxu0 %v1702
      %1976 = vmatprep.subr.mxu0 %v1711
      %1977 = vmatpush1.msra.mxu0 %v1710
      %1978 = vmatprep.subr.mxu0 %v1719
      %1979 = vmatpush1.msra.mxu0 %v1718
      %1980 = vmatprep.subr.mxu0 %v1727
      %1981 = vmatpush1.msra.mxu0 %v1726
      %1982 = vmatprep.subr.mxu0 %v1735
      %1983 = vmatpush1.msra.mxu0 %v1734
      %1984 = vmatprep.subr.mxu0 %v1743
      %1985 = vmatpush1.msra.mxu0 %v1742
      %1986 = vmatprep.subr.mxu0 %v1751
      %1987 = vmatpush1.msra.mxu0 %v1750
      %1988 = vmatprep.subr.mxu0 %v1759
      %1989 = vmatpush1.msra.mxu0 %v1758
      %1990 = vmatprep.subr.mxu0 %v1767
      %1991 = vmatpush1.msra.mxu0 %v1766
      %1992 = vmatprep.subr.mxu0 %v1775
      %1993 = vmatpush1.msra.mxu0 %v1774
      %1994 = vmatprep.subr.mxu0 %v1783
      %1995 = vmatpush1.msra.mxu0 %v1782
      %1996 = vmatprep.subr.mxu0 %v1791
      %1997 = vmatpush1.msra.mxu0 %v1790
      %1998 = vmatprep.subr.mxu0 %v1799
      %1999 = vmatpush1.msra.mxu0 %v1798
      %2000 = vmatprep.subr.mxu0 %v1807
      %2001 = vmatpush1.msra.mxu0 %v1806
      %2002 = vmatprep.subr.mxu0 %v1815
      %2003 = vmatpush1.msra.mxu0 %v1814
      %2004 = vmatprep.subr.mxu0 %v1823
      %2005 = vmatpush1.msra.mxu0 %v1822
      %2006 = vmatprep.subr.mxu0 %v1831
      %2007 = vmatpush1.msra.mxu0 %v1830
      %2008 = vmatprep.subr.mxu0 %v1839
      %2009 = vmatpush1.msra.mxu0 %v1838
      %2010 = vmatprep.subr.mxu0 %v1847
      %2011 = vmatpush1.msra.mxu0 %v1846
      %2012 = vmatprep.subr.mxu0 %v1855
      %2013 = vmatpush1.msra.mxu0 %v1854
      %2014 = vmatprep.subr.mxu0 %v1863
      %2015 = vmatpush1.msra.mxu0 %v1862
      %2016 = vmatprep.subr.mxu0 %v1871
      %2017 = vmatpush1.msra.mxu0 %v1870
      %2018 = vmatprep.subr.mxu0 %v1879
      %2019 = vmatpush1.msra.mxu0 %v1878
      %2020 = vmatprep.subr.mxu0 %v1887
      %2021 = vmatpush1.msra.mxu0 %v1886
      %2022 = vmatprep.subr.mxu0 0.0
      %2023 = vmatpush1.msra.mxu0 0.0
      %2024 = vmatprep.subr.mxu0 0.0
      %2025 = vmatpush1.msra.mxu0 0.0
      %2026 = vmatprep.subr.mxu0 0.0
      %2027 = vmatpush1.msra.mxu0 0.0
      %2028 = vmatprep.subr.mxu0 0.0
      %2029 = vmatpush1.msra.mxu0 0.0
      %2030 = vmatprep.subr.mxu0 0.0
      %2031 = vmatpush1.msra.mxu0 0.0
      %2032 = vmatprep.subr.mxu0 0.0
      %2033 = vmatpush1.msra.mxu0 0.0
      %2034 = vmatprep.subr.mxu0 0.0
      %2035 = vmatpush1.msra.mxu0 0.0
      %2036 = vmatprep.mubr.f32.mxu0 %v1899
      %2037 = vmatmul.mubr.f32.gmra.mrb[0].mxu0 %v258
      %v2038 = vpop.f32.mrb[0].mxu0
      %v2039 = vadd.f32 %v1895, %v2038
      %v2040 = vpop.f32.mrb[0].mxu0
      %v2041 = vadd.f32 %v1895, %v2040
      %2042 = vdwg.mxu0
      %2043 = vmatprep.subr.mxu0 %v1697
      %2044 = vmatpush1.msra.mxu0 %v1696
      %2045 = vmatprep.subr.mxu0 %v1705
      %2046 = vmatpush1.msra.mxu0 %v1704
      %2047 = vmatprep.subr.mxu0 %v1713
      %2048 = vmatpush1.msra.mxu0 %v1712
      %2049 = vmatprep.subr.mxu0 %v1721
      %2050 = vmatpush1.msra.mxu0 %v1720
      %2051 = vmatprep.subr.mxu0 %v1729
      %2052 = vmatpush1.msra.mxu0 %v1728
      %2053 = vmatprep.subr.mxu0 %v1737
      %2054 = vmatpush1.msra.mxu0 %v1736
      %2055 = vmatprep.subr.mxu0 %v1745
      %2056 = vmatpush1.msra.mxu0 %v1744
      %2057 = vmatprep.subr.mxu0 %v1753
      %2058 = vmatpush1.msra.mxu0 %v1752
      %2059 = vmatprep.subr.mxu0 %v1761
      %2060 = vmatpush1.msra.mxu0 %v1760
      %2061 = vmatprep.subr.mxu0 %v1769
      %2062 = vmatpush1.msra.mxu0 %v1768
      %2063 = vmatprep.subr.mxu0 %v1777
      %2064 = vmatpush1.msra.mxu0 %v1776
      %2065 = vmatprep.subr.mxu0 %v1785
      %2066 = vmatpush1.msra.mxu0 %v1784
      %2067 = vmatprep.subr.mxu0 %v1793
      %2068 = vmatpush1.msra.mxu0 %v1792
      %2069 = vmatprep.subr.mxu0 %v1801
      %2070 = vmatpush1.msra.mxu0 %v1800
      %2071 = vmatprep.subr.mxu0 %v1809
      %2072 = vmatpush1.msra.mxu0 %v1808
      %2073 = vmatprep.subr.mxu0 %v1817
      %2074 = vmatpush1.msra.mxu0 %v1816
      %2075 = vmatprep.subr.mxu0 %v1825
      %2076 = vmatpush1.msra.mxu0 %v1824
      %2077 = vmatprep.subr.mxu0 %v1833
      %2078 = vmatpush1.msra.mxu0 %v1832
      %2079 = vmatprep.subr.mxu0 %v1841
      %2080 = vmatpush1.msra.mxu0 %v1840
      %2081 = vmatprep.subr.mxu0 %v1849
      %2082 = vmatpush1.msra.mxu0 %v1848
      %2083 = vmatprep.subr.mxu0 %v1857
      %2084 = vmatpush1.msra.mxu0 %v1856
      %2085 = vmatprep.subr.mxu0 %v1865
      %2086 = vmatpush1.msra.mxu0 %v1864
      %2087 = vmatprep.subr.mxu0 %v1873
      %2088 = vmatpush1.msra.mxu0 %v1872
      %2089 = vmatprep.subr.mxu0 %v1881
      %2090 = vmatpush1.msra.mxu0 %v1880
      %2091 = vmatprep.subr.mxu0 %v1889
      %2092 = vmatpush1.msra.mxu0 %v1888
      %2093 = vmatprep.subr.mxu0 0.0
      %2094 = vmatpush1.msra.mxu0 0.0
      %2095 = vmatprep.subr.mxu0 0.0
      %2096 = vmatpush1.msra.mxu0 0.0
      %2097 = vmatprep.subr.mxu0 0.0
      %2098 = vmatpush1.msra.mxu0 0.0
      %2099 = vmatprep.subr.mxu0 0.0
      %2100 = vmatpush1.msra.mxu0 0.0
      %2101 = vmatprep.subr.mxu0 0.0
      %2102 = vmatpush1.msra.mxu0 0.0
      %2103 = vmatprep.subr.mxu0 0.0
      %2104 = vmatpush1.msra.mxu0 0.0
      %2105 = vmatprep.subr.mxu0 0.0
      %2106 = vmatpush1.msra.mxu0 0.0
      %2107 = vmatprep.mubr.f32.mxu0 %v1899
      %2108 = vmatmul.mubr.f32.gmra.mrb[0].mxu0 %v258
      %v2109 = vpop.f32.mrb[0].mxu0
      %v2110 = vadd.f32 %v1895, %v2109
      %v2111 = vpop.f32.mrb[0].mxu0
      %v2112 = vadd.f32 %v1895, %v2111
      %2113 = vdwg.mxu0
      %2114 = vmatprep.subr.mxu0 %v1699
      %2115 = vmatpush1.msra.mxu0 %v1698
      %2116 = vmatprep.subr.mxu0 %v1707
      %2117 = vmatpush1.msra.mxu0 %v1706
      %2118 = vmatprep.subr.mxu0 %v1715
      %2119 = vmatpush1.msra.mxu0 %v1714
      %2120 = vmatprep.subr.mxu0 %v1723
      %2121 = vmatpush1.msra.mxu0 %v1722
      %2122 = vmatprep.subr.mxu0 %v1731
      %2123 = vmatpush1.msra.mxu0 %v1730
      %2124 = vmatprep.subr.mxu0 %v1739
      %2125 = vmatpush1.msra.mxu0 %v1738
      %2126 = vmatprep.subr.mxu0 %v1747
      %2127 = vmatpush1.msra.mxu0 %v1746
      %2128 = vmatprep.subr.mxu0 %v1755
      %2129 = vmatpush1.msra.mxu0 %v1754
      %2130 = vmatprep.subr.mxu0 %v1763
      %2131 = vmatpush1.msra.mxu0 %v1762
      %2132 = vmatprep.subr.mxu0 %v1771
      %2133 = vmatpush1.msra.mxu0 %v1770
      %2134 = vmatprep.subr.mxu0 %v1779
      %2135 = vmatpush1.msra.mxu0 %v1778
      %2136 = vmatprep.subr.mxu0 %v1787
      %2137 = vmatpush1.msra.mxu0 %v1786
      %2138 = vmatprep.subr.mxu0 %v1795
      %2139 = vmatpush1.msra.mxu0 %v1794
      %2140 = vmatprep.subr.mxu0 %v1803
      %2141 = vmatpush1.msra.mxu0 %v1802
      %2142 = vmatprep.subr.mxu0 %v1811
      %2143 = vmatpush1.msra.mxu0 %v1810
      %2144 = vmatprep.subr.mxu0 %v1819
      %2145 = vmatpush1.msra.mxu0 %v1818
      %2146 = vmatprep.subr.mxu0 %v1827
      %2147 = vmatpush1.msra.mxu0 %v1826
      %2148 = vmatprep.subr.mxu0 %v1835
      %2149 = vmatpush1.msra.mxu0 %v1834
      %2150 = vmatprep.subr.mxu0 %v1843
      %2151 = vmatpush1.msra.mxu0 %v1842
      %2152 = vmatprep.subr.mxu0 %v1851
      %2153 = vmatpush1.msra.mxu0 %v1850
      %2154 = vmatprep.subr.mxu0 %v1859
      %2155 = vmatpush1.msra.mxu0 %v1858
      %2156 = vmatprep.subr.mxu0 %v1867
      %2157 = vmatpush1.msra.mxu0 %v1866
      %2158 = vmatprep.subr.mxu0 %v1875
      %2159 = vmatpush1.msra.mxu0 %v1874
      %2160 = vmatprep.subr.mxu0 %v1883
      %2161 = vmatpush1.msra.mxu0 %v1882
      %2162 = vmatprep.subr.mxu0 %v1891
      %2163 = vmatpush1.msra.mxu0 %v1890
      %2164 = vmatprep.subr.mxu0 0.0
      %2165 = vmatpush1.msra.mxu0 0.0
      %2166 = vmatprep.subr.mxu0 0.0
      %2167 = vmatpush1.msra.mxu0 0.0
      %2168 = vmatprep.subr.mxu0 0.0
      %2169 = vmatpush1.msra.mxu0 0.0
      %2170 = vmatprep.subr.mxu0 0.0
      %2171 = vmatpush1.msra.mxu0 0.0
      %2172 = vmatprep.subr.mxu0 0.0
      %2173 = vmatpush1.msra.mxu0 0.0
      %2174 = vmatprep.subr.mxu0 0.0
      %2175 = vmatpush1.msra.mxu0 0.0
      %2176 = vmatprep.subr.mxu0 0.0
      %2177 = vmatpush1.msra.mxu0 0.0
      %2178 = vmatprep.mubr.f32.mxu0 %v1899
      %2179 = vmatmul.mubr.f32.gmra.mrb[0].mxu0 %v258
      %v2180 = vpop.f32.mrb[0].mxu0
      %v2181 = vadd.f32 %v1895, %v2180
      %v2182 = vpop.f32.mrb[0].mxu0
      %v2183 = vadd.f32 %v1895, %v2182
      %2184 = vdwg.mxu0
      %v2185 = vmax.f32 %v1968, 0.0
      %v2186 = vmax.f32 %v1970, 0.0
      %v2187 = vmax.f32 %v2039, 0.0
      %v2188 = vmax.f32 %v2041, 0.0
      %v2189 = vmax.f32 %v2110, 0.0
      %v2190 = vmax.f32 %v2112, 0.0
      %v2191 = vmax.f32 %v2181, 0.0
      %v2192 = vmax.f32 %v2183, 0.0
      %2193 = vst [vmem:[#allocation3] sm:$0xff] %v2185
      %2194 = vst [vmem:[#allocation3 + $0x8] sm:$0xff] %v2186
      %2195 = vst [vmem:[#allocation3 + $0x10] sm:$0xff] %v2187
      %2196 = vst [vmem:[#allocation3 + $0x18] sm:$0xff] %v2188
      %2197 = vst [vmem:[#allocation3 + $0x20] sm:$0xff] %v2189
      %2198 = vst [vmem:[#allocation3 + $0x28] sm:$0xff] %v2190
      %2199 = vst [vmem:[#allocation3 + $0x30] sm:$0xff] %v2191
      %2200 = vst [vmem:[#allocation3 + $0x38] sm:$0xff] %v2192
      %v2201 = vld [vmem:[#allocation3] sm:$0xff]
      %v2202 = vld [vmem:[#allocation3 + $0x8] sm:$0xff]
      %v2203 = vld [vmem:[#allocation3 + $0x10] sm:$0xff]
      %v2204 = vld [vmem:[#allocation3 + $0x18] sm:$0xff]
      %v2205 = vld [vmem:[#allocation3 + $0x20] sm:$0xff]
      %v2206 = vld [vmem:[#allocation3 + $0x28] sm:$0xff]
      %v2207 = vld [vmem:[#allocation3 + $0x30] sm:$0xff]
      %v2208 = vld [vmem:[#allocation3 + $0x38] sm:$0xff]
      %v2209 = vld [vmem:[#allocation3 + $0x40] sm:$0xff]
      %2219 = vrot.lane.b32.xlu0 %v2201, 127
      %v2220 = vpop.permute.xlu0 %2219
      %2221 = vrot.lane.b32.xlu0 %v2202, 127
      %v2222 = vpop.permute.xlu0 %2221
      %2223 = vrot.lane.b32.xlu0 %v2203, 127
      %v2224 = vpop.permute.xlu0 %2223
      %2225 = vrot.lane.b32.xlu0 %v2204, 127
      %v2226 = vpop.permute.xlu0 %2225
      %2227 = vrot.lane.b32.xlu0 %v2205, 127
      %v2228 = vpop.permute.xlu0 %2227
      %2229 = vrot.lane.b32.xlu0 %v2206, 127
      %v2230 = vpop.permute.xlu0 %2229
      %2231 = vrot.lane.b32.xlu0 %v2207, 127
      %v2232 = vpop.permute.xlu0 %2231
      %2233 = vrot.lane.b32.xlu0 %v2208, 127
      %v2234 = vpop.permute.xlu0 %2233
      %2235 = vrot.lane.b32.xlu0 %v2209, 127
      %v2236 = vpop.permute.xlu0 %2235
      %v2237 = vsel %vm313, %v2220, %v2222
      %v2238 = vsel %vm313, %v2222, %v2224
      %v2239 = vsel %vm313, %v2224, %v2226
      %v2240 = vsel %vm313, %v2226, %v2228
      %v2241 = vsel %vm313, %v2228, %v2230
      %v2242 = vsel %vm313, %v2230, %v2232
      %v2243 = vsel %vm313, %v2232, %v2234
      %v2244 = vsel %vm313, %v2234, %v2236
      %v2253 = vmax.f32 %v2201, %v2237
      %v2254 = vmax.f32 %v2202, %v2238
      %v2255 = vmax.f32 %v2203, %v2239
      %v2256 = vmax.f32 %v2204, %v2240
      %v2257 = vmax.f32 %v2205, %v2241
      %v2258 = vmax.f32 %v2206, %v2242
      %v2259 = vmax.f32 %v2207, %v2243
      %v2260 = vmax.f32 %v2208, %v2244
      %2261 = vrot.lane.b32.xlu0 %v2201, 96
      %v2262 = vpop.permute.xlu0 %2261
      %2263 = vrot.lane.b32.xlu0 %v2202, 96
      %v2264 = vpop.permute.xlu0 %2263
      %2265 = vrot.lane.b32.xlu0 %v2203, 96
      %v2266 = vpop.permute.xlu0 %2265
      %2267 = vrot.lane.b32.xlu0 %v2204, 96
      %v2268 = vpop.permute.xlu0 %2267
      %2269 = vrot.lane.b32.xlu0 %v2205, 96
      %v2270 = vpop.permute.xlu0 %2269
      %2271 = vrot.lane.b32.xlu0 %v2206, 96
      %v2272 = vpop.permute.xlu0 %2271
      %2273 = vrot.lane.b32.xlu0 %v2207, 96
      %v2274 = vpop.permute.xlu0 %2273
      %2275 = vrot.lane.b32.xlu0 %v2208, 96
      %v2276 = vpop.permute.xlu0 %2275
      %2277 = vrot.lane.b32.xlu0 %v2209, 96
      %v2278 = vpop.permute.xlu0 %2277
      %v2279 = vsel %vm557, %v2262, %v2264
      %v2280 = vsel %vm557, %v2264, %v2266
      %v2281 = vsel %vm557, %v2266, %v2268
      %v2282 = vsel %vm557, %v2268, %v2270
      %v2283 = vsel %vm557, %v2270, %v2272
      %v2284 = vsel %vm557, %v2272, %v2274
      %v2285 = vsel %vm557, %v2274, %v2276
      %v2286 = vsel %vm557, %v2276, %v2278
      %v2295 = vmax.f32 %v2253, %v2279
      %v2296 = vmax.f32 %v2254, %v2280
      %v2297 = vmax.f32 %v2255, %v2281
      %v2298 = vmax.f32 %v2256, %v2282
      %v2299 = vmax.f32 %v2257, %v2283
      %v2300 = vmax.f32 %v2258, %v2284
      %v2301 = vmax.f32 %v2259, %v2285
      %v2302 = vmax.f32 %v2260, %v2286
      %2303 = vrot.lane.b32.xlu0 %v2201, 95
      %v2304 = vpop.permute.xlu0 %2303
      %2305 = vrot.lane.b32.xlu0 %v2202, 95
      %v2306 = vpop.permute.xlu0 %2305
      %2307 = vrot.lane.b32.xlu0 %v2203, 95
      %v2308 = vpop.permute.xlu0 %2307
      %2309 = vrot.lane.b32.xlu0 %v2204, 95
      %v2310 = vpop.permute.xlu0 %2309
      %2311 = vrot.lane.b32.xlu0 %v2205, 95
      %v2312 = vpop.permute.xlu0 %2311
      %2313 = vrot.lane.b32.xlu0 %v2206, 95
      %v2314 = vpop.permute.xlu0 %2313
      %2315 = vrot.lane.b32.xlu0 %v2207, 95
      %v2316 = vpop.permute.xlu0 %2315
      %2317 = vrot.lane.b32.xlu0 %v2208, 95
      %v2318 = vpop.permute.xlu0 %2317
      %2319 = vrot.lane.b32.xlu0 %v2209, 95
      %v2320 = vpop.permute.xlu0 %2319
      %v2321 = vsel %vm618, %v2304, %v2306
      %v2322 = vsel %vm618, %v2306, %v2308
      %v2323 = vsel %vm618, %v2308, %v2310
      %v2324 = vsel %vm618, %v2310, %v2312
      %v2325 = vsel %vm618, %v2312, %v2314
      %v2326 = vsel %vm618, %v2314, %v2316
      %v2327 = vsel %vm618, %v2316, %v2318
      %v2328 = vsel %vm618, %v2318, %v2320
      %v2337 = vmax.f32 %v2295, %v2321
      %v2338 = vmax.f32 %v2296, %v2322
      %v2339 = vmax.f32 %v2297, %v2323
      %v2340 = vmax.f32 %v2298, %v2324
      %v2341 = vmax.f32 %v2299, %v2325
      %v2342 = vmax.f32 %v2300, %v2326
      %v2343 = vmax.f32 %v2301, %v2327
      %v2344 = vmax.f32 %v2302, %v2328
      %2345 = vst [vmem:[#allocation4] sm:$0xff] %v2337
      %2346 = vst [vmem:[#allocation4 + $0x8] sm:$0xff] %v2338
      %2347 = vst [vmem:[#allocation4 + $0x10] sm:$0xff] %v2339
      %2348 = vst [vmem:[#allocation4 + $0x18] sm:$0xff] %v2340
      %2349 = vst [vmem:[#allocation4 + $0x20] sm:$0xff] %v2341
      %2350 = vst [vmem:[#allocation4 + $0x28] sm:$0xff] %v2342
      %2351 = vst [vmem:[#allocation4 + $0x30] sm:$0xff] %v2343
      %2352 = vst [vmem:[#allocation4 + $0x38] sm:$0xff] %v2344
      %v2353 = vld [vmem:[%s1 + $0x10] sm:$0xff]
      %v2354 = vld [vmem:[%s1 + $0x18] sm:$0xff]
      %v2355 = vld [vmem:[%s1 + $0x20] sm:$0xff]
      %v2356 = vld [vmem:[%s1 + $0x28] sm:$0xff]
      %v2357 = vld [vmem:[%s4 + $0x8] sm:$0xff]
      %v2358 = vld [vmem:[%s4 + $0x10] sm:$0xff]
      %v2359 = vld [vmem:[#allocation4] sm:$0xff]
      %v2360 = vld [vmem:[#allocation4 + $0x8] sm:$0xff]
      %v2361 = vld [vmem:[#allocation4 + $0x10] sm:$0xff]
      %v2362 = vld [vmem:[#allocation4 + $0x18] sm:$0xff]
      %v2363 = vld [vmem:[#allocation4 + $0x20] sm:$0xff]
      %v2364 = vld [vmem:[#allocation4 + $0x28] sm:$0xff]
      %v2365 = vld [vmem:[#allocation4 + $0x30] sm:$0xff]
      %v2366 = vld [vmem:[#allocation4 + $0x38] sm:$0xff]
      %2367 = vst [vmem:[#allocation7] sm:$0xff] %v2359
      %2368 = vst [vmem:[#allocation7 + $0x8] sm:$0xff] %v2360
      %2369 = vst [vmem:[#allocation7 + $0x10] sm:$0xff] %v2361
      %2370 = vst [vmem:[#allocation7 + $0x18] sm:$0xff] %v2362
      %2371 = vst [vmem:[#allocation7 + $0x20] sm:$0xff] %v2363
      %2372 = vst [vmem:[#allocation7 + $0x28] sm:$0xff] %v2364
      %2373 = vst [vmem:[#allocation7 + $0x30] sm:$0xff] %v2365
      %2374 = vst [vmem:[#allocation7 + $0x38] sm:$0xff] %v2366
      %v2375 = vld [vmem:[#allocation4] sm:$0xff]
      %v2376 = vld [vmem:[#allocation4 + $0x8] sm:$0xff]
      %v2377 = vld [vmem:[#allocation4 + $0x10] sm:$0xff]
      %v2378 = vld [vmem:[#allocation4 + $0x18] sm:$0xff]
      %v2379 = vld [vmem:[#allocation4 + $0x20] sm:$0xff]
      %v2380 = vld [vmem:[#allocation4 + $0x28] sm:$0xff]
      %v2381 = vld [vmem:[#allocation4 + $0x30] sm:$0xff]
      %v2382 = vld [vmem:[#allocation4 + $0x38] sm:$0xff]
      %v2383 = vld [vmem:[#allocation4 + $0x40] sm:$0xff]
      %2393 = vrot.lane.b32.xlu0 %v2375, 126
      %v2394 = vpop.permute.xlu0 %2393
      %2395 = vrot.lane.b32.xlu0 %v2376, 126
      %v2396 = vpop.permute.xlu0 %2395
      %2397 = vrot.lane.b32.xlu0 %v2377, 126
      %v2398 = vpop.permute.xlu0 %2397
      %2399 = vrot.lane.b32.xlu0 %v2378, 126
      %v2400 = vpop.permute.xlu0 %2399
      %2401 = vrot.lane.b32.xlu0 %v2379, 126
      %v2402 = vpop.permute.xlu0 %2401
      %2403 = vrot.lane.b32.xlu0 %v2380, 126
      %v2404 = vpop.permute.xlu0 %2403
      %2405 = vrot.lane.b32.xlu0 %v2381, 126
      %v2406 = vpop.permute.xlu0 %2405
      %2407 = vrot.lane.b32.xlu0 %v2382, 126
      %v2408 = vpop.permute.xlu0 %2407
      %2409 = vrot.lane.b32.xlu0 %v2383, 126
      %v2410 = vpop.permute.xlu0 %2409
      %v2411 = vsel %vm374, %v2394, %v2396
      %v2412 = vsel %vm374, %v2396, %v2398
      %v2413 = vsel %vm374, %v2398, %v2400
      %v2414 = vsel %vm374, %v2400, %v2402
      %v2415 = vsel %vm374, %v2402, %v2404
      %v2416 = vsel %vm374, %v2404, %v2406
      %v2417 = vsel %vm374, %v2406, %v2408
      %v2418 = vsel %vm374, %v2408, %v2410
      %2427 = vst [vmem:[#allocation7 + $0x40] sm:$0xff] %v2411
      %2428 = vst [vmem:[#allocation7 + $0x48] sm:$0xff] %v2412
      %2429 = vst [vmem:[#allocation7 + $0x50] sm:$0xff] %v2413
      %2430 = vst [vmem:[#allocation7 + $0x58] sm:$0xff] %v2414
      %2431 = vst [vmem:[#allocation7 + $0x60] sm:$0xff] %v2415
      %2432 = vst [vmem:[#allocation7 + $0x68] sm:$0xff] %v2416
      %2433 = vst [vmem:[#allocation7 + $0x70] sm:$0xff] %v2417
      %2434 = vst [vmem:[#allocation7 + $0x78] sm:$0xff] %v2418
      %v2435 = vld [vmem:[#allocation4] sm:$0xff]
      %v2436 = vld [vmem:[#allocation4 + $0x8] sm:$0xff]
      %v2437 = vld [vmem:[#allocation4 + $0x10] sm:$0xff]
      %v2438 = vld [vmem:[#allocation4 + $0x18] sm:$0xff]
      %v2439 = vld [vmem:[#allocation4 + $0x20] sm:$0xff]
      %v2440 = vld [vmem:[#allocation4 + $0x28] sm:$0xff]
      %v2441 = vld [vmem:[#allocation4 + $0x30] sm:$0xff]
      %v2442 = vld [vmem:[#allocation4 + $0x38] sm:$0xff]
      %v2443 = vld [vmem:[#allocation4 + $0x40] sm:$0xff]
      %2453 = vrot.lane.b32.xlu0 %v2435, 124
      %v2454 = vpop.permute.xlu0 %2453
      %2455 = vrot.lane.b32.xlu0 %v2436, 124
      %v2456 = vpop.permute.xlu0 %2455
      %2457 = vrot.lane.b32.xlu0 %v2437, 124
      %v2458 = vpop.permute.xlu0 %2457
      %2459 = vrot.lane.b32.xlu0 %v2438, 124
      %v2460 = vpop.permute.xlu0 %2459
      %2461 = vrot.lane.b32.xlu0 %v2439, 124
      %v2462 = vpop.permute.xlu0 %2461
      %2463 = vrot.lane.b32.xlu0 %v2440, 124
      %v2464 = vpop.permute.xlu0 %2463
      %2465 = vrot.lane.b32.xlu0 %v2441, 124
      %v2466 = vpop.permute.xlu0 %2465
      %2467 = vrot.lane.b32.xlu0 %v2442, 124
      %v2468 = vpop.permute.xlu0 %2467
      %2469 = vrot.lane.b32.xlu0 %v2443, 124
      %v2470 = vpop.permute.xlu0 %2469
      %v2471 = vsel %vm496, %v2454, %v2456
      %v2472 = vsel %vm496, %v2456, %v2458
      %v2473 = vsel %vm496, %v2458, %v2460
      %v2474 = vsel %vm496, %v2460, %v2462
      %v2475 = vsel %vm496, %v2462, %v2464
      %v2476 = vsel %vm496, %v2464, %v2466
      %v2477 = vsel %vm496, %v2466, %v2468
      %v2478 = vsel %vm496, %v2468, %v2470
      %2487 = vst [vmem:[#allocation7 + $0x80] sm:$0xff] %v2471
      %2488 = vst [vmem:[#allocation7 + $0x88] sm:$0xff] %v2472
      %2489 = vst [vmem:[#allocation7 + $0x90] sm:$0xff] %v2473
      %2490 = vst [vmem:[#allocation7 + $0x98] sm:$0xff] %v2474
      %2491 = vst [vmem:[#allocation7 + $0xa0] sm:$0xff] %v2475
      %2492 = vst [vmem:[#allocation7 + $0xa8] sm:$0xff] %v2476
      %2493 = vst [vmem:[#allocation7 + $0xb0] sm:$0xff] %v2477
      %2494 = vst [vmem:[#allocation7 + $0xb8] sm:$0xff] %v2478
      %v2495 = vld [vmem:[#allocation4] sm:$0xff]
      %v2496 = vld [vmem:[#allocation4 + $0x8] sm:$0xff]
      %v2497 = vld [vmem:[#allocation4 + $0x10] sm:$0xff]
      %v2498 = vld [vmem:[#allocation4 + $0x18] sm:$0xff]
      %v2499 = vld [vmem:[#allocation4 + $0x20] sm:$0xff]
      %v2500 = vld [vmem:[#allocation4 + $0x28] sm:$0xff]
      %v2501 = vld [vmem:[#allocation4 + $0x30] sm:$0xff]
      %v2502 = vld [vmem:[#allocation4 + $0x38] sm:$0xff]
      %v2503 = vld [vmem:[#allocation4 + $0x40] sm:$0xff]
      %2513 = vrot.lane.b32.xlu0 %v2495, 122
      %v2514 = vpop.permute.xlu0 %2513
      %2515 = vrot.lane.b32.xlu0 %v2496, 122
      %v2516 = vpop.permute.xlu0 %2515
      %2517 = vrot.lane.b32.xlu0 %v2497, 122
      %v2518 = vpop.permute.xlu0 %2517
      %2519 = vrot.lane.b32.xlu0 %v2498, 122
      %v2520 = vpop.permute.xlu0 %2519
      %2521 = vrot.lane.b32.xlu0 %v2499, 122
      %v2522 = vpop.permute.xlu0 %2521
      %2523 = vrot.lane.b32.xlu0 %v2500, 122
      %v2524 = vpop.permute.xlu0 %2523
      %2525 = vrot.lane.b32.xlu0 %v2501, 122
      %v2526 = vpop.permute.xlu0 %2525
      %2527 = vrot.lane.b32.xlu0 %v2502, 122
      %v2528 = vpop.permute.xlu0 %2527
      %2529 = vrot.lane.b32.xlu0 %v2503, 122
      %v2530 = vpop.permute.xlu0 %2529
      %vm2531 = vcmask 998400
      %v2532 = vsel %vm2531, %v2514, %v2516
      %v2533 = vsel %vm2531, %v2516, %v2518
      %v2534 = vsel %vm2531, %v2518, %v2520
      %v2535 = vsel %vm2531, %v2520, %v2522
      %v2536 = vsel %vm2531, %v2522, %v2524
      %v2537 = vsel %vm2531, %v2524, %v2526
      %v2538 = vsel %vm2531, %v2526, %v2528
      %v2539 = vsel %vm2531, %v2528, %v2530
      %2548 = vst [vmem:[#allocation7 + $0xc0] sm:$0xff] %v2532
      %2549 = vst [vmem:[#allocation7 + $0xc8] sm:$0xff] %v2533
      %2550 = vst [vmem:[#allocation7 + $0xd0] sm:$0xff] %v2534
      %2551 = vst [vmem:[#allocation7 + $0xd8] sm:$0xff] %v2535
      %2552 = vst [vmem:[#allocation7 + $0xe0] sm:$0xff] %v2536
      %2553 = vst [vmem:[#allocation7 + $0xe8] sm:$0xff] %v2537
      %2554 = vst [vmem:[#allocation7 + $0xf0] sm:$0xff] %v2538
      %2555 = vst [vmem:[#allocation7 + $0xf8] sm:$0xff] %v2539
      %v2556 = vld [vmem:[#allocation4] sm:$0xff]
      %v2557 = vld [vmem:[#allocation4 + $0x8] sm:$0xff]
      %v2558 = vld [vmem:[#allocation4 + $0x10] sm:$0xff]
      %v2559 = vld [vmem:[#allocation4 + $0x18] sm:$0xff]
      %v2560 = vld [vmem:[#allocation4 + $0x20] sm:$0xff]
      %v2561 = vld [vmem:[#allocation4 + $0x28] sm:$0xff]
      %v2562 = vld [vmem:[#allocation4 + $0x30] sm:$0xff]
      %v2563 = vld [vmem:[#allocation4 + $0x38] sm:$0xff]
      %v2564 = vld [vmem:[#allocation4 + $0x40] sm:$0xff]
      %2574 = vrot.lane.b32.xlu0 %v2556, 120
      %v2575 = vpop.permute.xlu0 %2574
      %2576 = vrot.lane.b32.xlu0 %v2557, 120
      %v2577 = vpop.permute.xlu0 %2576
      %2578 = vrot.lane.b32.xlu0 %v2558, 120
      %v2579 = vpop.permute.xlu0 %2578
      %2580 = vrot.lane.b32.xlu0 %v2559, 120
      %v2581 = vpop.permute.xlu0 %2580
      %2582 = vrot.lane.b32.xlu0 %v2560, 120
      %v2583 = vpop.permute.xlu0 %2582
      %2584 = vrot.lane.b32.xlu0 %v2561, 120
      %v2585 = vpop.permute.xlu0 %2584
      %2586 = vrot.lane.b32.xlu0 %v2562, 120
      %v2587 = vpop.permute.xlu0 %2586
      %2588 = vrot.lane.b32.xlu0 %v2563, 120
      %v2589 = vpop.permute.xlu0 %2588
      %2590 = vrot.lane.b32.xlu0 %v2564, 120
      %v2591 = vpop.permute.xlu0 %2590
      %vm2592 = vcmask 982016
      %v2593 = vsel %vm2592, %v2575, %v2577
      %v2594 = vsel %vm2592, %v2577, %v2579
      %v2595 = vsel %vm2592, %v2579, %v2581
      %v2596 = vsel %vm2592, %v2581, %v2583
      %v2597 = vsel %vm2592, %v2583, %v2585
      %v2598 = vsel %vm2592, %v2585, %v2587
      %v2599 = vsel %vm2592, %v2587, %v2589
      %v2600 = vsel %vm2592, %v2589, %v2591
      %2609 = vst [vmem:[#allocation7 + $0x100] sm:$0xff] %v2593
      %2610 = vst [vmem:[#allocation7 + $0x108] sm:$0xff] %v2594
      %2611 = vst [vmem:[#allocation7 + $0x110] sm:$0xff] %v2595
      %2612 = vst [vmem:[#allocation7 + $0x118] sm:$0xff] %v2596
      %2613 = vst [vmem:[#allocation7 + $0x120] sm:$0xff] %v2597
      %2614 = vst [vmem:[#allocation7 + $0x128] sm:$0xff] %v2598
      %2615 = vst [vmem:[#allocation7 + $0x130] sm:$0xff] %v2599
      %2616 = vst [vmem:[#allocation7 + $0x138] sm:$0xff] %v2600
      %v2617 = vld [vmem:[#allocation4] sm:$0xff]
      %v2618 = vld [vmem:[#allocation4 + $0x8] sm:$0xff]
      %v2619 = vld [vmem:[#allocation4 + $0x10] sm:$0xff]
      %v2620 = vld [vmem:[#allocation4 + $0x18] sm:$0xff]
      %v2621 = vld [vmem:[#allocation4 + $0x20] sm:$0xff]
      %v2622 = vld [vmem:[#allocation4 + $0x28] sm:$0xff]
      %v2623 = vld [vmem:[#allocation4 + $0x30] sm:$0xff]
      %v2624 = vld [vmem:[#allocation4 + $0x38] sm:$0xff]
      %v2625 = vld [vmem:[#allocation4 + $0x40] sm:$0xff]
      %2635 = vrot.lane.b32.xlu0 %v2617, 64
      %v2636 = vpop.permute.xlu0 %2635
      %2637 = vrot.lane.b32.xlu0 %v2618, 64
      %v2638 = vpop.permute.xlu0 %2637
      %2639 = vrot.lane.b32.xlu0 %v2619, 64
      %v2640 = vpop.permute.xlu0 %2639
      %2641 = vrot.lane.b32.xlu0 %v2620, 64
      %v2642 = vpop.permute.xlu0 %2641
      %2643 = vrot.lane.b32.xlu0 %v2621, 64
      %v2644 = vpop.permute.xlu0 %2643
      %2645 = vrot.lane.b32.xlu0 %v2622, 64
      %v2646 = vpop.permute.xlu0 %2645
      %2647 = vrot.lane.b32.xlu0 %v2623, 64
      %v2648 = vpop.permute.xlu0 %2647
      %2649 = vrot.lane.b32.xlu0 %v2624, 64
      %v2650 = vpop.permute.xlu0 %2649
      %2651 = vrot.lane.b32.xlu0 %v2625, 64
      %v2652 = vpop.permute.xlu0 %2651
      %v2653 = vsel %vm862, %v2636, %v2638
      %v2654 = vsel %vm862, %v2638, %v2640
      %v2655 = vsel %vm862, %v2640, %v2642
      %v2656 = vsel %vm862, %v2642, %v2644
      %v2657 = vsel %vm862, %v2644, %v2646
      %v2658 = vsel %vm862, %v2646, %v2648
      %v2659 = vsel %vm862, %v2648, %v2650
      %v2660 = vsel %vm862, %v2650, %v2652
      %2669 = vst [vmem:[#allocation7 + $0x140] sm:$0xff] %v2653
      %2670 = vst [vmem:[#allocation7 + $0x148] sm:$0xff] %v2654
      %2671 = vst [vmem:[#allocation7 + $0x150] sm:$0xff] %v2655
      %2672 = vst [vmem:[#allocation7 + $0x158] sm:$0xff] %v2656
      %2673 = vst [vmem:[#allocation7 + $0x160] sm:$0xff] %v2657
      %2674 = vst [vmem:[#allocation7 + $0x168] sm:$0xff] %v2658
      %2675 = vst [vmem:[#allocation7 + $0x170] sm:$0xff] %v2659
      %2676 = vst [vmem:[#allocation7 + $0x178] sm:$0xff] %v2660
      %v2677 = vld [vmem:[#allocation4] sm:$0xff]
      %v2678 = vld [vmem:[#allocation4 + $0x8] sm:$0xff]
      %v2679 = vld [vmem:[#allocation4 + $0x10] sm:$0xff]
      %v2680 = vld [vmem:[#allocation4 + $0x18] sm:$0xff]
      %v2681 = vld [vmem:[#allocation4 + $0x20] sm:$0xff]
      %v2682 = vld [vmem:[#allocation4 + $0x28] sm:$0xff]
      %v2683 = vld [vmem:[#allocation4 + $0x30] sm:$0xff]
      %v2684 = vld [vmem:[#allocation4 + $0x38] sm:$0xff]
      %v2685 = vld [vmem:[#allocation4 + $0x40] sm:$0xff]
      %2695 = vrot.lane.b32.xlu0 %v2677, 62
      %v2696 = vpop.permute.xlu0 %2695
      %2697 = vrot.lane.b32.xlu0 %v2678, 62
      %v2698 = vpop.permute.xlu0 %2697
      %2699 = vrot.lane.b32.xlu0 %v2679, 62
      %v2700 = vpop.permute.xlu0 %2699
      %2701 = vrot.lane.b32.xlu0 %v2680, 62
      %v2702 = vpop.permute.xlu0 %2701
      %2703 = vrot.lane.b32.xlu0 %v2681, 62
      %v2704 = vpop.permute.xlu0 %2703
      %2705 = vrot.lane.b32.xlu0 %v2682, 62
      %v2706 = vpop.permute.xlu0 %2705
      %2707 = vrot.lane.b32.xlu0 %v2683, 62
      %v2708 = vpop.permute.xlu0 %2707
      %2709 = vrot.lane.b32.xlu0 %v2684, 62
      %v2710 = vpop.permute.xlu0 %2709
      %2711 = vrot.lane.b32.xlu0 %v2685, 62
      %v2712 = vpop.permute.xlu0 %2711
      %v2713 = vsel %vm984, %v2696, %v2698
      %v2714 = vsel %vm984, %v2698, %v2700
      %v2715 = vsel %vm984, %v2700, %v2702
      %v2716 = vsel %vm984, %v2702, %v2704
      %v2717 = vsel %vm984, %v2704, %v2706
      %v2718 = vsel %vm984, %v2706, %v2708
      %v2719 = vsel %vm984, %v2708, %v2710
      %v2720 = vsel %vm984, %v2710, %v2712
      %2729 = vst [vmem:[#allocation7 + $0x180] sm:$0xff] %v2713
      %2730 = vst [vmem:[#allocation7 + $0x188] sm:$0xff] %v2714
      %2731 = vst [vmem:[#allocation7 + $0x190] sm:$0xff] %v2715
      %2732 = vst [vmem:[#allocation7 + $0x198] sm:$0xff] %v2716
      %2733 = vst [vmem:[#allocation7 + $0x1a0] sm:$0xff] %v2717
      %2734 = vst [vmem:[#allocation7 + $0x1a8] sm:$0xff] %v2718
      %2735 = vst [vmem:[#allocation7 + $0x1b0] sm:$0xff] %v2719
      %2736 = vst [vmem:[#allocation7 + $0x1b8] sm:$0xff] %v2720
      %v2737 = vld [vmem:[#allocation4] sm:$0xff]
      %v2738 = vld [vmem:[#allocation4 + $0x8] sm:$0xff]
      %v2739 = vld [vmem:[#allocation4 + $0x10] sm:$0xff]
      %v2740 = vld [vmem:[#allocation4 + $0x18] sm:$0xff]
      %v2741 = vld [vmem:[#allocation4 + $0x20] sm:$0xff]
      %v2742 = vld [vmem:[#allocation4 + $0x28] sm:$0xff]
      %v2743 = vld [vmem:[#allocation4 + $0x30] sm:$0xff]
      %v2744 = vld [vmem:[#allocation4 + $0x38] sm:$0xff]
      %v2745 = vld [vmem:[#allocation4 + $0x40] sm:$0xff]
      %2755 = vrot.lane.b32.xlu0 %v2737, 60
      %v2756 = vpop.permute.xlu0 %2755
      %2757 = vrot.lane.b32.xlu0 %v2738, 60
      %v2758 = vpop.permute.xlu0 %2757
      %2759 = vrot.lane.b32.xlu0 %v2739, 60
      %v2760 = vpop.permute.xlu0 %2759
      %2761 = vrot.lane.b32.xlu0 %v2740, 60
      %v2762 = vpop.permute.xlu0 %2761
      %2763 = vrot.lane.b32.xlu0 %v2741, 60
      %v2764 = vpop.permute.xlu0 %2763
      %2765 = vrot.lane.b32.xlu0 %v2742, 60
      %v2766 = vpop.permute.xlu0 %2765
      %2767 = vrot.lane.b32.xlu0 %v2743, 60
      %v2768 = vpop.permute.xlu0 %2767
      %2769 = vrot.lane.b32.xlu0 %v2744, 60
      %v2770 = vpop.permute.xlu0 %2769
      %2771 = vrot.lane.b32.xlu0 %v2745, 60
      %v2772 = vpop.permute.xlu0 %2771
      %v2773 = vsel %vm1106, %v2756, %v2758
      %v2774 = vsel %vm1106, %v2758, %v2760
      %v2775 = vsel %vm1106, %v2760, %v2762
      %v2776 = vsel %vm1106, %v2762, %v2764
      %v2777 = vsel %vm1106, %v2764, %v2766
      %v2778 = vsel %vm1106, %v2766, %v2768
      %v2779 = vsel %vm1106, %v2768, %v2770
      %v2780 = vsel %vm1106, %v2770, %v2772
      %2789 = vst [vmem:[#allocation7 + $0x1c0] sm:$0xff] %v2773
      %2790 = vst [vmem:[#allocation7 + $0x1c8] sm:$0xff] %v2774
      %2791 = vst [vmem:[#allocation7 + $0x1d0] sm:$0xff] %v2775
      %2792 = vst [vmem:[#allocation7 + $0x1d8] sm:$0xff] %v2776
      %2793 = vst [vmem:[#allocation7 + $0x1e0] sm:$0xff] %v2777
      %2794 = vst [vmem:[#allocation7 + $0x1e8] sm:$0xff] %v2778
      %2795 = vst [vmem:[#allocation7 + $0x1f0] sm:$0xff] %v2779
      %2796 = vst [vmem:[#allocation7 + $0x1f8] sm:$0xff] %v2780
      %v2797 = vld [vmem:[#allocation4] sm:$0xff]
      %v2798 = vld [vmem:[#allocation4 + $0x8] sm:$0xff]
      %v2799 = vld [vmem:[#allocation4 + $0x10] sm:$0xff]
      %v2800 = vld [vmem:[#allocation4 + $0x18] sm:$0xff]
      %v2801 = vld [vmem:[#allocation4 + $0x20] sm:$0xff]
      %v2802 = vld [vmem:[#allocation4 + $0x28] sm:$0xff]
      %v2803 = vld [vmem:[#allocation4 + $0x30] sm:$0xff]
      %v2804 = vld [vmem:[#allocation4 + $0x38] sm:$0xff]
      %v2805 = vld [vmem:[#allocation4 + $0x40] sm:$0xff]
      %2815 = vrot.lane.b32.xlu0 %v2797, 58
      %v2816 = vpop.permute.xlu0 %2815
      %2817 = vrot.lane.b32.xlu0 %v2798, 58
      %v2818 = vpop.permute.xlu0 %2817
      %2819 = vrot.lane.b32.xlu0 %v2799, 58
      %v2820 = vpop.permute.xlu0 %2819
      %2821 = vrot.lane.b32.xlu0 %v2800, 58
      %v2822 = vpop.permute.xlu0 %2821
      %2823 = vrot.lane.b32.xlu0 %v2801, 58
      %v2824 = vpop.permute.xlu0 %2823
      %2825 = vrot.lane.b32.xlu0 %v2802, 58
      %v2826 = vpop.permute.xlu0 %2825
      %2827 = vrot.lane.b32.xlu0 %v2803, 58
      %v2828 = vpop.permute.xlu0 %2827
      %2829 = vrot.lane.b32.xlu0 %v2804, 58
      %v2830 = vpop.permute.xlu0 %2829
      %2831 = vrot.lane.b32.xlu0 %v2805, 58
      %v2832 = vpop.permute.xlu0 %2831
      %vm2833 = vcmask 474112
      %v2834 = vsel %vm2833, %v2816, %v2818
      %v2835 = vsel %vm2833, %v2818, %v2820
      %v2836 = vsel %vm2833, %v2820, %v2822
      %v2837 = vsel %vm2833, %v2822, %v2824
      %v2838 = vsel %vm2833, %v2824, %v2826
      %v2839 = vsel %vm2833, %v2826, %v2828
      %v2840 = vsel %vm2833, %v2828, %v2830
      %v2841 = vsel %vm2833, %v2830, %v2832
      %2850 = vst [vmem:[#allocation7 + $0x200] sm:$0xff] %v2834
      %2851 = vst [vmem:[#allocation7 + $0x208] sm:$0xff] %v2835
      %2852 = vst [vmem:[#allocation7 + $0x210] sm:$0xff] %v2836
      %2853 = vst [vmem:[#allocation7 + $0x218] sm:$0xff] %v2837
      %2854 = vst [vmem:[#allocation7 + $0x220] sm:$0xff] %v2838
      %2855 = vst [vmem:[#allocation7 + $0x228] sm:$0xff] %v2839
      %2856 = vst [vmem:[#allocation7 + $0x230] sm:$0xff] %v2840
      %2857 = vst [vmem:[#allocation7 + $0x238] sm:$0xff] %v2841
      %v2858 = vld [vmem:[#allocation4] sm:$0xff]
      %v2859 = vld [vmem:[#allocation4 + $0x8] sm:$0xff]
      %v2860 = vld [vmem:[#allocation4 + $0x10] sm:$0xff]
      %v2861 = vld [vmem:[#allocation4 + $0x18] sm:$0xff]
      %v2862 = vld [vmem:[#allocation4 + $0x20] sm:$0xff]
      %v2863 = vld [vmem:[#allocation4 + $0x28] sm:$0xff]
      %v2864 = vld [vmem:[#allocation4 + $0x30] sm:$0xff]
      %v2865 = vld [vmem:[#allocation4 + $0x38] sm:$0xff]
      %v2866 = vld [vmem:[#allocation4 + $0x40] sm:$0xff]
      %2876 = vrot.lane.b32.xlu0 %v2858, 56
      %v2877 = vpop.permute.xlu0 %2876
      %2878 = vrot.lane.b32.xlu0 %v2859, 56
      %v2879 = vpop.permute.xlu0 %2878
      %2880 = vrot.lane.b32.xlu0 %v2860, 56
      %v2881 = vpop.permute.xlu0 %2880
      %2882 = vrot.lane.b32.xlu0 %v2861, 56
      %v2883 = vpop.permute.xlu0 %2882
      %2884 = vrot.lane.b32.xlu0 %v2862, 56
      %v2885 = vpop.permute.xlu0 %2884
      %2886 = vrot.lane.b32.xlu0 %v2863, 56
      %v2887 = vpop.permute.xlu0 %2886
      %2888 = vrot.lane.b32.xlu0 %v2864, 56
      %v2889 = vpop.permute.xlu0 %2888
      %2890 = vrot.lane.b32.xlu0 %v2865, 56
      %v2891 = vpop.permute.xlu0 %2890
      %2892 = vrot.lane.b32.xlu0 %v2866, 56
      %v2893 = vpop.permute.xlu0 %2892
      %vm2894 = vcmask 457728
      %v2895 = vsel %vm2894, %v2877, %v2879
      %v2896 = vsel %vm2894, %v2879, %v2881
      %v2897 = vsel %vm2894, %v2881, %v2883
      %v2898 = vsel %vm2894, %v2883, %v2885
      %v2899 = vsel %vm2894, %v2885, %v2887
      %v2900 = vsel %vm2894, %v2887, %v2889
      %v2901 = vsel %vm2894, %v2889, %v2891
      %v2902 = vsel %vm2894, %v2891, %v2893
      %2911 = vst [vmem:[#allocation7 + $0x240] sm:$0xff] %v2895
      %2912 = vst [vmem:[#allocation7 + $0x248] sm:$0xff] %v2896
      %2913 = vst [vmem:[#allocation7 + $0x250] sm:$0xff] %v2897
      %2914 = vst [vmem:[#allocation7 + $0x258] sm:$0xff] %v2898
      %2915 = vst [vmem:[#allocation7 + $0x260] sm:$0xff] %v2899
      %2916 = vst [vmem:[#allocation7 + $0x268] sm:$0xff] %v2900
      %2917 = vst [vmem:[#allocation7 + $0x270] sm:$0xff] %v2901
      %2918 = vst [vmem:[#allocation7 + $0x278] sm:$0xff] %v2902
      %v2919 = vld [vmem:[#allocation4 + $0x8] sm:$0xff]
      %v2920 = vld [vmem:[#allocation4 + $0x10] sm:$0xff]
      %v2921 = vld [vmem:[#allocation4 + $0x18] sm:$0xff]
      %v2922 = vld [vmem:[#allocation4 + $0x20] sm:$0xff]
      %v2923 = vld [vmem:[#allocation4 + $0x28] sm:$0xff]
      %v2924 = vld [vmem:[#allocation4 + $0x30] sm:$0xff]
      %v2925 = vld [vmem:[#allocation4 + $0x38] sm:$0xff]
      %v2926 = vld [vmem:[#allocation4 + $0x40] sm:$0xff]
      %2927 = vst [vmem:[#allocation7 + $0x280] sm:$0xff] %v2919
      %2928 = vst [vmem:[#allocation7 + $0x288] sm:$0xff] %v2920
      %2929 = vst [vmem:[#allocation7 + $0x290] sm:$0xff] %v2921
      %2930 = vst [vmem:[#allocation7 + $0x298] sm:$0xff] %v2922
      %2931 = vst [vmem:[#allocation7 + $0x2a0] sm:$0xff] %v2923
      %2932 = vst [vmem:[#allocation7 + $0x2a8] sm:$0xff] %v2924
      %2933 = vst [vmem:[#allocation7 + $0x2b0] sm:$0xff] %v2925
      %2934 = vst [vmem:[#allocation7 + $0x2b8] sm:$0xff] %v2926
      %v2935 = vld [vmem:[#allocation4 + $0x8] sm:$0xff]
      %v2936 = vld [vmem:[#allocation4 + $0x10] sm:$0xff]
      %v2937 = vld [vmem:[#allocation4 + $0x18] sm:$0xff]
      %v2938 = vld [vmem:[#allocation4 + $0x20] sm:$0xff]
      %v2939 = vld [vmem:[#allocation4 + $0x28] sm:$0xff]
      %v2940 = vld [vmem:[#allocation4 + $0x30] sm:$0xff]
      %v2941 = vld [vmem:[#allocation4 + $0x38] sm:$0xff]
      %v2942 = vld [vmem:[#allocation4 + $0x40] sm:$0xff]
      %v2943 = vld [vmem:[#allocation4 + $0x48] sm:$0xff]
      %2953 = vrot.lane.b32.xlu0 %v2935, 126
      %v2954 = vpop.permute.xlu0 %2953
      %2955 = vrot.lane.b32.xlu0 %v2936, 126
      %v2956 = vpop.permute.xlu0 %2955
      %2957 = vrot.lane.b32.xlu0 %v2937, 126
      %v2958 = vpop.permute.xlu0 %2957
      %2959 = vrot.lane.b32.xlu0 %v2938, 126
      %v2960 = vpop.permute.xlu0 %2959
      %2961 = vrot.lane.b32.xlu0 %v2939, 126
      %v2962 = vpop.permute.xlu0 %2961
      %2963 = vrot.lane.b32.xlu0 %v2940, 126
      %v2964 = vpop.permute.xlu0 %2963
      %2965 = vrot.lane.b32.xlu0 %v2941, 126
      %v2966 = vpop.permute.xlu0 %2965
      %2967 = vrot.lane.b32.xlu0 %v2942, 126
      %v2968 = vpop.permute.xlu0 %2967
      %2969 = vrot.lane.b32.xlu0 %v2943, 126
      %v2970 = vpop.permute.xlu0 %2969
      %v2971 = vsel %vm374, %v2954, %v2956
      %v2972 = vsel %vm374, %v2956, %v2958
      %v2973 = vsel %vm374, %v2958, %v2960
      %v2974 = vsel %vm374, %v2960, %v2962
      %v2975 = vsel %vm374, %v2962, %v2964
      %v2976 = vsel %vm374, %v2964, %v2966
      %v2977 = vsel %vm374, %v2966, %v2968
      %v2978 = vsel %vm374, %v2968, %v2970
      %2987 = vst [vmem:[#allocation7 + $0x2c0] sm:$0xff] %v2971
      %2988 = vst [vmem:[#allocation7 + $0x2c8] sm:$0xff] %v2972
      %2989 = vst [vmem:[#allocation7 + $0x2d0] sm:$0xff] %v2973
      %2990 = vst [vmem:[#allocation7 + $0x2d8] sm:$0xff] %v2974
      %2991 = vst [vmem:[#allocation7 + $0x2e0] sm:$0xff] %v2975
      %2992 = vst [vmem:[#allocation7 + $0x2e8] sm:$0xff] %v2976
      %2993 = vst [vmem:[#allocation7 + $0x2f0] sm:$0xff] %v2977
      %2994 = vst [vmem:[#allocation7 + $0x2f8] sm:$0xff] %v2978
      %v2995 = vld [vmem:[#allocation4 + $0x8] sm:$0xff]
      %v2996 = vld [vmem:[#allocation4 + $0x10] sm:$0xff]
      %v2997 = vld [vmem:[#allocation4 + $0x18] sm:$0xff]
      %v2998 = vld [vmem:[#allocation4 + $0x20] sm:$0xff]
      %v2999 = vld [vmem:[#allocation4 + $0x28] sm:$0xff]
      %v3000 = vld [vmem:[#allocation4 + $0x30] sm:$0xff]
      %v3001 = vld [vmem:[#allocation4 + $0x38] sm:$0xff]
      %v3002 = vld [vmem:[#allocation4 + $0x40] sm:$0xff]
      %v3003 = vld [vmem:[#allocation4 + $0x48] sm:$0xff]
      %3013 = vrot.lane.b32.xlu0 %v2995, 124
      %v3014 = vpop.permute.xlu0 %3013
      %3015 = vrot.lane.b32.xlu0 %v2996, 124
      %v3016 = vpop.permute.xlu0 %3015
      %3017 = vrot.lane.b32.xlu0 %v2997, 124
      %v3018 = vpop.permute.xlu0 %3017
      %3019 = vrot.lane.b32.xlu0 %v2998, 124
      %v3020 = vpop.permute.xlu0 %3019
      %3021 = vrot.lane.b32.xlu0 %v2999, 124
      %v3022 = vpop.permute.xlu0 %3021
      %3023 = vrot.lane.b32.xlu0 %v3000, 124
      %v3024 = vpop.permute.xlu0 %3023
      %3025 = vrot.lane.b32.xlu0 %v3001, 124
      %v3026 = vpop.permute.xlu0 %3025
      %3027 = vrot.lane.b32.xlu0 %v3002, 124
      %v3028 = vpop.permute.xlu0 %3027
      %3029 = vrot.lane.b32.xlu0 %v3003, 124
      %v3030 = vpop.permute.xlu0 %3029
      %v3031 = vsel %vm496, %v3014, %v3016
      %v3032 = vsel %vm496, %v3016, %v3018
      %v3033 = vsel %vm496, %v3018, %v3020
      %v3034 = vsel %vm496, %v3020, %v3022
      %v3035 = vsel %vm496, %v3022, %v3024
      %v3036 = vsel %vm496, %v3024, %v3026
      %v3037 = vsel %vm496, %v3026, %v3028
      %v3038 = vsel %vm496, %v3028, %v3030
      %3047 = vst [vmem:[#allocation7 + $0x300] sm:$0xff] %v3031
      %3048 = vst [vmem:[#allocation7 + $0x308] sm:$0xff] %v3032
      %3049 = vst [vmem:[#allocation7 + $0x310] sm:$0xff] %v3033
      %3050 = vst [vmem:[#allocation7 + $0x318] sm:$0xff] %v3034
      %3051 = vst [vmem:[#allocation7 + $0x320] sm:$0xff] %v3035
      %3052 = vst [vmem:[#allocation7 + $0x328] sm:$0xff] %v3036
      %3053 = vst [vmem:[#allocation7 + $0x330] sm:$0xff] %v3037
      %3054 = vst [vmem:[#allocation7 + $0x338] sm:$0xff] %v3038
      %v3055 = vld [vmem:[#allocation4 + $0x8] sm:$0xff]
      %v3056 = vld [vmem:[#allocation4 + $0x10] sm:$0xff]
      %v3057 = vld [vmem:[#allocation4 + $0x18] sm:$0xff]
      %v3058 = vld [vmem:[#allocation4 + $0x20] sm:$0xff]
      %v3059 = vld [vmem:[#allocation4 + $0x28] sm:$0xff]
      %v3060 = vld [vmem:[#allocation4 + $0x30] sm:$0xff]
      %v3061 = vld [vmem:[#allocation4 + $0x38] sm:$0xff]
      %v3062 = vld [vmem:[#allocation4 + $0x40] sm:$0xff]
      %v3063 = vld [vmem:[#allocation4 + $0x48] sm:$0xff]
      %3073 = vrot.lane.b32.xlu0 %v3055, 122
      %v3074 = vpop.permute.xlu0 %3073
      %3075 = vrot.lane.b32.xlu0 %v3056, 122
      %v3076 = vpop.permute.xlu0 %3075
      %3077 = vrot.lane.b32.xlu0 %v3057, 122
      %v3078 = vpop.permute.xlu0 %3077
      %3079 = vrot.lane.b32.xlu0 %v3058, 122
      %v3080 = vpop.permute.xlu0 %3079
      %3081 = vrot.lane.b32.xlu0 %v3059, 122
      %v3082 = vpop.permute.xlu0 %3081
      %3083 = vrot.lane.b32.xlu0 %v3060, 122
      %v3084 = vpop.permute.xlu0 %3083
      %3085 = vrot.lane.b32.xlu0 %v3061, 122
      %v3086 = vpop.permute.xlu0 %3085
      %3087 = vrot.lane.b32.xlu0 %v3062, 122
      %v3088 = vpop.permute.xlu0 %3087
      %3089 = vrot.lane.b32.xlu0 %v3063, 122
      %v3090 = vpop.permute.xlu0 %3089
      %v3091 = vsel %vm2531, %v3074, %v3076
      %v3092 = vsel %vm2531, %v3076, %v3078
      %v3093 = vsel %vm2531, %v3078, %v3080
      %v3094 = vsel %vm2531, %v3080, %v3082
      %v3095 = vsel %vm2531, %v3082, %v3084
      %v3096 = vsel %vm2531, %v3084, %v3086
      %v3097 = vsel %vm2531, %v3086, %v3088
      %v3098 = vsel %vm2531, %v3088, %v3090
      %3107 = vst [vmem:[#allocation7 + $0x340] sm:$0xff] %v3091
      %3108 = vst [vmem:[#allocation7 + $0x348] sm:$0xff] %v3092
      %3109 = vst [vmem:[#allocation7 + $0x350] sm:$0xff] %v3093
      %3110 = vst [vmem:[#allocation7 + $0x358] sm:$0xff] %v3094
      %3111 = vst [vmem:[#allocation7 + $0x360] sm:$0xff] %v3095
      %3112 = vst [vmem:[#allocation7 + $0x368] sm:$0xff] %v3096
      %3113 = vst [vmem:[#allocation7 + $0x370] sm:$0xff] %v3097
      %3114 = vst [vmem:[#allocation7 + $0x378] sm:$0xff] %v3098
      %v3115 = vld [vmem:[#allocation4 + $0x8] sm:$0xff]
      %v3116 = vld [vmem:[#allocation4 + $0x10] sm:$0xff]
      %v3117 = vld [vmem:[#allocation4 + $0x18] sm:$0xff]
      %v3118 = vld [vmem:[#allocation4 + $0x20] sm:$0xff]
      %v3119 = vld [vmem:[#allocation4 + $0x28] sm:$0xff]
      %v3120 = vld [vmem:[#allocation4 + $0x30] sm:$0xff]
      %v3121 = vld [vmem:[#allocation4 + $0x38] sm:$0xff]
      %v3122 = vld [vmem:[#allocation4 + $0x40] sm:$0xff]
      %v3123 = vld [vmem:[#allocation4 + $0x48] sm:$0xff]
      %3133 = vrot.lane.b32.xlu0 %v3115, 120
      %v3134 = vpop.permute.xlu0 %3133
      %3135 = vrot.lane.b32.xlu0 %v3116, 120
      %v3136 = vpop.permute.xlu0 %3135
      %3137 = vrot.lane.b32.xlu0 %v3117, 120
      %v3138 = vpop.permute.xlu0 %3137
      %3139 = vrot.lane.b32.xlu0 %v3118, 120
      %v3140 = vpop.permute.xlu0 %3139
      %3141 = vrot.lane.b32.xlu0 %v3119, 120
      %v3142 = vpop.permute.xlu0 %3141
      %3143 = vrot.lane.b32.xlu0 %v3120, 120
      %v3144 = vpop.permute.xlu0 %3143
      %3145 = vrot.lane.b32.xlu0 %v3121, 120
      %v3146 = vpop.permute.xlu0 %3145
      %3147 = vrot.lane.b32.xlu0 %v3122, 120
      %v3148 = vpop.permute.xlu0 %3147
      %3149 = vrot.lane.b32.xlu0 %v3123, 120
      %v3150 = vpop.permute.xlu0 %3149
      %v3151 = vsel %vm2592, %v3134, %v3136
      %v3152 = vsel %vm2592, %v3136, %v3138
      %v3153 = vsel %vm2592, %v3138, %v3140
      %v3154 = vsel %vm2592, %v3140, %v3142
      %v3155 = vsel %vm2592, %v3142, %v3144
      %v3156 = vsel %vm2592, %v3144, %v3146
      %v3157 = vsel %vm2592, %v3146, %v3148
      %v3158 = vsel %vm2592, %v3148, %v3150
      %3167 = vst [vmem:[#allocation7 + $0x380] sm:$0xff] %v3151
      %3168 = vst [vmem:[#allocation7 + $0x388] sm:$0xff] %v3152
      %3169 = vst [vmem:[#allocation7 + $0x390] sm:$0xff] %v3153
      %3170 = vst [vmem:[#allocation7 + $0x398] sm:$0xff] %v3154
      %3171 = vst [vmem:[#allocation7 + $0x3a0] sm:$0xff] %v3155
      %3172 = vst [vmem:[#allocation7 + $0x3a8] sm:$0xff] %v3156
      %3173 = vst [vmem:[#allocation7 + $0x3b0] sm:$0xff] %v3157
      %3174 = vst [vmem:[#allocation7 + $0x3b8] sm:$0xff] %v3158
      %v3175 = vld [vmem:[#allocation4 + $0x8] sm:$0xff]
      %v3176 = vld [vmem:[#allocation4 + $0x10] sm:$0xff]
      %v3177 = vld [vmem:[#allocation4 + $0x18] sm:$0xff]
      %v3178 = vld [vmem:[#allocation4 + $0x20] sm:$0xff]
      %v3179 = vld [vmem:[#allocation4 + $0x28] sm:$0xff]
      %v3180 = vld [vmem:[#allocation4 + $0x30] sm:$0xff]
      %v3181 = vld [vmem:[#allocation4 + $0x38] sm:$0xff]
      %v3182 = vld [vmem:[#allocation4 + $0x40] sm:$0xff]
      %v3183 = vld [vmem:[#allocation4 + $0x48] sm:$0xff]
      %3193 = vrot.lane.b32.xlu0 %v3175, 64
      %v3194 = vpop.permute.xlu0 %3193
      %3195 = vrot.lane.b32.xlu0 %v3176, 64
      %v3196 = vpop.permute.xlu0 %3195
      %3197 = vrot.lane.b32.xlu0 %v3177, 64
      %v3198 = vpop.permute.xlu0 %3197
      %3199 = vrot.lane.b32.xlu0 %v3178, 64
      %v3200 = vpop.permute.xlu0 %3199
      %3201 = vrot.lane.b32.xlu0 %v3179, 64
      %v3202 = vpop.permute.xlu0 %3201
      %3203 = vrot.lane.b32.xlu0 %v3180, 64
      %v3204 = vpop.permute.xlu0 %3203
      %3205 = vrot.lane.b32.xlu0 %v3181, 64
      %v3206 = vpop.permute.xlu0 %3205
      %3207 = vrot.lane.b32.xlu0 %v3182, 64
      %v3208 = vpop.permute.xlu0 %3207
      %3209 = vrot.lane.b32.xlu0 %v3183, 64
      %v3210 = vpop.permute.xlu0 %3209
      %v3211 = vsel %vm862, %v3194, %v3196
      %v3212 = vsel %vm862, %v3196, %v3198
      %v3213 = vsel %vm862, %v3198, %v3200
      %v3214 = vsel %vm862, %v3200, %v3202
      %v3215 = vsel %vm862, %v3202, %v3204
      %v3216 = vsel %vm862, %v3204, %v3206
      %v3217 = vsel %vm862, %v3206, %v3208
      %v3218 = vsel %vm862, %v3208, %v3210
      %3227 = vst [vmem:[#allocation7 + $0x3c0] sm:$0xff] %v3211
      %3228 = vst [vmem:[#allocation7 + $0x3c8] sm:$0xff] %v3212
      %3229 = vst [vmem:[#allocation7 + $0x3d0] sm:$0xff] %v3213
      %3230 = vst [vmem:[#allocation7 + $0x3d8] sm:$0xff] %v3214
      %3231 = vst [vmem:[#allocation7 + $0x3e0] sm:$0xff] %v3215
      %3232 = vst [vmem:[#allocation7 + $0x3e8] sm:$0xff] %v3216
      %3233 = vst [vmem:[#allocation7 + $0x3f0] sm:$0xff] %v3217
      %3234 = vst [vmem:[#allocation7 + $0x3f8] sm:$0xff] %v3218
      %v3235 = vld [vmem:[#allocation4 + $0x8] sm:$0xff]
      %v3236 = vld [vmem:[#allocation4 + $0x10] sm:$0xff]
      %v3237 = vld [vmem:[#allocation4 + $0x18] sm:$0xff]
      %v3238 = vld [vmem:[#allocation4 + $0x20] sm:$0xff]
      %v3239 = vld [vmem:[#allocation4 + $0x28] sm:$0xff]
      %v3240 = vld [vmem:[#allocation4 + $0x30] sm:$0xff]
      %v3241 = vld [vmem:[#allocation4 + $0x38] sm:$0xff]
      %v3242 = vld [vmem:[#allocation4 + $0x40] sm:$0xff]
      %v3243 = vld [vmem:[#allocation4 + $0x48] sm:$0xff]
      %3253 = vrot.lane.b32.xlu0 %v3235, 62
      %v3254 = vpop.permute.xlu0 %3253
      %3255 = vrot.lane.b32.xlu0 %v3236, 62
      %v3256 = vpop.permute.xlu0 %3255
      %3257 = vrot.lane.b32.xlu0 %v3237, 62
      %v3258 = vpop.permute.xlu0 %3257
      %3259 = vrot.lane.b32.xlu0 %v3238, 62
      %v3260 = vpop.permute.xlu0 %3259
      %3261 = vrot.lane.b32.xlu0 %v3239, 62
      %v3262 = vpop.permute.xlu0 %3261
      %3263 = vrot.lane.b32.xlu0 %v3240, 62
      %v3264 = vpop.permute.xlu0 %3263
      %3265 = vrot.lane.b32.xlu0 %v3241, 62
      %v3266 = vpop.permute.xlu0 %3265
      %3267 = vrot.lane.b32.xlu0 %v3242, 62
      %v3268 = vpop.permute.xlu0 %3267
      %3269 = vrot.lane.b32.xlu0 %v3243, 62
      %v3270 = vpop.permute.xlu0 %3269
      %v3271 = vsel %vm984, %v3254, %v3256
      %v3272 = vsel %vm984, %v3256, %v3258
      %v3273 = vsel %vm984, %v3258, %v3260
      %v3274 = vsel %vm984, %v3260, %v3262
      %v3275 = vsel %vm984, %v3262, %v3264
      %v3276 = vsel %vm984, %v3264, %v3266
      %v3277 = vsel %vm984, %v3266, %v3268
      %v3278 = vsel %vm984, %v3268, %v3270
      %3287 = vst [vmem:[#allocation7 + $0x400] sm:$0xff] %v3271
      %3288 = vst [vmem:[#allocation7 + $0x408] sm:$0xff] %v3272
      %3289 = vst [vmem:[#allocation7 + $0x410] sm:$0xff] %v3273
      %3290 = vst [vmem:[#allocation7 + $0x418] sm:$0xff] %v3274
      %3291 = vst [vmem:[#allocation7 + $0x420] sm:$0xff] %v3275
      %3292 = vst [vmem:[#allocation7 + $0x428] sm:$0xff] %v3276
      %3293 = vst [vmem:[#allocation7 + $0x430] sm:$0xff] %v3277
      %3294 = vst [vmem:[#allocation7 + $0x438] sm:$0xff] %v3278
      %v3295 = vld [vmem:[#allocation4 + $0x8] sm:$0xff]
      %v3296 = vld [vmem:[#allocation4 + $0x10] sm:$0xff]
      %v3297 = vld [vmem:[#allocation4 + $0x18] sm:$0xff]
      %v3298 = vld [vmem:[#allocation4 + $0x20] sm:$0xff]
      %v3299 = vld [vmem:[#allocation4 + $0x28] sm:$0xff]
      %v3300 = vld [vmem:[#allocation4 + $0x30] sm:$0xff]
      %v3301 = vld [vmem:[#allocation4 + $0x38] sm:$0xff]
      %v3302 = vld [vmem:[#allocation4 + $0x40] sm:$0xff]
      %v3303 = vld [vmem:[#allocation4 + $0x48] sm:$0xff]
      %3313 = vrot.lane.b32.xlu0 %v3295, 60
      %v3314 = vpop.permute.xlu0 %3313
      %3315 = vrot.lane.b32.xlu0 %v3296, 60
      %v3316 = vpop.permute.xlu0 %3315
      %3317 = vrot.lane.b32.xlu0 %v3297, 60
      %v3318 = vpop.permute.xlu0 %3317
      %3319 = vrot.lane.b32.xlu0 %v3298, 60
      %v3320 = vpop.permute.xlu0 %3319
      %3321 = vrot.lane.b32.xlu0 %v3299, 60
      %v3322 = vpop.permute.xlu0 %3321
      %3323 = vrot.lane.b32.xlu0 %v3300, 60
      %v3324 = vpop.permute.xlu0 %3323
      %3325 = vrot.lane.b32.xlu0 %v3301, 60
      %v3326 = vpop.permute.xlu0 %3325
      %3327 = vrot.lane.b32.xlu0 %v3302, 60
      %v3328 = vpop.permute.xlu0 %3327
      %3329 = vrot.lane.b32.xlu0 %v3303, 60
      %v3330 = vpop.permute.xlu0 %3329
      %v3331 = vsel %vm1106, %v3314, %v3316
      %v3332 = vsel %vm1106, %v3316, %v3318
      %v3333 = vsel %vm1106, %v3318, %v3320
      %v3334 = vsel %vm1106, %v3320, %v3322
      %v3335 = vsel %vm1106, %v3322, %v3324
      %v3336 = vsel %vm1106, %v3324, %v3326
      %v3337 = vsel %vm1106, %v3326, %v3328
      %v3338 = vsel %vm1106, %v3328, %v3330
      %3347 = vst [vmem:[#allocation7 + $0x440] sm:$0xff] %v3331
      %3348 = vst [vmem:[#allocation7 + $0x448] sm:$0xff] %v3332
      %3349 = vst [vmem:[#allocation7 + $0x450] sm:$0xff] %v3333
      %3350 = vst [vmem:[#allocation7 + $0x458] sm:$0xff] %v3334
      %3351 = vst [vmem:[#allocation7 + $0x460] sm:$0xff] %v3335
      %3352 = vst [vmem:[#allocation7 + $0x468] sm:$0xff] %v3336
      %3353 = vst [vmem:[#allocation7 + $0x470] sm:$0xff] %v3337
      %3354 = vst [vmem:[#allocation7 + $0x478] sm:$0xff] %v3338
      %v3355 = vld [vmem:[#allocation4 + $0x8] sm:$0xff]
      %v3356 = vld [vmem:[#allocation4 + $0x10] sm:$0xff]
      %v3357 = vld [vmem:[#allocation4 + $0x18] sm:$0xff]
      %v3358 = vld [vmem:[#allocation4 + $0x20] sm:$0xff]
      %v3359 = vld [vmem:[#allocation4 + $0x28] sm:$0xff]
      %v3360 = vld [vmem:[#allocation4 + $0x30] sm:$0xff]
      %v3361 = vld [vmem:[#allocation4 + $0x38] sm:$0xff]
      %v3362 = vld [vmem:[#allocation4 + $0x40] sm:$0xff]
      %v3363 = vld [vmem:[#allocation4 + $0x48] sm:$0xff]
      %3373 = vrot.lane.b32.xlu0 %v3355, 58
      %v3374 = vpop.permute.xlu0 %3373
      %3375 = vrot.lane.b32.xlu0 %v3356, 58
      %v3376 = vpop.permute.xlu0 %3375
      %3377 = vrot.lane.b32.xlu0 %v3357, 58
      %v3378 = vpop.permute.xlu0 %3377
      %3379 = vrot.lane.b32.xlu0 %v3358, 58
      %v3380 = vpop.permute.xlu0 %3379
      %3381 = vrot.lane.b32.xlu0 %v3359, 58
      %v3382 = vpop.permute.xlu0 %3381
      %3383 = vrot.lane.b32.xlu0 %v3360, 58
      %v3384 = vpop.permute.xlu0 %3383
      %3385 = vrot.lane.b32.xlu0 %v3361, 58
      %v3386 = vpop.permute.xlu0 %3385
      %3387 = vrot.lane.b32.xlu0 %v3362, 58
      %v3388 = vpop.permute.xlu0 %3387
      %3389 = vrot.lane.b32.xlu0 %v3363, 58
      %v3390 = vpop.permute.xlu0 %3389
      %v3391 = vsel %vm2833, %v3374, %v3376
      %v3392 = vsel %vm2833, %v3376, %v3378
      %v3393 = vsel %vm2833, %v3378, %v3380
      %v3394 = vsel %vm2833, %v3380, %v3382
      %v3395 = vsel %vm2833, %v3382, %v3384
      %v3396 = vsel %vm2833, %v3384, %v3386
      %v3397 = vsel %vm2833, %v3386, %v3388
      %v3398 = vsel %vm2833, %v3388, %v3390
      %3407 = vst [vmem:[#allocation7 + $0x480] sm:$0xff] %v3391
      %3408 = vst [vmem:[#allocation7 + $0x488] sm:$0xff] %v3392
      %3409 = vst [vmem:[#allocation7 + $0x490] sm:$0xff] %v3393
      %3410 = vst [vmem:[#allocation7 + $0x498] sm:$0xff] %v3394
      %3411 = vst [vmem:[#allocation7 + $0x4a0] sm:$0xff] %v3395
      %3412 = vst [vmem:[#allocation7 + $0x4a8] sm:$0xff] %v3396
      %3413 = vst [vmem:[#allocation7 + $0x4b0] sm:$0xff] %v3397
      %3414 = vst [vmem:[#allocation7 + $0x4b8] sm:$0xff] %v3398
      %v3415 = vld [vmem:[#allocation4 + $0x8] sm:$0xff]
      %v3416 = vld [vmem:[#allocation4 + $0x10] sm:$0xff]
      %v3417 = vld [vmem:[#allocation4 + $0x18] sm:$0xff]
      %v3418 = vld [vmem:[#allocation4 + $0x20] sm:$0xff]
      %v3419 = vld [vmem:[#allocation4 + $0x28] sm:$0xff]
      %v3420 = vld [vmem:[#allocation4 + $0x30] sm:$0xff]
      %v3421 = vld [vmem:[#allocation4 + $0x38] sm:$0xff]
      %v3422 = vld [vmem:[#allocation4 + $0x40] sm:$0xff]
      %v3423 = vld [vmem:[#allocation4 + $0x48] sm:$0xff]
      %3433 = vrot.lane.b32.xlu0 %v3415, 56
      %v3434 = vpop.permute.xlu0 %3433
      %3435 = vrot.lane.b32.xlu0 %v3416, 56
      %v3436 = vpop.permute.xlu0 %3435
      %3437 = vrot.lane.b32.xlu0 %v3417, 56
      %v3438 = vpop.permute.xlu0 %3437
      %3439 = vrot.lane.b32.xlu0 %v3418, 56
      %v3440 = vpop.permute.xlu0 %3439
      %3441 = vrot.lane.b32.xlu0 %v3419, 56
      %v3442 = vpop.permute.xlu0 %3441
      %3443 = vrot.lane.b32.xlu0 %v3420, 56
      %v3444 = vpop.permute.xlu0 %3443
      %3445 = vrot.lane.b32.xlu0 %v3421, 56
      %v3446 = vpop.permute.xlu0 %3445
      %3447 = vrot.lane.b32.xlu0 %v3422, 56
      %v3448 = vpop.permute.xlu0 %3447
      %3449 = vrot.lane.b32.xlu0 %v3423, 56
      %v3450 = vpop.permute.xlu0 %3449
      %v3451 = vsel %vm2894, %v3434, %v3436
      %v3452 = vsel %vm2894, %v3436, %v3438
      %v3453 = vsel %vm2894, %v3438, %v3440
      %v3454 = vsel %vm2894, %v3440, %v3442
      %v3455 = vsel %vm2894, %v3442, %v3444
      %v3456 = vsel %vm2894, %v3444, %v3446
      %v3457 = vsel %vm2894, %v3446, %v3448
      %v3458 = vsel %vm2894, %v3448, %v3450
      %3467 = vst [vmem:[#allocation7 + $0x4c0] sm:$0xff] %v3451
      %3468 = vst [vmem:[#allocation7 + $0x4c8] sm:$0xff] %v3452
      %3469 = vst [vmem:[#allocation7 + $0x4d0] sm:$0xff] %v3453
      %3470 = vst [vmem:[#allocation7 + $0x4d8] sm:$0xff] %v3454
      %3471 = vst [vmem:[#allocation7 + $0x4e0] sm:$0xff] %v3455
      %3472 = vst [vmem:[#allocation7 + $0x4e8] sm:$0xff] %v3456
      %3473 = vst [vmem:[#allocation7 + $0x4f0] sm:$0xff] %v3457
      %3474 = vst [vmem:[#allocation7 + $0x4f8] sm:$0xff] %v3458
      %v3475 = vld [vmem:[#allocation4 + $0x10] sm:$0xff]
      %v3476 = vld [vmem:[#allocation4 + $0x18] sm:$0xff]
      %v3477 = vld [vmem:[#allocation4 + $0x20] sm:$0xff]
      %v3478 = vld [vmem:[#allocation4 + $0x28] sm:$0xff]
      %v3479 = vld [vmem:[#allocation4 + $0x30] sm:$0xff]
      %v3480 = vld [vmem:[#allocation4 + $0x38] sm:$0xff]
      %v3481 = vld [vmem:[#allocation4 + $0x40] sm:$0xff]
      %v3482 = vld [vmem:[#allocation4 + $0x48] sm:$0xff]
      %3483 = vst [vmem:[#allocation7 + $0x500] sm:$0xff] %v3475
      %3484 = vst [vmem:[#allocation7 + $0x508] sm:$0xff] %v3476
      %3485 = vst [vmem:[#allocation7 + $0x510] sm:$0xff] %v3477
      %3486 = vst [vmem:[#allocation7 + $0x518] sm:$0xff] %v3478
      %3487 = vst [vmem:[#allocation7 + $0x520] sm:$0xff] %v3479
      %3488 = vst [vmem:[#allocation7 + $0x528] sm:$0xff] %v3480
      %3489 = vst [vmem:[#allocation7 + $0x530] sm:$0xff] %v3481
      %3490 = vst [vmem:[#allocation7 + $0x538] sm:$0xff] %v3482
      %v3491 = vld [vmem:[#allocation4 + $0x10] sm:$0xff]
      %v3492 = vld [vmem:[#allocation4 + $0x18] sm:$0xff]
      %v3493 = vld [vmem:[#allocation4 + $0x20] sm:$0xff]
      %v3494 = vld [vmem:[#allocation4 + $0x28] sm:$0xff]
      %v3495 = vld [vmem:[#allocation4 + $0x30] sm:$0xff]
      %v3496 = vld [vmem:[#allocation4 + $0x38] sm:$0xff]
      %v3497 = vld [vmem:[#allocation4 + $0x40] sm:$0xff]
      %v3498 = vld [vmem:[#allocation4 + $0x48] sm:$0xff]
      %v3499 = vld [vmem:[#allocation4 + $0x50] sm:$0xff]
      %3509 = vrot.lane.b32.xlu0 %v3491, 126
      %v3510 = vpop.permute.xlu0 %3509
      %3511 = vrot.lane.b32.xlu0 %v3492, 126
      %v3512 = vpop.permute.xlu0 %3511
      %3513 = vrot.lane.b32.xlu0 %v3493, 126
      %v3514 = vpop.permute.xlu0 %3513
      %3515 = vrot.lane.b32.xlu0 %v3494, 126
      %v3516 = vpop.permute.xlu0 %3515
      %3517 = vrot.lane.b32.xlu0 %v3495, 126
      %v3518 = vpop.permute.xlu0 %3517
      %3519 = vrot.lane.b32.xlu0 %v3496, 126
      %v3520 = vpop.permute.xlu0 %3519
      %3521 = vrot.lane.b32.xlu0 %v3497, 126
      %v3522 = vpop.permute.xlu0 %3521
      %3523 = vrot.lane.b32.xlu0 %v3498, 126
      %v3524 = vpop.permute.xlu0 %3523
      %3525 = vrot.lane.b32.xlu0 %v3499, 126
      %v3526 = vpop.permute.xlu0 %3525
      %v3527 = vsel %vm374, %v3510, %v3512
      %v3528 = vsel %vm374, %v3512, %v3514
      %v3529 = vsel %vm374, %v3514, %v3516
      %v3530 = vsel %vm374, %v3516, %v3518
      %v3531 = vsel %vm374, %v3518, %v3520
      %v3532 = vsel %vm374, %v3520, %v3522
      %v3533 = vsel %vm374, %v3522, %v3524
      %v3534 = vsel %vm374, %v3524, %v3526
      %3543 = vst [vmem:[#allocation7 + $0x540] sm:$0xff] %v3527
      %3544 = vst [vmem:[#allocation7 + $0x548] sm:$0xff] %v3528
      %3545 = vst [vmem:[#allocation7 + $0x550] sm:$0xff] %v3529
      %3546 = vst [vmem:[#allocation7 + $0x558] sm:$0xff] %v3530
      %3547 = vst [vmem:[#allocation7 + $0x560] sm:$0xff] %v3531
      %3548 = vst [vmem:[#allocation7 + $0x568] sm:$0xff] %v3532
      %3549 = vst [vmem:[#allocation7 + $0x570] sm:$0xff] %v3533
      %3550 = vst [vmem:[#allocation7 + $0x578] sm:$0xff] %v3534
      %v3551 = vld [vmem:[#allocation4 + $0x10] sm:$0xff]
      %v3552 = vld [vmem:[#allocation4 + $0x18] sm:$0xff]
      %v3553 = vld [vmem:[#allocation4 + $0x20] sm:$0xff]
      %v3554 = vld [vmem:[#allocation4 + $0x28] sm:$0xff]
      %v3555 = vld [vmem:[#allocation4 + $0x30] sm:$0xff]
      %v3556 = vld [vmem:[#allocation4 + $0x38] sm:$0xff]
      %v3557 = vld [vmem:[#allocation4 + $0x40] sm:$0xff]
      %v3558 = vld [vmem:[#allocation4 + $0x48] sm:$0xff]
      %v3559 = vld [vmem:[#allocation4 + $0x50] sm:$0xff]
      %3569 = vrot.lane.b32.xlu0 %v3551, 124
      %v3570 = vpop.permute.xlu0 %3569
      %3571 = vrot.lane.b32.xlu0 %v3552, 124
      %v3572 = vpop.permute.xlu0 %3571
      %3573 = vrot.lane.b32.xlu0 %v3553, 124
      %v3574 = vpop.permute.xlu0 %3573
      %3575 = vrot.lane.b32.xlu0 %v3554, 124
      %v3576 = vpop.permute.xlu0 %3575
      %3577 = vrot.lane.b32.xlu0 %v3555, 124
      %v3578 = vpop.permute.xlu0 %3577
      %3579 = vrot.lane.b32.xlu0 %v3556, 124
      %v3580 = vpop.permute.xlu0 %3579
      %3581 = vrot.lane.b32.xlu0 %v3557, 124
      %v3582 = vpop.permute.xlu0 %3581
      %3583 = vrot.lane.b32.xlu0 %v3558, 124
      %v3584 = vpop.permute.xlu0 %3583
      %3585 = vrot.lane.b32.xlu0 %v3559, 124
      %v3586 = vpop.permute.xlu0 %3585
      %v3587 = vsel %vm496, %v3570, %v3572
      %v3588 = vsel %vm496, %v3572, %v3574
      %v3589 = vsel %vm496, %v3574, %v3576
      %v3590 = vsel %vm496, %v3576, %v3578
      %v3591 = vsel %vm496, %v3578, %v3580
      %v3592 = vsel %vm496, %v3580, %v3582
      %v3593 = vsel %vm496, %v3582, %v3584
      %v3594 = vsel %vm496, %v3584, %v3586
      %3603 = vst [vmem:[#allocation7 + $0x580] sm:$0xff] %v3587
      %3604 = vst [vmem:[#allocation7 + $0x588] sm:$0xff] %v3588
      %3605 = vst [vmem:[#allocation7 + $0x590] sm:$0xff] %v3589
      %3606 = vst [vmem:[#allocation7 + $0x598] sm:$0xff] %v3590
      %3607 = vst [vmem:[#allocation7 + $0x5a0] sm:$0xff] %v3591
      %3608 = vst [vmem:[#allocation7 + $0x5a8] sm:$0xff] %v3592
      %3609 = vst [vmem:[#allocation7 + $0x5b0] sm:$0xff] %v3593
      %3610 = vst [vmem:[#allocation7 + $0x5b8] sm:$0xff] %v3594
      %v3611 = vld [vmem:[#allocation4 + $0x10] sm:$0xff]
      %v3612 = vld [vmem:[#allocation4 + $0x18] sm:$0xff]
      %v3613 = vld [vmem:[#allocation4 + $0x20] sm:$0xff]
      %v3614 = vld [vmem:[#allocation4 + $0x28] sm:$0xff]
      %v3615 = vld [vmem:[#allocation4 + $0x30] sm:$0xff]
      %v3616 = vld [vmem:[#allocation4 + $0x38] sm:$0xff]
      %v3617 = vld [vmem:[#allocation4 + $0x40] sm:$0xff]
      %v3618 = vld [vmem:[#allocation4 + $0x48] sm:$0xff]
      %v3619 = vld [vmem:[#allocation4 + $0x50] sm:$0xff]
      %3629 = vrot.lane.b32.xlu0 %v3611, 122
      %v3630 = vpop.permute.xlu0 %3629
      %3631 = vrot.lane.b32.xlu0 %v3612, 122
      %v3632 = vpop.permute.xlu0 %3631
      %3633 = vrot.lane.b32.xlu0 %v3613, 122
      %v3634 = vpop.permute.xlu0 %3633
      %3635 = vrot.lane.b32.xlu0 %v3614, 122
      %v3636 = vpop.permute.xlu0 %3635
      %3637 = vrot.lane.b32.xlu0 %v3615, 122
      %v3638 = vpop.permute.xlu0 %3637
      %3639 = vrot.lane.b32.xlu0 %v3616, 122
      %v3640 = vpop.permute.xlu0 %3639
      %3641 = vrot.lane.b32.xlu0 %v3617, 122
      %v3642 = vpop.permute.xlu0 %3641
      %3643 = vrot.lane.b32.xlu0 %v3618, 122
      %v3644 = vpop.permute.xlu0 %3643
      %3645 = vrot.lane.b32.xlu0 %v3619, 122
      %v3646 = vpop.permute.xlu0 %3645
      %v3647 = vsel %vm2531, %v3630, %v3632
      %v3648 = vsel %vm2531, %v3632, %v3634
      %v3649 = vsel %vm2531, %v3634, %v3636
      %v3650 = vsel %vm2531, %v3636, %v3638
      %v3651 = vsel %vm2531, %v3638, %v3640
      %v3652 = vsel %vm2531, %v3640, %v3642
      %v3653 = vsel %vm2531, %v3642, %v3644
      %v3654 = vsel %vm2531, %v3644, %v3646
      %3663 = vst [vmem:[#allocation7 + $0x5c0] sm:$0xff] %v3647
      %3664 = vst [vmem:[#allocation7 + $0x5c8] sm:$0xff] %v3648
      %3665 = vst [vmem:[#allocation7 + $0x5d0] sm:$0xff] %v3649
      %3666 = vst [vmem:[#allocation7 + $0x5d8] sm:$0xff] %v3650
      %3667 = vst [vmem:[#allocation7 + $0x5e0] sm:$0xff] %v3651
      %3668 = vst [vmem:[#allocation7 + $0x5e8] sm:$0xff] %v3652
      %3669 = vst [vmem:[#allocation7 + $0x5f0] sm:$0xff] %v3653
      %3670 = vst [vmem:[#allocation7 + $0x5f8] sm:$0xff] %v3654
      %v3671 = vld [vmem:[#allocation4 + $0x10] sm:$0xff]
      %v3672 = vld [vmem:[#allocation4 + $0x18] sm:$0xff]
      %v3673 = vld [vmem:[#allocation4 + $0x20] sm:$0xff]
      %v3674 = vld [vmem:[#allocation4 + $0x28] sm:$0xff]
      %v3675 = vld [vmem:[#allocation4 + $0x30] sm:$0xff]
      %v3676 = vld [vmem:[#allocation4 + $0x38] sm:$0xff]
      %v3677 = vld [vmem:[#allocation4 + $0x40] sm:$0xff]
      %v3678 = vld [vmem:[#allocation4 + $0x48] sm:$0xff]
      %v3679 = vld [vmem:[#allocation4 + $0x50] sm:$0xff]
      %3689 = vrot.lane.b32.xlu0 %v3671, 120
      %v3690 = vpop.permute.xlu0 %3689
      %3691 = vrot.lane.b32.xlu0 %v3672, 120
      %v3692 = vpop.permute.xlu0 %3691
      %3693 = vrot.lane.b32.xlu0 %v3673, 120
      %v3694 = vpop.permute.xlu0 %3693
      %3695 = vrot.lane.b32.xlu0 %v3674, 120
      %v3696 = vpop.permute.xlu0 %3695
      %3697 = vrot.lane.b32.xlu0 %v3675, 120
      %v3698 = vpop.permute.xlu0 %3697
      %3699 = vrot.lane.b32.xlu0 %v3676, 120
      %v3700 = vpop.permute.xlu0 %3699
      %3701 = vrot.lane.b32.xlu0 %v3677, 120
      %v3702 = vpop.permute.xlu0 %3701
      %3703 = vrot.lane.b32.xlu0 %v3678, 120
      %v3704 = vpop.permute.xlu0 %3703
      %3705 = vrot.lane.b32.xlu0 %v3679, 120
      %v3706 = vpop.permute.xlu0 %3705
      %v3707 = vsel %vm2592, %v3690, %v3692
      %v3708 = vsel %vm2592, %v3692, %v3694
      %v3709 = vsel %vm2592, %v3694, %v3696
      %v3710 = vsel %vm2592, %v3696, %v3698
      %v3711 = vsel %vm2592, %v3698, %v3700
      %v3712 = vsel %vm2592, %v3700, %v3702
      %v3713 = vsel %vm2592, %v3702, %v3704
      %v3714 = vsel %vm2592, %v3704, %v3706
      %3723 = vst [vmem:[#allocation7 + $0x600] sm:$0xff] %v3707
      %3724 = vst [vmem:[#allocation7 + $0x608] sm:$0xff] %v3708
      %3725 = vst [vmem:[#allocation7 + $0x610] sm:$0xff] %v3709
      %3726 = vst [vmem:[#allocation7 + $0x618] sm:$0xff] %v3710
      %3727 = vst [vmem:[#allocation7 + $0x620] sm:$0xff] %v3711
      %3728 = vst [vmem:[#allocation7 + $0x628] sm:$0xff] %v3712
      %3729 = vst [vmem:[#allocation7 + $0x630] sm:$0xff] %v3713
      %3730 = vst [vmem:[#allocation7 + $0x638] sm:$0xff] %v3714
      %v3731 = vld [vmem:[#allocation7] sm:$0xff]
      %v3732 = vld [vmem:[#allocation7 + $0x8] sm:$0xff]
      %v3733 = vld [vmem:[#allocation7 + $0x10] sm:$0xff]
      %v3734 = vld [vmem:[#allocation7 + $0x18] sm:$0xff]
      %v3735 = vld [vmem:[#allocation7 + $0x20] sm:$0xff]
      %v3736 = vld [vmem:[#allocation7 + $0x28] sm:$0xff]
      %v3737 = vld [vmem:[#allocation7 + $0x30] sm:$0xff]
      %v3738 = vld [vmem:[#allocation7 + $0x38] sm:$0xff]
      %v3739 = vld [vmem:[#allocation7 + $0x40] sm:$0xff]
      %v3740 = vld [vmem:[#allocation7 + $0x48] sm:$0xff]
      %v3741 = vld [vmem:[#allocation7 + $0x50] sm:$0xff]
      %v3742 = vld [vmem:[#allocation7 + $0x58] sm:$0xff]
      %v3743 = vld [vmem:[#allocation7 + $0x60] sm:$0xff]
      %v3744 = vld [vmem:[#allocation7 + $0x68] sm:$0xff]
      %v3745 = vld [vmem:[#allocation7 + $0x70] sm:$0xff]
      %v3746 = vld [vmem:[#allocation7 + $0x78] sm:$0xff]
      %v3747 = vld [vmem:[#allocation7 + $0x80] sm:$0xff]
      %v3748 = vld [vmem:[#allocation7 + $0x88] sm:$0xff]
      %v3749 = vld [vmem:[#allocation7 + $0x90] sm:$0xff]
      %v3750 = vld [vmem:[#allocation7 + $0x98] sm:$0xff]
      %v3751 = vld [vmem:[#allocation7 + $0xa0] sm:$0xff]
      %v3752 = vld [vmem:[#allocation7 + $0xa8] sm:$0xff]
      %v3753 = vld [vmem:[#allocation7 + $0xb0] sm:$0xff]
      %v3754 = vld [vmem:[#allocation7 + $0xb8] sm:$0xff]
      %v3755 = vld [vmem:[#allocation7 + $0xc0] sm:$0xff]
      %v3756 = vld [vmem:[#allocation7 + $0xc8] sm:$0xff]
      %v3757 = vld [vmem:[#allocation7 + $0xd0] sm:$0xff]
      %v3758 = vld [vmem:[#allocation7 + $0xd8] sm:$0xff]
      %v3759 = vld [vmem:[#allocation7 + $0xe0] sm:$0xff]
      %v3760 = vld [vmem:[#allocation7 + $0xe8] sm:$0xff]
      %v3761 = vld [vmem:[#allocation7 + $0xf0] sm:$0xff]
      %v3762 = vld [vmem:[#allocation7 + $0xf8] sm:$0xff]
      %v3763 = vld [vmem:[#allocation7 + $0x100] sm:$0xff]
      %v3764 = vld [vmem:[#allocation7 + $0x108] sm:$0xff]
      %v3765 = vld [vmem:[#allocation7 + $0x110] sm:$0xff]
      %v3766 = vld [vmem:[#allocation7 + $0x118] sm:$0xff]
      %v3767 = vld [vmem:[#allocation7 + $0x120] sm:$0xff]
      %v3768 = vld [vmem:[#allocation7 + $0x128] sm:$0xff]
      %v3769 = vld [vmem:[#allocation7 + $0x130] sm:$0xff]
      %v3770 = vld [vmem:[#allocation7 + $0x138] sm:$0xff]
      %v3771 = vld [vmem:[#allocation7 + $0x140] sm:$0xff]
      %v3772 = vld [vmem:[#allocation7 + $0x148] sm:$0xff]
      %v3773 = vld [vmem:[#allocation7 + $0x150] sm:$0xff]
      %v3774 = vld [vmem:[#allocation7 + $0x158] sm:$0xff]
      %v3775 = vld [vmem:[#allocation7 + $0x160] sm:$0xff]
      %v3776 = vld [vmem:[#allocation7 + $0x168] sm:$0xff]
      %v3777 = vld [vmem:[#allocation7 + $0x170] sm:$0xff]
      %v3778 = vld [vmem:[#allocation7 + $0x178] sm:$0xff]
      %v3779 = vld [vmem:[#allocation7 + $0x180] sm:$0xff]
      %v3780 = vld [vmem:[#allocation7 + $0x188] sm:$0xff]
      %v3781 = vld [vmem:[#allocation7 + $0x190] sm:$0xff]
      %v3782 = vld [vmem:[#allocation7 + $0x198] sm:$0xff]
      %v3783 = vld [vmem:[#allocation7 + $0x1a0] sm:$0xff]
      %v3784 = vld [vmem:[#allocation7 + $0x1a8] sm:$0xff]
      %v3785 = vld [vmem:[#allocation7 + $0x1b0] sm:$0xff]
      %v3786 = vld [vmem:[#allocation7 + $0x1b8] sm:$0xff]
      %v3787 = vld [vmem:[#allocation7 + $0x1c0] sm:$0xff]
      %v3788 = vld [vmem:[#allocation7 + $0x1c8] sm:$0xff]
      %v3789 = vld [vmem:[#allocation7 + $0x1d0] sm:$0xff]
      %v3790 = vld [vmem:[#allocation7 + $0x1d8] sm:$0xff]
      %v3791 = vld [vmem:[#allocation7 + $0x1e0] sm:$0xff]
      %v3792 = vld [vmem:[#allocation7 + $0x1e8] sm:$0xff]
      %v3793 = vld [vmem:[#allocation7 + $0x1f0] sm:$0xff]
      %v3794 = vld [vmem:[#allocation7 + $0x1f8] sm:$0xff]
      %v3795 = vld [vmem:[#allocation7 + $0x200] sm:$0xff]
      %v3796 = vld [vmem:[#allocation7 + $0x208] sm:$0xff]
      %v3797 = vld [vmem:[#allocation7 + $0x210] sm:$0xff]
      %v3798 = vld [vmem:[#allocation7 + $0x218] sm:$0xff]
      %v3799 = vld [vmem:[#allocation7 + $0x220] sm:$0xff]
      %v3800 = vld [vmem:[#allocation7 + $0x228] sm:$0xff]
      %v3801 = vld [vmem:[#allocation7 + $0x230] sm:$0xff]
      %v3802 = vld [vmem:[#allocation7 + $0x238] sm:$0xff]
      %v3803 = vld [vmem:[#allocation7 + $0x240] sm:$0xff]
      %v3804 = vld [vmem:[#allocation7 + $0x248] sm:$0xff]
      %v3805 = vld [vmem:[#allocation7 + $0x250] sm:$0xff]
      %v3806 = vld [vmem:[#allocation7 + $0x258] sm:$0xff]
      %v3807 = vld [vmem:[#allocation7 + $0x260] sm:$0xff]
      %v3808 = vld [vmem:[#allocation7 + $0x268] sm:$0xff]
      %v3809 = vld [vmem:[#allocation7 + $0x270] sm:$0xff]
      %v3810 = vld [vmem:[#allocation7 + $0x278] sm:$0xff]
      %v3811 = vld [vmem:[#allocation7 + $0x280] sm:$0xff]
      %v3812 = vld [vmem:[#allocation7 + $0x288] sm:$0xff]
      %v3813 = vld [vmem:[#allocation7 + $0x290] sm:$0xff]
      %v3814 = vld [vmem:[#allocation7 + $0x298] sm:$0xff]
      %v3815 = vld [vmem:[#allocation7 + $0x2a0] sm:$0xff]
      %v3816 = vld [vmem:[#allocation7 + $0x2a8] sm:$0xff]
      %v3817 = vld [vmem:[#allocation7 + $0x2b0] sm:$0xff]
      %v3818 = vld [vmem:[#allocation7 + $0x2b8] sm:$0xff]
      %v3819 = vld [vmem:[#allocation7 + $0x2c0] sm:$0xff]
      %v3820 = vld [vmem:[#allocation7 + $0x2c8] sm:$0xff]
      %v3821 = vld [vmem:[#allocation7 + $0x2d0] sm:$0xff]
      %v3822 = vld [vmem:[#allocation7 + $0x2d8] sm:$0xff]
      %v3823 = vld [vmem:[#allocation7 + $0x2e0] sm:$0xff]
      %v3824 = vld [vmem:[#allocation7 + $0x2e8] sm:$0xff]
      %v3825 = vld [vmem:[#allocation7 + $0x2f0] sm:$0xff]
      %v3826 = vld [vmem:[#allocation7 + $0x2f8] sm:$0xff]
      %v3827 = vld [vmem:[#allocation7 + $0x300] sm:$0xff]
      %v3828 = vld [vmem:[#allocation7 + $0x308] sm:$0xff]
      %v3829 = vld [vmem:[#allocation7 + $0x310] sm:$0xff]
      %v3830 = vld [vmem:[#allocation7 + $0x318] sm:$0xff]
      %v3831 = vld [vmem:[#allocation7 + $0x320] sm:$0xff]
      %v3832 = vld [vmem:[#allocation7 + $0x328] sm:$0xff]
      %v3833 = vld [vmem:[#allocation7 + $0x330] sm:$0xff]
      %v3834 = vld [vmem:[#allocation7 + $0x338] sm:$0xff]
      %v3835 = vld [vmem:[#allocation7 + $0x340] sm:$0xff]
      %v3836 = vld [vmem:[#allocation7 + $0x348] sm:$0xff]
      %v3837 = vld [vmem:[#allocation7 + $0x350] sm:$0xff]
      %v3838 = vld [vmem:[#allocation7 + $0x358] sm:$0xff]
      %v3839 = vld [vmem:[#allocation7 + $0x360] sm:$0xff]
      %v3840 = vld [vmem:[#allocation7 + $0x368] sm:$0xff]
      %v3841 = vld [vmem:[#allocation7 + $0x370] sm:$0xff]
      %v3842 = vld [vmem:[#allocation7 + $0x378] sm:$0xff]
      %v3843 = vld [vmem:[#allocation7 + $0x380] sm:$0xff]
      %v3844 = vld [vmem:[#allocation7 + $0x388] sm:$0xff]
      %v3845 = vld [vmem:[#allocation7 + $0x390] sm:$0xff]
      %v3846 = vld [vmem:[#allocation7 + $0x398] sm:$0xff]
      %v3847 = vld [vmem:[#allocation7 + $0x3a0] sm:$0xff]
      %v3848 = vld [vmem:[#allocation7 + $0x3a8] sm:$0xff]
      %v3849 = vld [vmem:[#allocation7 + $0x3b0] sm:$0xff]
      %v3850 = vld [vmem:[#allocation7 + $0x3b8] sm:$0xff]
      %v3851 = vld [vmem:[#allocation7 + $0x3c0] sm:$0xff]
      %v3852 = vld [vmem:[#allocation7 + $0x3c8] sm:$0xff]
      %v3853 = vld [vmem:[#allocation7 + $0x3d0] sm:$0xff]
      %v3854 = vld [vmem:[#allocation7 + $0x3d8] sm:$0xff]
      %v3855 = vld [vmem:[#allocation7 + $0x3e0] sm:$0xff]
      %v3856 = vld [vmem:[#allocation7 + $0x3e8] sm:$0xff]
      %v3857 = vld [vmem:[#allocation7 + $0x3f0] sm:$0xff]
      %v3858 = vld [vmem:[#allocation7 + $0x3f8] sm:$0xff]
      %v3859 = vld [vmem:[#allocation7 + $0x400] sm:$0xff]
      %v3860 = vld [vmem:[#allocation7 + $0x408] sm:$0xff]
      %v3861 = vld [vmem:[#allocation7 + $0x410] sm:$0xff]
      %v3862 = vld [vmem:[#allocation7 + $0x418] sm:$0xff]
      %v3863 = vld [vmem:[#allocation7 + $0x420] sm:$0xff]
      %v3864 = vld [vmem:[#allocation7 + $0x428] sm:$0xff]
      %v3865 = vld [vmem:[#allocation7 + $0x430] sm:$0xff]
      %v3866 = vld [vmem:[#allocation7 + $0x438] sm:$0xff]
      %v3867 = vld [vmem:[#allocation7 + $0x440] sm:$0xff]
      %v3868 = vld [vmem:[#allocation7 + $0x448] sm:$0xff]
      %v3869 = vld [vmem:[#allocation7 + $0x450] sm:$0xff]
      %v3870 = vld [vmem:[#allocation7 + $0x458] sm:$0xff]
      %v3871 = vld [vmem:[#allocation7 + $0x460] sm:$0xff]
      %v3872 = vld [vmem:[#allocation7 + $0x468] sm:$0xff]
      %v3873 = vld [vmem:[#allocation7 + $0x470] sm:$0xff]
      %v3874 = vld [vmem:[#allocation7 + $0x478] sm:$0xff]
      %v3875 = vld [vmem:[#allocation7 + $0x480] sm:$0xff]
      %v3876 = vld [vmem:[#allocation7 + $0x488] sm:$0xff]
      %v3877 = vld [vmem:[#allocation7 + $0x490] sm:$0xff]
      %v3878 = vld [vmem:[#allocation7 + $0x498] sm:$0xff]
      %v3879 = vld [vmem:[#allocation7 + $0x4a0] sm:$0xff]
      %v3880 = vld [vmem:[#allocation7 + $0x4a8] sm:$0xff]
      %v3881 = vld [vmem:[#allocation7 + $0x4b0] sm:$0xff]
      %v3882 = vld [vmem:[#allocation7 + $0x4b8] sm:$0xff]
      %v3883 = vld [vmem:[#allocation7 + $0x4c0] sm:$0xff]
      %v3884 = vld [vmem:[#allocation7 + $0x4c8] sm:$0xff]
      %v3885 = vld [vmem:[#allocation7 + $0x4d0] sm:$0xff]
      %v3886 = vld [vmem:[#allocation7 + $0x4d8] sm:$0xff]
      %v3887 = vld [vmem:[#allocation7 + $0x4e0] sm:$0xff]
      %v3888 = vld [vmem:[#allocation7 + $0x4e8] sm:$0xff]
      %v3889 = vld [vmem:[#allocation7 + $0x4f0] sm:$0xff]
      %v3890 = vld [vmem:[#allocation7 + $0x4f8] sm:$0xff]
      %v3891 = vld [vmem:[#allocation7 + $0x500] sm:$0xff]
      %v3892 = vld [vmem:[#allocation7 + $0x508] sm:$0xff]
      %v3893 = vld [vmem:[#allocation7 + $0x510] sm:$0xff]
      %v3894 = vld [vmem:[#allocation7 + $0x518] sm:$0xff]
      %v3895 = vld [vmem:[#allocation7 + $0x520] sm:$0xff]
      %v3896 = vld [vmem:[#allocation7 + $0x528] sm:$0xff]
      %v3897 = vld [vmem:[#allocation7 + $0x530] sm:$0xff]
      %v3898 = vld [vmem:[#allocation7 + $0x538] sm:$0xff]
      %v3899 = vld [vmem:[#allocation7 + $0x540] sm:$0xff]
      %v3900 = vld [vmem:[#allocation7 + $0x548] sm:$0xff]
      %v3901 = vld [vmem:[#allocation7 + $0x550] sm:$0xff]
      %v3902 = vld [vmem:[#allocation7 + $0x558] sm:$0xff]
      %v3903 = vld [vmem:[#allocation7 + $0x560] sm:$0xff]
      %v3904 = vld [vmem:[#allocation7 + $0x568] sm:$0xff]
      %v3905 = vld [vmem:[#allocation7 + $0x570] sm:$0xff]
      %v3906 = vld [vmem:[#allocation7 + $0x578] sm:$0xff]
      %v3907 = vld [vmem:[#allocation7 + $0x580] sm:$0xff]
      %v3908 = vld [vmem:[#allocation7 + $0x588] sm:$0xff]
      %v3909 = vld [vmem:[#allocation7 + $0x590] sm:$0xff]
      %v3910 = vld [vmem:[#allocation7 + $0x598] sm:$0xff]
      %v3911 = vld [vmem:[#allocation7 + $0x5a0] sm:$0xff]
      %v3912 = vld [vmem:[#allocation7 + $0x5a8] sm:$0xff]
      %v3913 = vld [vmem:[#allocation7 + $0x5b0] sm:$0xff]
      %v3914 = vld [vmem:[#allocation7 + $0x5b8] sm:$0xff]
      %v3915 = vld [vmem:[#allocation7 + $0x5c0] sm:$0xff]
      %v3916 = vld [vmem:[#allocation7 + $0x5c8] sm:$0xff]
      %v3917 = vld [vmem:[#allocation7 + $0x5d0] sm:$0xff]
      %v3918 = vld [vmem:[#allocation7 + $0x5d8] sm:$0xff]
      %v3919 = vld [vmem:[#allocation7 + $0x5e0] sm:$0xff]
      %v3920 = vld [vmem:[#allocation7 + $0x5e8] sm:$0xff]
      %v3921 = vld [vmem:[#allocation7 + $0x5f0] sm:$0xff]
      %v3922 = vld [vmem:[#allocation7 + $0x5f8] sm:$0xff]
      %v3923 = vld [vmem:[#allocation7 + $0x600] sm:$0xff]
      %v3924 = vld [vmem:[#allocation7 + $0x608] sm:$0xff]
      %v3925 = vld [vmem:[#allocation7 + $0x610] sm:$0xff]
      %v3926 = vld [vmem:[#allocation7 + $0x618] sm:$0xff]
      %v3927 = vld [vmem:[#allocation7 + $0x620] sm:$0xff]
      %v3928 = vld [vmem:[#allocation7 + $0x628] sm:$0xff]
      %v3929 = vld [vmem:[#allocation7 + $0x630] sm:$0xff]
      %v3930 = vld [vmem:[#allocation7 + $0x638] sm:$0xff]
      %3932 = vset.pattern.permute.xlu0 0
      %3933 = vperm.xlu0 %3932, %v2357
      %v3934 = vpop.permute.xlu0 %3933
      %3937 = vset.pattern.permute.xlu0 0
      %3938 = vperm.xlu0 %3937, %v2358
      %v3939 = vpop.permute.xlu0 %3938
      %v3942 = vsel %vm1897, %v2354, 0
      %v3945 = vsel %vm1897, %v2356, 0
      %3947 = vmatprep.subr.mxu0 %v3732
      %3948 = vmatpush1.msra.mxu0 %v3731
      %3949 = vmatprep.subr.mxu0 %v3740
      %3950 = vmatpush1.msra.mxu0 %v3739
      %3951 = vmatprep.subr.mxu0 %v3748
      %3952 = vmatpush1.msra.mxu0 %v3747
      %3953 = vmatprep.subr.mxu0 %v3756
      %3954 = vmatpush1.msra.mxu0 %v3755
      %3955 = vmatprep.subr.mxu0 %v3764
      %3956 = vmatpush1.msra.mxu0 %v3763
      %3957 = vmatprep.subr.mxu0 %v3772
      %3958 = vmatpush1.msra.mxu0 %v3771
      %3959 = vmatprep.subr.mxu0 %v3780
      %3960 = vmatpush1.msra.mxu0 %v3779
      %3961 = vmatprep.subr.mxu0 %v3788
      %3962 = vmatpush1.msra.mxu0 %v3787
      %3963 = vmatprep.subr.mxu0 %v3796
      %3964 = vmatpush1.msra.mxu0 %v3795
      %3965 = vmatprep.subr.mxu0 %v3804
      %3966 = vmatpush1.msra.mxu0 %v3803
      %3967 = vmatprep.subr.mxu0 %v3812
      %3968 = vmatpush1.msra.mxu0 %v3811
      %3969 = vmatprep.subr.mxu0 %v3820
      %3970 = vmatpush1.msra.mxu0 %v3819
      %3971 = vmatprep.subr.mxu0 %v3828
      %3972 = vmatpush1.msra.mxu0 %v3827
      %3973 = vmatprep.subr.mxu0 %v3836
      %3974 = vmatpush1.msra.mxu0 %v3835
      %3975 = vmatprep.subr.mxu0 %v3844
      %3976 = vmatpush1.msra.mxu0 %v3843
      %3977 = vmatprep.subr.mxu0 %v3852
      %3978 = vmatpush1.msra.mxu0 %v3851
      %3979 = vmatprep.subr.mxu0 %v3860
      %3980 = vmatpush1.msra.mxu0 %v3859
      %3981 = vmatprep.subr.mxu0 %v3868
      %3982 = vmatpush1.msra.mxu0 %v3867
      %3983 = vmatprep.subr.mxu0 %v3876
      %3984 = vmatpush1.msra.mxu0 %v3875
      %3985 = vmatprep.subr.mxu0 %v3884
      %3986 = vmatpush1.msra.mxu0 %v3883
      %3987 = vmatprep.subr.mxu0 %v3892
      %3988 = vmatpush1.msra.mxu0 %v3891
      %3989 = vmatprep.subr.mxu0 %v3900
      %3990 = vmatpush1.msra.mxu0 %v3899
      %3991 = vmatprep.subr.mxu0 %v3908
      %3992 = vmatpush1.msra.mxu0 %v3907
      %3993 = vmatprep.subr.mxu0 %v3916
      %3994 = vmatpush1.msra.mxu0 %v3915
      %3995 = vmatprep.subr.mxu0 %v3924
      %3996 = vmatpush1.msra.mxu0 %v3923
      %3997 = vmatprep.subr.mxu0 0.0
      %3998 = vmatpush1.msra.mxu0 0.0
      %3999 = vmatprep.subr.mxu0 0.0
      %4000 = vmatpush1.msra.mxu0 0.0
      %4001 = vmatprep.subr.mxu0 0.0
      %4002 = vmatpush1.msra.mxu0 0.0
      %4003 = vmatprep.subr.mxu0 0.0
      %4004 = vmatpush1.msra.mxu0 0.0
      %4005 = vmatprep.subr.mxu0 0.0
      %4006 = vmatpush1.msra.mxu0 0.0
      %4007 = vmatprep.subr.mxu0 0.0
      %4008 = vmatpush1.msra.mxu0 0.0
      %4009 = vmatprep.subr.mxu0 0.0
      %4010 = vmatpush1.msra.mxu0 0.0
      %4011 = vmatprep.mubr.f32.mxu0 %v3942
      %4012 = vmatmul.mubr.f32.gmra.mrb[0].mxu0 %v2353
      %v4013 = vpop.f32.mrb[0].mxu0
      %v4014 = vadd.f32 %v3934, %v4013
      %v4015 = vpop.f32.mrb[0].mxu0
      %v4016 = vadd.f32 %v3934, %v4015
      %4017 = vmatprep.mubr.f32.mxu0 %v3945
      %4018 = vmatmul.mubr.f32.gmra.mrb[0].mxu0 %v2355
      %v4019 = vpop.f32.mrb[0].mxu0
      %v4020 = vadd.f32 %v3939, %v4019
      %v4021 = vpop.f32.mrb[0].mxu0
      %v4022 = vadd.f32 %v3939, %v4021
      %4023 = vdwg.mxu0
      %4024 = vmatprep.subr.mxu0 %v3734
      %4025 = vmatpush1.msra.mxu0 %v3733
      %4026 = vmatprep.subr.mxu0 %v3742
      %4027 = vmatpush1.msra.mxu0 %v3741
      %4028 = vmatprep.subr.mxu0 %v3750
      %4029 = vmatpush1.msra.mxu0 %v3749
      %4030 = vmatprep.subr.mxu0 %v3758
      %4031 = vmatpush1.msra.mxu0 %v3757
      %4032 = vmatprep.subr.mxu0 %v3766
      %4033 = vmatpush1.msra.mxu0 %v3765
      %4034 = vmatprep.subr.mxu0 %v3774
      %4035 = vmatpush1.msra.mxu0 %v3773
      %4036 = vmatprep.subr.mxu0 %v3782
      %4037 = vmatpush1.msra.mxu0 %v3781
      %4038 = vmatprep.subr.mxu0 %v3790
      %4039 = vmatpush1.msra.mxu0 %v3789
      %4040 = vmatprep.subr.mxu0 %v3798
      %4041 = vmatpush1.msra.mxu0 %v3797
      %4042 = vmatprep.subr.mxu0 %v3806
      %4043 = vmatpush1.msra.mxu0 %v3805
      %4044 = vmatprep.subr.mxu0 %v3814
      %4045 = vmatpush1.msra.mxu0 %v3813
      %4046 = vmatprep.subr.mxu0 %v3822
      %4047 = vmatpush1.msra.mxu0 %v3821
      %4048 = vmatprep.subr.mxu0 %v3830
      %4049 = vmatpush1.msra.mxu0 %v3829
      %4050 = vmatprep.subr.mxu0 %v3838
      %4051 = vmatpush1.msra.mxu0 %v3837
      %4052 = vmatprep.subr.mxu0 %v3846
      %4053 = vmatpush1.msra.mxu0 %v3845
      %4054 = vmatprep.subr.mxu0 %v3854
      %4055 = vmatpush1.msra.mxu0 %v3853
      %4056 = vmatprep.subr.mxu0 %v3862
      %4057 = vmatpush1.msra.mxu0 %v3861
      %4058 = vmatprep.subr.mxu0 %v3870
      %4059 = vmatpush1.msra.mxu0 %v3869
      %4060 = vmatprep.subr.mxu0 %v3878
      %4061 = vmatpush1.msra.mxu0 %v3877
      %4062 = vmatprep.subr.mxu0 %v3886
      %4063 = vmatpush1.msra.mxu0 %v3885
      %4064 = vmatprep.subr.mxu0 %v3894
      %4065 = vmatpush1.msra.mxu0 %v3893
      %4066 = vmatprep.subr.mxu0 %v3902
      %4067 = vmatpush1.msra.mxu0 %v3901
      %4068 = vmatprep.subr.mxu0 %v3910
      %4069 = vmatpush1.msra.mxu0 %v3909
      %4070 = vmatprep.subr.mxu0 %v3918
      %4071 = vmatpush1.msra.mxu0 %v3917
      %4072 = vmatprep.subr.mxu0 %v3926
      %4073 = vmatpush1.msra.mxu0 %v3925
      %4074 = vmatprep.subr.mxu0 0.0
      %4075 = vmatpush1.msra.mxu0 0.0
      %4076 = vmatprep.subr.mxu0 0.0
      %4077 = vmatpush1.msra.mxu0 0.0
      %4078 = vmatprep.subr.mxu0 0.0
      %4079 = vmatpush1.msra.mxu0 0.0
      %4080 = vmatprep.subr.mxu0 0.0
      %4081 = vmatpush1.msra.mxu0 0.0
      %4082 = vmatprep.subr.mxu0 0.0
      %4083 = vmatpush1.msra.mxu0 0.0
      %4084 = vmatprep.subr.mxu0 0.0
      %4085 = vmatpush1.msra.mxu0 0.0
      %4086 = vmatprep.subr.mxu0 0.0
      %4087 = vmatpush1.msra.mxu0 0.0
      %4088 = vmatprep.mubr.f32.mxu0 %v3942
      %4089 = vmatmul.mubr.f32.gmra.mrb[0].mxu0 %v2353
      %v4090 = vpop.f32.mrb[0].mxu0
      %v4091 = vadd.f32 %v3934, %v4090
      %v4092 = vpop.f32.mrb[0].mxu0
      %v4093 = vadd.f32 %v3934, %v4092
      %4094 = vmatprep.mubr.f32.mxu0 %v3945
      %4095 = vmatmul.mubr.f32.gmra.mrb[0].mxu0 %v2355
      %v4096 = vpop.f32.mrb[0].mxu0
      %v4097 = vadd.f32 %v3939, %v4096
      %v4098 = vpop.f32.mrb[0].mxu0
      %v4099 = vadd.f32 %v3939, %v4098
      %4100 = vdwg.mxu0
      %4101 = vmatprep.subr.mxu0 %v3736
      %4102 = vmatpush1.msra.mxu0 %v3735
      %4103 = vmatprep.subr.mxu0 %v3744
      %4104 = vmatpush1.msra.mxu0 %v3743
      %4105 = vmatprep.subr.mxu0 %v3752
      %4106 = vmatpush1.msra.mxu0 %v3751
      %4107 = vmatprep.subr.mxu0 %v3760
      %4108 = vmatpush1.msra.mxu0 %v3759
      %4109 = vmatprep.subr.mxu0 %v3768
      %4110 = vmatpush1.msra.mxu0 %v3767
      %4111 = vmatprep.subr.mxu0 %v3776
      %4112 = vmatpush1.msra.mxu0 %v3775
      %4113 = vmatprep.subr.mxu0 %v3784
      %4114 = vmatpush1.msra.mxu0 %v3783
      %4115 = vmatprep.subr.mxu0 %v3792
      %4116 = vmatpush1.msra.mxu0 %v3791
      %4117 = vmatprep.subr.mxu0 %v3800
      %4118 = vmatpush1.msra.mxu0 %v3799
      %4119 = vmatprep.subr.mxu0 %v3808
      %4120 = vmatpush1.msra.mxu0 %v3807
      %4121 = vmatprep.subr.mxu0 %v3816
      %4122 = vmatpush1.msra.mxu0 %v3815
      %4123 = vmatprep.subr.mxu0 %v3824
      %4124 = vmatpush1.msra.mxu0 %v3823
      %4125 = vmatprep.subr.mxu0 %v3832
      %4126 = vmatpush1.msra.mxu0 %v3831
      %4127 = vmatprep.subr.mxu0 %v3840
      %4128 = vmatpush1.msra.mxu0 %v3839
      %4129 = vmatprep.subr.mxu0 %v3848
      %4130 = vmatpush1.msra.mxu0 %v3847
      %4131 = vmatprep.subr.mxu0 %v3856
      %4132 = vmatpush1.msra.mxu0 %v3855
      %4133 = vmatprep.subr.mxu0 %v3864
      %4134 = vmatpush1.msra.mxu0 %v3863
      %4135 = vmatprep.subr.mxu0 %v3872
      %4136 = vmatpush1.msra.mxu0 %v3871
      %4137 = vmatprep.subr.mxu0 %v3880
      %4138 = vmatpush1.msra.mxu0 %v3879
      %4139 = vmatprep.subr.mxu0 %v3888
      %4140 = vmatpush1.msra.mxu0 %v3887
      %4141 = vmatprep.subr.mxu0 %v3896
      %4142 = vmatpush1.msra.mxu0 %v3895
      %4143 = vmatprep.subr.mxu0 %v3904
      %4144 = vmatpush1.msra.mxu0 %v3903
      %4145 = vmatprep.subr.mxu0 %v3912
      %4146 = vmatpush1.msra.mxu0 %v3911
      %4147 = vmatprep.subr.mxu0 %v3920
      %4148 = vmatpush1.msra.mxu0 %v3919
      %4149 = vmatprep.subr.mxu0 %v3928
      %4150 = vmatpush1.msra.mxu0 %v3927
      %4151 = vmatprep.subr.mxu0 0.0
      %4152 = vmatpush1.msra.mxu0 0.0
      %4153 = vmatprep.subr.mxu0 0.0
      %4154 = vmatpush1.msra.mxu0 0.0
      %4155 = vmatprep.subr.mxu0 0.0
      %4156 = vmatpush1.msra.mxu0 0.0
      %4157 = vmatprep.subr.mxu0 0.0
      %4158 = vmatpush1.msra.mxu0 0.0
      %4159 = vmatprep.subr.mxu0 0.0
      %4160 = vmatpush1.msra.mxu0 0.0
      %4161 = vmatprep.subr.mxu0 0.0
      %4162 = vmatpush1.msra.mxu0 0.0
      %4163 = vmatprep.subr.mxu0 0.0
      %4164 = vmatpush1.msra.mxu0 0.0
      %4165 = vmatprep.mubr.f32.mxu0 %v3942
      %4166 = vmatmul.mubr.f32.gmra.mrb[0].mxu0 %v2353
      %v4167 = vpop.f32.mrb[0].mxu0
      %v4168 = vadd.f32 %v3934, %v4167
      %v4169 = vpop.f32.mrb[0].mxu0
      %v4170 = vadd.f32 %v3934, %v4169
      %4171 = vmatprep.mubr.f32.mxu0 %v3945
      %4172 = vmatmul.mubr.f32.gmra.mrb[0].mxu0 %v2355
      %v4173 = vpop.f32.mrb[0].mxu0
      %v4174 = vadd.f32 %v3939, %v4173
      %v4175 = vpop.f32.mrb[0].mxu0
      %v4176 = vadd.f32 %v3939, %v4175
      %4177 = vdwg.mxu0
      %4178 = vmatprep.subr.mxu0 %v3738
      %4179 = vmatpush1.msra.mxu0 %v3737
      %4180 = vmatprep.subr.mxu0 %v3746
      %4181 = vmatpush1.msra.mxu0 %v3745
      %4182 = vmatprep.subr.mxu0 %v3754
      %4183 = vmatpush1.msra.mxu0 %v3753
      %4184 = vmatprep.subr.mxu0 %v3762
      %4185 = vmatpush1.msra.mxu0 %v3761
      %4186 = vmatprep.subr.mxu0 %v3770
      %4187 = vmatpush1.msra.mxu0 %v3769
      %4188 = vmatprep.subr.mxu0 %v3778
      %4189 = vmatpush1.msra.mxu0 %v3777
      %4190 = vmatprep.subr.mxu0 %v3786
      %4191 = vmatpush1.msra.mxu0 %v3785
      %4192 = vmatprep.subr.mxu0 %v3794
      %4193 = vmatpush1.msra.mxu0 %v3793
      %4194 = vmatprep.subr.mxu0 %v3802
      %4195 = vmatpush1.msra.mxu0 %v3801
      %4196 = vmatprep.subr.mxu0 %v3810
      %4197 = vmatpush1.msra.mxu0 %v3809
      %4198 = vmatprep.subr.mxu0 %v3818
      %4199 = vmatpush1.msra.mxu0 %v3817
      %4200 = vmatprep.subr.mxu0 %v3826
      %4201 = vmatpush1.msra.mxu0 %v3825
      %4202 = vmatprep.subr.mxu0 %v3834
      %4203 = vmatpush1.msra.mxu0 %v3833
      %4204 = vmatprep.subr.mxu0 %v3842
      %4205 = vmatpush1.msra.mxu0 %v3841
      %4206 = vmatprep.subr.mxu0 %v3850
      %4207 = vmatpush1.msra.mxu0 %v3849
      %4208 = vmatprep.subr.mxu0 %v3858
      %4209 = vmatpush1.msra.mxu0 %v3857
      %4210 = vmatprep.subr.mxu0 %v3866
      %4211 = vmatpush1.msra.mxu0 %v3865
      %4212 = vmatprep.subr.mxu0 %v3874
      %4213 = vmatpush1.msra.mxu0 %v3873
      %4214 = vmatprep.subr.mxu0 %v3882
      %4215 = vmatpush1.msra.mxu0 %v3881
      %4216 = vmatprep.subr.mxu0 %v3890
      %4217 = vmatpush1.msra.mxu0 %v3889
      %4218 = vmatprep.subr.mxu0 %v3898
      %4219 = vmatpush1.msra.mxu0 %v3897
      %4220 = vmatprep.subr.mxu0 %v3906
      %4221 = vmatpush1.msra.mxu0 %v3905
      %4222 = vmatprep.subr.mxu0 %v3914
      %4223 = vmatpush1.msra.mxu0 %v3913
      %4224 = vmatprep.subr.mxu0 %v3922
      %4225 = vmatpush1.msra.mxu0 %v3921
      %4226 = vmatprep.subr.mxu0 %v3930
      %4227 = vmatpush1.msra.mxu0 %v3929
      %4228 = vmatprep.subr.mxu0 0.0
      %4229 = vmatpush1.msra.mxu0 0.0
      %4230 = vmatprep.subr.mxu0 0.0
      %4231 = vmatpush1.msra.mxu0 0.0
      %4232 = vmatprep.subr.mxu0 0.0
      %4233 = vmatpush1.msra.mxu0 0.0
      %4234 = vmatprep.subr.mxu0 0.0
      %4235 = vmatpush1.msra.mxu0 0.0
      %4236 = vmatprep.subr.mxu0 0.0
      %4237 = vmatpush1.msra.mxu0 0.0
      %4238 = vmatprep.subr.mxu0 0.0
      %4239 = vmatpush1.msra.mxu0 0.0
      %4240 = vmatprep.subr.mxu0 0.0
      %4241 = vmatpush1.msra.mxu0 0.0
      %4242 = vmatprep.mubr.f32.mxu0 %v3942
      %4243 = vmatmul.mubr.f32.gmra.mrb[0].mxu0 %v2353
      %v4244 = vpop.f32.mrb[0].mxu0
      %v4245 = vadd.f32 %v3934, %v4244
      %v4246 = vpop.f32.mrb[0].mxu0
      %v4247 = vadd.f32 %v3934, %v4246
      %4248 = vmatprep.mubr.f32.mxu0 %v3945
      %4249 = vmatmul.mubr.f32.gmra.mrb[0].mxu0 %v2355
      %v4250 = vpop.f32.mrb[0].mxu0
      %v4251 = vadd.f32 %v3939, %v4250
      %v4252 = vpop.f32.mrb[0].mxu0
      %v4253 = vadd.f32 %v3939, %v4252
      %4254 = vdwg.mxu0
      %v4255 = vmax.f32 %v4014, 0.0
      %v4256 = vmax.f32 %v4016, 0.0
      %v4257 = vmax.f32 %v4091, 0.0
      %v4258 = vmax.f32 %v4093, 0.0
      %v4259 = vmax.f32 %v4168, 0.0
      %v4260 = vmax.f32 %v4170, 0.0
      %v4261 = vmax.f32 %v4245, 0.0
      %v4262 = vmax.f32 %v4247, 0.0
      %v4263 = vmax.f32 %v4020, 0.0
      %v4264 = vmax.f32 %v4022, 0.0
      %v4265 = vmax.f32 %v4097, 0.0
      %v4266 = vmax.f32 %v4099, 0.0
      %v4267 = vmax.f32 %v4174, 0.0
      %v4268 = vmax.f32 %v4176, 0.0
      %v4269 = vmax.f32 %v4251, 0.0
      %v4270 = vmax.f32 %v4253, 0.0
      %4271 = vst [vmem:[#allocation5] sm:$0xff] %v4255
      %4272 = vst [vmem:[#allocation5 + $0x8] sm:$0xff] %v4256
      %4273 = vst [vmem:[#allocation5 + $0x10] sm:$0xff] %v4257
      %4274 = vst [vmem:[#allocation5 + $0x18] sm:$0xff] %v4258
      %4275 = vst [vmem:[#allocation5 + $0x20] sm:$0xff] %v4259
      %4276 = vst [vmem:[#allocation5 + $0x28] sm:$0xff] %v4260
      %4277 = vst [vmem:[#allocation5 + $0x30] sm:$0xff] %v4261
      %4278 = vst [vmem:[#allocation5 + $0x38] sm:$0xff] %v4262
      %4279 = vst [vmem:[#allocation5 + $0x58] sm:$0xff] %v4263
      %4280 = vst [vmem:[#allocation5 + $0x60] sm:$0xff] %v4264
      %4281 = vst [vmem:[#allocation5 + $0x68] sm:$0xff] %v4265
      %4282 = vst [vmem:[#allocation5 + $0x70] sm:$0xff] %v4266
      %4283 = vst [vmem:[#allocation5 + $0x78] sm:$0xff] %v4267
      %4284 = vst [vmem:[#allocation5 + $0x80] sm:$0xff] %v4268
      %4285 = vst [vmem:[#allocation5 + $0x88] sm:$0xff] %v4269
      %4286 = vst [vmem:[#allocation5 + $0x90] sm:$0xff] %v4270
      %v4287 = vld [vmem:[#allocation5] sm:$0xff]
      %v4288 = vld [vmem:[#allocation5 + $0x8] sm:$0xff]
      %v4289 = vld [vmem:[#allocation5 + $0x10] sm:$0xff]
      %v4290 = vld [vmem:[#allocation5 + $0x18] sm:$0xff]
      %v4291 = vld [vmem:[#allocation5 + $0x20] sm:$0xff]
      %v4292 = vld [vmem:[#allocation5 + $0x28] sm:$0xff]
      %v4293 = vld [vmem:[#allocation5 + $0x30] sm:$0xff]
      %v4294 = vld [vmem:[#allocation5 + $0x38] sm:$0xff]
      %v4295 = vld [vmem:[#allocation5 + $0x58] sm:$0xff]
      %v4296 = vld [vmem:[#allocation5 + $0x60] sm:$0xff]
      %v4297 = vld [vmem:[#allocation5 + $0x68] sm:$0xff]
      %v4298 = vld [vmem:[#allocation5 + $0x70] sm:$0xff]
      %v4299 = vld [vmem:[#allocation5 + $0x78] sm:$0xff]
      %v4300 = vld [vmem:[#allocation5 + $0x80] sm:$0xff]
      %v4301 = vld [vmem:[#allocation5 + $0x88] sm:$0xff]
      %v4302 = vld [vmem:[#allocation5 + $0x90] sm:$0xff]
      %v4303 = vld [vmem:[#allocation5 + $0x40] sm:$0xff]
      %v4304 = vld [vmem:[#allocation5 + $0x98] sm:$0xff]
      %4323 = vrot.lane.b32.xlu0 %v4287, 126
      %v4324 = vpop.permute.xlu0 %4323
      %4325 = vrot.lane.b32.xlu0 %v4288, 126
      %v4326 = vpop.permute.xlu0 %4325
      %4327 = vrot.lane.b32.xlu0 %v4289, 126
      %v4328 = vpop.permute.xlu0 %4327
      %4329 = vrot.lane.b32.xlu0 %v4290, 126
      %v4330 = vpop.permute.xlu0 %4329
      %4331 = vrot.lane.b32.xlu0 %v4291, 126
      %v4332 = vpop.permute.xlu0 %4331
      %4333 = vrot.lane.b32.xlu0 %v4292, 126
      %v4334 = vpop.permute.xlu0 %4333
      %4335 = vrot.lane.b32.xlu0 %v4293, 126
      %v4336 = vpop.permute.xlu0 %4335
      %4337 = vrot.lane.b32.xlu0 %v4294, 126
      %v4338 = vpop.permute.xlu0 %4337
      %4339 = vrot.lane.b32.xlu0 %v4303, 126
      %v4340 = vpop.permute.xlu0 %4339
      %4341 = vrot.lane.b32.xlu0 %v4295, 126
      %v4342 = vpop.permute.xlu0 %4341
      %4343 = vrot.lane.b32.xlu0 %v4296, 126
      %v4344 = vpop.permute.xlu0 %4343
      %4345 = vrot.lane.b32.xlu0 %v4297, 126
      %v4346 = vpop.permute.xlu0 %4345
      %4347 = vrot.lane.b32.xlu0 %v4298, 126
      %v4348 = vpop.permute.xlu0 %4347
      %4349 = vrot.lane.b32.xlu0 %v4299, 126
      %v4350 = vpop.permute.xlu0 %4349
      %4351 = vrot.lane.b32.xlu0 %v4300, 126
      %v4352 = vpop.permute.xlu0 %4351
      %4353 = vrot.lane.b32.xlu0 %v4301, 126
      %v4354 = vpop.permute.xlu0 %4353
      %4355 = vrot.lane.b32.xlu0 %v4302, 126
      %v4356 = vpop.permute.xlu0 %4355
      %4357 = vrot.lane.b32.xlu0 %v4304, 126
      %v4358 = vpop.permute.xlu0 %4357
      %v4359 = vsel %vm374, %v4324, %v4326
      %v4360 = vsel %vm374, %v4326, %v4328
      %v4361 = vsel %vm374, %v4328, %v4330
      %v4362 = vsel %vm374, %v4330, %v4332
      %v4363 = vsel %vm374, %v4332, %v4334
      %v4364 = vsel %vm374, %v4334, %v4336
      %v4365 = vsel %vm374, %v4336, %v4338
      %v4366 = vsel %vm374, %v4338, %v4340
      %v4367 = vsel %vm374, %v4342, %v4344
      %v4368 = vsel %vm374, %v4344, %v4346
      %v4369 = vsel %vm374, %v4346, %v4348
      %v4370 = vsel %vm374, %v4348, %v4350
      %v4371 = vsel %vm374, %v4350, %v4352
      %v4372 = vsel %vm374, %v4352, %v4354
      %v4373 = vsel %vm374, %v4354, %v4356
      %v4374 = vsel %vm374, %v4356, %v4358
      %v4391 = vmax.f32 %v4287, %v4359
      %v4392 = vmax.f32 %v4288, %v4360
      %v4393 = vmax.f32 %v4289, %v4361
      %v4394 = vmax.f32 %v4290, %v4362
      %v4395 = vmax.f32 %v4291, %v4363
      %v4396 = vmax.f32 %v4292, %v4364
      %v4397 = vmax.f32 %v4293, %v4365
      %v4398 = vmax.f32 %v4294, %v4366
      %v4399 = vmax.f32 %v4295, %v4367
      %v4400 = vmax.f32 %v4296, %v4368
      %v4401 = vmax.f32 %v4297, %v4369
      %v4402 = vmax.f32 %v4298, %v4370
      %v4403 = vmax.f32 %v4299, %v4371
      %v4404 = vmax.f32 %v4300, %v4372
      %v4405 = vmax.f32 %v4301, %v4373
      %v4406 = vmax.f32 %v4302, %v4374
      %4407 = vrot.lane.b32.xlu0 %v4287, 64
      %v4408 = vpop.permute.xlu0 %4407
      %4409 = vrot.lane.b32.xlu0 %v4288, 64
      %v4410 = vpop.permute.xlu0 %4409
      %4411 = vrot.lane.b32.xlu0 %v4289, 64
      %v4412 = vpop.permute.xlu0 %4411
      %4413 = vrot.lane.b32.xlu0 %v4290, 64
      %v4414 = vpop.permute.xlu0 %4413
      %4415 = vrot.lane.b32.xlu0 %v4291, 64
      %v4416 = vpop.permute.xlu0 %4415
      %4417 = vrot.lane.b32.xlu0 %v4292, 64
      %v4418 = vpop.permute.xlu0 %4417
      %4419 = vrot.lane.b32.xlu0 %v4293, 64
      %v4420 = vpop.permute.xlu0 %4419
      %4421 = vrot.lane.b32.xlu0 %v4294, 64
      %v4422 = vpop.permute.xlu0 %4421
      %4423 = vrot.lane.b32.xlu0 %v4303, 64
      %v4424 = vpop.permute.xlu0 %4423
      %4425 = vrot.lane.b32.xlu0 %v4295, 64
      %v4426 = vpop.permute.xlu0 %4425
      %4427 = vrot.lane.b32.xlu0 %v4296, 64
      %v4428 = vpop.permute.xlu0 %4427
      %4429 = vrot.lane.b32.xlu0 %v4297, 64
      %v4430 = vpop.permute.xlu0 %4429
      %4431 = vrot.lane.b32.xlu0 %v4298, 64
      %v4432 = vpop.permute.xlu0 %4431
      %4433 = vrot.lane.b32.xlu0 %v4299, 64
      %v4434 = vpop.permute.xlu0 %4433
      %4435 = vrot.lane.b32.xlu0 %v4300, 64
      %v4436 = vpop.permute.xlu0 %4435
      %4437 = vrot.lane.b32.xlu0 %v4301, 64
      %v4438 = vpop.permute.xlu0 %4437
      %4439 = vrot.lane.b32.xlu0 %v4302, 64
      %v4440 = vpop.permute.xlu0 %4439
      %4441 = vrot.lane.b32.xlu0 %v4304, 64
      %v4442 = vpop.permute.xlu0 %4441
      %v4443 = vsel %vm862, %v4408, %v4410
      %v4444 = vsel %vm862, %v4410, %v4412
      %v4445 = vsel %vm862, %v4412, %v4414
      %v4446 = vsel %vm862, %v4414, %v4416
      %v4447 = vsel %vm862, %v4416, %v4418
      %v4448 = vsel %vm862, %v4418, %v4420
      %v4449 = vsel %vm862, %v4420, %v4422
      %v4450 = vsel %vm862, %v4422, %v4424
      %v4451 = vsel %vm862, %v4426, %v4428
      %v4452 = vsel %vm862, %v4428, %v4430
      %v4453 = vsel %vm862, %v4430, %v4432
      %v4454 = vsel %vm862, %v4432, %v4434
      %v4455 = vsel %vm862, %v4434, %v4436
      %v4456 = vsel %vm862, %v4436, %v4438
      %v4457 = vsel %vm862, %v4438, %v4440
      %v4458 = vsel %vm862, %v4440, %v4442
      %v4475 = vmax.f32 %v4391, %v4443
      %v4476 = vmax.f32 %v4392, %v4444
      %v4477 = vmax.f32 %v4393, %v4445
      %v4478 = vmax.f32 %v4394, %v4446
      %v4479 = vmax.f32 %v4395, %v4447
      %v4480 = vmax.f32 %v4396, %v4448
      %v4481 = vmax.f32 %v4397, %v4449
      %v4482 = vmax.f32 %v4398, %v4450
      %v4483 = vmax.f32 %v4399, %v4451
      %v4484 = vmax.f32 %v4400, %v4452
      %v4485 = vmax.f32 %v4401, %v4453
      %v4486 = vmax.f32 %v4402, %v4454
      %v4487 = vmax.f32 %v4403, %v4455
      %v4488 = vmax.f32 %v4404, %v4456
      %v4489 = vmax.f32 %v4405, %v4457
      %v4490 = vmax.f32 %v4406, %v4458
      %4491 = vrot.lane.b32.xlu0 %v4287, 62
      %v4492 = vpop.permute.xlu0 %4491
      %4493 = vrot.lane.b32.xlu0 %v4288, 62
      %v4494 = vpop.permute.xlu0 %4493
      %4495 = vrot.lane.b32.xlu0 %v4289, 62
      %v4496 = vpop.permute.xlu0 %4495
      %4497 = vrot.lane.b32.xlu0 %v4290, 62
      %v4498 = vpop.permute.xlu0 %4497
      %4499 = vrot.lane.b32.xlu0 %v4291, 62
      %v4500 = vpop.permute.xlu0 %4499
      %4501 = vrot.lane.b32.xlu0 %v4292, 62
      %v4502 = vpop.permute.xlu0 %4501
      %4503 = vrot.lane.b32.xlu0 %v4293, 62
      %v4504 = vpop.permute.xlu0 %4503
      %4505 = vrot.lane.b32.xlu0 %v4294, 62
      %v4506 = vpop.permute.xlu0 %4505
      %4507 = vrot.lane.b32.xlu0 %v4303, 62
      %v4508 = vpop.permute.xlu0 %4507
      %4509 = vrot.lane.b32.xlu0 %v4295, 62
      %v4510 = vpop.permute.xlu0 %4509
      %4511 = vrot.lane.b32.xlu0 %v4296, 62
      %v4512 = vpop.permute.xlu0 %4511
      %4513 = vrot.lane.b32.xlu0 %v4297, 62
      %v4514 = vpop.permute.xlu0 %4513
      %4515 = vrot.lane.b32.xlu0 %v4298, 62
      %v4516 = vpop.permute.xlu0 %4515
      %4517 = vrot.lane.b32.xlu0 %v4299, 62
      %v4518 = vpop.permute.xlu0 %4517
      %4519 = vrot.lane.b32.xlu0 %v4300, 62
      %v4520 = vpop.permute.xlu0 %4519
      %4521 = vrot.lane.b32.xlu0 %v4301, 62
      %v4522 = vpop.permute.xlu0 %4521
      %4523 = vrot.lane.b32.xlu0 %v4302, 62
      %v4524 = vpop.permute.xlu0 %4523
      %4525 = vrot.lane.b32.xlu0 %v4304, 62
      %v4526 = vpop.permute.xlu0 %4525
      %v4527 = vsel %vm984, %v4492, %v4494
      %v4528 = vsel %vm984, %v4494, %v4496
      %v4529 = vsel %vm984, %v4496, %v4498
      %v4530 = vsel %vm984, %v4498, %v4500
      %v4531 = vsel %vm984, %v4500, %v4502
      %v4532 = vsel %vm984, %v4502, %v4504
      %v4533 = vsel %vm984, %v4504, %v4506
      %v4534 = vsel %vm984, %v4506, %v4508
      %v4535 = vsel %vm984, %v4510, %v4512
      %v4536 = vsel %vm984, %v4512, %v4514
      %v4537 = vsel %vm984, %v4514, %v4516
      %v4538 = vsel %vm984, %v4516, %v4518
      %v4539 = vsel %vm984, %v4518, %v4520
      %v4540 = vsel %vm984, %v4520, %v4522
      %v4541 = vsel %vm984, %v4522, %v4524
      %v4542 = vsel %vm984, %v4524, %v4526
      %v4559 = vmax.f32 %v4475, %v4527
      %v4560 = vmax.f32 %v4476, %v4528
      %v4561 = vmax.f32 %v4477, %v4529
      %v4562 = vmax.f32 %v4478, %v4530
      %v4563 = vmax.f32 %v4479, %v4531
      %v4564 = vmax.f32 %v4480, %v4532
      %v4565 = vmax.f32 %v4481, %v4533
      %v4566 = vmax.f32 %v4482, %v4534
      %v4567 = vmax.f32 %v4483, %v4535
      %v4568 = vmax.f32 %v4484, %v4536
      %v4569 = vmax.f32 %v4485, %v4537
      %v4570 = vmax.f32 %v4486, %v4538
      %v4571 = vmax.f32 %v4487, %v4539
      %v4572 = vmax.f32 %v4488, %v4540
      %v4573 = vmax.f32 %v4489, %v4541
      %v4574 = vmax.f32 %v4490, %v4542
      %4575 = vst [vmem:[#allocation6] sm:$0xff] %v4559
      %4576 = vst [vmem:[#allocation6 + $0x8] sm:$0xff] %v4560
      %4577 = vst [vmem:[#allocation6 + $0x10] sm:$0xff] %v4561
      %4578 = vst [vmem:[#allocation6 + $0x18] sm:$0xff] %v4562
      %4579 = vst [vmem:[#allocation6 + $0x20] sm:$0xff] %v4563
      %4580 = vst [vmem:[#allocation6 + $0x28] sm:$0xff] %v4564
      %4581 = vst [vmem:[#allocation6 + $0x30] sm:$0xff] %v4565
      %4582 = vst [vmem:[#allocation6 + $0x38] sm:$0xff] %v4566
      %4583 = vst [vmem:[#allocation6 + $0x40] sm:$0xff] %v4567
      %4584 = vst [vmem:[#allocation6 + $0x48] sm:$0xff] %v4568
      %4585 = vst [vmem:[#allocation6 + $0x50] sm:$0xff] %v4569
      %4586 = vst [vmem:[#allocation6 + $0x58] sm:$0xff] %v4570
      %4587 = vst [vmem:[#allocation6 + $0x60] sm:$0xff] %v4571
      %4588 = vst [vmem:[#allocation6 + $0x68] sm:$0xff] %v4572
      %4589 = vst [vmem:[#allocation6 + $0x70] sm:$0xff] %v4573
      %4590 = vst [vmem:[#allocation6 + $0x78] sm:$0xff] %v4574
      %v4591 = vld [vmem:[#allocation6] sm:$0xff]
      %v4592 = vld [vmem:[#allocation6 + $0x40] sm:$0xff]
      %vm4593 = vcmask 7168
      %4594 = vst.msk [vmem:[#allocation8] sm:$0xff] %vm4593, %v4591
      %4595 = vst.msk [vmem:[#allocation8 + $0x8] sm:$0xff] %vm4593, %v4592
      %v4596 = vld [vmem:[#allocation6] sm:$0xff]
      %v4597 = vld [vmem:[#allocation6 + $0x40] sm:$0xff]
      %4600 = vrot.lane.b32.xlu0 %v4596, 124
      %v4601 = vpop.permute.xlu0 %4600
      %4602 = vrot.lane.b32.xlu0 %v4597, 124
      %v4603 = vpop.permute.xlu0 %4602
      %4606 = vst.msk [vmem:[#allocation8 + $0x10] sm:$0xff] %vm4593, %v4601
      %4607 = vst.msk [vmem:[#allocation8 + $0x18] sm:$0xff] %vm4593, %v4603
      %v4608 = vld [vmem:[#allocation6] sm:$0xff]
      %v4609 = vld [vmem:[#allocation6 + $0x40] sm:$0xff]
      %4612 = vrot.lane.b32.xlu0 %v4608, 120
      %v4613 = vpop.permute.xlu0 %4612
      %4614 = vrot.lane.b32.xlu0 %v4609, 120
      %v4615 = vpop.permute.xlu0 %4614
      %4618 = vst.msk [vmem:[#allocation8 + $0x20] sm:$0xff] %vm4593, %v4613
      %4619 = vst.msk [vmem:[#allocation8 + $0x28] sm:$0xff] %vm4593, %v4615
      %v4620 = vld [vmem:[#allocation6] sm:$0xff]
      %v4621 = vld [vmem:[#allocation6 + $0x40] sm:$0xff]
      %4624 = vrot.lane.b32.xlu0 %v4620, 116
      %v4625 = vpop.permute.xlu0 %4624
      %4626 = vrot.lane.b32.xlu0 %v4621, 116
      %v4627 = vpop.permute.xlu0 %4626
      %4630 = vst.msk [vmem:[#allocation8 + $0x30] sm:$0xff] %vm4593, %v4625
      %4631 = vst.msk [vmem:[#allocation8 + $0x38] sm:$0xff] %vm4593, %v4627
      %v4632 = vld [vmem:[#allocation6] sm:$0xff]
      %v4633 = vld [vmem:[#allocation6 + $0x40] sm:$0xff]
      %4636 = vrot.lane.b32.xlu0 %v4632, 112
      %v4637 = vpop.permute.xlu0 %4636
      %4638 = vrot.lane.b32.xlu0 %v4633, 112
      %v4639 = vpop.permute.xlu0 %4638
      %4642 = vst.msk [vmem:[#allocation8 + $0x40] sm:$0xff] %vm4593, %v4637
      %4643 = vst.msk [vmem:[#allocation8 + $0x48] sm:$0xff] %vm4593, %v4639
      %v4644 = vld [vmem:[#allocation6 + $0x8] sm:$0xff]
      %v4645 = vld [vmem:[#allocation6 + $0x48] sm:$0xff]
      %4646 = vst.msk [vmem:[#allocation8 + $0x50] sm:$0xff] %vm4593, %v4644
      %4647 = vst.msk [vmem:[#allocation8 + $0x58] sm:$0xff] %vm4593, %v4645
      %v4648 = vld [vmem:[#allocation6 + $0x8] sm:$0xff]
      %v4649 = vld [vmem:[#allocation6 + $0x48] sm:$0xff]
      %4652 = vrot.lane.b32.xlu0 %v4648, 124
      %v4653 = vpop.permute.xlu0 %4652
      %4654 = vrot.lane.b32.xlu0 %v4649, 124
      %v4655 = vpop.permute.xlu0 %4654
      %4658 = vst.msk [vmem:[#allocation8 + $0x60] sm:$0xff] %vm4593, %v4653
      %4659 = vst.msk [vmem:[#allocation8 + $0x68] sm:$0xff] %vm4593, %v4655
      %v4660 = vld [vmem:[#allocation6 + $0x8] sm:$0xff]
      %v4661 = vld [vmem:[#allocation6 + $0x48] sm:$0xff]
      %4664 = vrot.lane.b32.xlu0 %v4660, 120
      %v4665 = vpop.permute.xlu0 %4664
      %4666 = vrot.lane.b32.xlu0 %v4661, 120
      %v4667 = vpop.permute.xlu0 %4666
      %4670 = vst.msk [vmem:[#allocation8 + $0x70] sm:$0xff] %vm4593, %v4665
      %4671 = vst.msk [vmem:[#allocation8 + $0x78] sm:$0xff] %vm4593, %v4667
      %v4672 = vld [vmem:[#allocation6 + $0x8] sm:$0xff]
      %v4673 = vld [vmem:[#allocation6 + $0x48] sm:$0xff]
      %4676 = vrot.lane.b32.xlu0 %v4672, 116
      %v4677 = vpop.permute.xlu0 %4676
      %4678 = vrot.lane.b32.xlu0 %v4673, 116
      %v4679 = vpop.permute.xlu0 %4678
      %4682 = vst.msk [vmem:[#allocation8 + $0x80] sm:$0xff] %vm4593, %v4677
      %4683 = vst.msk [vmem:[#allocation8 + $0x88] sm:$0xff] %vm4593, %v4679
      %v4684 = vld [vmem:[#allocation6 + $0x8] sm:$0xff]
      %v4685 = vld [vmem:[#allocation6 + $0x48] sm:$0xff]
      %4688 = vrot.lane.b32.xlu0 %v4684, 112
      %v4689 = vpop.permute.xlu0 %4688
      %4690 = vrot.lane.b32.xlu0 %v4685, 112
      %v4691 = vpop.permute.xlu0 %4690
      %4694 = vst.msk [vmem:[#allocation8 + $0x90] sm:$0xff] %vm4593, %v4689
      %4695 = vst.msk [vmem:[#allocation8 + $0x98] sm:$0xff] %vm4593, %v4691
      %v4696 = vld [vmem:[#allocation6 + $0x10] sm:$0xff]
      %v4697 = vld [vmem:[#allocation6 + $0x50] sm:$0xff]
      %4698 = vst.msk [vmem:[#allocation8 + $0xa0] sm:$0xff] %vm4593, %v4696
      %4699 = vst.msk [vmem:[#allocation8 + $0xa8] sm:$0xff] %vm4593, %v4697
      %v4700 = vld [vmem:[#allocation6 + $0x10] sm:$0xff]
      %v4701 = vld [vmem:[#allocation6 + $0x50] sm:$0xff]
      %4704 = vrot.lane.b32.xlu0 %v4700, 124
      %v4705 = vpop.permute.xlu0 %4704
      %4706 = vrot.lane.b32.xlu0 %v4701, 124
      %v4707 = vpop.permute.xlu0 %4706
      %4710 = vst.msk [vmem:[#allocation8 + $0xb0] sm:$0xff] %vm4593, %v4705
      %4711 = vst.msk [vmem:[#allocation8 + $0xb8] sm:$0xff] %vm4593, %v4707
      %v4712 = vld [vmem:[#allocation6 + $0x10] sm:$0xff]
      %v4713 = vld [vmem:[#allocation6 + $0x50] sm:$0xff]
      %4716 = vrot.lane.b32.xlu0 %v4712, 120
      %v4717 = vpop.permute.xlu0 %4716
      %4718 = vrot.lane.b32.xlu0 %v4713, 120
      %v4719 = vpop.permute.xlu0 %4718
      %4722 = vst.msk [vmem:[#allocation8 + $0xc0] sm:$0xff] %vm4593, %v4717
      %4723 = vst.msk [vmem:[#allocation8 + $0xc8] sm:$0xff] %vm4593, %v4719
      %v4724 = vld [vmem:[#allocation6 + $0x10] sm:$0xff]
      %v4725 = vld [vmem:[#allocation6 + $0x50] sm:$0xff]
      %4728 = vrot.lane.b32.xlu0 %v4724, 116
      %v4729 = vpop.permute.xlu0 %4728
      %4730 = vrot.lane.b32.xlu0 %v4725, 116
      %v4731 = vpop.permute.xlu0 %4730
      %4734 = vst.msk [vmem:[#allocation8 + $0xd0] sm:$0xff] %vm4593, %v4729
      %4735 = vst.msk [vmem:[#allocation8 + $0xd8] sm:$0xff] %vm4593, %v4731
      %v4736 = vld [vmem:[#allocation6 + $0x10] sm:$0xff]
      %v4737 = vld [vmem:[#allocation6 + $0x50] sm:$0xff]
      %4740 = vrot.lane.b32.xlu0 %v4736, 112
      %v4741 = vpop.permute.xlu0 %4740
      %4742 = vrot.lane.b32.xlu0 %v4737, 112
      %v4743 = vpop.permute.xlu0 %4742
      %4746 = vst.msk [vmem:[#allocation8 + $0xe0] sm:$0xff] %vm4593, %v4741
      %4747 = vst.msk [vmem:[#allocation8 + $0xe8] sm:$0xff] %vm4593, %v4743
      %v4748 = vld [vmem:[#allocation6 + $0x18] sm:$0xff]
      %v4749 = vld [vmem:[#allocation6 + $0x58] sm:$0xff]
      %4750 = vst.msk [vmem:[#allocation8 + $0xf0] sm:$0xff] %vm4593, %v4748
      %4751 = vst.msk [vmem:[#allocation8 + $0xf8] sm:$0xff] %vm4593, %v4749
      %v4752 = vld [vmem:[#allocation6 + $0x18] sm:$0xff]
      %v4753 = vld [vmem:[#allocation6 + $0x58] sm:$0xff]
      %4756 = vrot.lane.b32.xlu0 %v4752, 124
      %v4757 = vpop.permute.xlu0 %4756
      %4758 = vrot.lane.b32.xlu0 %v4753, 124
      %v4759 = vpop.permute.xlu0 %4758
      %4762 = vst.msk [vmem:[#allocation8 + $0x100] sm:$0xff] %vm4593, %v4757
      %4763 = vst.msk [vmem:[#allocation8 + $0x108] sm:$0xff] %vm4593, %v4759
      %v4764 = vld [vmem:[#allocation6 + $0x18] sm:$0xff]
      %v4765 = vld [vmem:[#allocation6 + $0x58] sm:$0xff]
      %4768 = vrot.lane.b32.xlu0 %v4764, 120
      %v4769 = vpop.permute.xlu0 %4768
      %4770 = vrot.lane.b32.xlu0 %v4765, 120
      %v4771 = vpop.permute.xlu0 %4770
      %4774 = vst.msk [vmem:[#allocation8 + $0x110] sm:$0xff] %vm4593, %v4769
      %4775 = vst.msk [vmem:[#allocation8 + $0x118] sm:$0xff] %vm4593, %v4771
      %v4776 = vld [vmem:[#allocation6 + $0x18] sm:$0xff]
      %v4777 = vld [vmem:[#allocation6 + $0x58] sm:$0xff]
      %4780 = vrot.lane.b32.xlu0 %v4776, 116
      %v4781 = vpop.permute.xlu0 %4780
      %4782 = vrot.lane.b32.xlu0 %v4777, 116
      %v4783 = vpop.permute.xlu0 %4782
      %4786 = vst.msk [vmem:[#allocation8 + $0x120] sm:$0xff] %vm4593, %v4781
      %4787 = vst.msk [vmem:[#allocation8 + $0x128] sm:$0xff] %vm4593, %v4783
      %v4788 = vld [vmem:[#allocation6 + $0x18] sm:$0xff]
      %v4789 = vld [vmem:[#allocation6 + $0x58] sm:$0xff]
      %4792 = vrot.lane.b32.xlu0 %v4788, 112
      %v4793 = vpop.permute.xlu0 %4792
      %4794 = vrot.lane.b32.xlu0 %v4789, 112
      %v4795 = vpop.permute.xlu0 %4794
      %4798 = vst.msk [vmem:[#allocation8 + $0x130] sm:$0xff] %vm4593, %v4793
      %4799 = vst.msk [vmem:[#allocation8 + $0x138] sm:$0xff] %vm4593, %v4795
      %v4800 = vld [vmem:[#allocation6 + $0x20] sm:$0xff]
      %v4801 = vld [vmem:[#allocation6 + $0x60] sm:$0xff]
      %4802 = vst.msk [vmem:[#allocation8 + $0x140] sm:$0xff] %vm4593, %v4800
      %4803 = vst.msk [vmem:[#allocation8 + $0x148] sm:$0xff] %vm4593, %v4801
      %v4804 = vld [vmem:[#allocation6 + $0x20] sm:$0xff]
      %v4805 = vld [vmem:[#allocation6 + $0x60] sm:$0xff]
      %4808 = vrot.lane.b32.xlu0 %v4804, 124
      %v4809 = vpop.permute.xlu0 %4808
      %4810 = vrot.lane.b32.xlu0 %v4805, 124
      %v4811 = vpop.permute.xlu0 %4810
      %4814 = vst.msk [vmem:[#allocation8 + $0x150] sm:$0xff] %vm4593, %v4809
      %4815 = vst.msk [vmem:[#allocation8 + $0x158] sm:$0xff] %vm4593, %v4811
      %v4816 = vld [vmem:[#allocation6 + $0x20] sm:$0xff]
      %v4817 = vld [vmem:[#allocation6 + $0x60] sm:$0xff]
      %4820 = vrot.lane.b32.xlu0 %v4816, 120
      %v4821 = vpop.permute.xlu0 %4820
      %4822 = vrot.lane.b32.xlu0 %v4817, 120
      %v4823 = vpop.permute.xlu0 %4822
      %4826 = vst.msk [vmem:[#allocation8 + $0x160] sm:$0xff] %vm4593, %v4821
      %4827 = vst.msk [vmem:[#allocation8 + $0x168] sm:$0xff] %vm4593, %v4823
      %v4828 = vld [vmem:[#allocation6 + $0x20] sm:$0xff]
      %v4829 = vld [vmem:[#allocation6 + $0x60] sm:$0xff]
      %4832 = vrot.lane.b32.xlu0 %v4828, 116
      %v4833 = vpop.permute.xlu0 %4832
      %4834 = vrot.lane.b32.xlu0 %v4829, 116
      %v4835 = vpop.permute.xlu0 %4834
      %4838 = vst.msk [vmem:[#allocation8 + $0x170] sm:$0xff] %vm4593, %v4833
      %4839 = vst.msk [vmem:[#allocation8 + $0x178] sm:$0xff] %vm4593, %v4835
      %v4840 = vld [vmem:[#allocation6 + $0x20] sm:$0xff]
      %v4841 = vld [vmem:[#allocation6 + $0x60] sm:$0xff]
      %4844 = vrot.lane.b32.xlu0 %v4840, 112
      %v4845 = vpop.permute.xlu0 %4844
      %4846 = vrot.lane.b32.xlu0 %v4841, 112
      %v4847 = vpop.permute.xlu0 %4846
      %4850 = vst.msk [vmem:[#allocation8 + $0x180] sm:$0xff] %vm4593, %v4845
      %4851 = vst.msk [vmem:[#allocation8 + $0x188] sm:$0xff] %vm4593, %v4847
      %v4852 = vld [vmem:[%s2] sm:$0xff]
      %v4853 = vld [vmem:[%s2 + $0x8] sm:$0xff]
      %v4854 = vld [vmem:[%s2 + $0x10] sm:$0xff]
      %v4855 = vld [vmem:[%s2 + $0x18] sm:$0xff]
      %v4856 = vld [vmem:[%s2 + $0x20] sm:$0xff]
      %v4857 = vld [vmem:[%s2 + $0x28] sm:$0xff]
      %v4858 = vld [vmem:[%s2 + $0x30] sm:$0xff]
      %v4859 = vld [vmem:[%s2 + $0x38] sm:$0xff]
      %v4860 = vld [vmem:[%s2 + $0x40] sm:$0xff]
      %v4861 = vld [vmem:[%s2 + $0x48] sm:$0xff]
      %v4862 = vld [vmem:[%s2 + $0x50] sm:$0xff]
      %v4863 = vld [vmem:[%s2 + $0x58] sm:$0xff]
      %v4864 = vld [vmem:[%s2 + $0x60] sm:$0xff]
      %v4865 = vld [vmem:[%s2 + $0x68] sm:$0xff]
      %v4866 = vld [vmem:[%s2 + $0x70] sm:$0xff]
      %v4867 = vld [vmem:[%s2 + $0x78] sm:$0xff]
      %v4868 = vld [vmem:[%s2 + $0x80] sm:$0xff]
      %v4869 = vld [vmem:[%s2 + $0x88] sm:$0xff]
      %v4870 = vld [vmem:[%s2 + $0x90] sm:$0xff]
      %v4871 = vld [vmem:[%s2 + $0x98] sm:$0xff]
      %v4872 = vld [vmem:[%s2 + $0xa0] sm:$0xff]
      %v4873 = vld [vmem:[%s2 + $0xa8] sm:$0xff]
      %v4874 = vld [vmem:[%s2 + $0xb0] sm:$0xff]
      %v4875 = vld [vmem:[%s2 + $0xb8] sm:$0xff]
      %v4876 = vld [vmem:[%s2 + $0xc0] sm:$0xff]
      %v4877 = vld [vmem:[%s2 + $0xc8] sm:$0xff]
      %v4878 = vld [vmem:[%s2 + $0xd0] sm:$0xff]
      %v4879 = vld [vmem:[%s2 + $0xd8] sm:$0xff]
      %v4880 = vld [vmem:[%s2 + $0xe0] sm:$0xff]
      %v4881 = vld [vmem:[%s2 + $0xe8] sm:$0xff]
      %v4882 = vld [vmem:[%s2 + $0xf0] sm:$0xff]
      %v4883 = vld [vmem:[%s2 + $0xf8] sm:$0xff]
      %v4884 = vld [vmem:[%s2 + $0x100] sm:$0xff]
      %v4885 = vld [vmem:[%s2 + $0x108] sm:$0xff]
      %v4886 = vld [vmem:[%s2 + $0x110] sm:$0xff]
      %v4887 = vld [vmem:[%s2 + $0x118] sm:$0xff]
      %v4888 = vld [vmem:[%s2 + $0x120] sm:$0xff]
      %v4889 = vld [vmem:[%s2 + $0x128] sm:$0xff]
      %v4890 = vld [vmem:[%s2 + $0x130] sm:$0xff]
      %v4891 = vld [vmem:[%s2 + $0x138] sm:$0xff]
      %v4892 = vld [vmem:[%s2 + $0x140] sm:$0xff]
      %v4893 = vld [vmem:[%s2 + $0x148] sm:$0xff]
      %v4894 = vld [vmem:[%s2 + $0x150] sm:$0xff]
      %v4895 = vld [vmem:[%s2 + $0x158] sm:$0xff]
      %v4896 = vld [vmem:[%s2 + $0x160] sm:$0xff]
      %v4897 = vld [vmem:[%s2 + $0x168] sm:$0xff]
      %v4898 = vld [vmem:[%s2 + $0x170] sm:$0xff]
      %v4899 = vld [vmem:[%s2 + $0x178] sm:$0xff]
      %v4900 = vld [vmem:[%s2 + $0x180] sm:$0xff]
      %v4901 = vld [vmem:[%s2 + $0x188] sm:$0xff]
      %v4902 = vld [vmem:[%s2 + $0x190] sm:$0xff]
      %v4903 = vld [vmem:[%s2 + $0x198] sm:$0xff]
      %v4904 = vld [vmem:[%s2 + $0x1a0] sm:$0xff]
      %v4905 = vld [vmem:[%s2 + $0x1a8] sm:$0xff]
      %v4906 = vld [vmem:[%s2 + $0x1b0] sm:$0xff]
      %v4907 = vld [vmem:[%s2 + $0x1b8] sm:$0xff]
      %v4908 = vld [vmem:[%s2 + $0x1c0] sm:$0xff]
      %v4909 = vld [vmem:[%s2 + $0x1c8] sm:$0xff]
      %v4910 = vld [vmem:[%s2 + $0x1d0] sm:$0xff]
      %v4911 = vld [vmem:[%s2 + $0x1d8] sm:$0xff]
      %v4912 = vld [vmem:[#allocation8] sm:$0xff]
      %v4913 = vld [vmem:[#allocation8 + $0x8] sm:$0xff]
      %v4914 = vld [vmem:[#allocation8 + $0x10] sm:$0xff]
      %v4915 = vld [vmem:[#allocation8 + $0x18] sm:$0xff]
      %v4916 = vld [vmem:[#allocation8 + $0x20] sm:$0xff]
      %v4917 = vld [vmem:[#allocation8 + $0x28] sm:$0xff]
      %v4918 = vld [vmem:[#allocation8 + $0x30] sm:$0xff]
      %v4919 = vld [vmem:[#allocation8 + $0x38] sm:$0xff]
      %v4920 = vld [vmem:[#allocation8 + $0x40] sm:$0xff]
      %v4921 = vld [vmem:[#allocation8 + $0x48] sm:$0xff]
      %v4922 = vld [vmem:[#allocation8 + $0x50] sm:$0xff]
      %v4923 = vld [vmem:[#allocation8 + $0x58] sm:$0xff]
      %v4924 = vld [vmem:[#allocation8 + $0x60] sm:$0xff]
      %v4925 = vld [vmem:[#allocation8 + $0x68] sm:$0xff]
      %v4926 = vld [vmem:[#allocation8 + $0x70] sm:$0xff]
      %v4927 = vld [vmem:[#allocation8 + $0x78] sm:$0xff]
      %v4928 = vld [vmem:[#allocation8 + $0x80] sm:$0xff]
      %v4929 = vld [vmem:[#allocation8 + $0x88] sm:$0xff]
      %v4930 = vld [vmem:[#allocation8 + $0x90] sm:$0xff]
      %v4931 = vld [vmem:[#allocation8 + $0x98] sm:$0xff]
      %v4932 = vld [vmem:[#allocation8 + $0xa0] sm:$0xff]
      %v4933 = vld [vmem:[#allocation8 + $0xa8] sm:$0xff]
      %v4934 = vld [vmem:[#allocation8 + $0xb0] sm:$0xff]
      %v4935 = vld [vmem:[#allocation8 + $0xb8] sm:$0xff]
      %v4936 = vld [vmem:[#allocation8 + $0xc0] sm:$0xff]
      %v4937 = vld [vmem:[#allocation8 + $0xc8] sm:$0xff]
      %v4938 = vld [vmem:[#allocation8 + $0xd0] sm:$0xff]
      %v4939 = vld [vmem:[#allocation8 + $0xd8] sm:$0xff]
      %v4940 = vld [vmem:[#allocation8 + $0xe0] sm:$0xff]
      %v4941 = vld [vmem:[#allocation8 + $0xe8] sm:$0xff]
      %v4942 = vld [vmem:[#allocation8 + $0xf0] sm:$0xff]
      %v4943 = vld [vmem:[#allocation8 + $0xf8] sm:$0xff]
      %v4944 = vld [vmem:[#allocation8 + $0x100] sm:$0xff]
      %v4945 = vld [vmem:[#allocation8 + $0x108] sm:$0xff]
      %v4946 = vld [vmem:[#allocation8 + $0x110] sm:$0xff]
      %v4947 = vld [vmem:[#allocation8 + $0x118] sm:$0xff]
      %v4948 = vld [vmem:[#allocation8 + $0x120] sm:$0xff]
      %v4949 = vld [vmem:[#allocation8 + $0x128] sm:$0xff]
      %v4950 = vld [vmem:[#allocation8 + $0x130] sm:$0xff]
      %v4951 = vld [vmem:[#allocation8 + $0x138] sm:$0xff]
      %v4952 = vld [vmem:[#allocation8 + $0x140] sm:$0xff]
      %v4953 = vld [vmem:[#allocation8 + $0x148] sm:$0xff]
      %v4954 = vld [vmem:[#allocation8 + $0x150] sm:$0xff]
      %v4955 = vld [vmem:[#allocation8 + $0x158] sm:$0xff]
      %v4956 = vld [vmem:[#allocation8 + $0x160] sm:$0xff]
      %v4957 = vld [vmem:[#allocation8 + $0x168] sm:$0xff]
      %v4958 = vld [vmem:[#allocation8 + $0x170] sm:$0xff]
      %v4959 = vld [vmem:[#allocation8 + $0x178] sm:$0xff]
      %v4960 = vld [vmem:[#allocation8 + $0x180] sm:$0xff]
      %v4961 = vld [vmem:[#allocation8 + $0x188] sm:$0xff]
      %v4962 = vld [vmem:[%s4 + $0x18] sm:$0xff]
      %v4963 = vld [vmem:[%s4 + $0x20] sm:$0xff]
      %v4964 = vld [vmem:[%s4 + $0x28] sm:$0xff]
      %v4965 = vld [vmem:[%s4 + $0x30] sm:$0xff]
      %v4966 = vld [vmem:[%s4 + $0x38] sm:$0xff]
      %v4967 = vld [vmem:[%s4 + $0x40] sm:$0xff]
      %v4968 = vld [vmem:[%s4 + $0x48] sm:$0xff]
      %v4969 = vld [vmem:[%s4 + $0x50] sm:$0xff]
      %v4970 = vld [vmem:[%s4 + $0x58] sm:$0xff]
      %v4971 = vld [vmem:[%s4 + $0x60] sm:$0xff]
      %v4972 = vld [vmem:[%s4 + $0x68] sm:$0xff]
      %v4973 = vld [vmem:[%s4 + $0x70] sm:$0xff]
      %v4974 = vld [vmem:[%s4 + $0x78] sm:$0xff]
      %v4975 = vld [vmem:[%s4 + $0x80] sm:$0xff]
      %v4976 = vld [vmem:[%s4 + $0x88] sm:$0xff]
      %vm4977 = vcmask 130048
      %v4979 = vsel %vm4977, %v4855, 0
      %v4982 = vsel %vm4977, %v4859, 0
      %v4985 = vsel %vm4977, %v4863, 0
      %v4988 = vsel %vm4977, %v4867, 0
      %v4991 = vsel %vm4977, %v4871, 0
      %v4994 = vsel %vm4977, %v4875, 0
      %v4997 = vsel %vm4977, %v4879, 0
      %v5000 = vsel %vm4977, %v4883, 0
      %v5003 = vsel %vm4977, %v4887, 0
      %v5006 = vsel %vm4977, %v4891, 0
      %v5009 = vsel %vm4977, %v4895, 0
      %v5012 = vsel %vm4977, %v4899, 0
      %v5015 = vsel %vm4977, %v4903, 0
      %v5018 = vsel %vm4977, %v4907, 0
      %v5021 = vsel %vm4977, %v4911, 0
      %5023 = vmatprep.subr.mxu0 0.0
      %5024 = vmatpush1.msra.mxu0 %v4912
      %5025 = vmatprep.subr.mxu0 0.0
      %5026 = vmatpush1.msra.mxu0 %v4913
      %5027 = vmatprep.subr.mxu0 0.0
      %5028 = vmatpush1.msra.mxu0 %v4914
      %5029 = vmatprep.subr.mxu0 0.0
      %5030 = vmatpush1.msra.mxu0 %v4915
      %5031 = vmatprep.subr.mxu0 0.0
      %5032 = vmatpush1.msra.mxu0 %v4916
      %5033 = vmatprep.subr.mxu0 0.0
      %5034 = vmatpush1.msra.mxu0 %v4917
      %5035 = vmatprep.subr.mxu0 0.0
      %5036 = vmatpush1.msra.mxu0 %v4918
      %5037 = vmatprep.subr.mxu0 0.0
      %5038 = vmatpush1.msra.mxu0 %v4919
      %5039 = vmatprep.subr.mxu0 0.0
      %5040 = vmatpush1.msra.mxu0 %v4920
      %5041 = vmatprep.subr.mxu0 0.0
      %5042 = vmatpush1.msra.mxu0 %v4921
      %5043 = vmatprep.subr.mxu0 0.0
      %5044 = vmatpush1.msra.mxu0 %v4922
      %5045 = vmatprep.subr.mxu0 0.0
      %5046 = vmatpush1.msra.mxu0 %v4923
      %5047 = vmatprep.subr.mxu0 0.0
      %5048 = vmatpush1.msra.mxu0 %v4924
      %5049 = vmatprep.subr.mxu0 0.0
      %5050 = vmatpush1.msra.mxu0 %v4925
      %5051 = vmatprep.subr.mxu0 0.0
      %5052 = vmatpush1.msra.mxu0 %v4926
      %5053 = vmatprep.subr.mxu0 0.0
      %5054 = vmatpush1.msra.mxu0 %v4927
      %5055 = vmatprep.subr.mxu0 0.0
      %5056 = vmatpush1.msra.mxu0 %v4928
      %5057 = vmatprep.subr.mxu0 0.0
      %5058 = vmatpush1.msra.mxu0 %v4929
      %5059 = vmatprep.subr.mxu0 0.0
      %5060 = vmatpush1.msra.mxu0 %v4930
      %5061 = vmatprep.subr.mxu0 0.0
      %5062 = vmatpush1.msra.mxu0 %v4931
      %5063 = vmatprep.subr.mxu0 0.0
      %5064 = vmatpush1.msra.mxu0 %v4932
      %5065 = vmatprep.subr.mxu0 0.0
      %5066 = vmatpush1.msra.mxu0 %v4933
      %5067 = vmatprep.subr.mxu0 0.0
      %5068 = vmatpush1.msra.mxu0 %v4934
      %5069 = vmatprep.subr.mxu0 0.0
      %5070 = vmatpush1.msra.mxu0 %v4935
      %5071 = vmatprep.subr.mxu0 0.0
      %5072 = vmatpush1.msra.mxu0 %v4936
      %5073 = vmatprep.subr.mxu0 0.0
      %5074 = vmatpush1.msra.mxu0 %v4937
      %5075 = vmatprep.subr.mxu0 0.0
      %5076 = vmatpush1.msra.mxu0 %v4938
      %5077 = vmatprep.subr.mxu0 0.0
      %5078 = vmatpush1.msra.mxu0 %v4939
      %5079 = vmatprep.subr.mxu0 0.0
      %5080 = vmatpush1.msra.mxu0 %v4940
      %5081 = vmatprep.subr.mxu0 0.0
      %5082 = vmatpush1.msra.mxu0 %v4941
      %5083 = vmatprep.subr.mxu0 0.0
      %5084 = vmatpush1.msra.mxu0 %v4942
      %5085 = vmatprep.subr.mxu0 0.0
      %5086 = vmatpush1.msra.mxu0 %v4943
      %5087 = vmatprep.mubr.f32.mxu0 %v4853
      %5088 = vmatmul.mubr.f32.gmra.mrb[0].mxu0 %v4852
      %v5089 = vpop.f32.mrb[0].mxu0
      %v5090 = vadd.f32 %v4962, %v5089
      %v5091 = vpop.f32.mrb[0].mxu0
      %5092 = vmatprep.mubr.f32.mxu0 %v4857
      %5093 = vmatmul.mubr.f32.gmra.mrb[0].mxu0 %v4856
      %v5094 = vpop.f32.mrb[0].mxu0
      %v5095 = vadd.f32 %v4963, %v5094
      %v5096 = vpop.f32.mrb[0].mxu0
      %5097 = vmatprep.mubr.f32.mxu0 %v4861
      %5098 = vmatmul.mubr.f32.gmra.mrb[0].mxu0 %v4860
      %v5099 = vpop.f32.mrb[0].mxu0
      %v5100 = vadd.f32 %v4964, %v5099
      %v5101 = vpop.f32.mrb[0].mxu0
      %5102 = vmatprep.mubr.f32.mxu0 %v4865
      %5103 = vmatmul.mubr.f32.gmra.mrb[0].mxu0 %v4864
      %v5104 = vpop.f32.mrb[0].mxu0
      %v5105 = vadd.f32 %v4965, %v5104
      %v5106 = vpop.f32.mrb[0].mxu0
      %5107 = vmatprep.mubr.f32.mxu0 %v4869
      %5108 = vmatmul.mubr.f32.gmra.mrb[0].mxu0 %v4868
      %v5109 = vpop.f32.mrb[0].mxu0
      %v5110 = vadd.f32 %v4966, %v5109
      %v5111 = vpop.f32.mrb[0].mxu0
      %5112 = vmatprep.mubr.f32.mxu0 %v4873
      %5113 = vmatmul.mubr.f32.gmra.mrb[0].mxu0 %v4872
      %v5114 = vpop.f32.mrb[0].mxu0
      %v5115 = vadd.f32 %v4967, %v5114
      %v5116 = vpop.f32.mrb[0].mxu0
      %5117 = vmatprep.mubr.f32.mxu0 %v4877
      %5118 = vmatmul.mubr.f32.gmra.mrb[0].mxu0 %v4876
      %v5119 = vpop.f32.mrb[0].mxu0
      %v5120 = vadd.f32 %v4968, %v5119
      %v5121 = vpop.f32.mrb[0].mxu0
      %5122 = vmatprep.mubr.f32.mxu0 %v4881
      %5123 = vmatmul.mubr.f32.gmra.mrb[0].mxu0 %v4880
      %v5124 = vpop.f32.mrb[0].mxu0
      %v5125 = vadd.f32 %v4969, %v5124
      %v5126 = vpop.f32.mrb[0].mxu0
      %5127 = vmatprep.mubr.f32.mxu0 %v4885
      %5128 = vmatmul.mubr.f32.gmra.mrb[0].mxu0 %v4884
      %v5129 = vpop.f32.mrb[0].mxu0
      %v5130 = vadd.f32 %v4970, %v5129
      %v5131 = vpop.f32.mrb[0].mxu0
      %5132 = vmatprep.mubr.f32.mxu0 %v4889
      %5133 = vmatmul.mubr.f32.gmra.mrb[0].mxu0 %v4888
      %v5134 = vpop.f32.mrb[0].mxu0
      %v5135 = vadd.f32 %v4971, %v5134
      %v5136 = vpop.f32.mrb[0].mxu0
      %5137 = vmatprep.mubr.f32.mxu0 %v4893
      %5138 = vmatmul.mubr.f32.gmra.mrb[0].mxu0 %v4892
      %v5139 = vpop.f32.mrb[0].mxu0
      %v5140 = vadd.f32 %v4972, %v5139
      %v5141 = vpop.f32.mrb[0].mxu0
      %5142 = vmatprep.mubr.f32.mxu0 %v4897
      %5143 = vmatmul.mubr.f32.gmra.mrb[0].mxu0 %v4896
      %v5144 = vpop.f32.mrb[0].mxu0
      %v5145 = vadd.f32 %v4973, %v5144
      %v5146 = vpop.f32.mrb[0].mxu0
      %5147 = vmatprep.mubr.f32.mxu0 %v4901
      %5148 = vmatmul.mubr.f32.gmra.mrb[0].mxu0 %v4900
      %v5149 = vpop.f32.mrb[0].mxu0
      %v5150 = vadd.f32 %v4974, %v5149
      %v5151 = vpop.f32.mrb[0].mxu0
      %5152 = vmatprep.mubr.f32.mxu0 %v4905
      %5153 = vmatmul.mubr.f32.gmra.mrb[0].mxu0 %v4904
      %v5154 = vpop.f32.mrb[0].mxu0
      %v5155 = vadd.f32 %v4975, %v5154
      %v5156 = vpop.f32.mrb[0].mxu0
      %5157 = vmatprep.mubr.f32.mxu0 %v4909
      %5158 = vmatmul.mubr.f32.gmra.mrb[0].mxu0 %v4908
      %v5159 = vpop.f32.mrb[0].mxu0
      %v5160 = vadd.f32 %v4976, %v5159
      %v5161 = vpop.f32.mrb[0].mxu0
      %5162 = vdwg.mxu0
      %5163 = vmatprep.subr.mxu0 0.0
      %5164 = vmatpush1.msra.mxu0 %v4944
      %5165 = vmatprep.subr.mxu0 0.0
      %5166 = vmatpush1.msra.mxu0 %v4945
      %5167 = vmatprep.subr.mxu0 0.0
      %5168 = vmatpush1.msra.mxu0 %v4946
      %5169 = vmatprep.subr.mxu0 0.0
      %5170 = vmatpush1.msra.mxu0 %v4947
      %5171 = vmatprep.subr.mxu0 0.0
      %5172 = vmatpush1.msra.mxu0 %v4948
      %5173 = vmatprep.subr.mxu0 0.0
      %5174 = vmatpush1.msra.mxu0 %v4949
      %5175 = vmatprep.subr.mxu0 0.0
      %5176 = vmatpush1.msra.mxu0 %v4950
      %5177 = vmatprep.subr.mxu0 0.0
      %5178 = vmatpush1.msra.mxu0 %v4951
      %5179 = vmatprep.subr.mxu0 0.0
      %5180 = vmatpush1.msra.mxu0 %v4952
      %5181 = vmatprep.subr.mxu0 0.0
      %5182 = vmatpush1.msra.mxu0 %v4953
      %5183 = vmatprep.subr.mxu0 0.0
      %5184 = vmatpush1.msra.mxu0 %v4954
      %5185 = vmatprep.subr.mxu0 0.0
      %5186 = vmatpush1.msra.mxu0 %v4955
      %5187 = vmatprep.subr.mxu0 0.0
      %5188 = vmatpush1.msra.mxu0 %v4956
      %5189 = vmatprep.subr.mxu0 0.0
      %5190 = vmatpush1.msra.mxu0 %v4957
      %5191 = vmatprep.subr.mxu0 0.0
      %5192 = vmatpush1.msra.mxu0 %v4958
      %5193 = vmatprep.subr.mxu0 0.0
      %5194 = vmatpush1.msra.mxu0 %v4959
      %5195 = vmatprep.subr.mxu0 0.0
      %5196 = vmatpush1.msra.mxu0 %v4960
      %5197 = vmatprep.subr.mxu0 0.0
      %5198 = vmatpush1.msra.mxu0 %v4961
      %5199 = vmatprep.subr.mxu0 0.0
      %5200 = vmatpush1.msra.mxu0 0.0
      %5201 = vmatprep.subr.mxu0 0.0
      %5202 = vmatpush1.msra.mxu0 0.0
      %5203 = vmatprep.subr.mxu0 0.0
      %5204 = vmatpush1.msra.mxu0 0.0
      %5205 = vmatprep.subr.mxu0 0.0
      %5206 = vmatpush1.msra.mxu0 0.0
      %5207 = vmatprep.subr.mxu0 0.0
      %5208 = vmatpush1.msra.mxu0 0.0
      %5209 = vmatprep.subr.mxu0 0.0
      %5210 = vmatpush1.msra.mxu0 0.0
      %5211 = vmatprep.subr.mxu0 0.0
      %5212 = vmatpush1.msra.mxu0 0.0
      %5213 = vmatprep.subr.mxu0 0.0
      %5214 = vmatpush1.msra.mxu0 0.0
      %5215 = vmatprep.subr.mxu0 0.0
      %5216 = vmatpush1.msra.mxu0 0.0
      %5217 = vmatprep.subr.mxu0 0.0
      %5218 = vmatpush1.msra.mxu0 0.0
      %5219 = vmatprep.subr.mxu0 0.0
      %5220 = vmatpush1.msra.mxu0 0.0
      %5221 = vmatprep.subr.mxu0 0.0
      %5222 = vmatpush1.msra.mxu0 0.0
      %5223 = vmatprep.subr.mxu0 0.0
      %5224 = vmatpush1.msra.mxu0 0.0
      %5225 = vmatprep.subr.mxu0 0.0
      %5226 = vmatpush1.msra.mxu0 0.0
      %5227 = vmatprep.mubr.f32.mxu0 %v4979
      %5228 = vmatmul.mubr.f32.gmra.mrb[0].mxu0 %v4854
      %v5229 = vpop.f32.mrb[0].mxu0
      %v5230 = vadd.f32 %v5090, %v5229
      %v5231 = vpop.f32.mrb[0].mxu0
      %5232 = vmatprep.mubr.f32.mxu0 %v4982
      %5233 = vmatmul.mubr.f32.gmra.mrb[0].mxu0 %v4858
      %v5234 = vpop.f32.mrb[0].mxu0
      %v5235 = vadd.f32 %v5095, %v5234
      %v5236 = vpop.f32.mrb[0].mxu0
      %5237 = vmatprep.mubr.f32.mxu0 %v4985
      %5238 = vmatmul.mubr.f32.gmra.mrb[0].mxu0 %v4862
      %v5239 = vpop.f32.mrb[0].mxu0
      %v5240 = vadd.f32 %v5100, %v5239
      %v5241 = vpop.f32.mrb[0].mxu0
      %5242 = vmatprep.mubr.f32.mxu0 %v4988
      %5243 = vmatmul.mubr.f32.gmra.mrb[0].mxu0 %v4866
      %v5244 = vpop.f32.mrb[0].mxu0
      %v5245 = vadd.f32 %v5105, %v5244
      %v5246 = vpop.f32.mrb[0].mxu0
      %5247 = vmatprep.mubr.f32.mxu0 %v4991
      %5248 = vmatmul.mubr.f32.gmra.mrb[0].mxu0 %v4870
      %v5249 = vpop.f32.mrb[0].mxu0
      %v5250 = vadd.f32 %v5110, %v5249
      %v5251 = vpop.f32.mrb[0].mxu0
      %5252 = vmatprep.mubr.f32.mxu0 %v4994
      %5253 = vmatmul.mubr.f32.gmra.mrb[0].mxu0 %v4874
      %v5254 = vpop.f32.mrb[0].mxu0
      %v5255 = vadd.f32 %v5115, %v5254
      %v5256 = vpop.f32.mrb[0].mxu0
      %5257 = vmatprep.mubr.f32.mxu0 %v4997
      %5258 = vmatmul.mubr.f32.gmra.mrb[0].mxu0 %v4878
      %v5259 = vpop.f32.mrb[0].mxu0
      %v5260 = vadd.f32 %v5120, %v5259
      %v5261 = vpop.f32.mrb[0].mxu0
      %5262 = vmatprep.mubr.f32.mxu0 %v5000
      %5263 = vmatmul.mubr.f32.gmra.mrb[0].mxu0 %v4882
      %v5264 = vpop.f32.mrb[0].mxu0
      %v5265 = vadd.f32 %v5125, %v5264
      %v5266 = vpop.f32.mrb[0].mxu0
      %5267 = vmatprep.mubr.f32.mxu0 %v5003
      %5268 = vmatmul.mubr.f32.gmra.mrb[0].mxu0 %v4886
      %v5269 = vpop.f32.mrb[0].mxu0
      %v5270 = vadd.f32 %v5130, %v5269
      %v5271 = vpop.f32.mrb[0].mxu0
      %5272 = vmatprep.mubr.f32.mxu0 %v5006
      %5273 = vmatmul.mubr.f32.gmra.mrb[0].mxu0 %v4890
      %v5274 = vpop.f32.mrb[0].mxu0
      %v5275 = vadd.f32 %v5135, %v5274
      %v5276 = vpop.f32.mrb[0].mxu0
      %5277 = vmatprep.mubr.f32.mxu0 %v5009
      %5278 = vmatmul.mubr.f32.gmra.mrb[0].mxu0 %v4894
      %v5279 = vpop.f32.mrb[0].mxu0
      %v5280 = vadd.f32 %v5140, %v5279
      %v5281 = vpop.f32.mrb[0].mxu0
      %5282 = vmatprep.mubr.f32.mxu0 %v5012
      %5283 = vmatmul.mubr.f32.gmra.mrb[0].mxu0 %v4898
      %v5284 = vpop.f32.mrb[0].mxu0
      %v5285 = vadd.f32 %v5145, %v5284
      %v5286 = vpop.f32.mrb[0].mxu0
      %5287 = vmatprep.mubr.f32.mxu0 %v5015
      %5288 = vmatmul.mubr.f32.gmra.mrb[0].mxu0 %v4902
      %v5289 = vpop.f32.mrb[0].mxu0
      %v5290 = vadd.f32 %v5150, %v5289
      %v5291 = vpop.f32.mrb[0].mxu0
      %5292 = vmatprep.mubr.f32.mxu0 %v5018
      %5293 = vmatmul.mubr.f32.gmra.mrb[0].mxu0 %v4906
      %v5294 = vpop.f32.mrb[0].mxu0
      %v5295 = vadd.f32 %v5155, %v5294
      %v5296 = vpop.f32.mrb[0].mxu0
      %5297 = vmatprep.mubr.f32.mxu0 %v5021
      %5298 = vmatmul.mubr.f32.gmra.mrb[0].mxu0 %v4910
      %v5299 = vpop.f32.mrb[0].mxu0
      %v5300 = vadd.f32 %v5160, %v5299
      %v5301 = vpop.f32.mrb[0].mxu0
      %5302 = vdwg.mxu0
      %v5303 = vmax.f32 %v5230, 0.0
      %v5304 = vmax.f32 %v5235, 0.0
      %v5305 = vmax.f32 %v5240, 0.0
      %v5306 = vmax.f32 %v5245, 0.0
      %v5307 = vmax.f32 %v5250, 0.0
      %v5308 = vmax.f32 %v5255, 0.0
      %v5309 = vmax.f32 %v5260, 0.0
      %v5310 = vmax.f32 %v5265, 0.0
      %v5311 = vmax.f32 %v5270, 0.0
      %v5312 = vmax.f32 %v5275, 0.0
      %v5313 = vmax.f32 %v5280, 0.0
      %v5314 = vmax.f32 %v5285, 0.0
      %v5315 = vmax.f32 %v5290, 0.0
      %v5316 = vmax.f32 %v5295, 0.0
      %v5317 = vmax.f32 %v5300, 0.0
      %v5318 = vld [vmem:[%s3] sm:$0xff]
      %v5319 = vld [vmem:[%s3 + $0x8] sm:$0xff]
      %v5320 = vld [vmem:[%s3 + $0x10] sm:$0xff]
      %v5321 = vld [vmem:[%s3 + $0x18] sm:$0xff]
      %v5322 = vld [vmem:[%s3 + $0x20] sm:$0xff]
      %v5323 = vld [vmem:[%s3 + $0x28] sm:$0xff]
      %v5324 = vld [vmem:[%s3 + $0x30] sm:$0xff]
      %v5325 = vld [vmem:[%s3 + $0x38] sm:$0xff]
      %v5326 = vld [vmem:[%s3 + $0x40] sm:$0xff]
      %v5327 = vld [vmem:[%s3 + $0x48] sm:$0xff]
      %v5328 = vld [vmem:[%s3 + $0x50] sm:$0xf]
      %v5329 = vld [vmem:[%s4 + $0x90] sm:$0xff]
      %v5330 = vld [vmem:[%s4 + $0x98] sm:$0xff]
      %v5331 = vld [vmem:[%s4 + $0xa0] sm:$0xff]
      %v5332 = vld [vmem:[%s4 + $0xa8] sm:$0xff]
      %v5333 = vld [vmem:[%s4 + $0xb0] sm:$0xff]
      %v5334 = vld [vmem:[%s4 + $0xb8] sm:$0xff]
      %v5335 = vld [vmem:[%s4 + $0xc0] sm:$0xff]
      %v5336 = vld [vmem:[%s4 + $0xc8] sm:$0xff]
      %v5337 = vld [vmem:[%s4 + $0xd0] sm:$0xff]
      %v5338 = vld [vmem:[%s4 + $0xd8] sm:$0xff]
      %v5339 = vld [vmem:[%s4 + $0xe0] sm:$0xf]
      %v5341 = vsel %vm2592, %v5318, 0
      %v5344 = vsel %vm2592, %v5319, 0
      %v5347 = vsel %vm2592, %v5320, 0
      %v5350 = vsel %vm2592, %v5321, 0
      %v5353 = vsel %vm2592, %v5322, 0
      %v5356 = vsel %vm2592, %v5323, 0
      %v5359 = vsel %vm2592, %v5324, 0
      %v5362 = vsel %vm2592, %v5325, 0
      %v5365 = vsel %vm2592, %v5326, 0
      %v5368 = vsel %vm2592, %v5327, 0
      %v5371 = vsel %vm2592, %v5328, 0
      %5373 = vmatprep.subr.mxu0 0.0
      %5374 = vmatpush1.msra.mxu0 %v5303
      %5375 = vmatprep.subr.mxu0 0.0
      %5376 = vmatpush1.msra.mxu0 %v5304
      %5377 = vmatprep.subr.mxu0 0.0
      %5378 = vmatpush1.msra.mxu0 %v5305
      %5379 = vmatprep.subr.mxu0 0.0
      %5380 = vmatpush1.msra.mxu0 %v5306
      %5381 = vmatprep.subr.mxu0 0.0
      %5382 = vmatpush1.msra.mxu0 %v5307
      %5383 = vmatprep.subr.mxu0 0.0
      %5384 = vmatpush1.msra.mxu0 %v5308
      %5385 = vmatprep.subr.mxu0 0.0
      %5386 = vmatpush1.msra.mxu0 %v5309
      %5387 = vmatprep.subr.mxu0 0.0
      %5388 = vmatpush1.msra.mxu0 %v5310
      %5389 = vmatprep.subr.mxu0 0.0
      %5390 = vmatpush1.msra.mxu0 %v5311
      %5391 = vmatprep.subr.mxu0 0.0
      %5392 = vmatpush1.msra.mxu0 %v5312
      %5393 = vmatprep.subr.mxu0 0.0
      %5394 = vmatpush1.msra.mxu0 %v5313
      %5395 = vmatprep.subr.mxu0 0.0
      %5396 = vmatpush1.msra.mxu0 %v5314
      %5397 = vmatprep.subr.mxu0 0.0
      %5398 = vmatpush1.msra.mxu0 %v5315
      %5399 = vmatprep.subr.mxu0 0.0
      %5400 = vmatpush1.msra.mxu0 %v5316
      %5401 = vmatprep.subr.mxu0 0.0
      %5402 = vmatpush1.msra.mxu0 %v5317
      %5403 = vmatprep.subr.mxu0 0.0
      %5404 = vmatpush1.msra.mxu0 0.0
      %5405 = vmatprep.subr.mxu0 0.0
      %5406 = vmatpush1.msra.mxu0 0.0
      %5407 = vmatprep.subr.mxu0 0.0
      %5408 = vmatpush1.msra.mxu0 0.0
      %5409 = vmatprep.subr.mxu0 0.0
      %5410 = vmatpush1.msra.mxu0 0.0
      %5411 = vmatprep.subr.mxu0 0.0
      %5412 = vmatpush1.msra.mxu0 0.0
      %5413 = vmatprep.subr.mxu0 0.0
      %5414 = vmatpush1.msra.mxu0 0.0
      %5415 = vmatprep.subr.mxu0 0.0
      %5416 = vmatpush1.msra.mxu0 0.0
      %5417 = vmatprep.subr.mxu0 0.0
      %5418 = vmatpush1.msra.mxu0 0.0
      %5419 = vmatprep.subr.mxu0 0.0
      %5420 = vmatpush1.msra.mxu0 0.0
      %5421 = vmatprep.subr.mxu0 0.0
      %5422 = vmatpush1.msra.mxu0 0.0
      %5423 = vmatprep.subr.mxu0 0.0
      %5424 = vmatpush1.msra.mxu0 0.0
      %5425 = vmatprep.subr.mxu0 0.0
      %5426 = vmatpush1.msra.mxu0 0.0
      %5427 = vmatprep.subr.mxu0 0.0
      %5428 = vmatpush1.msra.mxu0 0.0
      %5429 = vmatprep.subr.mxu0 0.0
      %5430 = vmatpush1.msra.mxu0 0.0
      %5431 = vmatprep.subr.mxu0 0.0
      %5432 = vmatpush1.msra.mxu0 0.0
      %5433 = vmatprep.subr.mxu0 0.0
      %5434 = vmatpush1.msra.mxu0 0.0
      %5435 = vmatprep.subr.mxu0 0.0
      %5436 = vmatpush1.msra.mxu0 0.0
      %5437 = vmatprep.mubr.f32.mxu0 0.0
      %5438 = vmatmul.mubr.f32.gmra.mrb[0].mxu0 %v5341
      %v5439 = vpop.f32.mrb[0].mxu0
      %v5440 = vadd.f32 %v5329, %v5439
      %v5441 = vpop.f32.mrb[0].mxu0
      %5442 = vmatprep.mubr.f32.mxu0 0.0
      %5443 = vmatmul.mubr.f32.gmra.mrb[0].mxu0 %v5344
      %v5444 = vpop.f32.mrb[0].mxu0
      %v5445 = vadd.f32 %v5330, %v5444
      %v5446 = vpop.f32.mrb[0].mxu0
      %5447 = vmatprep.mubr.f32.mxu0 0.0
      %5448 = vmatmul.mubr.f32.gmra.mrb[0].mxu0 %v5347
      %v5449 = vpop.f32.mrb[0].mxu0
      %v5450 = vadd.f32 %v5331, %v5449
      %v5451 = vpop.f32.mrb[0].mxu0
      %5452 = vmatprep.mubr.f32.mxu0 0.0
      %5453 = vmatmul.mubr.f32.gmra.mrb[0].mxu0 %v5350
      %v5454 = vpop.f32.mrb[0].mxu0
      %v5455 = vadd.f32 %v5332, %v5454
      %v5456 = vpop.f32.mrb[0].mxu0
      %5457 = vmatprep.mubr.f32.mxu0 0.0
      %5458 = vmatmul.mubr.f32.gmra.mrb[0].mxu0 %v5353
      %v5459 = vpop.f32.mrb[0].mxu0
      %v5460 = vadd.f32 %v5333, %v5459
      %v5461 = vpop.f32.mrb[0].mxu0
      %5462 = vmatprep.mubr.f32.mxu0 0.0
      %5463 = vmatmul.mubr.f32.gmra.mrb[0].mxu0 %v5356
      %v5464 = vpop.f32.mrb[0].mxu0
      %v5465 = vadd.f32 %v5334, %v5464
      %v5466 = vpop.f32.mrb[0].mxu0
      %5467 = vmatprep.mubr.f32.mxu0 0.0
      %5468 = vmatmul.mubr.f32.gmra.mrb[0].mxu0 %v5359
      %v5469 = vpop.f32.mrb[0].mxu0
      %v5470 = vadd.f32 %v5335, %v5469
      %v5471 = vpop.f32.mrb[0].mxu0
      %5472 = vmatprep.mubr.f32.mxu0 0.0
      %5473 = vmatmul.mubr.f32.gmra.mrb[0].mxu0 %v5362
      %v5474 = vpop.f32.mrb[0].mxu0
      %v5475 = vadd.f32 %v5336, %v5474
      %v5476 = vpop.f32.mrb[0].mxu0
      %5477 = vmatprep.mubr.f32.mxu0 0.0
      %5478 = vmatmul.mubr.f32.gmra.mrb[0].mxu0 %v5365
      %v5479 = vpop.f32.mrb[0].mxu0
      %v5480 = vadd.f32 %v5337, %v5479
      %v5481 = vpop.f32.mrb[0].mxu0
      %5482 = vmatprep.mubr.f32.mxu0 0.0
      %5483 = vmatmul.mubr.f32.gmra.mrb[0].mxu0 %v5368
      %v5484 = vpop.f32.mrb[0].mxu0
      %v5485 = vadd.f32 %v5338, %v5484
      %v5486 = vpop.f32.mrb[0].mxu0
      %5487 = vmatprep.mubr.f32.mxu0 0.0
      %5488 = vmatmul.mubr.f32.gmra.mrb[0].mxu0 %v5371
      %v5489 = vpop.f32.mrb[0].mxu0
      %v5490 = vadd.f32 %v5339, %v5489
      %v5491 = vpop.f32.mrb[0].mxu0
      %5492 = vdwg.mxu0
      %v5493 = vmax.f32 %v5440, 0.0
      %v5494 = vmax.f32 %v5445, 0.0
      %v5495 = vmax.f32 %v5450, 0.0
      %v5496 = vmax.f32 %v5455, 0.0
      %v5497 = vmax.f32 %v5460, 0.0
      %v5498 = vmax.f32 %v5465, 0.0
      %v5499 = vmax.f32 %v5470, 0.0
      %v5500 = vmax.f32 %v5475, 0.0
      %v5501 = vmax.f32 %v5480, 0.0
      %v5502 = vmax.f32 %v5485, 0.0
      %v5503 = vmax.f32 %v5490, 0.0
      %v5504 = vld [vmem:[%s3 + $0x58] sm:$0xff]
      %v5505 = vld [vmem:[%s3 + $0x60] sm:$0x3]
      %v5506 = vld [vmem:[%s4 + $0xe8] sm:$0xff]
      %v5507 = vld [vmem:[%s4 + $0xf0] sm:$0x3]
      %vm5508 = vcmask 687104
      %v5510 = vsel %vm5508, %v5504, 0
      %v5513 = vsel %vm5508, %v5505, 0
      %vm5515 = vcmask 1043456
      %v5517 = vsel %vm5515, %v5503, 0
      %5519 = vmatprep.subr.mxu0 0.0
      %5520 = vmatpush1.msra.mxu0 %v5493
      %5521 = vmatprep.subr.mxu0 0.0
      %5522 = vmatpush1.msra.mxu0 %v5494
      %5523 = vmatprep.subr.mxu0 0.0
      %5524 = vmatpush1.msra.mxu0 %v5495
      %5525 = vmatprep.subr.mxu0 0.0
      %5526 = vmatpush1.msra.mxu0 %v5496
      %5527 = vmatprep.subr.mxu0 0.0
      %5528 = vmatpush1.msra.mxu0 %v5497
      %5529 = vmatprep.subr.mxu0 0.0
      %5530 = vmatpush1.msra.mxu0 %v5498
      %5531 = vmatprep.subr.mxu0 0.0
      %5532 = vmatpush1.msra.mxu0 %v5499
      %5533 = vmatprep.subr.mxu0 0.0
      %5534 = vmatpush1.msra.mxu0 %v5500
      %5535 = vmatprep.subr.mxu0 0.0
      %5536 = vmatpush1.msra.mxu0 %v5501
      %5537 = vmatprep.subr.mxu0 0.0
      %5538 = vmatpush1.msra.mxu0 %v5502
      %5539 = vmatprep.subr.mxu0 0.0
      %5540 = vmatpush1.msra.mxu0 %v5517
      %5541 = vmatprep.subr.mxu0 0.0
      %5542 = vmatpush1.msra.mxu0 0.0
      %5543 = vmatprep.subr.mxu0 0.0
      %5544 = vmatpush1.msra.mxu0 0.0
      %5545 = vmatprep.subr.mxu0 0.0
      %5546 = vmatpush1.msra.mxu0 0.0
      %5547 = vmatprep.subr.mxu0 0.0
      %5548 = vmatpush1.msra.mxu0 0.0
      %5549 = vmatprep.subr.mxu0 0.0
      %5550 = vmatpush1.msra.mxu0 0.0
      %5551 = vmatprep.subr.mxu0 0.0
      %5552 = vmatpush1.msra.mxu0 0.0
      %5553 = vmatprep.subr.mxu0 0.0
      %5554 = vmatpush1.msra.mxu0 0.0
      %5555 = vmatprep.subr.mxu0 0.0
      %5556 = vmatpush1.msra.mxu0 0.0
      %5557 = vmatprep.subr.mxu0 0.0
      %5558 = vmatpush1.msra.mxu0 0.0
      %5559 = vmatprep.subr.mxu0 0.0
      %5560 = vmatpush1.msra.mxu0 0.0
      %5561 = vmatprep.subr.mxu0 0.0
      %5562 = vmatpush1.msra.mxu0 0.0
      %5563 = vmatprep.subr.mxu0 0.0
      %5564 = vmatpush1.msra.mxu0 0.0
      %5565 = vmatprep.subr.mxu0 0.0
      %5566 = vmatpush1.msra.mxu0 0.0
      %5567 = vmatprep.subr.mxu0 0.0
      %5568 = vmatpush1.msra.mxu0 0.0
      %5569 = vmatprep.subr.mxu0 0.0
      %5570 = vmatpush1.msra.mxu0 0.0
      %5571 = vmatprep.subr.mxu0 0.0
      %5572 = vmatpush1.msra.mxu0 0.0
      %5573 = vmatprep.subr.mxu0 0.0
      %5574 = vmatpush1.msra.mxu0 0.0
      %5575 = vmatprep.subr.mxu0 0.0
      %5576 = vmatpush1.msra.mxu0 0.0
      %5577 = vmatprep.subr.mxu0 0.0
      %5578 = vmatpush1.msra.mxu0 0.0
      %5579 = vmatprep.subr.mxu0 0.0
      %5580 = vmatpush1.msra.mxu0 0.0
      %5581 = vmatprep.subr.mxu0 0.0
      %5582 = vmatpush1.msra.mxu0 0.0
      %5583 = vmatprep.mubr.f32.mxu0 0.0
      %5584 = vmatmul.mubr.f32.gmra.mrb[0].mxu0 %v5510
      %v5585 = vpop.f32.mrb[0].mxu0
      %v5586 = vadd.f32 %v5506, %v5585
      %v5587 = vpop.f32.mrb[0].mxu0
      %5588 = vmatprep.mubr.f32.mxu0 0.0
      %5589 = vmatmul.mubr.f32.gmra.mrb[0].mxu0 %v5513
      %v5590 = vpop.f32.mrb[0].mxu0
      %v5591 = vadd.f32 %v5507, %v5590
      %v5592 = vpop.f32.mrb[0].mxu0
      %5593 = vdwg.mxu0
      %5594 = vst.msk [vmem:[%s226] sm:$0xff] %vm4593, %v5586
      %vm5595 = vcmask 1024
      %5596 = vst.msk [vmem:[%s226 + $0x8] sm:$0x3] %vm5595, %v5591
      %p5597 = scmp.lt.s32.totalorder %s16, 1
      %s5598 = scalar_select %p5597, %s16, 1
      %s5599 = smul.addr %s5598, 2
      %s5600 = smul.addr %s5599, 8
      %s5601 = scalar_lea.vmem %s5, %s5600
      // Predicated region
      $region41: #{net_forward.1} parent=39 // pred_check
        %p5602 = pneg %p144
      $region42: #{net_forward.1} parent=39 // pred_check_branch
        %5604 = sbr.rel (%p5602) target = $region44
      $region43: #{net_forward.1} parent=39 // pred_region
        _
      $region44: #{net_forward.1} parent=39 // pred_fallthru
        _
    $region40: #{net_forward.1} parent=5 // pred_fallthru
      _
    %p5605 = scmp.le.s32.totalorder 2, %s11
    // Predicated region
    $region45: #{net_forward.1} parent=5 // pred_check
      %p5606 = pneg %p5605
    $region46: #{net_forward.1} parent=5 // pred_check_branch
      %5608 = sbr.rel (%p5606) target = $region48
    $region47: #{net_forward.1} parent=5 // pred_region
      %s5609 = ssub.s32 %s11, 2
      // Predicated region
      $region49: #{net_forward.1} parent=47 // pred_check
        %p5610 = pneg %p150
      $region50: #{net_forward.1} parent=47 // pred_check_branch
        %5612 = sbr.rel (%p5610) target = $region52
      $region51: #{net_forward.1} parent=47 // pred_region
        %p5613 = scmp.lt.s32.totalorder %s17, 1
        %s5614 = scalar_select %p5613, %s17, 1
        %s5615 = smul.addr %s5614, 2
        %s5616 = smul.addr %s5615, 8
        %s5617 = scalar_lea.vmem %s5, %s5616
      $region52: #{net_forward.1} parent=47 // pred_fallthru
        _
    $region48: #{net_forward.1} parent=5 // pred_fallthru
      _
  $region6: #{net_forward.1} parent=0 // loop_footer
    %s15 = sadd.s32 1, %s11
  $region7: #{net_forward.1} parent=0 // loop_footer_branch
    %10 = sbr.rel target = $region3
  $region8: #{net_forward.1} parent=0 // loop_exit
    _

</llo_original>
